<compile_context>
chip_gen: v5e
topology: v5e:2x2
jax: 0.10.0
libtpu: 0.0.40
codegen_flags: <defaults>
</compile_context>

<pallas_src>
import jax
import jax.numpy as jnp
from jax import lax
from jax.experimental import pallas as pl
from jax.experimental.pallas import tpu as pltpu

_LANES = 128  # every feature axis is padded to one full lane group


def _sigmoid(x):
    # divide stays on the EUP (approx reciprocal) instead of a VALU divide
    return pl.reciprocal(1.0 + jnp.exp(-x), approx=True)


def lenet_kernel(cols1_ref, w1_ref, b1_ref, w2c_ref, b2_ref,
                 fc1c_ref, fc1b_ref, fc2w_ref, fc2b_ref, fc3w_ref, fc3b_ref,
                 out_ref, a1_ref, w2x_ref, fc1x_ref):
    """Fused LeNet forward for one batch block of NB rows.

    cols1_ref : (4, NB, 12, 16, 128) bf16  conv1 im2col patches grouped by 2x2
                pool position; pooled width padded 12->16, K=25 padded to 128.
    w1_ref    : (128, 128) bf16  conv1 weight [k, co]          (25, 6 real)
    w2c_ref   : (5, 40, 128) bf16 compact conv2 weight [dj, di*8+ci, co]
    fc1c_ref  : (256, 128) bf16  compact fc1 weight [s*16+c, o], s = h*4+w
    fc2w_ref  : (128, 128) bf16  fc2 weight [i, o]             (120, 84 real)
    fc3w_ref  : (128, 128) bf16  fc3 weight [i, o]             (84, 10 real)
    b*_ref    : (1, 128) f32     biases, zero padded
    out_ref   : (NB, 128) f32    logits (first 10 lanes real)
    a1_ref    : (NB, 12, 16, 128) f32  VMEM scratch: pooled conv1 activations
    w2x_ref   : (5, 640, 128) bf16     VMEM scratch: zero-expanded conv2 weight
    fc1x_ref  : (2048, 128) bf16       VMEM scratch: zero-expanded fc1 weight
    """
    f32 = jnp.float32
    bf16 = jnp.bfloat16
    NB, H1, W1p, C = a1_ref.shape            # (NB, 12, 16, 128)
    M1 = NB * H1 * W1p

    # ---- one-time expansion of compact weights into zero-padded VMEM --------
    # Scratch persists across grid steps; zero rows in the expanded forms are
    # what keeps the sigmoid(0)=0.5 padded activation lanes out of the results.
    @pl.when(pl.program_id(0) == 0)
    def _expand():
        w2x_ref[...] = jnp.zeros_like(w2x_ref)
        fc1x_ref[...] = jnp.zeros_like(fc1x_ref)
        for di in range(5):
            w2x_ref[:, di * C:di * C + 8, :] = w2c_ref[:, di * 8:di * 8 + 8, :]
        for s in range(16):
            fc1x_ref[s * C:s * C + 16, :] = fc1c_ref[s * 16:s * 16 + 16, :]

    # ---- conv1 (5x5) -> maxpool(2,2) -> bias -> sigmoid ----------------------
    # pool max folded incrementally over the 4 pool positions (sigmoid is
    # monotone, so max commutes with bias+sigmoid); no 4x stacked intermediate.
    z1 = None
    for p in range(4):
        zp = jnp.dot(cols1_ref[p].reshape(M1, C), w1_ref[...],
                     preferred_element_type=f32)                    # (M1, 128)
        z1 = zp if z1 is None else jnp.maximum(z1, zp)
    # a1 padded lanes (c>=6) hold sigmoid(0)=0.5; padded pooled-width columns
    # 12..15 hold sigmoid(b1).  Both are only safe because conv2's reads stop
    # at dj+8 <= 12 and the expanded conv2 weight rows for ci>=6 are zero.
    a1_ref[...] = _sigmoid(z1 + b1_ref[...]).reshape(NB, H1, W1p, C)

    # ---- conv2 (5x5): hoisted width shift + grouped K=640 MXU contractions --
    z2 = jnp.zeros((NB * 64, C), f32)
    for dj in range(5):
        a1s = a1_ref[:, :, dj:dj + 8, :].astype(bf16)     # 1 shifted read / dj
        big = jnp.concatenate([a1s[:, di:di + 8] for di in range(5)],
                              axis=-1)                    # (NB, 8, 8, 640)
        z2 = z2 + jnp.dot(big.reshape(NB * 64, 5 * C), w2x_ref[dj],
                          preferred_element_type=f32)     # f32 accumulate

    # ---- maxpool(2,2) -> bias -> sigmoid, then ONE K=2048 fc1 dot ------------
    z2v = z2.reshape(NB, 4, 2, 8, C)                      # free leading split
    th = jnp.maximum(z2v[:, :, 0], z2v[:, :, 1])          # h-pair max, slab ops
    parts = []
    for h in range(4):
        for w in range(4):                                # order s = h*4 + w
            m = jnp.maximum(th[:, h, 2 * w, :], th[:, h, 2 * w + 1, :])
            parts.append(_sigmoid(m + b2_ref[...]))       # (NB, 128)
    a2 = jnp.concatenate(parts, axis=-1).astype(bf16)     # (NB, 2048) lane-dense

    # ---- FC head -------------------------------------------------------------
    h1 = jnp.dot(a2, fc1x_ref[...], preferred_element_type=f32)
    h1 = _sigmoid(h1 + fc1b_ref[...])
    h2 = _sigmoid(jnp.dot(h1.astype(bf16), fc2w_ref[...],
                          preferred_element_type=f32) + fc2b_ref[...])
    out = jnp.dot(h2.astype(bf16), fc3w_ref[...],
                  preferred_element_type=f32) + fc3b_ref[...]
    out_ref[...] = out.astype(out_ref.dtype)


def _conv1_cols(x):
    """im2col for conv1, grouped by 2x2 pool position, emitted in bf16.

    Returns (4, N, 12, 16, 128): pooled width padded 12->16, K=25 padded to
    128 lanes with zeros (so conv1's padded weight rows can stay zero).
    """
    N = x.shape[0]
    xs = x[:, 0]                                          # (N, 28, 28)
    groups = []
    for pi in range(2):
        for pj in range(2):
            taps = []
            for di in range(5):
                for dj in range(5):
                    s0, s1 = pi + di, pj + dj
                    taps.append(lax.slice(xs, (0, s0, s1),
                                          (N, s0 + 23, s1 + 23), (1, 2, 2)))
            groups.append(jnp.stack(taps, axis=-1))       # (N, 12, 12, 25)
    cols = jnp.stack(groups, axis=0)                      # (4, N, 12, 12, 25)
    cols = jnp.pad(cols, ((0, 0), (0, 0), (0, 0), (0, 4), (0, _LANES - 25)))
    return cols.astype(jnp.bfloat16)                      # (4, N, 12, 16, 128)


def pack_params(params):
    """One-time weight prep (not per forward): transpose to [in, out], permute
    to channels-last spatial-major order, store conv2/fc1 COMPACT, cast to bf16.
    All zero-padding of output columns is kept so downstream padded lanes
    contract against zeros."""
    (cw1, cb1, cw2, cb2, fw1, fb1, fw2, fb2, fw3, fb3) = params
    f32, bf16 = jnp.float32, jnp.bfloat16

    def pad2(a):
        return jnp.pad(a, ((0, _LANES - a.shape[0]),
                           (0, _LANES - a.shape[1]))).astype(bf16)

    def padb(b):
        return jnp.pad(b, (0, _LANES - b.shape[0])).reshape(1, _LANES).astype(f32)

    # conv1: (6,1,5,5) -> [k = di*5+dj, co], padded (128,128)
    w1p = pad2(cw1.reshape(6, 25).T)
    b1p = padb(cb1)

    # conv2 compact, grouped by dj: w2c[dj, di*8+ci, co] = cw2[co, ci, di, dj]
    w2t = cw2.transpose(3, 2, 1, 0)                               # (5,5,6,16)
    w2t = jnp.pad(w2t, ((0, 0), (0, 0), (0, 2), (0, _LANES - 16)))  # (5,5,8,128)
    w2c = w2t.reshape(5, 40, _LANES).astype(bf16)
    b2p = padb(cb2)

    # fc1 compact: PyTorch input index is c*16 + h*4 + w; re-key to
    # fc1c[s*16 + c, o] with s = h*4 + w (matches the in-kernel lane concat).
    f1 = fw1.reshape(120, 16, 16).transpose(2, 1, 0)              # (s, c, o)
    f1 = jnp.pad(f1, ((0, 0), (0, 0), (0, _LANES - 120)))         # (16,16,128)
    fc1c = f1.reshape(256, _LANES).astype(bf16)
    fc1bp = padb(fb1)

    fc2wp = pad2(fw2.T)
    fc2bp = padb(fb2)
    fc3wp = pad2(fw3.T)
    fc3bp = padb(fb3)
    return (w1p, b1p, w2c, b2p, fc1c, fc1bp, fc2wp, fc2bp, fc3wp, fc3bp)


def _resident(a):
    """Full-array block with a constant index_map -> stays VMEM-resident."""
    nd = a.ndim
    return pl.BlockSpec(a.shape, lambda i: (0,) * nd)


def lenet_forward(x, packed):
    N = x.shape[0]
    assert x.shape[1:] == (1, 28, 28)
    # Batch row-block.  At N=2 this is a single grid step; at larger batch the
    # grid double-buffers cols1/output DMA under compute.  Keep
    # 2*(cols1 block + a1 scratch) + ~1.5 MiB weight scratch within the VMEM
    # limit below (NB=8 uses ~4 MiB, fine on v5e/v6e/v7x).
    NB = N if N < 8 else 8
    assert N % NB == 0, "pad the batch to a multiple of the row block"

    cols1 = _conv1_cols(x)                                # (4, N, 12, 16, 128) bf16
    (w1p, b1p, w2c, b2p, fc1c, fc1bp, fc2wp, fc2bp, fc3wp, fc3bp) = packed

    in_specs = [
        pl.BlockSpec((4, NB, 12, 16, _LANES), lambda i: (0, i, 0, 0, 0)),
        _resident(w1p), _resident(b1p), _resident(w2c), _resident(b2p),
        _resident(fc1c), _resident(fc1bp), _resident(fc2wp), _resident(fc2bp),
        _resident(fc3wp), _resident(fc3bp),
    ]

    out = pl.pallas_call(
        lenet_kernel,
        out_shape=jax.ShapeDtypeStruct((N, _LANES), jnp.float32),
        grid=(N // NB,),
        in_specs=in_specs,
        out_specs=pl.BlockSpec((NB, _LANES), lambda i: (i, 0)),
        scratch_shapes=[
            pltpu.VMEM((NB, 12, 16, _LANES), jnp.float32),      # pooled conv1 act.
            pltpu.VMEM((5, 5 * _LANES, _LANES), jnp.bfloat16),  # expanded conv2 w
            pltpu.VMEM((16 * _LANES, _LANES), jnp.bfloat16),    # expanded fc1 w
        ],
        compiler_params=pltpu.CompilerParams(
            # "arbitrary" on purpose: the pl.when(program_id==0) weight
            # expansion is per-core scratch state and is not megacore-safe
            # under a "parallel" split (see header comment).
            dimension_semantics=("arbitrary",),
            vmem_limit_bytes=32 * 1024 * 1024,
        ),
    )(cols1, w1p, b1p, w2c, b2p, fc1c, fc1bp, fc2wp, fc2bp, fc3wp, fc3bp)
    return out[:, :10]


def init_params(key):
    ks = jax.random.split(key, 10)

    def rn(k, shape, scale):
        return (scale * jax.random.normal(k, shape)).astype(jnp.float32)

    cw1 = rn(ks[0], (6, 1, 5, 5), 0.2)
    cb1 = rn(ks[1], (6,), 0.1)
    cw2 = rn(ks[2], (16, 6, 5, 5), 0.1)
    cb2 = rn(ks[3], (16,), 0.1)
    fw1 = rn(ks[4], (120, 16 * 4 * 4), 0.05)
    fb1 = rn(ks[5], (120,), 0.05)
    fw2 = rn(ks[6], (84, 120), 0.05)
    fb2 = rn(ks[7], (84,), 0.05)
    fw3 = rn(ks[8], (10, 84), 0.05)
    fb3 = rn(ks[9], (10,), 0.05)
    return (cw1, cb1, cw2, cb2, fw1, fb1, fw2, fb2, fw3, fb3)


if __name__ == "__main__":
    key = jax.random.PRNGKey(0)
    kx, kp = jax.random.split(key)
    # LeNet's FC head (16*4*4) fixes the spatial size: 1x28x28 inputs, batch=2.
    x = jax.random.normal(kx, (2, 1, 28, 28), dtype=jnp.float32)
    params = init_params(kp)
    packed = pack_params(params)          # one-time layout/pad/bf16 prep

    out = jax.jit(lenet_forward)(x, packed)
    jax.block_until_ready(out)
    assert out.shape == (2, 10) and out.dtype == jnp.float32
    print("KERNEL_OK")
</pallas_src>

<mosaic_0001>
module attributes {stable_mosaic.version = 11 : i64} {
  func.func @lenet_kernel(%arg0: i32, %arg1: memref<4x2x12x16x128xbf16, #tpu.memory_space<vmem>>, %arg2: memref<128x128xbf16, #tpu.memory_space<vmem>>, %arg3: memref<1x128xf32, #tpu.memory_space<vmem>>, %arg4: memref<5x40x128xbf16, #tpu.memory_space<vmem>>, %arg5: memref<1x128xf32, #tpu.memory_space<vmem>>, %arg6: memref<256x128xbf16, #tpu.memory_space<vmem>>, %arg7: memref<1x128xf32, #tpu.memory_space<vmem>>, %arg8: memref<128x128xbf16, #tpu.memory_space<vmem>>, %arg9: memref<1x128xf32, #tpu.memory_space<vmem>>, %arg10: memref<128x128xbf16, #tpu.memory_space<vmem>>, %arg11: memref<1x128xf32, #tpu.memory_space<vmem>>, %arg12: memref<2x128xf32, #tpu.memory_space<vmem>>, %arg13: memref<2x12x16x128xf32, #tpu.memory_space<vmem>>, %arg14: memref<5x640x128xbf16, #tpu.memory_space<vmem>>, %arg15: memref<2048x128xbf16, #tpu.memory_space<vmem>>) attributes {dimension_semantics = [#tpu.dimension_semantics<arbitrary>], iteration_bounds = array<i64: 1>, scalar_prefetch = 0 : i64, scratch_operands = 3 : i64, tpu.core_type = #tpu.core_type<tc>, window_params = [{transform_indices = @transform_0, window_bounds = array<i64: 4, 2, 12, 16, 128>}, {pipeline_mode = #tpu.pipeline_mode<synchronous>, transform_indices = @transform_1, window_bounds = array<i64: 128, 128>}, {pipeline_mode = #tpu.pipeline_mode<synchronous>, transform_indices = @transform_2, window_bounds = array<i64: 1, 128>}, {pipeline_mode = #tpu.pipeline_mode<synchronous>, transform_indices = @transform_3, window_bounds = array<i64: 5, 40, 128>}, {pipeline_mode = #tpu.pipeline_mode<synchronous>, transform_indices = @transform_4, window_bounds = array<i64: 1, 128>}, {pipeline_mode = #tpu.pipeline_mode<synchronous>, transform_indices = @transform_5, window_bounds = array<i64: 256, 128>}, {pipeline_mode = #tpu.pipeline_mode<synchronous>, transform_indices = @transform_6, window_bounds = array<i64: 1, 128>}, {pipeline_mode = #tpu.pipeline_mode<synchronous>, transform_indices = @transform_7, window_bounds = array<i64: 128, 128>}, {pipeline_mode = #tpu.pipeline_mode<synchronous>, transform_indices = @transform_8, window_bounds = array<i64: 1, 128>}, {pipeline_mode = #tpu.pipeline_mode<synchronous>, transform_indices = @transform_9, window_bounds = array<i64: 128, 128>}, {pipeline_mode = #tpu.pipeline_mode<synchronous>, transform_indices = @transform_10, window_bounds = array<i64: 1, 128>}, {transform_indices = @transform_11, window_bounds = array<i64: 2, 128>}]} {
    %c0_i32 = arith.constant 0 : i32
    %0 = arith.cmpi eq, %arg0, %c0_i32 : i32
    %1 = arith.extui %0 : i1 to i32
    %c0_i32_0 = arith.constant 0 : i32
    %2 = arith.cmpi ne, %1, %c0_i32_0 : i32
    scf.if %2 {
      %cst_161 = arith.constant 0.000000e+00 : bf16
      %365 = vector.broadcast %cst_161 : bf16 to vector<5x640x128xbf16>
      %c0_162 = arith.constant 0 : index
      %c0_163 = arith.constant 0 : index
      %c0_164 = arith.constant 0 : index
      %366 = vector.load %arg14[%c0_162, %c0_163, %c0_164] : memref<5x640x128xbf16, #tpu.memory_space<vmem>>, vector<5x640x128xbf16>
      tpu.vector_store %arg14[%c0_162, %c0_163, %c0_164], %365 {strides = array<i32>} : memref<5x640x128xbf16, #tpu.memory_space<vmem>>, vector<5x640x128xbf16>,
      %cst_165 = arith.constant 0.000000e+00 : bf16
      %367 = vector.broadcast %cst_165 : bf16 to vector<2048x128xbf16>
      %c0_166 = arith.constant 0 : index
      %c0_167 = arith.constant 0 : index
      %368 = vector.load %arg15[%c0_166, %c0_167] : memref<2048x128xbf16, #tpu.memory_space<vmem>>, vector<2048x128xbf16>
      tpu.vector_store %arg15[%c0_166, %c0_167], %367 {strides = array<i32>} : memref<2048x128xbf16, #tpu.memory_space<vmem>>, vector<2048x128xbf16>,
      %c0_168 = arith.constant 0 : index
      %c0_169 = arith.constant 0 : index
      %c0_170 = arith.constant 0 : index
      %369 = vector.load %arg4[%c0_168, %c0_169, %c0_170] : memref<5x40x128xbf16, #tpu.memory_space<vmem>>, vector<5x8x128xbf16>
      %c0_171 = arith.constant 0 : index
      %c0_172 = arith.constant 0 : index
      %c0_173 = arith.constant 0 : index
      %370 = vector.load %arg14[%c0_171, %c0_172, %c0_173] : memref<5x640x128xbf16, #tpu.memory_space<vmem>>, vector<5x8x128xbf16>
      tpu.vector_store %arg14[%c0_171, %c0_172, %c0_173], %369 {strides = array<i32>} : memref<5x640x128xbf16, #tpu.memory_space<vmem>>, vector<5x8x128xbf16>,
      %c0_174 = arith.constant 0 : index
      %c8 = arith.constant 8 : index
      %c0_175 = arith.constant 0 : index
      %371 = vector.load %arg4[%c0_174, %c8, %c0_175] : memref<5x40x128xbf16, #tpu.memory_space<vmem>>, vector<5x8x128xbf16>
      %c0_176 = arith.constant 0 : index
      %c128 = arith.constant 128 : index
      %c0_177 = arith.constant 0 : index
      %372 = vector.load %arg14[%c0_176, %c128, %c0_177] : memref<5x640x128xbf16, #tpu.memory_space<vmem>>, vector<5x8x128xbf16>
      tpu.vector_store %arg14[%c0_176, %c128, %c0_177], %371 {strides = array<i32>} : memref<5x640x128xbf16, #tpu.memory_space<vmem>>, vector<5x8x128xbf16>,
      %c0_178 = arith.constant 0 : index
      %c16 = arith.constant 16 : index
      %c0_179 = arith.constant 0 : index
      %373 = vector.load %arg4[%c0_178, %c16, %c0_179] : memref<5x40x128xbf16, #tpu.memory_space<vmem>>, vector<5x8x128xbf16>
      %c0_180 = arith.constant 0 : index
      %c256 = arith.constant 256 : index
      %c0_181 = arith.constant 0 : index
      %374 = vector.load %arg14[%c0_180, %c256, %c0_181] : memref<5x640x128xbf16, #tpu.memory_space<vmem>>, vector<5x8x128xbf16>
      tpu.vector_store %arg14[%c0_180, %c256, %c0_181], %373 {strides = array<i32>} : memref<5x640x128xbf16, #tpu.memory_space<vmem>>, vector<5x8x128xbf16>,
      %c0_182 = arith.constant 0 : index
      %c24 = arith.constant 24 : index
      %c0_183 = arith.constant 0 : index
      %375 = vector.load %arg4[%c0_182, %c24, %c0_183] : memref<5x40x128xbf16, #tpu.memory_space<vmem>>, vector<5x8x128xbf16>
      %c0_184 = arith.constant 0 : index
      %c384 = arith.constant 384 : index
      %c0_185 = arith.constant 0 : index
      %376 = vector.load %arg14[%c0_184, %c384, %c0_185] : memref<5x640x128xbf16, #tpu.memory_space<vmem>>, vector<5x8x128xbf16>
      tpu.vector_store %arg14[%c0_184, %c384, %c0_185], %375 {strides = array<i32>} : memref<5x640x128xbf16, #tpu.memory_space<vmem>>, vector<5x8x128xbf16>,
      %c0_186 = arith.constant 0 : index
      %c32 = arith.constant 32 : index
      %c0_187 = arith.constant 0 : index
      %377 = vector.load %arg4[%c0_186, %c32, %c0_187] : memref<5x40x128xbf16, #tpu.memory_space<vmem>>, vector<5x8x128xbf16>
      %c0_188 = arith.constant 0 : index
      %c512 = arith.constant 512 : index
      %c0_189 = arith.constant 0 : index
      %378 = vector.load %arg14[%c0_188, %c512, %c0_189] : memref<5x640x128xbf16, #tpu.memory_space<vmem>>, vector<5x8x128xbf16>
      tpu.vector_store %arg14[%c0_188, %c512, %c0_189], %377 {strides = array<i32>} : memref<5x640x128xbf16, #tpu.memory_space<vmem>>, vector<5x8x128xbf16>,
      %c0_190 = arith.constant 0 : index
      %c0_191 = arith.constant 0 : index
      %379 = vector.load %arg6[%c0_190, %c0_191] : memref<256x128xbf16, #tpu.memory_space<vmem>>, vector<16x128xbf16>
      %c0_192 = arith.constant 0 : index
      %c0_193 = arith.constant 0 : index
      %380 = vector.load %arg15[%c0_192, %c0_193] : memref<2048x128xbf16, #tpu.memory_space<vmem>>, vector<16x128xbf16>
      tpu.vector_store %arg15[%c0_192, %c0_193], %379 {strides = array<i32>} : memref<2048x128xbf16, #tpu.memory_space<vmem>>, vector<16x128xbf16>,
      %c16_194 = arith.constant 16 : index
      %c0_195 = arith.constant 0 : index
      %381 = vector.load %arg6[%c16_194, %c0_195] : memref<256x128xbf16, #tpu.memory_space<vmem>>, vector<16x128xbf16>
      %c128_196 = arith.constant 128 : index
      %c0_197 = arith.constant 0 : index
      %382 = vector.load %arg15[%c128_196, %c0_197] : memref<2048x128xbf16, #tpu.memory_space<vmem>>, vector<16x128xbf16>
      tpu.vector_store %arg15[%c128_196, %c0_197], %381 {strides = array<i32>} : memref<2048x128xbf16, #tpu.memory_space<vmem>>, vector<16x128xbf16>,
      %c32_198 = arith.constant 32 : index
      %c0_199 = arith.constant 0 : index
      %383 = vector.load %arg6[%c32_198, %c0_199] : memref<256x128xbf16, #tpu.memory_space<vmem>>, vector<16x128xbf16>
      %c256_200 = arith.constant 256 : index
      %c0_201 = arith.constant 0 : index
      %384 = vector.load %arg15[%c256_200, %c0_201] : memref<2048x128xbf16, #tpu.memory_space<vmem>>, vector<16x128xbf16>
      tpu.vector_store %arg15[%c256_200, %c0_201], %383 {strides = array<i32>} : memref<2048x128xbf16, #tpu.memory_space<vmem>>, vector<16x128xbf16>,
      %c48 = arith.constant 48 : index
      %c0_202 = arith.constant 0 : index
      %385 = vector.load %arg6[%c48, %c0_202] : memref<256x128xbf16, #tpu.memory_space<vmem>>, vector<16x128xbf16>
      %c384_203 = arith.constant 384 : index
      %c0_204 = arith.constant 0 : index
      %386 = vector.load %arg15[%c384_203, %c0_204] : memref<2048x128xbf16, #tpu.memory_space<vmem>>, vector<16x128xbf16>
      tpu.vector_store %arg15[%c384_203, %c0_204], %385 {strides = array<i32>} : memref<2048x128xbf16, #tpu.memory_space<vmem>>, vector<16x128xbf16>,
      %c64 = arith.constant 64 : index
      %c0_205 = arith.constant 0 : index
      %387 = vector.load %arg6[%c64, %c0_205] : memref<256x128xbf16, #tpu.memory_space<vmem>>, vector<16x128xbf16>
      %c512_206 = arith.constant 512 : index
      %c0_207 = arith.constant 0 : index
      %388 = vector.load %arg15[%c512_206, %c0_207] : memref<2048x128xbf16, #tpu.memory_space<vmem>>, vector<16x128xbf16>
      tpu.vector_store %arg15[%c512_206, %c0_207], %387 {strides = array<i32>} : memref<2048x128xbf16, #tpu.memory_space<vmem>>, vector<16x128xbf16>,
      %c80 = arith.constant 80 : index
      %c0_208 = arith.constant 0 : index
      %389 = vector.load %arg6[%c80, %c0_208] : memref<256x128xbf16, #tpu.memory_space<vmem>>, vector<16x128xbf16>
      %c640 = arith.constant 640 : index
      %c0_209 = arith.constant 0 : index
      %390 = vector.load %arg15[%c640, %c0_209] : memref<2048x128xbf16, #tpu.memory_space<vmem>>, vector<16x128xbf16>
      tpu.vector_store %arg15[%c640, %c0_209], %389 {strides = array<i32>} : memref<2048x128xbf16, #tpu.memory_space<vmem>>, vector<16x128xbf16>,
      %c96 = arith.constant 96 : index
      %c0_210 = arith.constant 0 : index
      %391 = vector.load %arg6[%c96, %c0_210] : memref<256x128xbf16, #tpu.memory_space<vmem>>, vector<16x128xbf16>
      %c768 = arith.constant 768 : index
      %c0_211 = arith.constant 0 : index
      %392 = vector.load %arg15[%c768, %c0_211] : memref<2048x128xbf16, #tpu.memory_space<vmem>>, vector<16x128xbf16>
      tpu.vector_store %arg15[%c768, %c0_211], %391 {strides = array<i32>} : memref<2048x128xbf16, #tpu.memory_space<vmem>>, vector<16x128xbf16>,
      %c112 = arith.constant 112 : index
      %c0_212 = arith.constant 0 : index
      %393 = vector.load %arg6[%c112, %c0_212] : memref<256x128xbf16, #tpu.memory_space<vmem>>, vector<16x128xbf16>
      %c896 = arith.constant 896 : index
      %c0_213 = arith.constant 0 : index
      %394 = vector.load %arg15[%c896, %c0_213] : memref<2048x128xbf16, #tpu.memory_space<vmem>>, vector<16x128xbf16>
      tpu.vector_store %arg15[%c896, %c0_213], %393 {strides = array<i32>} : memref<2048x128xbf16, #tpu.memory_space<vmem>>, vector<16x128xbf16>,
      %c128_214 = arith.constant 128 : index
      %c0_215 = arith.constant 0 : index
      %395 = vector.load %arg6[%c128_214, %c0_215] : memref<256x128xbf16, #tpu.memory_space<vmem>>, vector<16x128xbf16>
      %c1024 = arith.constant 1024 : index
      %c0_216 = arith.constant 0 : index
      %396 = vector.load %arg15[%c1024, %c0_216] : memref<2048x128xbf16, #tpu.memory_space<vmem>>, vector<16x128xbf16>
      tpu.vector_store %arg15[%c1024, %c0_216], %395 {strides = array<i32>} : memref<2048x128xbf16, #tpu.memory_space<vmem>>, vector<16x128xbf16>,
      %c144 = arith.constant 144 : index
      %c0_217 = arith.constant 0 : index
      %397 = vector.load %arg6[%c144, %c0_217] : memref<256x128xbf16, #tpu.memory_space<vmem>>, vector<16x128xbf16>
      %c1152 = arith.constant 1152 : index
      %c0_218 = arith.constant 0 : index
      %398 = vector.load %arg15[%c1152, %c0_218] : memref<2048x128xbf16, #tpu.memory_space<vmem>>, vector<16x128xbf16>
      tpu.vector_store %arg15[%c1152, %c0_218], %397 {strides = array<i32>} : memref<2048x128xbf16, #tpu.memory_space<vmem>>, vector<16x128xbf16>,
      %c160 = arith.constant 160 : index
      %c0_219 = arith.constant 0 : index
      %399 = vector.load %arg6[%c160, %c0_219] : memref<256x128xbf16, #tpu.memory_space<vmem>>, vector<16x128xbf16>
      %c1280 = arith.constant 1280 : index
      %c0_220 = arith.constant 0 : index
      %400 = vector.load %arg15[%c1280, %c0_220] : memref<2048x128xbf16, #tpu.memory_space<vmem>>, vector<16x128xbf16>
      tpu.vector_store %arg15[%c1280, %c0_220], %399 {strides = array<i32>} : memref<2048x128xbf16, #tpu.memory_space<vmem>>, vector<16x128xbf16>,
      %c176 = arith.constant 176 : index
      %c0_221 = arith.constant 0 : index
      %401 = vector.load %arg6[%c176, %c0_221] : memref<256x128xbf16, #tpu.memory_space<vmem>>, vector<16x128xbf16>
      %c1408 = arith.constant 1408 : index
      %c0_222 = arith.constant 0 : index
      %402 = vector.load %arg15[%c1408, %c0_222] : memref<2048x128xbf16, #tpu.memory_space<vmem>>, vector<16x128xbf16>
      tpu.vector_store %arg15[%c1408, %c0_222], %401 {strides = array<i32>} : memref<2048x128xbf16, #tpu.memory_space<vmem>>, vector<16x128xbf16>,
      %c192 = arith.constant 192 : index
      %c0_223 = arith.constant 0 : index
      %403 = vector.load %arg6[%c192, %c0_223] : memref<256x128xbf16, #tpu.memory_space<vmem>>, vector<16x128xbf16>
      %c1536 = arith.constant 1536 : index
      %c0_224 = arith.constant 0 : index
      %404 = vector.load %arg15[%c1536, %c0_224] : memref<2048x128xbf16, #tpu.memory_space<vmem>>, vector<16x128xbf16>
      tpu.vector_store %arg15[%c1536, %c0_224], %403 {strides = array<i32>} : memref<2048x128xbf16, #tpu.memory_space<vmem>>, vector<16x128xbf16>,
      %c208 = arith.constant 208 : index
      %c0_225 = arith.constant 0 : index
      %405 = vector.load %arg6[%c208, %c0_225] : memref<256x128xbf16, #tpu.memory_space<vmem>>, vector<16x128xbf16>
      %c1664 = arith.constant 1664 : index
      %c0_226 = arith.constant 0 : index
      %406 = vector.load %arg15[%c1664, %c0_226] : memref<2048x128xbf16, #tpu.memory_space<vmem>>, vector<16x128xbf16>
      tpu.vector_store %arg15[%c1664, %c0_226], %405 {strides = array<i32>} : memref<2048x128xbf16, #tpu.memory_space<vmem>>, vector<16x128xbf16>,
      %c224 = arith.constant 224 : index
      %c0_227 = arith.constant 0 : index
      %407 = vector.load %arg6[%c224, %c0_227] : memref<256x128xbf16, #tpu.memory_space<vmem>>, vector<16x128xbf16>
      %c1792 = arith.constant 1792 : index
      %c0_228 = arith.constant 0 : index
      %408 = vector.load %arg15[%c1792, %c0_228] : memref<2048x128xbf16, #tpu.memory_space<vmem>>, vector<16x128xbf16>
      tpu.vector_store %arg15[%c1792, %c0_228], %407 {strides = array<i32>} : memref<2048x128xbf16, #tpu.memory_space<vmem>>, vector<16x128xbf16>,
      %c240 = arith.constant 240 : index
      %c0_229 = arith.constant 0 : index
      %409 = vector.load %arg6[%c240, %c0_229] : memref<256x128xbf16, #tpu.memory_space<vmem>>, vector<16x128xbf16>
      %c1920 = arith.constant 1920 : index
      %c0_230 = arith.constant 0 : index
      %410 = vector.load %arg15[%c1920, %c0_230] : memref<2048x128xbf16, #tpu.memory_space<vmem>>, vector<16x128xbf16>
      tpu.vector_store %arg15[%c1920, %c0_230], %409 {strides = array<i32>} : memref<2048x128xbf16, #tpu.memory_space<vmem>>, vector<16x128xbf16>,
    } else {
    }
    %c0 = arith.constant 0 : index
    %c0_1 = arith.constant 0 : index
    %c0_2 = arith.constant 0 : index
    %c0_3 = arith.constant 0 : index
    %c0_4 = arith.constant 0 : index
    %3 = vector.load %arg1[%c0, %c0_1, %c0_2, %c0_3, %c0_4] : memref<4x2x12x16x128xbf16, #tpu.memory_space<vmem>>, vector<1x2x12x16x128xbf16>
    %4 = vector.shape_cast %3 : vector<1x2x12x16x128xbf16> to vector<2x12x16x128xbf16>
    %5 = vector.shape_cast %4 : vector<2x12x16x128xbf16> to vector<384x128xbf16>
    %c0_5 = arith.constant 0 : index
    %c0_6 = arith.constant 0 : index
    %6 = vector.load %arg2[%c0_5, %c0_6] : memref<128x128xbf16, #tpu.memory_space<vmem>>, vector<128x128xbf16>
    %cst = arith.constant dense<0.000000e+00> : vector<384x128xf32>
    %7 = tpu.matmul %5, %6, %cst {dimension_numbers = #tpu.dot_dimension_numbers<[1], [0], [0], [1], [0, 0, 1, 1], [], []>} : vector<384x128xbf16>, vector<128x128xbf16>, vector<384x128xf32> -> vector<384x128xf32>
    %c1 = arith.constant 1 : index
    %c0_7 = arith.constant 0 : index
    %c0_8 = arith.constant 0 : index
    %c0_9 = arith.constant 0 : index
    %c0_10 = arith.constant 0 : index
    %8 = vector.load %arg1[%c1, %c0_7, %c0_8, %c0_9, %c0_10] : memref<4x2x12x16x128xbf16, #tpu.memory_space<vmem>>, vector<1x2x12x16x128xbf16>
    %9 = vector.shape_cast %8 : vector<1x2x12x16x128xbf16> to vector<2x12x16x128xbf16>
    %10 = vector.shape_cast %9 : vector<2x12x16x128xbf16> to vector<384x128xbf16>
    %c0_11 = arith.constant 0 : index
    %c0_12 = arith.constant 0 : index
    %11 = vector.load %arg2[%c0_11, %c0_12] : memref<128x128xbf16, #tpu.memory_space<vmem>>, vector<128x128xbf16>
    %cst_13 = arith.constant dense<0.000000e+00> : vector<384x128xf32>
    %12 = tpu.matmul %10, %11, %cst_13 {dimension_numbers = #tpu.dot_dimension_numbers<[1], [0], [0], [1], [0, 0, 1, 1], [], []>} : vector<384x128xbf16>, vector<128x128xbf16>, vector<384x128xf32> -> vector<384x128xf32>
    %13 = arith.maximumf %7, %12 : vector<384x128xf32>
    %c2 = arith.constant 2 : index
    %c0_14 = arith.constant 0 : index
    %c0_15 = arith.constant 0 : index
    %c0_16 = arith.constant 0 : index
    %c0_17 = arith.constant 0 : index
    %14 = vector.load %arg1[%c2, %c0_14, %c0_15, %c0_16, %c0_17] : memref<4x2x12x16x128xbf16, #tpu.memory_space<vmem>>, vector<1x2x12x16x128xbf16>
    %15 = vector.shape_cast %14 : vector<1x2x12x16x128xbf16> to vector<2x12x16x128xbf16>
    %16 = vector.shape_cast %15 : vector<2x12x16x128xbf16> to vector<384x128xbf16>
    %c0_18 = arith.constant 0 : index
    %c0_19 = arith.constant 0 : index
    %17 = vector.load %arg2[%c0_18, %c0_19] : memref<128x128xbf16, #tpu.memory_space<vmem>>, vector<128x128xbf16>
    %cst_20 = arith.constant dense<0.000000e+00> : vector<384x128xf32>
    %18 = tpu.matmul %16, %17, %cst_20 {dimension_numbers = #tpu.dot_dimension_numbers<[1], [0], [0], [1], [0, 0, 1, 1], [], []>} : vector<384x128xbf16>, vector<128x128xbf16>, vector<384x128xf32> -> vector<384x128xf32>
    %19 = arith.maximumf %13, %18 : vector<384x128xf32>
    %c3 = arith.constant 3 : index
    %c0_21 = arith.constant 0 : index
    %c0_22 = arith.constant 0 : index
    %c0_23 = arith.constant 0 : index
    %c0_24 = arith.constant 0 : index
    %20 = vector.load %arg1[%c3, %c0_21, %c0_22, %c0_23, %c0_24] : memref<4x2x12x16x128xbf16, #tpu.memory_space<vmem>>, vector<1x2x12x16x128xbf16>
    %21 = vector.shape_cast %20 : vector<1x2x12x16x128xbf16> to vector<2x12x16x128xbf16>
    %22 = vector.shape_cast %21 : vector<2x12x16x128xbf16> to vector<384x128xbf16>
    %c0_25 = arith.constant 0 : index
    %c0_26 = arith.constant 0 : index
    %23 = vector.load %arg2[%c0_25, %c0_26] : memref<128x128xbf16, #tpu.memory_space<vmem>>, vector<128x128xbf16>
    %cst_27 = arith.constant dense<0.000000e+00> : vector<384x128xf32>
    %24 = tpu.matmul %22, %23, %cst_27 {dimension_numbers = #tpu.dot_dimension_numbers<[1], [0], [0], [1], [0, 0, 1, 1], [], []>} : vector<384x128xbf16>, vector<128x128xbf16>, vector<384x128xf32> -> vector<384x128xf32>
    %25 = arith.maximumf %19, %24 : vector<384x128xf32>
    %c0_28 = arith.constant 0 : index
    %c0_29 = arith.constant 0 : index
    %26 = vector.load %arg3[%c0_28, %c0_29] : memref<1x128xf32, #tpu.memory_space<vmem>>, vector<1x128xf32>
    %27 = vector.broadcast %26 : vector<1x128xf32> to vector<384x128xf32>
    %28 = arith.addf %25, %27 : vector<384x128xf32>
    %cst_30 = arith.constant 0.000000e+00 : f32
    %29 = vector.broadcast %cst_30 : f32 to vector<384x128xf32>
    %30 = arith.subf %29, %28 : vector<384x128xf32>
    %31 = math.exp %30 : vector<384x128xf32>
    %cst_31 = arith.constant 1.000000e+00 : f32
    %32 = vector.broadcast %cst_31 : f32 to vector<384x128xf32>
    %33 = arith.addf %32, %31 : vector<384x128xf32>
    %34 = tpu.reciprocal %33 {approx = true} : vector<384x128xf32> -> vector<384x128xf32>
    %35 = vector.shape_cast %34 : vector<384x128xf32> to vector<2x12x16x128xf32>
    %c0_32 = arith.constant 0 : index
    %c0_33 = arith.constant 0 : index
    %c0_34 = arith.constant 0 : index
    %c0_35 = arith.constant 0 : index
    %36 = vector.load %arg13[%c0_32, %c0_33, %c0_34, %c0_35] : memref<2x12x16x128xf32, #tpu.memory_space<vmem>>, vector<2x12x16x128xf32>
    tpu.vector_store %arg13[%c0_32, %c0_33, %c0_34, %c0_35], %35 {strides = array<i32>} : memref<2x12x16x128xf32, #tpu.memory_space<vmem>>, vector<2x12x16x128xf32>,
    %cst_36 = arith.constant 0.000000e+00 : f32
    %37 = vector.broadcast %cst_36 : f32 to vector<128x128xf32>
    %c0_37 = arith.constant 0 : index
    %c0_38 = arith.constant 0 : index
    %c0_39 = arith.constant 0 : index
    %c0_40 = arith.constant 0 : index
    %38 = vector.load %arg13[%c0_37, %c0_38, %c0_39, %c0_40] : memref<2x12x16x128xf32, #tpu.memory_space<vmem>>, vector<2x12x8x128xf32>
    %39 = arith.truncf %38 : vector<2x12x8x128xf32> to vector<2x12x8x128xbf16>
    %40 = vector.extract_strided_slice %39 {offsets = [0, 0, 0, 0], sizes = [2, 8, 8, 128], strides = [1, 1, 1, 1]} : vector<2x12x8x128xbf16> to vector<2x8x8x128xbf16>
    %41 = vector.extract_strided_slice %39 {offsets = [0, 1, 0, 0], sizes = [2, 8, 8, 128], strides = [1, 1, 1, 1]} : vector<2x12x8x128xbf16> to vector<2x8x8x128xbf16>
    %42 = vector.extract_strided_slice %39 {offsets = [0, 2, 0, 0], sizes = [2, 8, 8, 128], strides = [1, 1, 1, 1]} : vector<2x12x8x128xbf16> to vector<2x8x8x128xbf16>
    %43 = vector.extract_strided_slice %39 {offsets = [0, 3, 0, 0], sizes = [2, 8, 8, 128], strides = [1, 1, 1, 1]} : vector<2x12x8x128xbf16> to vector<2x8x8x128xbf16>
    %44 = vector.extract_strided_slice %39 {offsets = [0, 4, 0, 0], sizes = [2, 8, 8, 128], strides = [1, 1, 1, 1]} : vector<2x12x8x128xbf16> to vector<2x8x8x128xbf16>
    %45 = tpu.concatenate %40, %41, %42, %43, %44 in 3 : vector<2x8x8x128xbf16>, vector<2x8x8x128xbf16>, vector<2x8x8x128xbf16>, vector<2x8x8x128xbf16>, vector<2x8x8x128xbf16> -> vector<2x8x8x640xbf16>
    %46 = vector.shape_cast %45 : vector<2x8x8x640xbf16> to vector<128x640xbf16>
    %c0_41 = arith.constant 0 : index
    %c0_42 = arith.constant 0 : index
    %c0_43 = arith.constant 0 : index
    %47 = vector.load %arg14[%c0_41, %c0_42, %c0_43] : memref<5x640x128xbf16, #tpu.memory_space<vmem>>, vector<1x640x128xbf16>
    %48 = vector.shape_cast %47 : vector<1x640x128xbf16> to vector<640x128xbf16>
    %cst_44 = arith.constant dense<0.000000e+00> : vector<128x128xf32>
    %49 = tpu.matmul %46, %48, %cst_44 {dimension_numbers = #tpu.dot_dimension_numbers<[1], [0], [0], [1], [0, 0, 1, 1], [], []>} : vector<128x640xbf16>, vector<640x128xbf16>, vector<128x128xf32> -> vector<128x128xf32>
    %50 = arith.addf %37, %49 : vector<128x128xf32>
    %c0_45 = arith.constant 0 : index
    %c0_46 = arith.constant 0 : index
    %c1_47 = arith.constant 1 : index
    %c0_48 = arith.constant 0 : index
    %51 = vector.load %arg13[%c0_45, %c0_46, %c1_47, %c0_48] : memref<2x12x16x128xf32, #tpu.memory_space<vmem>>, vector<2x12x8x128xf32>
    %52 = arith.truncf %51 : vector<2x12x8x128xf32> to vector<2x12x8x128xbf16>
    %53 = vector.extract_strided_slice %52 {offsets = [0, 0, 0, 0], sizes = [2, 8, 8, 128], strides = [1, 1, 1, 1]} : vector<2x12x8x128xbf16> to vector<2x8x8x128xbf16>
    %54 = vector.extract_strided_slice %52 {offsets = [0, 1, 0, 0], sizes = [2, 8, 8, 128], strides = [1, 1, 1, 1]} : vector<2x12x8x128xbf16> to vector<2x8x8x128xbf16>
    %55 = vector.extract_strided_slice %52 {offsets = [0, 2, 0, 0], sizes = [2, 8, 8, 128], strides = [1, 1, 1, 1]} : vector<2x12x8x128xbf16> to vector<2x8x8x128xbf16>
    %56 = vector.extract_strided_slice %52 {offsets = [0, 3, 0, 0], sizes = [2, 8, 8, 128], strides = [1, 1, 1, 1]} : vector<2x12x8x128xbf16> to vector<2x8x8x128xbf16>
    %57 = vector.extract_strided_slice %52 {offsets = [0, 4, 0, 0], sizes = [2, 8, 8, 128], strides = [1, 1, 1, 1]} : vector<2x12x8x128xbf16> to vector<2x8x8x128xbf16>
    %58 = tpu.concatenate %53, %54, %55, %56, %57 in 3 : vector<2x8x8x128xbf16>, vector<2x8x8x128xbf16>, vector<2x8x8x128xbf16>, vector<2x8x8x128xbf16>, vector<2x8x8x128xbf16> -> vector<2x8x8x640xbf16>
    %59 = vector.shape_cast %58 : vector<2x8x8x640xbf16> to vector<128x640xbf16>
    %c1_49 = arith.constant 1 : index
    %c0_50 = arith.constant 0 : index
    %c0_51 = arith.constant 0 : index
    %60 = vector.load %arg14[%c1_49, %c0_50, %c0_51] : memref<5x640x128xbf16, #tpu.memory_space<vmem>>, vector<1x640x128xbf16>
    %61 = vector.shape_cast %60 : vector<1x640x128xbf16> to vector<640x128xbf16>
    %cst_52 = arith.constant dense<0.000000e+00> : vector<128x128xf32>
    %62 = tpu.matmul %59, %61, %cst_52 {dimension_numbers = #tpu.dot_dimension_numbers<[1], [0], [0], [1], [0, 0, 1, 1], [], []>} : vector<128x640xbf16>, vector<640x128xbf16>, vector<128x128xf32> -> vector<128x128xf32>
    %63 = arith.addf %50, %62 : vector<128x128xf32>
    %c0_53 = arith.constant 0 : index
    %c0_54 = arith.constant 0 : index
    %c2_55 = arith.constant 2 : index
    %c0_56 = arith.constant 0 : index
    %64 = vector.load %arg13[%c0_53, %c0_54, %c2_55, %c0_56] : memref<2x12x16x128xf32, #tpu.memory_space<vmem>>, vector<2x12x8x128xf32>
    %65 = arith.truncf %64 : vector<2x12x8x128xf32> to vector<2x12x8x128xbf16>
    %66 = vector.extract_strided_slice %65 {offsets = [0, 0, 0, 0], sizes = [2, 8, 8, 128], strides = [1, 1, 1, 1]} : vector<2x12x8x128xbf16> to vector<2x8x8x128xbf16>
    %67 = vector.extract_strided_slice %65 {offsets = [0, 1, 0, 0], sizes = [2, 8, 8, 128], strides = [1, 1, 1, 1]} : vector<2x12x8x128xbf16> to vector<2x8x8x128xbf16>
    %68 = vector.extract_strided_slice %65 {offsets = [0, 2, 0, 0], sizes = [2, 8, 8, 128], strides = [1, 1, 1, 1]} : vector<2x12x8x128xbf16> to vector<2x8x8x128xbf16>
    %69 = vector.extract_strided_slice %65 {offsets = [0, 3, 0, 0], sizes = [2, 8, 8, 128], strides = [1, 1, 1, 1]} : vector<2x12x8x128xbf16> to vector<2x8x8x128xbf16>
    %70 = vector.extract_strided_slice %65 {offsets = [0, 4, 0, 0], sizes = [2, 8, 8, 128], strides = [1, 1, 1, 1]} : vector<2x12x8x128xbf16> to vector<2x8x8x128xbf16>
    %71 = tpu.concatenate %66, %67, %68, %69, %70 in 3 : vector<2x8x8x128xbf16>, vector<2x8x8x128xbf16>, vector<2x8x8x128xbf16>, vector<2x8x8x128xbf16>, vector<2x8x8x128xbf16> -> vector<2x8x8x640xbf16>
    %72 = vector.shape_cast %71 : vector<2x8x8x640xbf16> to vector<128x640xbf16>
    %c2_57 = arith.constant 2 : index
    %c0_58 = arith.constant 0 : index
    %c0_59 = arith.constant 0 : index
    %73 = vector.load %arg14[%c2_57, %c0_58, %c0_59] : memref<5x640x128xbf16, #tpu.memory_space<vmem>>, vector<1x640x128xbf16>
    %74 = vector.shape_cast %73 : vector<1x640x128xbf16> to vector<640x128xbf16>
    %cst_60 = arith.constant dense<0.000000e+00> : vector<128x128xf32>
    %75 = tpu.matmul %72, %74, %cst_60 {dimension_numbers = #tpu.dot_dimension_numbers<[1], [0], [0], [1], [0, 0, 1, 1], [], []>} : vector<128x640xbf16>, vector<640x128xbf16>, vector<128x128xf32> -> vector<128x128xf32>
    %76 = arith.addf %63, %75 : vector<128x128xf32>
    %c0_61 = arith.constant 0 : index
    %c0_62 = arith.constant 0 : index
    %c3_63 = arith.constant 3 : index
    %c0_64 = arith.constant 0 : index
    %77 = vector.load %arg13[%c0_61, %c0_62, %c3_63, %c0_64] : memref<2x12x16x128xf32, #tpu.memory_space<vmem>>, vector<2x12x8x128xf32>
    %78 = arith.truncf %77 : vector<2x12x8x128xf32> to vector<2x12x8x128xbf16>
    %79 = vector.extract_strided_slice %78 {offsets = [0, 0, 0, 0], sizes = [2, 8, 8, 128], strides = [1, 1, 1, 1]} : vector<2x12x8x128xbf16> to vector<2x8x8x128xbf16>
    %80 = vector.extract_strided_slice %78 {offsets = [0, 1, 0, 0], sizes = [2, 8, 8, 128], strides = [1, 1, 1, 1]} : vector<2x12x8x128xbf16> to vector<2x8x8x128xbf16>
    %81 = vector.extract_strided_slice %78 {offsets = [0, 2, 0, 0], sizes = [2, 8, 8, 128], strides = [1, 1, 1, 1]} : vector<2x12x8x128xbf16> to vector<2x8x8x128xbf16>
    %82 = vector.extract_strided_slice %78 {offsets = [0, 3, 0, 0], sizes = [2, 8, 8, 128], strides = [1, 1, 1, 1]} : vector<2x12x8x128xbf16> to vector<2x8x8x128xbf16>
    %83 = vector.extract_strided_slice %78 {offsets = [0, 4, 0, 0], sizes = [2, 8, 8, 128], strides = [1, 1, 1, 1]} : vector<2x12x8x128xbf16> to vector<2x8x8x128xbf16>
    %84 = tpu.concatenate %79, %80, %81, %82, %83 in 3 : vector<2x8x8x128xbf16>, vector<2x8x8x128xbf16>, vector<2x8x8x128xbf16>, vector<2x8x8x128xbf16>, vector<2x8x8x128xbf16> -> vector<2x8x8x640xbf16>
    %85 = vector.shape_cast %84 : vector<2x8x8x640xbf16> to vector<128x640xbf16>
    %c3_65 = arith.constant 3 : index
    %c0_66 = arith.constant 0 : index
    %c0_67 = arith.constant 0 : index
    %86 = vector.load %arg14[%c3_65, %c0_66, %c0_67] : memref<5x640x128xbf16, #tpu.memory_space<vmem>>, vector<1x640x128xbf16>
    %87 = vector.shape_cast %86 : vector<1x640x128xbf16> to vector<640x128xbf16>
    %cst_68 = arith.constant dense<0.000000e+00> : vector<128x128xf32>
    %88 = tpu.matmul %85, %87, %cst_68 {dimension_numbers = #tpu.dot_dimension_numbers<[1], [0], [0], [1], [0, 0, 1, 1], [], []>} : vector<128x640xbf16>, vector<640x128xbf16>, vector<128x128xf32> -> vector<128x128xf32>
    %89 = arith.addf %76, %88 : vector<128x128xf32>
    %c0_69 = arith.constant 0 : index
    %c0_70 = arith.constant 0 : index
    %c4 = arith.constant 4 : index
    %c0_71 = arith.constant 0 : index
    %90 = vector.load %arg13[%c0_69, %c0_70, %c4, %c0_71] : memref<2x12x16x128xf32, #tpu.memory_space<vmem>>, vector<2x12x8x128xf32>
    %91 = arith.truncf %90 : vector<2x12x8x128xf32> to vector<2x12x8x128xbf16>
    %92 = vector.extract_strided_slice %91 {offsets = [0, 0, 0, 0], sizes = [2, 8, 8, 128], strides = [1, 1, 1, 1]} : vector<2x12x8x128xbf16> to vector<2x8x8x128xbf16>
    %93 = vector.extract_strided_slice %91 {offsets = [0, 1, 0, 0], sizes = [2, 8, 8, 128], strides = [1, 1, 1, 1]} : vector<2x12x8x128xbf16> to vector<2x8x8x128xbf16>
    %94 = vector.extract_strided_slice %91 {offsets = [0, 2, 0, 0], sizes = [2, 8, 8, 128], strides = [1, 1, 1, 1]} : vector<2x12x8x128xbf16> to vector<2x8x8x128xbf16>
    %95 = vector.extract_strided_slice %91 {offsets = [0, 3, 0, 0], sizes = [2, 8, 8, 128], strides = [1, 1, 1, 1]} : vector<2x12x8x128xbf16> to vector<2x8x8x128xbf16>
    %96 = vector.extract_strided_slice %91 {offsets = [0, 4, 0, 0], sizes = [2, 8, 8, 128], strides = [1, 1, 1, 1]} : vector<2x12x8x128xbf16> to vector<2x8x8x128xbf16>
    %97 = tpu.concatenate %92, %93, %94, %95, %96 in 3 : vector<2x8x8x128xbf16>, vector<2x8x8x128xbf16>, vector<2x8x8x128xbf16>, vector<2x8x8x128xbf16>, vector<2x8x8x128xbf16> -> vector<2x8x8x640xbf16>
    %98 = vector.shape_cast %97 : vector<2x8x8x640xbf16> to vector<128x640xbf16>
    %c4_72 = arith.constant 4 : index
    %c0_73 = arith.constant 0 : index
    %c0_74 = arith.constant 0 : index
    %99 = vector.load %arg14[%c4_72, %c0_73, %c0_74] : memref<5x640x128xbf16, #tpu.memory_space<vmem>>, vector<1x640x128xbf16>
    %100 = vector.shape_cast %99 : vector<1x640x128xbf16> to vector<640x128xbf16>
    %cst_75 = arith.constant dense<0.000000e+00> : vector<128x128xf32>
    %101 = tpu.matmul %98, %100, %cst_75 {dimension_numbers = #tpu.dot_dimension_numbers<[1], [0], [0], [1], [0, 0, 1, 1], [], []>} : vector<128x640xbf16>, vector<640x128xbf16>, vector<128x128xf32> -> vector<128x128xf32>
    %102 = arith.addf %89, %101 : vector<128x128xf32>
    %103 = vector.shape_cast %102 : vector<128x128xf32> to vector<2x4x2x8x128xf32>
    %104 = vector.extract_strided_slice %103 {offsets = [0, 0, 0, 0, 0], sizes = [2, 4, 1, 8, 128], strides = [1, 1, 1, 1, 1]} : vector<2x4x2x8x128xf32> to vector<2x4x1x8x128xf32>
    %105 = vector.shape_cast %104 : vector<2x4x1x8x128xf32> to vector<2x4x8x128xf32>
    %106 = vector.extract_strided_slice %103 {offsets = [0, 0, 1, 0, 0], sizes = [2, 4, 1, 8, 128], strides = [1, 1, 1, 1, 1]} : vector<2x4x2x8x128xf32> to vector<2x4x1x8x128xf32>
    %107 = vector.shape_cast %106 : vector<2x4x1x8x128xf32> to vector<2x4x8x128xf32>
    %108 = arith.maximumf %105, %107 : vector<2x4x8x128xf32>
    %109 = vector.extract_strided_slice %108 {offsets = [0, 0, 0, 0], sizes = [2, 1, 1, 128], strides = [1, 1, 1, 1]} : vector<2x4x8x128xf32> to vector<2x1x1x128xf32>
    %110 = vector.shape_cast %109 : vector<2x1x1x128xf32> to vector<2x128xf32>
    %111 = vector.extract_strided_slice %108 {offsets = [0, 0, 1, 0], sizes = [2, 1, 1, 128], strides = [1, 1, 1, 1]} : vector<2x4x8x128xf32> to vector<2x1x1x128xf32>
    %112 = vector.shape_cast %111 : vector<2x1x1x128xf32> to vector<2x128xf32>
    %113 = arith.maximumf %110, %112 : vector<2x128xf32>
    %c0_76 = arith.constant 0 : index
    %c0_77 = arith.constant 0 : index
    %114 = vector.load %arg5[%c0_76, %c0_77] : memref<1x128xf32, #tpu.memory_space<vmem>>, vector<1x128xf32>
    %115 = vector.broadcast %114 : vector<1x128xf32> to vector<2x128xf32>
    %116 = arith.addf %113, %115 : vector<2x128xf32>
    %cst_78 = arith.constant 0.000000e+00 : f32
    %117 = vector.broadcast %cst_78 : f32 to vector<2x128xf32>
    %118 = arith.subf %117, %116 : vector<2x128xf32>
    %119 = math.exp %118 : vector<2x128xf32>
    %cst_79 = arith.constant 1.000000e+00 : f32
    %120 = vector.broadcast %cst_79 : f32 to vector<2x128xf32>
    %121 = arith.addf %120, %119 : vector<2x128xf32>
    %122 = tpu.reciprocal %121 {approx = true} : vector<2x128xf32> -> vector<2x128xf32>
    %123 = vector.extract_strided_slice %108 {offsets = [0, 0, 2, 0], sizes = [2, 1, 1, 128], strides = [1, 1, 1, 1]} : vector<2x4x8x128xf32> to vector<2x1x1x128xf32>
    %124 = vector.shape_cast %123 : vector<2x1x1x128xf32> to vector<2x128xf32>
    %125 = vector.extract_strided_slice %108 {offsets = [0, 0, 3, 0], sizes = [2, 1, 1, 128], strides = [1, 1, 1, 1]} : vector<2x4x8x128xf32> to vector<2x1x1x128xf32>
    %126 = vector.shape_cast %125 : vector<2x1x1x128xf32> to vector<2x128xf32>
    %127 = arith.maximumf %124, %126 : vector<2x128xf32>
    %c0_80 = arith.constant 0 : index
    %c0_81 = arith.constant 0 : index
    %128 = vector.load %arg5[%c0_80, %c0_81] : memref<1x128xf32, #tpu.memory_space<vmem>>, vector<1x128xf32>
    %129 = vector.broadcast %128 : vector<1x128xf32> to vector<2x128xf32>
    %130 = arith.addf %127, %129 : vector<2x128xf32>
    %cst_82 = arith.constant 0.000000e+00 : f32
    %131 = vector.broadcast %cst_82 : f32 to vector<2x128xf32>
    %132 = arith.subf %131, %130 : vector<2x128xf32>
    %133 = math.exp %132 : vector<2x128xf32>
    %cst_83 = arith.constant 1.000000e+00 : f32
    %134 = vector.broadcast %cst_83 : f32 to vector<2x128xf32>
    %135 = arith.addf %134, %133 : vector<2x128xf32>
    %136 = tpu.reciprocal %135 {approx = true} : vector<2x128xf32> -> vector<2x128xf32>
    %137 = vector.extract_strided_slice %108 {offsets = [0, 0, 4, 0], sizes = [2, 1, 1, 128], strides = [1, 1, 1, 1]} : vector<2x4x8x128xf32> to vector<2x1x1x128xf32>
    %138 = vector.shape_cast %137 : vector<2x1x1x128xf32> to vector<2x128xf32>
    %139 = vector.extract_strided_slice %108 {offsets = [0, 0, 5, 0], sizes = [2, 1, 1, 128], strides = [1, 1, 1, 1]} : vector<2x4x8x128xf32> to vector<2x1x1x128xf32>
    %140 = vector.shape_cast %139 : vector<2x1x1x128xf32> to vector<2x128xf32>
    %141 = arith.maximumf %138, %140 : vector<2x128xf32>
    %c0_84 = arith.constant 0 : index
    %c0_85 = arith.constant 0 : index
    %142 = vector.load %arg5[%c0_84, %c0_85] : memref<1x128xf32, #tpu.memory_space<vmem>>, vector<1x128xf32>
    %143 = vector.broadcast %142 : vector<1x128xf32> to vector<2x128xf32>
    %144 = arith.addf %141, %143 : vector<2x128xf32>
    %cst_86 = arith.constant 0.000000e+00 : f32
    %145 = vector.broadcast %cst_86 : f32 to vector<2x128xf32>
    %146 = arith.subf %145, %144 : vector<2x128xf32>
    %147 = math.exp %146 : vector<2x128xf32>
    %cst_87 = arith.constant 1.000000e+00 : f32
    %148 = vector.broadcast %cst_87 : f32 to vector<2x128xf32>
    %149 = arith.addf %148, %147 : vector<2x128xf32>
    %150 = tpu.reciprocal %149 {approx = true} : vector<2x128xf32> -> vector<2x128xf32>
    %151 = vector.extract_strided_slice %108 {offsets = [0, 0, 6, 0], sizes = [2, 1, 1, 128], strides = [1, 1, 1, 1]} : vector<2x4x8x128xf32> to vector<2x1x1x128xf32>
    %152 = vector.shape_cast %151 : vector<2x1x1x128xf32> to vector<2x128xf32>
    %153 = vector.extract_strided_slice %108 {offsets = [0, 0, 7, 0], sizes = [2, 1, 1, 128], strides = [1, 1, 1, 1]} : vector<2x4x8x128xf32> to vector<2x1x1x128xf32>
    %154 = vector.shape_cast %153 : vector<2x1x1x128xf32> to vector<2x128xf32>
    %155 = arith.maximumf %152, %154 : vector<2x128xf32>
    %c0_88 = arith.constant 0 : index
    %c0_89 = arith.constant 0 : index
    %156 = vector.load %arg5[%c0_88, %c0_89] : memref<1x128xf32, #tpu.memory_space<vmem>>, vector<1x128xf32>
    %157 = vector.broadcast %156 : vector<1x128xf32> to vector<2x128xf32>
    %158 = arith.addf %155, %157 : vector<2x128xf32>
    %cst_90 = arith.constant 0.000000e+00 : f32
    %159 = vector.broadcast %cst_90 : f32 to vector<2x128xf32>
    %160 = arith.subf %159, %158 : vector<2x128xf32>
    %161 = math.exp %160 : vector<2x128xf32>
    %cst_91 = arith.constant 1.000000e+00 : f32
    %162 = vector.broadcast %cst_91 : f32 to vector<2x128xf32>
    %163 = arith.addf %162, %161 : vector<2x128xf32>
    %164 = tpu.reciprocal %163 {approx = true} : vector<2x128xf32> -> vector<2x128xf32>
    %165 = vector.extract_strided_slice %108 {offsets = [0, 1, 0, 0], sizes = [2, 1, 1, 128], strides = [1, 1, 1, 1]} : vector<2x4x8x128xf32> to vector<2x1x1x128xf32>
    %166 = vector.shape_cast %165 : vector<2x1x1x128xf32> to vector<2x128xf32>
    %167 = vector.extract_strided_slice %108 {offsets = [0, 1, 1, 0], sizes = [2, 1, 1, 128], strides = [1, 1, 1, 1]} : vector<2x4x8x128xf32> to vector<2x1x1x128xf32>
    %168 = vector.shape_cast %167 : vector<2x1x1x128xf32> to vector<2x128xf32>
    %169 = arith.maximumf %166, %168 : vector<2x128xf32>
    %c0_92 = arith.constant 0 : index
    %c0_93 = arith.constant 0 : index
    %170 = vector.load %arg5[%c0_92, %c0_93] : memref<1x128xf32, #tpu.memory_space<vmem>>, vector<1x128xf32>
    %171 = vector.broadcast %170 : vector<1x128xf32> to vector<2x128xf32>
    %172 = arith.addf %169, %171 : vector<2x128xf32>
    %cst_94 = arith.constant 0.000000e+00 : f32
    %173 = vector.broadcast %cst_94 : f32 to vector<2x128xf32>
    %174 = arith.subf %173, %172 : vector<2x128xf32>
    %175 = math.exp %174 : vector<2x128xf32>
    %cst_95 = arith.constant 1.000000e+00 : f32
    %176 = vector.broadcast %cst_95 : f32 to vector<2x128xf32>
    %177 = arith.addf %176, %175 : vector<2x128xf32>
    %178 = tpu.reciprocal %177 {approx = true} : vector<2x128xf32> -> vector<2x128xf32>
    %179 = vector.extract_strided_slice %108 {offsets = [0, 1, 2, 0], sizes = [2, 1, 1, 128], strides = [1, 1, 1, 1]} : vector<2x4x8x128xf32> to vector<2x1x1x128xf32>
    %180 = vector.shape_cast %179 : vector<2x1x1x128xf32> to vector<2x128xf32>
    %181 = vector.extract_strided_slice %108 {offsets = [0, 1, 3, 0], sizes = [2, 1, 1, 128], strides = [1, 1, 1, 1]} : vector<2x4x8x128xf32> to vector<2x1x1x128xf32>
    %182 = vector.shape_cast %181 : vector<2x1x1x128xf32> to vector<2x128xf32>
    %183 = arith.maximumf %180, %182 : vector<2x128xf32>
    %c0_96 = arith.constant 0 : index
    %c0_97 = arith.constant 0 : index
    %184 = vector.load %arg5[%c0_96, %c0_97] : memref<1x128xf32, #tpu.memory_space<vmem>>, vector<1x128xf32>
    %185 = vector.broadcast %184 : vector<1x128xf32> to vector<2x128xf32>
    %186 = arith.addf %183, %185 : vector<2x128xf32>
    %cst_98 = arith.constant 0.000000e+00 : f32
    %187 = vector.broadcast %cst_98 : f32 to vector<2x128xf32>
    %188 = arith.subf %187, %186 : vector<2x128xf32>
    %189 = math.exp %188 : vector<2x128xf32>
    %cst_99 = arith.constant 1.000000e+00 : f32
    %190 = vector.broadcast %cst_99 : f32 to vector<2x128xf32>
    %191 = arith.addf %190, %189 : vector<2x128xf32>
    %192 = tpu.reciprocal %191 {approx = true} : vector<2x128xf32> -> vector<2x128xf32>
    %193 = vector.extract_strided_slice %108 {offsets = [0, 1, 4, 0], sizes = [2, 1, 1, 128], strides = [1, 1, 1, 1]} : vector<2x4x8x128xf32> to vector<2x1x1x128xf32>
    %194 = vector.shape_cast %193 : vector<2x1x1x128xf32> to vector<2x128xf32>
    %195 = vector.extract_strided_slice %108 {offsets = [0, 1, 5, 0], sizes = [2, 1, 1, 128], strides = [1, 1, 1, 1]} : vector<2x4x8x128xf32> to vector<2x1x1x128xf32>
    %196 = vector.shape_cast %195 : vector<2x1x1x128xf32> to vector<2x128xf32>
    %197 = arith.maximumf %194, %196 : vector<2x128xf32>
    %c0_100 = arith.constant 0 : index
    %c0_101 = arith.constant 0 : index
    %198 = vector.load %arg5[%c0_100, %c0_101] : memref<1x128xf32, #tpu.memory_space<vmem>>, vector<1x128xf32>
    %199 = vector.broadcast %198 : vector<1x128xf32> to vector<2x128xf32>
    %200 = arith.addf %197, %199 : vector<2x128xf32>
    %cst_102 = arith.constant 0.000000e+00 : f32
    %201 = vector.broadcast %cst_102 : f32 to vector<2x128xf32>
    %202 = arith.subf %201, %200 : vector<2x128xf32>
    %203 = math.exp %202 : vector<2x128xf32>
    %cst_103 = arith.constant 1.000000e+00 : f32
    %204 = vector.broadcast %cst_103 : f32 to vector<2x128xf32>
    %205 = arith.addf %204, %203 : vector<2x128xf32>
    %206 = tpu.reciprocal %205 {approx = true} : vector<2x128xf32> -> vector<2x128xf32>
    %207 = vector.extract_strided_slice %108 {offsets = [0, 1, 6, 0], sizes = [2, 1, 1, 128], strides = [1, 1, 1, 1]} : vector<2x4x8x128xf32> to vector<2x1x1x128xf32>
    %208 = vector.shape_cast %207 : vector<2x1x1x128xf32> to vector<2x128xf32>
    %209 = vector.extract_strided_slice %108 {offsets = [0, 1, 7, 0], sizes = [2, 1, 1, 128], strides = [1, 1, 1, 1]} : vector<2x4x8x128xf32> to vector<2x1x1x128xf32>
    %210 = vector.shape_cast %209 : vector<2x1x1x128xf32> to vector<2x128xf32>
    %211 = arith.maximumf %208, %210 : vector<2x128xf32>
    %c0_104 = arith.constant 0 : index
    %c0_105 = arith.constant 0 : index
    %212 = vector.load %arg5[%c0_104, %c0_105] : memref<1x128xf32, #tpu.memory_space<vmem>>, vector<1x128xf32>
    %213 = vector.broadcast %212 : vector<1x128xf32> to vector<2x128xf32>
    %214 = arith.addf %211, %213 : vector<2x128xf32>
    %cst_106 = arith.constant 0.000000e+00 : f32
    %215 = vector.broadcast %cst_106 : f32 to vector<2x128xf32>
    %216 = arith.subf %215, %214 : vector<2x128xf32>
    %217 = math.exp %216 : vector<2x128xf32>
    %cst_107 = arith.constant 1.000000e+00 : f32
    %218 = vector.broadcast %cst_107 : f32 to vector<2x128xf32>
    %219 = arith.addf %218, %217 : vector<2x128xf32>
    %220 = tpu.reciprocal %219 {approx = true} : vector<2x128xf32> -> vector<2x128xf32>
    %221 = vector.extract_strided_slice %108 {offsets = [0, 2, 0, 0], sizes = [2, 1, 1, 128], strides = [1, 1, 1, 1]} : vector<2x4x8x128xf32> to vector<2x1x1x128xf32>
    %222 = vector.shape_cast %221 : vector<2x1x1x128xf32> to vector<2x128xf32>
    %223 = vector.extract_strided_slice %108 {offsets = [0, 2, 1, 0], sizes = [2, 1, 1, 128], strides = [1, 1, 1, 1]} : vector<2x4x8x128xf32> to vector<2x1x1x128xf32>
    %224 = vector.shape_cast %223 : vector<2x1x1x128xf32> to vector<2x128xf32>
    %225 = arith.maximumf %222, %224 : vector<2x128xf32>
    %c0_108 = arith.constant 0 : index
    %c0_109 = arith.constant 0 : index
    %226 = vector.load %arg5[%c0_108, %c0_109] : memref<1x128xf32, #tpu.memory_space<vmem>>, vector<1x128xf32>
    %227 = vector.broadcast %226 : vector<1x128xf32> to vector<2x128xf32>
    %228 = arith.addf %225, %227 : vector<2x128xf32>
    %cst_110 = arith.constant 0.000000e+00 : f32
    %229 = vector.broadcast %cst_110 : f32 to vector<2x128xf32>
    %230 = arith.subf %229, %228 : vector<2x128xf32>
    %231 = math.exp %230 : vector<2x128xf32>
    %cst_111 = arith.constant 1.000000e+00 : f32
    %232 = vector.broadcast %cst_111 : f32 to vector<2x128xf32>
    %233 = arith.addf %232, %231 : vector<2x128xf32>
    %234 = tpu.reciprocal %233 {approx = true} : vector<2x128xf32> -> vector<2x128xf32>
    %235 = vector.extract_strided_slice %108 {offsets = [0, 2, 2, 0], sizes = [2, 1, 1, 128], strides = [1, 1, 1, 1]} : vector<2x4x8x128xf32> to vector<2x1x1x128xf32>
    %236 = vector.shape_cast %235 : vector<2x1x1x128xf32> to vector<2x128xf32>
    %237 = vector.extract_strided_slice %108 {offsets = [0, 2, 3, 0], sizes = [2, 1, 1, 128], strides = [1, 1, 1, 1]} : vector<2x4x8x128xf32> to vector<2x1x1x128xf32>
    %238 = vector.shape_cast %237 : vector<2x1x1x128xf32> to vector<2x128xf32>
    %239 = arith.maximumf %236, %238 : vector<2x128xf32>
    %c0_112 = arith.constant 0 : index
    %c0_113 = arith.constant 0 : index
    %240 = vector.load %arg5[%c0_112, %c0_113] : memref<1x128xf32, #tpu.memory_space<vmem>>, vector<1x128xf32>
    %241 = vector.broadcast %240 : vector<1x128xf32> to vector<2x128xf32>
    %242 = arith.addf %239, %241 : vector<2x128xf32>
    %cst_114 = arith.constant 0.000000e+00 : f32
    %243 = vector.broadcast %cst_114 : f32 to vector<2x128xf32>
    %244 = arith.subf %243, %242 : vector<2x128xf32>
    %245 = math.exp %244 : vector<2x128xf32>
    %cst_115 = arith.constant 1.000000e+00 : f32
    %246 = vector.broadcast %cst_115 : f32 to vector<2x128xf32>
    %247 = arith.addf %246, %245 : vector<2x128xf32>
    %248 = tpu.reciprocal %247 {approx = true} : vector<2x128xf32> -> vector<2x128xf32>
    %249 = vector.extract_strided_slice %108 {offsets = [0, 2, 4, 0], sizes = [2, 1, 1, 128], strides = [1, 1, 1, 1]} : vector<2x4x8x128xf32> to vector<2x1x1x128xf32>
    %250 = vector.shape_cast %249 : vector<2x1x1x128xf32> to vector<2x128xf32>
    %251 = vector.extract_strided_slice %108 {offsets = [0, 2, 5, 0], sizes = [2, 1, 1, 128], strides = [1, 1, 1, 1]} : vector<2x4x8x128xf32> to vector<2x1x1x128xf32>
    %252 = vector.shape_cast %251 : vector<2x1x1x128xf32> to vector<2x128xf32>
    %253 = arith.maximumf %250, %252 : vector<2x128xf32>
    %c0_116 = arith.constant 0 : index
    %c0_117 = arith.constant 0 : index
    %254 = vector.load %arg5[%c0_116, %c0_117] : memref<1x128xf32, #tpu.memory_space<vmem>>, vector<1x128xf32>
    %255 = vector.broadcast %254 : vector<1x128xf32> to vector<2x128xf32>
    %256 = arith.addf %253, %255 : vector<2x128xf32>
    %cst_118 = arith.constant 0.000000e+00 : f32
    %257 = vector.broadcast %cst_118 : f32 to vector<2x128xf32>
    %258 = arith.subf %257, %256 : vector<2x128xf32>
    %259 = math.exp %258 : vector<2x128xf32>
    %cst_119 = arith.constant 1.000000e+00 : f32
    %260 = vector.broadcast %cst_119 : f32 to vector<2x128xf32>
    %261 = arith.addf %260, %259 : vector<2x128xf32>
    %262 = tpu.reciprocal %261 {approx = true} : vector<2x128xf32> -> vector<2x128xf32>
    %263 = vector.extract_strided_slice %108 {offsets = [0, 2, 6, 0], sizes = [2, 1, 1, 128], strides = [1, 1, 1, 1]} : vector<2x4x8x128xf32> to vector<2x1x1x128xf32>
    %264 = vector.shape_cast %263 : vector<2x1x1x128xf32> to vector<2x128xf32>
    %265 = vector.extract_strided_slice %108 {offsets = [0, 2, 7, 0], sizes = [2, 1, 1, 128], strides = [1, 1, 1, 1]} : vector<2x4x8x128xf32> to vector<2x1x1x128xf32>
    %266 = vector.shape_cast %265 : vector<2x1x1x128xf32> to vector<2x128xf32>
    %267 = arith.maximumf %264, %266 : vector<2x128xf32>
    %c0_120 = arith.constant 0 : index
    %c0_121 = arith.constant 0 : index
    %268 = vector.load %arg5[%c0_120, %c0_121] : memref<1x128xf32, #tpu.memory_space<vmem>>, vector<1x128xf32>
    %269 = vector.broadcast %268 : vector<1x128xf32> to vector<2x128xf32>
    %270 = arith.addf %267, %269 : vector<2x128xf32>
    %cst_122 = arith.constant 0.000000e+00 : f32
    %271 = vector.broadcast %cst_122 : f32 to vector<2x128xf32>
    %272 = arith.subf %271, %270 : vector<2x128xf32>
    %273 = math.exp %272 : vector<2x128xf32>
    %cst_123 = arith.constant 1.000000e+00 : f32
    %274 = vector.broadcast %cst_123 : f32 to vector<2x128xf32>
    %275 = arith.addf %274, %273 : vector<2x128xf32>
    %276 = tpu.reciprocal %275 {approx = true} : vector<2x128xf32> -> vector<2x128xf32>
    %277 = vector.extract_strided_slice %108 {offsets = [0, 3, 0, 0], sizes = [2, 1, 1, 128], strides = [1, 1, 1, 1]} : vector<2x4x8x128xf32> to vector<2x1x1x128xf32>
    %278 = vector.shape_cast %277 : vector<2x1x1x128xf32> to vector<2x128xf32>
    %279 = vector.extract_strided_slice %108 {offsets = [0, 3, 1, 0], sizes = [2, 1, 1, 128], strides = [1, 1, 1, 1]} : vector<2x4x8x128xf32> to vector<2x1x1x128xf32>
    %280 = vector.shape_cast %279 : vector<2x1x1x128xf32> to vector<2x128xf32>
    %281 = arith.maximumf %278, %280 : vector<2x128xf32>
    %c0_124 = arith.constant 0 : index
    %c0_125 = arith.constant 0 : index
    %282 = vector.load %arg5[%c0_124, %c0_125] : memref<1x128xf32, #tpu.memory_space<vmem>>, vector<1x128xf32>
    %283 = vector.broadcast %282 : vector<1x128xf32> to vector<2x128xf32>
    %284 = arith.addf %281, %283 : vector<2x128xf32>
    %cst_126 = arith.constant 0.000000e+00 : f32
    %285 = vector.broadcast %cst_126 : f32 to vector<2x128xf32>
    %286 = arith.subf %285, %284 : vector<2x128xf32>
    %287 = math.exp %286 : vector<2x128xf32>
    %cst_127 = arith.constant 1.000000e+00 : f32
    %288 = vector.broadcast %cst_127 : f32 to vector<2x128xf32>
    %289 = arith.addf %288, %287 : vector<2x128xf32>
    %290 = tpu.reciprocal %289 {approx = true} : vector<2x128xf32> -> vector<2x128xf32>
    %291 = vector.extract_strided_slice %108 {offsets = [0, 3, 2, 0], sizes = [2, 1, 1, 128], strides = [1, 1, 1, 1]} : vector<2x4x8x128xf32> to vector<2x1x1x128xf32>
    %292 = vector.shape_cast %291 : vector<2x1x1x128xf32> to vector<2x128xf32>
    %293 = vector.extract_strided_slice %108 {offsets = [0, 3, 3, 0], sizes = [2, 1, 1, 128], strides = [1, 1, 1, 1]} : vector<2x4x8x128xf32> to vector<2x1x1x128xf32>
    %294 = vector.shape_cast %293 : vector<2x1x1x128xf32> to vector<2x128xf32>
    %295 = arith.maximumf %292, %294 : vector<2x128xf32>
    %c0_128 = arith.constant 0 : index
    %c0_129 = arith.constant 0 : index
    %296 = vector.load %arg5[%c0_128, %c0_129] : memref<1x128xf32, #tpu.memory_space<vmem>>, vector<1x128xf32>
    %297 = vector.broadcast %296 : vector<1x128xf32> to vector<2x128xf32>
    %298 = arith.addf %295, %297 : vector<2x128xf32>
    %cst_130 = arith.constant 0.000000e+00 : f32
    %299 = vector.broadcast %cst_130 : f32 to vector<2x128xf32>
    %300 = arith.subf %299, %298 : vector<2x128xf32>
    %301 = math.exp %300 : vector<2x128xf32>
    %cst_131 = arith.constant 1.000000e+00 : f32
    %302 = vector.broadcast %cst_131 : f32 to vector<2x128xf32>
    %303 = arith.addf %302, %301 : vector<2x128xf32>
    %304 = tpu.reciprocal %303 {approx = true} : vector<2x128xf32> -> vector<2x128xf32>
    %305 = vector.extract_strided_slice %108 {offsets = [0, 3, 4, 0], sizes = [2, 1, 1, 128], strides = [1, 1, 1, 1]} : vector<2x4x8x128xf32> to vector<2x1x1x128xf32>
    %306 = vector.shape_cast %305 : vector<2x1x1x128xf32> to vector<2x128xf32>
    %307 = vector.extract_strided_slice %108 {offsets = [0, 3, 5, 0], sizes = [2, 1, 1, 128], strides = [1, 1, 1, 1]} : vector<2x4x8x128xf32> to vector<2x1x1x128xf32>
    %308 = vector.shape_cast %307 : vector<2x1x1x128xf32> to vector<2x128xf32>
    %309 = arith.maximumf %306, %308 : vector<2x128xf32>
    %c0_132 = arith.constant 0 : index
    %c0_133 = arith.constant 0 : index
    %310 = vector.load %arg5[%c0_132, %c0_133] : memref<1x128xf32, #tpu.memory_space<vmem>>, vector<1x128xf32>
    %311 = vector.broadcast %310 : vector<1x128xf32> to vector<2x128xf32>
    %312 = arith.addf %309, %311 : vector<2x128xf32>
    %cst_134 = arith.constant 0.000000e+00 : f32
    %313 = vector.broadcast %cst_134 : f32 to vector<2x128xf32>
    %314 = arith.subf %313, %312 : vector<2x128xf32>
    %315 = math.exp %314 : vector<2x128xf32>
    %cst_135 = arith.constant 1.000000e+00 : f32
    %316 = vector.broadcast %cst_135 : f32 to vector<2x128xf32>
    %317 = arith.addf %316, %315 : vector<2x128xf32>
    %318 = tpu.reciprocal %317 {approx = true} : vector<2x128xf32> -> vector<2x128xf32>
    %319 = vector.extract_strided_slice %108 {offsets = [0, 3, 6, 0], sizes = [2, 1, 1, 128], strides = [1, 1, 1, 1]} : vector<2x4x8x128xf32> to vector<2x1x1x128xf32>
    %320 = vector.shape_cast %319 : vector<2x1x1x128xf32> to vector<2x128xf32>
    %321 = vector.extract_strided_slice %108 {offsets = [0, 3, 7, 0], sizes = [2, 1, 1, 128], strides = [1, 1, 1, 1]} : vector<2x4x8x128xf32> to vector<2x1x1x128xf32>
    %322 = vector.shape_cast %321 : vector<2x1x1x128xf32> to vector<2x128xf32>
    %323 = arith.maximumf %320, %322 : vector<2x128xf32>
    %c0_136 = arith.constant 0 : index
    %c0_137 = arith.constant 0 : index
    %324 = vector.load %arg5[%c0_136, %c0_137] : memref<1x128xf32, #tpu.memory_space<vmem>>, vector<1x128xf32>
    %325 = vector.broadcast %324 : vector<1x128xf32> to vector<2x128xf32>
    %326 = arith.addf %323, %325 : vector<2x128xf32>
    %cst_138 = arith.constant 0.000000e+00 : f32
    %327 = vector.broadcast %cst_138 : f32 to vector<2x128xf32>
    %328 = arith.subf %327, %326 : vector<2x128xf32>
    %329 = math.exp %328 : vector<2x128xf32>
    %cst_139 = arith.constant 1.000000e+00 : f32
    %330 = vector.broadcast %cst_139 : f32 to vector<2x128xf32>
    %331 = arith.addf %330, %329 : vector<2x128xf32>
    %332 = tpu.reciprocal %331 {approx = true} : vector<2x128xf32> -> vector<2x128xf32>
    %333 = tpu.concatenate %122, %136, %150, %164, %178, %192, %206, %220, %234, %248, %262, %276, %290, %304, %318, %332 in 1 : vector<2x128xf32>, vector<2x128xf32>, vector<2x128xf32>, vector<2x128xf32>, vector<2x128xf32>, vector<2x128xf32>, vector<2x128xf32>, vector<2x128xf32>, vector<2x128xf32>, vector<2x128xf32>, vector<2x128xf32>, vector<2x128xf32>, vector<2x128xf32>, vector<2x128xf32>, vector<2x128xf32>, vector<2x128xf32> -> vector<2x2048xf32>
    %334 = arith.truncf %333 : vector<2x2048xf32> to vector<2x2048xbf16>
    %c0_140 = arith.constant 0 : index
    %c0_141 = arith.constant 0 : index
    %335 = vector.load %arg15[%c0_140, %c0_141] : memref<2048x128xbf16, #tpu.memory_space<vmem>>, vector<2048x128xbf16>
    %cst_142 = arith.constant dense<0.000000e+00> : vector<2x128xf32>
    %336 = tpu.matmul %334, %335, %cst_142 {dimension_numbers = #tpu.dot_dimension_numbers<[1], [0], [0], [1], [0, 0, 1, 1], [], []>} : vector<2x2048xbf16>, vector<2048x128xbf16>, vector<2x128xf32> -> vector<2x128xf32>
    %c0_143 = arith.constant 0 : index
    %c0_144 = arith.constant 0 : index
    %337 = vector.load %arg7[%c0_143, %c0_144] : memref<1x128xf32, #tpu.memory_space<vmem>>, vector<1x128xf32>
    %338 = vector.broadcast %337 : vector<1x128xf32> to vector<2x128xf32>
    %339 = arith.addf %336, %338 : vector<2x128xf32>
    %cst_145 = arith.constant 0.000000e+00 : f32
    %340 = vector.broadcast %cst_145 : f32 to vector<2x128xf32>
    %341 = arith.subf %340, %339 : vector<2x128xf32>
    %342 = math.exp %341 : vector<2x128xf32>
    %cst_146 = arith.constant 1.000000e+00 : f32
    %343 = vector.broadcast %cst_146 : f32 to vector<2x128xf32>
    %344 = arith.addf %343, %342 : vector<2x128xf32>
    %345 = tpu.reciprocal %344 {approx = true} : vector<2x128xf32> -> vector<2x128xf32>
    %346 = arith.truncf %345 : vector<2x128xf32> to vector<2x128xbf16>
    %c0_147 = arith.constant 0 : index
    %c0_148 = arith.constant 0 : index
    %347 = vector.load %arg8[%c0_147, %c0_148] : memref<128x128xbf16, #tpu.memory_space<vmem>>, vector<128x128xbf16>
    %cst_149 = arith.constant dense<0.000000e+00> : vector<2x128xf32>
    %348 = tpu.matmul %346, %347, %cst_149 {dimension_numbers = #tpu.dot_dimension_numbers<[1], [0], [0], [1], [0, 0, 1, 1], [], []>} : vector<2x128xbf16>, vector<128x128xbf16>, vector<2x128xf32> -> vector<2x128xf32>
    %c0_150 = arith.constant 0 : index
    %c0_151 = arith.constant 0 : index
    %349 = vector.load %arg9[%c0_150, %c0_151] : memref<1x128xf32, #tpu.memory_space<vmem>>, vector<1x128xf32>
    %350 = vector.broadcast %349 : vector<1x128xf32> to vector<2x128xf32>
    %351 = arith.addf %348, %350 : vector<2x128xf32>
    %cst_152 = arith.constant 0.000000e+00 : f32
    %352 = vector.broadcast %cst_152 : f32 to vector<2x128xf32>
    %353 = arith.subf %352, %351 : vector<2x128xf32>
    %354 = math.exp %353 : vector<2x128xf32>
    %cst_153 = arith.constant 1.000000e+00 : f32
    %355 = vector.broadcast %cst_153 : f32 to vector<2x128xf32>
    %356 = arith.addf %355, %354 : vector<2x128xf32>
    %357 = tpu.reciprocal %356 {approx = true} : vector<2x128xf32> -> vector<2x128xf32>
    %358 = arith.truncf %357 : vector<2x128xf32> to vector<2x128xbf16>
    %c0_154 = arith.constant 0 : index
    %c0_155 = arith.constant 0 : index
    %359 = vector.load %arg10[%c0_154, %c0_155] : memref<128x128xbf16, #tpu.memory_space<vmem>>, vector<128x128xbf16>
    %cst_156 = arith.constant dense<0.000000e+00> : vector<2x128xf32>
    %360 = tpu.matmul %358, %359, %cst_156 {dimension_numbers = #tpu.dot_dimension_numbers<[1], [0], [0], [1], [0, 0, 1, 1], [], []>} : vector<2x128xbf16>, vector<128x128xbf16>, vector<2x128xf32> -> vector<2x128xf32>
    %c0_157 = arith.constant 0 : index
    %c0_158 = arith.constant 0 : index
    %361 = vector.load %arg11[%c0_157, %c0_158] : memref<1x128xf32, #tpu.memory_space<vmem>>, vector<1x128xf32>
    %362 = vector.broadcast %361 : vector<1x128xf32> to vector<2x128xf32>
    %363 = arith.addf %360, %362 : vector<2x128xf32>
    %c0_159 = arith.constant 0 : index
    %c0_160 = arith.constant 0 : index
    %364 = vector.load %arg12[%c0_159, %c0_160] : memref<2x128xf32, #tpu.memory_space<vmem>>, vector<2x128xf32>
    tpu.vector_store %arg12[%c0_159, %c0_160], %363 {strides = array<i32>} : memref<2x128xf32, #tpu.memory_space<vmem>>, vector<2x128xf32>,
    return
  }
  func.func @transform_0(%arg0: i32) -> (i32, i32, i32, i32, i32) {
    %c0_i32 = arith.constant 0 : i32
    %c0_i32_0 = arith.constant 0 : i32
    %c0_i32_1 = arith.constant 0 : i32
    %c0_i32_2 = arith.constant 0 : i32
    %c0_i32_3 = arith.constant 0 : i32
    return %c0_i32, %arg0, %c0_i32_0, %c0_i32_1, %c0_i32_2 : i32, i32, i32, i32, i32
  }
  func.func @transform_1(%arg0: i32) -> (i32, i32) {
    %c0_i32 = arith.constant 0 : i32
    %c0_i32_0 = arith.constant 0 : i32
    %c0_i32_1 = arith.constant 0 : i32
    return %c0_i32, %c0_i32_0 : i32, i32
  }
  func.func @transform_2(%arg0: i32) -> (i32, i32) {
    %c0_i32 = arith.constant 0 : i32
    %c0_i32_0 = arith.constant 0 : i32
    %c0_i32_1 = arith.constant 0 : i32
    return %c0_i32, %c0_i32_0 : i32, i32
  }
  func.func @transform_3(%arg0: i32) -> (i32, i32, i32) {
    %c0_i32 = arith.constant 0 : i32
    %c0_i32_0 = arith.constant 0 : i32
    %c0_i32_1 = arith.constant 0 : i32
    %c0_i32_2 = arith.constant 0 : i32
    return %c0_i32, %c0_i32_0, %c0_i32_1 : i32, i32, i32
  }
  func.func @transform_4(%arg0: i32) -> (i32, i32) {
    %c0_i32 = arith.constant 0 : i32
    %c0_i32_0 = arith.constant 0 : i32
    %c0_i32_1 = arith.constant 0 : i32
    return %c0_i32, %c0_i32_0 : i32, i32
  }
  func.func @transform_5(%arg0: i32) -> (i32, i32) {
    %c0_i32 = arith.constant 0 : i32
    %c0_i32_0 = arith.constant 0 : i32
    %c0_i32_1 = arith.constant 0 : i32
    return %c0_i32, %c0_i32_0 : i32, i32
  }
  func.func @transform_6(%arg0: i32) -> (i32, i32) {
    %c0_i32 = arith.constant 0 : i32
    %c0_i32_0 = arith.constant 0 : i32
    %c0_i32_1 = arith.constant 0 : i32
    return %c0_i32, %c0_i32_0 : i32, i32
  }
  func.func @transform_7(%arg0: i32) -> (i32, i32) {
    %c0_i32 = arith.constant 0 : i32
    %c0_i32_0 = arith.constant 0 : i32
    %c0_i32_1 = arith.constant 0 : i32
    return %c0_i32, %c0_i32_0 : i32, i32
  }
  func.func @transform_8(%arg0: i32) -> (i32, i32) {
    %c0_i32 = arith.constant 0 : i32
    %c0_i32_0 = arith.constant 0 : i32
    %c0_i32_1 = arith.constant 0 : i32
    return %c0_i32, %c0_i32_0 : i32, i32
  }
  func.func @transform_9(%arg0: i32) -> (i32, i32) {
    %c0_i32 = arith.constant 0 : i32
    %c0_i32_0 = arith.constant 0 : i32
    %c0_i32_1 = arith.constant 0 : i32
    return %c0_i32, %c0_i32_0 : i32, i32
  }
  func.func @transform_10(%arg0: i32) -> (i32, i32) {
    %c0_i32 = arith.constant 0 : i32
    %c0_i32_0 = arith.constant 0 : i32
    %c0_i32_1 = arith.constant 0 : i32
    return %c0_i32, %c0_i32_0 : i32, i32
  }
  func.func @transform_11(%arg0: i32) -> (i32, i32) {
    %c0_i32 = arith.constant 0 : i32
    %c0_i32_0 = arith.constant 0 : i32
    return %arg0, %c0_i32 : i32, i32
  }
}

</mosaic_0001>

<llo_original>
// kernel: lenet_forward.1
$region0: #{lenet_forward.1}
  #allocation0 [shape = 'u32[]', space=smem, size = 0x4, offset = 0x4, fixed_abs, tag = 'smem constant byte address 0x4 - core index']
  #allocation1 [shape = 'u32[72,128]{1,0:T(1,128)}', space=vmem, size = 0x9000, scoped, tag = 'internal scratch']
  #allocation2 [shape = 'f32[2,12,16,128]{3,2,1,0:T(8,128)}', space=vmem, size = 0x30000, scoped, tag = 'scratch operand']
  #allocation3 [shape = 'bf16[5,640,128]{2,1,0:T(8,128)(2,1)}', space=vmem, size = 0xc8000, scoped, tag = 'scratch operand']
  #allocation4 [shape = 'bf16[2048,128]{1,0:T(8,128)(2,1)}', space=vmem, size = 0x80000, scoped, tag = 'scratch operand']
  %s0 = inlined_call_operand.vmem [shape: bf16[4,2,12,16,128], index: 0, kind: input, shape index: {}]
  %s1 = inlined_call_operand.vmem [shape: bf16[128,128], index: 1, kind: input, shape index: {}]
  %s2 = inlined_call_operand.vmem [shape: f32[1,128], index: 2, kind: input, shape index: {}]
  %s3 = inlined_call_operand.vmem [shape: bf16[5,40,128], index: 3, kind: input, shape index: {}]
  %s4 = inlined_call_operand.vmem [shape: f32[1,128], index: 4, kind: input, shape index: {}]
  %s5 = inlined_call_operand.vmem [shape: bf16[256,128], index: 5, kind: input, shape index: {}]
  %s6 = inlined_call_operand.vmem [shape: f32[1,128], index: 6, kind: input, shape index: {}]
  %s7 = inlined_call_operand.vmem [shape: bf16[128,128], index: 7, kind: input, shape index: {}]
  %s8 = inlined_call_operand.vmem [shape: f32[1,128], index: 8, kind: input, shape index: {}]
  %s9 = inlined_call_operand.vmem [shape: bf16[128,128], index: 9, kind: input, shape index: {}]
  %s10 = inlined_call_operand.vmem [shape: f32[1,128], index: 10, kind: input, shape index: {}]
  %s11 = inlined_call_operand.hbm [shape: f32[2,128], index: 11, kind: output, shape index: {}]
  %s12 = sld [smem:[#allocation0]]
  $region58: #{lenet_forward.1} parent=0
    _
  %s14 = ssub.s32 1, %s12
  %s15 = scalar_select 0, %s14, %s12
  $region1: #{lenet_forward.1} parent=0
    #allocation5 [shape = 'u8[1024]{0}', space=vmem, size = 0x400, scoped, tag = 'output window, operand 0, single buffered']
    #allocation6 [shape = 's32[1]{0}', space=sflag, size = 0x4, scoped, tag = 'scoped memory for lenet_forward.1']
    %16 = vsyncpa [#allocation6], 0
    // Predicated region
    $region2: #{lenet_forward.1} parent=1 // pred_check
      _
    $region3: #{lenet_forward.1} parent=1 // pred_check_branch
      %18 = sbr.rel (0) target = $region5
    $region4: #{lenet_forward.1} parent=1 // pred_region
      _
    $region5: #{lenet_forward.1} parent=1 // pred_fallthru
      _
    // Predicated region
    $region6: #{lenet_forward.1} parent=1 // pred_check
      _
    $region7: #{lenet_forward.1} parent=1 // pred_check_branch
      %20 = sbr.rel (0) target = $region9
    $region8: #{lenet_forward.1} parent=1 // pred_region
      _
    $region9: #{lenet_forward.1} parent=1 // pred_fallthru
      _
    // Predicated region
    $region10: #{lenet_forward.1} parent=1 // pred_check
      _
    $region11: #{lenet_forward.1} parent=1 // pred_check_branch
      %22 = sbr.rel (0) target = $region13
    $region12: #{lenet_forward.1} parent=1 // pred_region
      _
    $region13: #{lenet_forward.1} parent=1 // pred_fallthru
      _
    // Predicated region
    $region14: #{lenet_forward.1} parent=1 // pred_check
      _
    $region15: #{lenet_forward.1} parent=1 // pred_check_branch
      %24 = sbr.rel (0) target = $region17
    $region16: #{lenet_forward.1} parent=1 // pred_region
      _
    $region17: #{lenet_forward.1} parent=1 // pred_fallthru
      _
    // Predicated region
    $region18: #{lenet_forward.1} parent=1 // pred_check
      _
    $region19: #{lenet_forward.1} parent=1 // pred_check_branch
      %26 = sbr.rel (0) target = $region21
    $region20: #{lenet_forward.1} parent=1 // pred_region
      _
    $region21: #{lenet_forward.1} parent=1 // pred_fallthru
      _
    // Predicated region
    $region22: #{lenet_forward.1} parent=1 // pred_check
      _
    $region23: #{lenet_forward.1} parent=1 // pred_check_branch
      %28 = sbr.rel (0) target = $region25
    $region24: #{lenet_forward.1} parent=1 // pred_region
      _
    $region25: #{lenet_forward.1} parent=1 // pred_fallthru
      _
    // Predicated region
    $region26: #{lenet_forward.1} parent=1 // pred_check
      _
    $region27: #{lenet_forward.1} parent=1 // pred_check_branch
      %30 = sbr.rel (0) target = $region29
    $region28: #{lenet_forward.1} parent=1 // pred_region
      _
    $region29: #{lenet_forward.1} parent=1 // pred_fallthru
      _
    // Predicated region
    $region30: #{lenet_forward.1} parent=1 // pred_check
      _
    $region31: #{lenet_forward.1} parent=1 // pred_check_branch
      %32 = sbr.rel (0) target = $region33
    $region32: #{lenet_forward.1} parent=1 // pred_region
      _
    $region33: #{lenet_forward.1} parent=1 // pred_fallthru
      _
    // Predicated region
    $region34: #{lenet_forward.1} parent=1 // pred_check
      _
    $region35: #{lenet_forward.1} parent=1 // pred_check_branch
      %34 = sbr.rel (0) target = $region37
    $region36: #{lenet_forward.1} parent=1 // pred_region
      _
    $region37: #{lenet_forward.1} parent=1 // pred_fallthru
      _
    // Predicated region
    $region38: #{lenet_forward.1} parent=1 // pred_check
      _
    $region39: #{lenet_forward.1} parent=1 // pred_check_branch
      %36 = sbr.rel (0) target = $region41
    $region40: #{lenet_forward.1} parent=1 // pred_region
      _
    $region41: #{lenet_forward.1} parent=1 // pred_fallthru
      _
    // Predicated region
    $region42: #{lenet_forward.1} parent=1 // pred_check
      _
    $region43: #{lenet_forward.1} parent=1 // pred_check_branch
      %38 = sbr.rel (0) target = $region45
    $region44: #{lenet_forward.1} parent=1 // pred_region
      _
    $region45: #{lenet_forward.1} parent=1 // pred_fallthru
      _
    %p40 = scmp.eq.s32.totalorder 0, 0
    // Predicated region
    $region46: #{lenet_forward.1} parent=1 // pred_check
      %p41 = pneg %p40
    $region47: #{lenet_forward.1} parent=1 // pred_check_branch
      %43 = sbr.rel (%p41) target = $region49
    $region48: #{lenet_forward.1} parent=1 // pred_region
      %44 = vst [vmem:[#allocation3] sm:$0xf] 0
      %45 = vst [vmem:[#allocation3 + $0x4] sm:$0xf] 0
      %46 = vst [vmem:[#allocation3 + $0x8] sm:$0xf] 0
      %47 = vst [vmem:[#allocation3 + $0xc] sm:$0xf] 0
      %48 = vst [vmem:[#allocation3 + $0x10] sm:$0xf] 0
      %49 = vst [vmem:[#allocation3 + $0x14] sm:$0xf] 0
      %50 = vst [vmem:[#allocation3 + $0x18] sm:$0xf] 0
      %51 = vst [vmem:[#allocation3 + $0x1c] sm:$0xf] 0
      %52 = vst [vmem:[#allocation3 + $0x20] sm:$0xf] 0
      %53 = vst [vmem:[#allocation3 + $0x24] sm:$0xf] 0
      %54 = vst [vmem:[#allocation3 + $0x28] sm:$0xf] 0
      %55 = vst [vmem:[#allocation3 + $0x2c] sm:$0xf] 0
      %56 = vst [vmem:[#allocation3 + $0x30] sm:$0xf] 0
      %57 = vst [vmem:[#allocation3 + $0x34] sm:$0xf] 0
      %58 = vst [vmem:[#allocation3 + $0x38] sm:$0xf] 0
      %59 = vst [vmem:[#allocation3 + $0x3c] sm:$0xf] 0
      %60 = vst [vmem:[#allocation3 + $0x40] sm:$0xf] 0
      %61 = vst [vmem:[#allocation3 + $0x44] sm:$0xf] 0
      %62 = vst [vmem:[#allocation3 + $0x48] sm:$0xf] 0
      %63 = vst [vmem:[#allocation3 + $0x4c] sm:$0xf] 0
      %64 = vst [vmem:[#allocation3 + $0x50] sm:$0xf] 0
      %65 = vst [vmem:[#allocation3 + $0x54] sm:$0xf] 0
      %66 = vst [vmem:[#allocation3 + $0x58] sm:$0xf] 0
      %67 = vst [vmem:[#allocation3 + $0x5c] sm:$0xf] 0
      %68 = vst [vmem:[#allocation3 + $0x60] sm:$0xf] 0
      %69 = vst [vmem:[#allocation3 + $0x64] sm:$0xf] 0
      %70 = vst [vmem:[#allocation3 + $0x68] sm:$0xf] 0
      %71 = vst [vmem:[#allocation3 + $0x6c] sm:$0xf] 0
      %72 = vst [vmem:[#allocation3 + $0x70] sm:$0xf] 0
      %73 = vst [vmem:[#allocation3 + $0x74] sm:$0xf] 0
      %74 = vst [vmem:[#allocation3 + $0x78] sm:$0xf] 0
      %75 = vst [vmem:[#allocation3 + $0x7c] sm:$0xf] 0
      %76 = vst [vmem:[#allocation3 + $0x80] sm:$0xf] 0
      %77 = vst [vmem:[#allocation3 + $0x84] sm:$0xf] 0
      %78 = vst [vmem:[#allocation3 + $0x88] sm:$0xf] 0
      %79 = vst [vmem:[#allocation3 + $0x8c] sm:$0xf] 0
      %80 = vst [vmem:[#allocation3 + $0x90] sm:$0xf] 0
      %81 = vst [vmem:[#allocation3 + $0x94] sm:$0xf] 0
      %82 = vst [vmem:[#allocation3 + $0x98] sm:$0xf] 0
      %83 = vst [vmem:[#allocation3 + $0x9c] sm:$0xf] 0
      %84 = vst [vmem:[#allocation3 + $0xa0] sm:$0xf] 0
      %85 = vst [vmem:[#allocation3 + $0xa4] sm:$0xf] 0
      %86 = vst [vmem:[#allocation3 + $0xa8] sm:$0xf] 0
      %87 = vst [vmem:[#allocation3 + $0xac] sm:$0xf] 0
      %88 = vst [vmem:[#allocation3 + $0xb0] sm:$0xf] 0
      %89 = vst [vmem:[#allocation3 + $0xb4] sm:$0xf] 0
      %90 = vst [vmem:[#allocation3 + $0xb8] sm:$0xf] 0
      %91 = vst [vmem:[#allocation3 + $0xbc] sm:$0xf] 0
      %92 = vst [vmem:[#allocation3 + $0xc0] sm:$0xf] 0
      %93 = vst [vmem:[#allocation3 + $0xc4] sm:$0xf] 0
      %94 = vst [vmem:[#allocation3 + $0xc8] sm:$0xf] 0
      %95 = vst [vmem:[#allocation3 + $0xcc] sm:$0xf] 0
      %96 = vst [vmem:[#allocation3 + $0xd0] sm:$0xf] 0
      %97 = vst [vmem:[#allocation3 + $0xd4] sm:$0xf] 0
      %98 = vst [vmem:[#allocation3 + $0xd8] sm:$0xf] 0
      %99 = vst [vmem:[#allocation3 + $0xdc] sm:$0xf] 0
      %100 = vst [vmem:[#allocation3 + $0xe0] sm:$0xf] 0
      %101 = vst [vmem:[#allocation3 + $0xe4] sm:$0xf] 0
      %102 = vst [vmem:[#allocation3 + $0xe8] sm:$0xf] 0
      %103 = vst [vmem:[#allocation3 + $0xec] sm:$0xf] 0
      %104 = vst [vmem:[#allocation3 + $0xf0] sm:$0xf] 0
      %105 = vst [vmem:[#allocation3 + $0xf4] sm:$0xf] 0
      %106 = vst [vmem:[#allocation3 + $0xf8] sm:$0xf] 0
      %107 = vst [vmem:[#allocation3 + $0xfc] sm:$0xf] 0
      %108 = vst [vmem:[#allocation3 + $0x100] sm:$0xf] 0
      %109 = vst [vmem:[#allocation3 + $0x104] sm:$0xf] 0
      %110 = vst [vmem:[#allocation3 + $0x108] sm:$0xf] 0
      %111 = vst [vmem:[#allocation3 + $0x10c] sm:$0xf] 0
      %112 = vst [vmem:[#allocation3 + $0x110] sm:$0xf] 0
      %113 = vst [vmem:[#allocation3 + $0x114] sm:$0xf] 0
      %114 = vst [vmem:[#allocation3 + $0x118] sm:$0xf] 0
      %115 = vst [vmem:[#allocation3 + $0x11c] sm:$0xf] 0
      %116 = vst [vmem:[#allocation3 + $0x120] sm:$0xf] 0
      %117 = vst [vmem:[#allocation3 + $0x124] sm:$0xf] 0
      %118 = vst [vmem:[#allocation3 + $0x128] sm:$0xf] 0
      %119 = vst [vmem:[#allocation3 + $0x12c] sm:$0xf] 0
      %120 = vst [vmem:[#allocation3 + $0x130] sm:$0xf] 0
      %121 = vst [vmem:[#allocation3 + $0x134] sm:$0xf] 0
      %122 = vst [vmem:[#allocation3 + $0x138] sm:$0xf] 0
      %123 = vst [vmem:[#allocation3 + $0x13c] sm:$0xf] 0
      %124 = vst [vmem:[#allocation3 + $0x140] sm:$0xf] 0
      %125 = vst [vmem:[#allocation3 + $0x144] sm:$0xf] 0
      %126 = vst [vmem:[#allocation3 + $0x148] sm:$0xf] 0
      %127 = vst [vmem:[#allocation3 + $0x14c] sm:$0xf] 0
      %128 = vst [vmem:[#allocation3 + $0x150] sm:$0xf] 0
      %129 = vst [vmem:[#allocation3 + $0x154] sm:$0xf] 0
      %130 = vst [vmem:[#allocation3 + $0x158] sm:$0xf] 0
      %131 = vst [vmem:[#allocation3 + $0x15c] sm:$0xf] 0
      %132 = vst [vmem:[#allocation3 + $0x160] sm:$0xf] 0
      %133 = vst [vmem:[#allocation3 + $0x164] sm:$0xf] 0
      %134 = vst [vmem:[#allocation3 + $0x168] sm:$0xf] 0
      %135 = vst [vmem:[#allocation3 + $0x16c] sm:$0xf] 0
      %136 = vst [vmem:[#allocation3 + $0x170] sm:$0xf] 0
      %137 = vst [vmem:[#allocation3 + $0x174] sm:$0xf] 0
      %138 = vst [vmem:[#allocation3 + $0x178] sm:$0xf] 0
      %139 = vst [vmem:[#allocation3 + $0x17c] sm:$0xf] 0
      %140 = vst [vmem:[#allocation3 + $0x180] sm:$0xf] 0
      %141 = vst [vmem:[#allocation3 + $0x184] sm:$0xf] 0
      %142 = vst [vmem:[#allocation3 + $0x188] sm:$0xf] 0
      %143 = vst [vmem:[#allocation3 + $0x18c] sm:$0xf] 0
      %144 = vst [vmem:[#allocation3 + $0x190] sm:$0xf] 0
      %145 = vst [vmem:[#allocation3 + $0x194] sm:$0xf] 0
      %146 = vst [vmem:[#allocation3 + $0x198] sm:$0xf] 0
      %147 = vst [vmem:[#allocation3 + $0x19c] sm:$0xf] 0
      %148 = vst [vmem:[#allocation3 + $0x1a0] sm:$0xf] 0
      %149 = vst [vmem:[#allocation3 + $0x1a4] sm:$0xf] 0
      %150 = vst [vmem:[#allocation3 + $0x1a8] sm:$0xf] 0
      %151 = vst [vmem:[#allocation3 + $0x1ac] sm:$0xf] 0
      %152 = vst [vmem:[#allocation3 + $0x1b0] sm:$0xf] 0
      %153 = vst [vmem:[#allocation3 + $0x1b4] sm:$0xf] 0
      %154 = vst [vmem:[#allocation3 + $0x1b8] sm:$0xf] 0
      %155 = vst [vmem:[#allocation3 + $0x1bc] sm:$0xf] 0
      %156 = vst [vmem:[#allocation3 + $0x1c0] sm:$0xf] 0
      %157 = vst [vmem:[#allocation3 + $0x1c4] sm:$0xf] 0
      %158 = vst [vmem:[#allocation3 + $0x1c8] sm:$0xf] 0
      %159 = vst [vmem:[#allocation3 + $0x1cc] sm:$0xf] 0
      %160 = vst [vmem:[#allocation3 + $0x1d0] sm:$0xf] 0
      %161 = vst [vmem:[#allocation3 + $0x1d4] sm:$0xf] 0
      %162 = vst [vmem:[#allocation3 + $0x1d8] sm:$0xf] 0
      %163 = vst [vmem:[#allocation3 + $0x1dc] sm:$0xf] 0
      %164 = vst [vmem:[#allocation3 + $0x1e0] sm:$0xf] 0
      %165 = vst [vmem:[#allocation3 + $0x1e4] sm:$0xf] 0
      %166 = vst [vmem:[#allocation3 + $0x1e8] sm:$0xf] 0
      %167 = vst [vmem:[#allocation3 + $0x1ec] sm:$0xf] 0
      %168 = vst [vmem:[#allocation3 + $0x1f0] sm:$0xf] 0
      %169 = vst [vmem:[#allocation3 + $0x1f4] sm:$0xf] 0
      %170 = vst [vmem:[#allocation3 + $0x1f8] sm:$0xf] 0
      %171 = vst [vmem:[#allocation3 + $0x1fc] sm:$0xf] 0
      %172 = vst [vmem:[#allocation3 + $0x200] sm:$0xf] 0
      %173 = vst [vmem:[#allocation3 + $0x204] sm:$0xf] 0
      %174 = vst [vmem:[#allocation3 + $0x208] sm:$0xf] 0
      %175 = vst [vmem:[#allocation3 + $0x20c] sm:$0xf] 0
      %176 = vst [vmem:[#allocation3 + $0x210] sm:$0xf] 0
      %177 = vst [vmem:[#allocation3 + $0x214] sm:$0xf] 0
      %178 = vst [vmem:[#allocation3 + $0x218] sm:$0xf] 0
      %179 = vst [vmem:[#allocation3 + $0x21c] sm:$0xf] 0
      %180 = vst [vmem:[#allocation3 + $0x220] sm:$0xf] 0
      %181 = vst [vmem:[#allocation3 + $0x224] sm:$0xf] 0
      %182 = vst [vmem:[#allocation3 + $0x228] sm:$0xf] 0
      %183 = vst [vmem:[#allocation3 + $0x22c] sm:$0xf] 0
      %184 = vst [vmem:[#allocation3 + $0x230] sm:$0xf] 0
      %185 = vst [vmem:[#allocation3 + $0x234] sm:$0xf] 0
      %186 = vst [vmem:[#allocation3 + $0x238] sm:$0xf] 0
      %187 = vst [vmem:[#allocation3 + $0x23c] sm:$0xf] 0
      %188 = vst [vmem:[#allocation3 + $0x240] sm:$0xf] 0
      %189 = vst [vmem:[#allocation3 + $0x244] sm:$0xf] 0
      %190 = vst [vmem:[#allocation3 + $0x248] sm:$0xf] 0
      %191 = vst [vmem:[#allocation3 + $0x24c] sm:$0xf] 0
      %192 = vst [vmem:[#allocation3 + $0x250] sm:$0xf] 0
      %193 = vst [vmem:[#allocation3 + $0x254] sm:$0xf] 0
      %194 = vst [vmem:[#allocation3 + $0x258] sm:$0xf] 0
      %195 = vst [vmem:[#allocation3 + $0x25c] sm:$0xf] 0
      %196 = vst [vmem:[#allocation3 + $0x260] sm:$0xf] 0
      %197 = vst [vmem:[#allocation3 + $0x264] sm:$0xf] 0
      %198 = vst [vmem:[#allocation3 + $0x268] sm:$0xf] 0
      %199 = vst [vmem:[#allocation3 + $0x26c] sm:$0xf] 0
      %200 = vst [vmem:[#allocation3 + $0x270] sm:$0xf] 0
      %201 = vst [vmem:[#allocation3 + $0x274] sm:$0xf] 0
      %202 = vst [vmem:[#allocation3 + $0x278] sm:$0xf] 0
      %203 = vst [vmem:[#allocation3 + $0x27c] sm:$0xf] 0
      %204 = vst [vmem:[#allocation3 + $0x280] sm:$0xf] 0
      %205 = vst [vmem:[#allocation3 + $0x284] sm:$0xf] 0
      %206 = vst [vmem:[#allocation3 + $0x288] sm:$0xf] 0
      %207 = vst [vmem:[#allocation3 + $0x28c] sm:$0xf] 0
      %208 = vst [vmem:[#allocation3 + $0x290] sm:$0xf] 0
      %209 = vst [vmem:[#allocation3 + $0x294] sm:$0xf] 0
      %210 = vst [vmem:[#allocation3 + $0x298] sm:$0xf] 0
      %211 = vst [vmem:[#allocation3 + $0x29c] sm:$0xf] 0
      %212 = vst [vmem:[#allocation3 + $0x2a0] sm:$0xf] 0
      %213 = vst [vmem:[#allocation3 + $0x2a4] sm:$0xf] 0
      %214 = vst [vmem:[#allocation3 + $0x2a8] sm:$0xf] 0
      %215 = vst [vmem:[#allocation3 + $0x2ac] sm:$0xf] 0
      %216 = vst [vmem:[#allocation3 + $0x2b0] sm:$0xf] 0
      %217 = vst [vmem:[#allocation3 + $0x2b4] sm:$0xf] 0
      %218 = vst [vmem:[#allocation3 + $0x2b8] sm:$0xf] 0
      %219 = vst [vmem:[#allocation3 + $0x2bc] sm:$0xf] 0
      %220 = vst [vmem:[#allocation3 + $0x2c0] sm:$0xf] 0
      %221 = vst [vmem:[#allocation3 + $0x2c4] sm:$0xf] 0
      %222 = vst [vmem:[#allocation3 + $0x2c8] sm:$0xf] 0
      %223 = vst [vmem:[#allocation3 + $0x2cc] sm:$0xf] 0
      %224 = vst [vmem:[#allocation3 + $0x2d0] sm:$0xf] 0
      %225 = vst [vmem:[#allocation3 + $0x2d4] sm:$0xf] 0
      %226 = vst [vmem:[#allocation3 + $0x2d8] sm:$0xf] 0
      %227 = vst [vmem:[#allocation3 + $0x2dc] sm:$0xf] 0
      %228 = vst [vmem:[#allocation3 + $0x2e0] sm:$0xf] 0
      %229 = vst [vmem:[#allocation3 + $0x2e4] sm:$0xf] 0
      %230 = vst [vmem:[#allocation3 + $0x2e8] sm:$0xf] 0
      %231 = vst [vmem:[#allocation3 + $0x2ec] sm:$0xf] 0
      %232 = vst [vmem:[#allocation3 + $0x2f0] sm:$0xf] 0
      %233 = vst [vmem:[#allocation3 + $0x2f4] sm:$0xf] 0
      %234 = vst [vmem:[#allocation3 + $0x2f8] sm:$0xf] 0
      %235 = vst [vmem:[#allocation3 + $0x2fc] sm:$0xf] 0
      %236 = vst [vmem:[#allocation3 + $0x300] sm:$0xf] 0
      %237 = vst [vmem:[#allocation3 + $0x304] sm:$0xf] 0
      %238 = vst [vmem:[#allocation3 + $0x308] sm:$0xf] 0
      %239 = vst [vmem:[#allocation3 + $0x30c] sm:$0xf] 0
      %240 = vst [vmem:[#allocation3 + $0x310] sm:$0xf] 0
      %241 = vst [vmem:[#allocation3 + $0x314] sm:$0xf] 0
      %242 = vst [vmem:[#allocation3 + $0x318] sm:$0xf] 0
      %243 = vst [vmem:[#allocation3 + $0x31c] sm:$0xf] 0
      %244 = vst [vmem:[#allocation3 + $0x320] sm:$0xf] 0
      %245 = vst [vmem:[#allocation3 + $0x324] sm:$0xf] 0
      %246 = vst [vmem:[#allocation3 + $0x328] sm:$0xf] 0
      %247 = vst [vmem:[#allocation3 + $0x32c] sm:$0xf] 0
      %248 = vst [vmem:[#allocation3 + $0x330] sm:$0xf] 0
      %249 = vst [vmem:[#allocation3 + $0x334] sm:$0xf] 0
      %250 = vst [vmem:[#allocation3 + $0x338] sm:$0xf] 0
      %251 = vst [vmem:[#allocation3 + $0x33c] sm:$0xf] 0
      %252 = vst [vmem:[#allocation3 + $0x340] sm:$0xf] 0
      %253 = vst [vmem:[#allocation3 + $0x344] sm:$0xf] 0
      %254 = vst [vmem:[#allocation3 + $0x348] sm:$0xf] 0
      %255 = vst [vmem:[#allocation3 + $0x34c] sm:$0xf] 0
      %256 = vst [vmem:[#allocation3 + $0x350] sm:$0xf] 0
      %257 = vst [vmem:[#allocation3 + $0x354] sm:$0xf] 0
      %258 = vst [vmem:[#allocation3 + $0x358] sm:$0xf] 0
      %259 = vst [vmem:[#allocation3 + $0x35c] sm:$0xf] 0
      %260 = vst [vmem:[#allocation3 + $0x360] sm:$0xf] 0
      %261 = vst [vmem:[#allocation3 + $0x364] sm:$0xf] 0
      %262 = vst [vmem:[#allocation3 + $0x368] sm:$0xf] 0
      %263 = vst [vmem:[#allocation3 + $0x36c] sm:$0xf] 0
      %264 = vst [vmem:[#allocation3 + $0x370] sm:$0xf] 0
      %265 = vst [vmem:[#allocation3 + $0x374] sm:$0xf] 0
      %266 = vst [vmem:[#allocation3 + $0x378] sm:$0xf] 0
      %267 = vst [vmem:[#allocation3 + $0x37c] sm:$0xf] 0
      %268 = vst [vmem:[#allocation3 + $0x380] sm:$0xf] 0
      %269 = vst [vmem:[#allocation3 + $0x384] sm:$0xf] 0
      %270 = vst [vmem:[#allocation3 + $0x388] sm:$0xf] 0
      %271 = vst [vmem:[#allocation3 + $0x38c] sm:$0xf] 0
      %272 = vst [vmem:[#allocation3 + $0x390] sm:$0xf] 0
      %273 = vst [vmem:[#allocation3 + $0x394] sm:$0xf] 0
      %274 = vst [vmem:[#allocation3 + $0x398] sm:$0xf] 0
      %275 = vst [vmem:[#allocation3 + $0x39c] sm:$0xf] 0
      %276 = vst [vmem:[#allocation3 + $0x3a0] sm:$0xf] 0
      %277 = vst [vmem:[#allocation3 + $0x3a4] sm:$0xf] 0
      %278 = vst [vmem:[#allocation3 + $0x3a8] sm:$0xf] 0
      %279 = vst [vmem:[#allocation3 + $0x3ac] sm:$0xf] 0
      %280 = vst [vmem:[#allocation3 + $0x3b0] sm:$0xf] 0
      %281 = vst [vmem:[#allocation3 + $0x3b4] sm:$0xf] 0
      %282 = vst [vmem:[#allocation3 + $0x3b8] sm:$0xf] 0
      %283 = vst [vmem:[#allocation3 + $0x3bc] sm:$0xf] 0
      %284 = vst [vmem:[#allocation3 + $0x3c0] sm:$0xf] 0
      %285 = vst [vmem:[#allocation3 + $0x3c4] sm:$0xf] 0
      %286 = vst [vmem:[#allocation3 + $0x3c8] sm:$0xf] 0
      %287 = vst [vmem:[#allocation3 + $0x3cc] sm:$0xf] 0
      %288 = vst [vmem:[#allocation3 + $0x3d0] sm:$0xf] 0
      %289 = vst [vmem:[#allocation3 + $0x3d4] sm:$0xf] 0
      %290 = vst [vmem:[#allocation3 + $0x3d8] sm:$0xf] 0
      %291 = vst [vmem:[#allocation3 + $0x3dc] sm:$0xf] 0
      %292 = vst [vmem:[#allocation3 + $0x3e0] sm:$0xf] 0
      %293 = vst [vmem:[#allocation3 + $0x3e4] sm:$0xf] 0
      %294 = vst [vmem:[#allocation3 + $0x3e8] sm:$0xf] 0
      %295 = vst [vmem:[#allocation3 + $0x3ec] sm:$0xf] 0
      %296 = vst [vmem:[#allocation3 + $0x3f0] sm:$0xf] 0
      %297 = vst [vmem:[#allocation3 + $0x3f4] sm:$0xf] 0
      %298 = vst [vmem:[#allocation3 + $0x3f8] sm:$0xf] 0
      %299 = vst [vmem:[#allocation3 + $0x3fc] sm:$0xf] 0
      %300 = vst [vmem:[#allocation3 + $0x400] sm:$0xf] 0
      %301 = vst [vmem:[#allocation3 + $0x404] sm:$0xf] 0
      %302 = vst [vmem:[#allocation3 + $0x408] sm:$0xf] 0
      %303 = vst [vmem:[#allocation3 + $0x40c] sm:$0xf] 0
      %304 = vst [vmem:[#allocation3 + $0x410] sm:$0xf] 0
      %305 = vst [vmem:[#allocation3 + $0x414] sm:$0xf] 0
      %306 = vst [vmem:[#allocation3 + $0x418] sm:$0xf] 0
      %307 = vst [vmem:[#allocation3 + $0x41c] sm:$0xf] 0
      %308 = vst [vmem:[#allocation3 + $0x420] sm:$0xf] 0
      %309 = vst [vmem:[#allocation3 + $0x424] sm:$0xf] 0
      %310 = vst [vmem:[#allocation3 + $0x428] sm:$0xf] 0
      %311 = vst [vmem:[#allocation3 + $0x42c] sm:$0xf] 0
      %312 = vst [vmem:[#allocation3 + $0x430] sm:$0xf] 0
      %313 = vst [vmem:[#allocation3 + $0x434] sm:$0xf] 0
      %314 = vst [vmem:[#allocation3 + $0x438] sm:$0xf] 0
      %315 = vst [vmem:[#allocation3 + $0x43c] sm:$0xf] 0
      %316 = vst [vmem:[#allocation3 + $0x440] sm:$0xf] 0
      %317 = vst [vmem:[#allocation3 + $0x444] sm:$0xf] 0
      %318 = vst [vmem:[#allocation3 + $0x448] sm:$0xf] 0
      %319 = vst [vmem:[#allocation3 + $0x44c] sm:$0xf] 0
      %320 = vst [vmem:[#allocation3 + $0x450] sm:$0xf] 0
      %321 = vst [vmem:[#allocation3 + $0x454] sm:$0xf] 0
      %322 = vst [vmem:[#allocation3 + $0x458] sm:$0xf] 0
      %323 = vst [vmem:[#allocation3 + $0x45c] sm:$0xf] 0
      %324 = vst [vmem:[#allocation3 + $0x460] sm:$0xf] 0
      %325 = vst [vmem:[#allocation3 + $0x464] sm:$0xf] 0
      %326 = vst [vmem:[#allocation3 + $0x468] sm:$0xf] 0
      %327 = vst [vmem:[#allocation3 + $0x46c] sm:$0xf] 0
      %328 = vst [vmem:[#allocation3 + $0x470] sm:$0xf] 0
      %329 = vst [vmem:[#allocation3 + $0x474] sm:$0xf] 0
      %330 = vst [vmem:[#allocation3 + $0x478] sm:$0xf] 0
      %331 = vst [vmem:[#allocation3 + $0x47c] sm:$0xf] 0
      %332 = vst [vmem:[#allocation3 + $0x480] sm:$0xf] 0
      %333 = vst [vmem:[#allocation3 + $0x484] sm:$0xf] 0
      %334 = vst [vmem:[#allocation3 + $0x488] sm:$0xf] 0
      %335 = vst [vmem:[#allocation3 + $0x48c] sm:$0xf] 0
      %336 = vst [vmem:[#allocation3 + $0x490] sm:$0xf] 0
      %337 = vst [vmem:[#allocation3 + $0x494] sm:$0xf] 0
      %338 = vst [vmem:[#allocation3 + $0x498] sm:$0xf] 0
      %339 = vst [vmem:[#allocation3 + $0x49c] sm:$0xf] 0
      %340 = vst [vmem:[#allocation3 + $0x4a0] sm:$0xf] 0
      %341 = vst [vmem:[#allocation3 + $0x4a4] sm:$0xf] 0
      %342 = vst [vmem:[#allocation3 + $0x4a8] sm:$0xf] 0
      %343 = vst [vmem:[#allocation3 + $0x4ac] sm:$0xf] 0
      %344 = vst [vmem:[#allocation3 + $0x4b0] sm:$0xf] 0
      %345 = vst [vmem:[#allocation3 + $0x4b4] sm:$0xf] 0
      %346 = vst [vmem:[#allocation3 + $0x4b8] sm:$0xf] 0
      %347 = vst [vmem:[#allocation3 + $0x4bc] sm:$0xf] 0
      %348 = vst [vmem:[#allocation3 + $0x4c0] sm:$0xf] 0
      %349 = vst [vmem:[#allocation3 + $0x4c4] sm:$0xf] 0
      %350 = vst [vmem:[#allocation3 + $0x4c8] sm:$0xf] 0
      %351 = vst [vmem:[#allocation3 + $0x4cc] sm:$0xf] 0
      %352 = vst [vmem:[#allocation3 + $0x4d0] sm:$0xf] 0
      %353 = vst [vmem:[#allocation3 + $0x4d4] sm:$0xf] 0
      %354 = vst [vmem:[#allocation3 + $0x4d8] sm:$0xf] 0
      %355 = vst [vmem:[#allocation3 + $0x4dc] sm:$0xf] 0
      %356 = vst [vmem:[#allocation3 + $0x4e0] sm:$0xf] 0
      %357 = vst [vmem:[#allocation3 + $0x4e4] sm:$0xf] 0
      %358 = vst [vmem:[#allocation3 + $0x4e8] sm:$0xf] 0
      %359 = vst [vmem:[#allocation3 + $0x4ec] sm:$0xf] 0
      %360 = vst [vmem:[#allocation3 + $0x4f0] sm:$0xf] 0
      %361 = vst [vmem:[#allocation3 + $0x4f4] sm:$0xf] 0
      %362 = vst [vmem:[#allocation3 + $0x4f8] sm:$0xf] 0
      %363 = vst [vmem:[#allocation3 + $0x4fc] sm:$0xf] 0
      %364 = vst [vmem:[#allocation3 + $0x500] sm:$0xf] 0
      %365 = vst [vmem:[#allocation3 + $0x504] sm:$0xf] 0
      %366 = vst [vmem:[#allocation3 + $0x508] sm:$0xf] 0
      %367 = vst [vmem:[#allocation3 + $0x50c] sm:$0xf] 0
      %368 = vst [vmem:[#allocation3 + $0x510] sm:$0xf] 0
      %369 = vst [vmem:[#allocation3 + $0x514] sm:$0xf] 0
      %370 = vst [vmem:[#allocation3 + $0x518] sm:$0xf] 0
      %371 = vst [vmem:[#allocation3 + $0x51c] sm:$0xf] 0
      %372 = vst [vmem:[#allocation3 + $0x520] sm:$0xf] 0
      %373 = vst [vmem:[#allocation3 + $0x524] sm:$0xf] 0
      %374 = vst [vmem:[#allocation3 + $0x528] sm:$0xf] 0
      %375 = vst [vmem:[#allocation3 + $0x52c] sm:$0xf] 0
      %376 = vst [vmem:[#allocation3 + $0x530] sm:$0xf] 0
      %377 = vst [vmem:[#allocation3 + $0x534] sm:$0xf] 0
      %378 = vst [vmem:[#allocation3 + $0x538] sm:$0xf] 0
      %379 = vst [vmem:[#allocation3 + $0x53c] sm:$0xf] 0
      %380 = vst [vmem:[#allocation3 + $0x540] sm:$0xf] 0
      %381 = vst [vmem:[#allocation3 + $0x544] sm:$0xf] 0
      %382 = vst [vmem:[#allocation3 + $0x548] sm:$0xf] 0
      %383 = vst [vmem:[#allocation3 + $0x54c] sm:$0xf] 0
      %384 = vst [vmem:[#allocation3 + $0x550] sm:$0xf] 0
      %385 = vst [vmem:[#allocation3 + $0x554] sm:$0xf] 0
      %386 = vst [vmem:[#allocation3 + $0x558] sm:$0xf] 0
      %387 = vst [vmem:[#allocation3 + $0x55c] sm:$0xf] 0
      %388 = vst [vmem:[#allocation3 + $0x560] sm:$0xf] 0
      %389 = vst [vmem:[#allocation3 + $0x564] sm:$0xf] 0
      %390 = vst [vmem:[#allocation3 + $0x568] sm:$0xf] 0
      %391 = vst [vmem:[#allocation3 + $0x56c] sm:$0xf] 0
      %392 = vst [vmem:[#allocation3 + $0x570] sm:$0xf] 0
      %393 = vst [vmem:[#allocation3 + $0x574] sm:$0xf] 0
      %394 = vst [vmem:[#allocation3 + $0x578] sm:$0xf] 0
      %395 = vst [vmem:[#allocation3 + $0x57c] sm:$0xf] 0
      %396 = vst [vmem:[#allocation3 + $0x580] sm:$0xf] 0
      %397 = vst [vmem:[#allocation3 + $0x584] sm:$0xf] 0
      %398 = vst [vmem:[#allocation3 + $0x588] sm:$0xf] 0
      %399 = vst [vmem:[#allocation3 + $0x58c] sm:$0xf] 0
      %400 = vst [vmem:[#allocation3 + $0x590] sm:$0xf] 0
      %401 = vst [vmem:[#allocation3 + $0x594] sm:$0xf] 0
      %402 = vst [vmem:[#allocation3 + $0x598] sm:$0xf] 0
      %403 = vst [vmem:[#allocation3 + $0x59c] sm:$0xf] 0
      %404 = vst [vmem:[#allocation3 + $0x5a0] sm:$0xf] 0
      %405 = vst [vmem:[#allocation3 + $0x5a4] sm:$0xf] 0
      %406 = vst [vmem:[#allocation3 + $0x5a8] sm:$0xf] 0
      %407 = vst [vmem:[#allocation3 + $0x5ac] sm:$0xf] 0
      %408 = vst [vmem:[#allocation3 + $0x5b0] sm:$0xf] 0
      %409 = vst [vmem:[#allocation3 + $0x5b4] sm:$0xf] 0
      %410 = vst [vmem:[#allocation3 + $0x5b8] sm:$0xf] 0
      %411 = vst [vmem:[#allocation3 + $0x5bc] sm:$0xf] 0
      %412 = vst [vmem:[#allocation3 + $0x5c0] sm:$0xf] 0
      %413 = vst [vmem:[#allocation3 + $0x5c4] sm:$0xf] 0
      %414 = vst [vmem:[#allocation3 + $0x5c8] sm:$0xf] 0
      %415 = vst [vmem:[#allocation3 + $0x5cc] sm:$0xf] 0
      %416 = vst [vmem:[#allocation3 + $0x5d0] sm:$0xf] 0
      %417 = vst [vmem:[#allocation3 + $0x5d4] sm:$0xf] 0
      %418 = vst [vmem:[#allocation3 + $0x5d8] sm:$0xf] 0
      %419 = vst [vmem:[#allocation3 + $0x5dc] sm:$0xf] 0
      %420 = vst [vmem:[#allocation3 + $0x5e0] sm:$0xf] 0
      %421 = vst [vmem:[#allocation3 + $0x5e4] sm:$0xf] 0
      %422 = vst [vmem:[#allocation3 + $0x5e8] sm:$0xf] 0
      %423 = vst [vmem:[#allocation3 + $0x5ec] sm:$0xf] 0
      %424 = vst [vmem:[#allocation3 + $0x5f0] sm:$0xf] 0
      %425 = vst [vmem:[#allocation3 + $0x5f4] sm:$0xf] 0
      %426 = vst [vmem:[#allocation3 + $0x5f8] sm:$0xf] 0
      %427 = vst [vmem:[#allocation3 + $0x5fc] sm:$0xf] 0
      %428 = vst [vmem:[#allocation3 + $0x600] sm:$0xf] 0
      %429 = vst [vmem:[#allocation3 + $0x604] sm:$0xf] 0
      %430 = vst [vmem:[#allocation3 + $0x608] sm:$0xf] 0
      %431 = vst [vmem:[#allocation3 + $0x60c] sm:$0xf] 0
      %432 = vst [vmem:[#allocation3 + $0x610] sm:$0xf] 0
      %433 = vst [vmem:[#allocation3 + $0x614] sm:$0xf] 0
      %434 = vst [vmem:[#allocation3 + $0x618] sm:$0xf] 0
      %435 = vst [vmem:[#allocation3 + $0x61c] sm:$0xf] 0
      %436 = vst [vmem:[#allocation3 + $0x620] sm:$0xf] 0
      %437 = vst [vmem:[#allocation3 + $0x624] sm:$0xf] 0
      %438 = vst [vmem:[#allocation3 + $0x628] sm:$0xf] 0
      %439 = vst [vmem:[#allocation3 + $0x62c] sm:$0xf] 0
      %440 = vst [vmem:[#allocation3 + $0x630] sm:$0xf] 0
      %441 = vst [vmem:[#allocation3 + $0x634] sm:$0xf] 0
      %442 = vst [vmem:[#allocation3 + $0x638] sm:$0xf] 0
      %443 = vst [vmem:[#allocation3 + $0x63c] sm:$0xf] 0
      %444 = vst [vmem:[#allocation4] sm:$0xf] 0
      %445 = vst [vmem:[#allocation4 + $0x4] sm:$0xf] 0
      %446 = vst [vmem:[#allocation4 + $0x8] sm:$0xf] 0
      %447 = vst [vmem:[#allocation4 + $0xc] sm:$0xf] 0
      %448 = vst [vmem:[#allocation4 + $0x10] sm:$0xf] 0
      %449 = vst [vmem:[#allocation4 + $0x14] sm:$0xf] 0
      %450 = vst [vmem:[#allocation4 + $0x18] sm:$0xf] 0
      %451 = vst [vmem:[#allocation4 + $0x1c] sm:$0xf] 0
      %452 = vst [vmem:[#allocation4 + $0x20] sm:$0xf] 0
      %453 = vst [vmem:[#allocation4 + $0x24] sm:$0xf] 0
      %454 = vst [vmem:[#allocation4 + $0x28] sm:$0xf] 0
      %455 = vst [vmem:[#allocation4 + $0x2c] sm:$0xf] 0
      %456 = vst [vmem:[#allocation4 + $0x30] sm:$0xf] 0
      %457 = vst [vmem:[#allocation4 + $0x34] sm:$0xf] 0
      %458 = vst [vmem:[#allocation4 + $0x38] sm:$0xf] 0
      %459 = vst [vmem:[#allocation4 + $0x3c] sm:$0xf] 0
      %460 = vst [vmem:[#allocation4 + $0x40] sm:$0xf] 0
      %461 = vst [vmem:[#allocation4 + $0x44] sm:$0xf] 0
      %462 = vst [vmem:[#allocation4 + $0x48] sm:$0xf] 0
      %463 = vst [vmem:[#allocation4 + $0x4c] sm:$0xf] 0
      %464 = vst [vmem:[#allocation4 + $0x50] sm:$0xf] 0
      %465 = vst [vmem:[#allocation4 + $0x54] sm:$0xf] 0
      %466 = vst [vmem:[#allocation4 + $0x58] sm:$0xf] 0
      %467 = vst [vmem:[#allocation4 + $0x5c] sm:$0xf] 0
      %468 = vst [vmem:[#allocation4 + $0x60] sm:$0xf] 0
      %469 = vst [vmem:[#allocation4 + $0x64] sm:$0xf] 0
      %470 = vst [vmem:[#allocation4 + $0x68] sm:$0xf] 0
      %471 = vst [vmem:[#allocation4 + $0x6c] sm:$0xf] 0
      %472 = vst [vmem:[#allocation4 + $0x70] sm:$0xf] 0
      %473 = vst [vmem:[#allocation4 + $0x74] sm:$0xf] 0
      %474 = vst [vmem:[#allocation4 + $0x78] sm:$0xf] 0
      %475 = vst [vmem:[#allocation4 + $0x7c] sm:$0xf] 0
      %476 = vst [vmem:[#allocation4 + $0x80] sm:$0xf] 0
      %477 = vst [vmem:[#allocation4 + $0x84] sm:$0xf] 0
      %478 = vst [vmem:[#allocation4 + $0x88] sm:$0xf] 0
      %479 = vst [vmem:[#allocation4 + $0x8c] sm:$0xf] 0
      %480 = vst [vmem:[#allocation4 + $0x90] sm:$0xf] 0
      %481 = vst [vmem:[#allocation4 + $0x94] sm:$0xf] 0
      %482 = vst [vmem:[#allocation4 + $0x98] sm:$0xf] 0
      %483 = vst [vmem:[#allocation4 + $0x9c] sm:$0xf] 0
      %484 = vst [vmem:[#allocation4 + $0xa0] sm:$0xf] 0
      %485 = vst [vmem:[#allocation4 + $0xa4] sm:$0xf] 0
      %486 = vst [vmem:[#allocation4 + $0xa8] sm:$0xf] 0
      %487 = vst [vmem:[#allocation4 + $0xac] sm:$0xf] 0
      %488 = vst [vmem:[#allocation4 + $0xb0] sm:$0xf] 0
      %489 = vst [vmem:[#allocation4 + $0xb4] sm:$0xf] 0
      %490 = vst [vmem:[#allocation4 + $0xb8] sm:$0xf] 0
      %491 = vst [vmem:[#allocation4 + $0xbc] sm:$0xf] 0
      %492 = vst [vmem:[#allocation4 + $0xc0] sm:$0xf] 0
      %493 = vst [vmem:[#allocation4 + $0xc4] sm:$0xf] 0
      %494 = vst [vmem:[#allocation4 + $0xc8] sm:$0xf] 0
      %495 = vst [vmem:[#allocation4 + $0xcc] sm:$0xf] 0
      %496 = vst [vmem:[#allocation4 + $0xd0] sm:$0xf] 0
      %497 = vst [vmem:[#allocation4 + $0xd4] sm:$0xf] 0
      %498 = vst [vmem:[#allocation4 + $0xd8] sm:$0xf] 0
      %499 = vst [vmem:[#allocation4 + $0xdc] sm:$0xf] 0
      %500 = vst [vmem:[#allocation4 + $0xe0] sm:$0xf] 0
      %501 = vst [vmem:[#allocation4 + $0xe4] sm:$0xf] 0
      %502 = vst [vmem:[#allocation4 + $0xe8] sm:$0xf] 0
      %503 = vst [vmem:[#allocation4 + $0xec] sm:$0xf] 0
      %504 = vst [vmem:[#allocation4 + $0xf0] sm:$0xf] 0
      %505 = vst [vmem:[#allocation4 + $0xf4] sm:$0xf] 0
      %506 = vst [vmem:[#allocation4 + $0xf8] sm:$0xf] 0
      %507 = vst [vmem:[#allocation4 + $0xfc] sm:$0xf] 0
      %508 = vst [vmem:[#allocation4 + $0x100] sm:$0xf] 0
      %509 = vst [vmem:[#allocation4 + $0x104] sm:$0xf] 0
      %510 = vst [vmem:[#allocation4 + $0x108] sm:$0xf] 0
      %511 = vst [vmem:[#allocation4 + $0x10c] sm:$0xf] 0
      %512 = vst [vmem:[#allocation4 + $0x110] sm:$0xf] 0
      %513 = vst [vmem:[#allocation4 + $0x114] sm:$0xf] 0
      %514 = vst [vmem:[#allocation4 + $0x118] sm:$0xf] 0
      %515 = vst [vmem:[#allocation4 + $0x11c] sm:$0xf] 0
      %516 = vst [vmem:[#allocation4 + $0x120] sm:$0xf] 0
      %517 = vst [vmem:[#allocation4 + $0x124] sm:$0xf] 0
      %518 = vst [vmem:[#allocation4 + $0x128] sm:$0xf] 0
      %519 = vst [vmem:[#allocation4 + $0x12c] sm:$0xf] 0
      %520 = vst [vmem:[#allocation4 + $0x130] sm:$0xf] 0
      %521 = vst [vmem:[#allocation4 + $0x134] sm:$0xf] 0
      %522 = vst [vmem:[#allocation4 + $0x138] sm:$0xf] 0
      %523 = vst [vmem:[#allocation4 + $0x13c] sm:$0xf] 0
      %524 = vst [vmem:[#allocation4 + $0x140] sm:$0xf] 0
      %525 = vst [vmem:[#allocation4 + $0x144] sm:$0xf] 0
      %526 = vst [vmem:[#allocation4 + $0x148] sm:$0xf] 0
      %527 = vst [vmem:[#allocation4 + $0x14c] sm:$0xf] 0
      %528 = vst [vmem:[#allocation4 + $0x150] sm:$0xf] 0
      %529 = vst [vmem:[#allocation4 + $0x154] sm:$0xf] 0
      %530 = vst [vmem:[#allocation4 + $0x158] sm:$0xf] 0
      %531 = vst [vmem:[#allocation4 + $0x15c] sm:$0xf] 0
      %532 = vst [vmem:[#allocation4 + $0x160] sm:$0xf] 0
      %533 = vst [vmem:[#allocation4 + $0x164] sm:$0xf] 0
      %534 = vst [vmem:[#allocation4 + $0x168] sm:$0xf] 0
      %535 = vst [vmem:[#allocation4 + $0x16c] sm:$0xf] 0
      %536 = vst [vmem:[#allocation4 + $0x170] sm:$0xf] 0
      %537 = vst [vmem:[#allocation4 + $0x174] sm:$0xf] 0
      %538 = vst [vmem:[#allocation4 + $0x178] sm:$0xf] 0
      %539 = vst [vmem:[#allocation4 + $0x17c] sm:$0xf] 0
      %540 = vst [vmem:[#allocation4 + $0x180] sm:$0xf] 0
      %541 = vst [vmem:[#allocation4 + $0x184] sm:$0xf] 0
      %542 = vst [vmem:[#allocation4 + $0x188] sm:$0xf] 0
      %543 = vst [vmem:[#allocation4 + $0x18c] sm:$0xf] 0
      %544 = vst [vmem:[#allocation4 + $0x190] sm:$0xf] 0
      %545 = vst [vmem:[#allocation4 + $0x194] sm:$0xf] 0
      %546 = vst [vmem:[#allocation4 + $0x198] sm:$0xf] 0
      %547 = vst [vmem:[#allocation4 + $0x19c] sm:$0xf] 0
      %548 = vst [vmem:[#allocation4 + $0x1a0] sm:$0xf] 0
      %549 = vst [vmem:[#allocation4 + $0x1a4] sm:$0xf] 0
      %550 = vst [vmem:[#allocation4 + $0x1a8] sm:$0xf] 0
      %551 = vst [vmem:[#allocation4 + $0x1ac] sm:$0xf] 0
      %552 = vst [vmem:[#allocation4 + $0x1b0] sm:$0xf] 0
      %553 = vst [vmem:[#allocation4 + $0x1b4] sm:$0xf] 0
      %554 = vst [vmem:[#allocation4 + $0x1b8] sm:$0xf] 0
      %555 = vst [vmem:[#allocation4 + $0x1bc] sm:$0xf] 0
      %556 = vst [vmem:[#allocation4 + $0x1c0] sm:$0xf] 0
      %557 = vst [vmem:[#allocation4 + $0x1c4] sm:$0xf] 0
      %558 = vst [vmem:[#allocation4 + $0x1c8] sm:$0xf] 0
      %559 = vst [vmem:[#allocation4 + $0x1cc] sm:$0xf] 0
      %560 = vst [vmem:[#allocation4 + $0x1d0] sm:$0xf] 0
      %561 = vst [vmem:[#allocation4 + $0x1d4] sm:$0xf] 0
      %562 = vst [vmem:[#allocation4 + $0x1d8] sm:$0xf] 0
      %563 = vst [vmem:[#allocation4 + $0x1dc] sm:$0xf] 0
      %564 = vst [vmem:[#allocation4 + $0x1e0] sm:$0xf] 0
      %565 = vst [vmem:[#allocation4 + $0x1e4] sm:$0xf] 0
      %566 = vst [vmem:[#allocation4 + $0x1e8] sm:$0xf] 0
      %567 = vst [vmem:[#allocation4 + $0x1ec] sm:$0xf] 0
      %568 = vst [vmem:[#allocation4 + $0x1f0] sm:$0xf] 0
      %569 = vst [vmem:[#allocation4 + $0x1f4] sm:$0xf] 0
      %570 = vst [vmem:[#allocation4 + $0x1f8] sm:$0xf] 0
      %571 = vst [vmem:[#allocation4 + $0x1fc] sm:$0xf] 0
      %572 = vst [vmem:[#allocation4 + $0x200] sm:$0xf] 0
      %573 = vst [vmem:[#allocation4 + $0x204] sm:$0xf] 0
      %574 = vst [vmem:[#allocation4 + $0x208] sm:$0xf] 0
      %575 = vst [vmem:[#allocation4 + $0x20c] sm:$0xf] 0
      %576 = vst [vmem:[#allocation4 + $0x210] sm:$0xf] 0
      %577 = vst [vmem:[#allocation4 + $0x214] sm:$0xf] 0
      %578 = vst [vmem:[#allocation4 + $0x218] sm:$0xf] 0
      %579 = vst [vmem:[#allocation4 + $0x21c] sm:$0xf] 0
      %580 = vst [vmem:[#allocation4 + $0x220] sm:$0xf] 0
      %581 = vst [vmem:[#allocation4 + $0x224] sm:$0xf] 0
      %582 = vst [vmem:[#allocation4 + $0x228] sm:$0xf] 0
      %583 = vst [vmem:[#allocation4 + $0x22c] sm:$0xf] 0
      %584 = vst [vmem:[#allocation4 + $0x230] sm:$0xf] 0
      %585 = vst [vmem:[#allocation4 + $0x234] sm:$0xf] 0
      %586 = vst [vmem:[#allocation4 + $0x238] sm:$0xf] 0
      %587 = vst [vmem:[#allocation4 + $0x23c] sm:$0xf] 0
      %588 = vst [vmem:[#allocation4 + $0x240] sm:$0xf] 0
      %589 = vst [vmem:[#allocation4 + $0x244] sm:$0xf] 0
      %590 = vst [vmem:[#allocation4 + $0x248] sm:$0xf] 0
      %591 = vst [vmem:[#allocation4 + $0x24c] sm:$0xf] 0
      %592 = vst [vmem:[#allocation4 + $0x250] sm:$0xf] 0
      %593 = vst [vmem:[#allocation4 + $0x254] sm:$0xf] 0
      %594 = vst [vmem:[#allocation4 + $0x258] sm:$0xf] 0
      %595 = vst [vmem:[#allocation4 + $0x25c] sm:$0xf] 0
      %596 = vst [vmem:[#allocation4 + $0x260] sm:$0xf] 0
      %597 = vst [vmem:[#allocation4 + $0x264] sm:$0xf] 0
      %598 = vst [vmem:[#allocation4 + $0x268] sm:$0xf] 0
      %599 = vst [vmem:[#allocation4 + $0x26c] sm:$0xf] 0
      %600 = vst [vmem:[#allocation4 + $0x270] sm:$0xf] 0
      %601 = vst [vmem:[#allocation4 + $0x274] sm:$0xf] 0
      %602 = vst [vmem:[#allocation4 + $0x278] sm:$0xf] 0
      %603 = vst [vmem:[#allocation4 + $0x27c] sm:$0xf] 0
      %604 = vst [vmem:[#allocation4 + $0x280] sm:$0xf] 0
      %605 = vst [vmem:[#allocation4 + $0x284] sm:$0xf] 0
      %606 = vst [vmem:[#allocation4 + $0x288] sm:$0xf] 0
      %607 = vst [vmem:[#allocation4 + $0x28c] sm:$0xf] 0
      %608 = vst [vmem:[#allocation4 + $0x290] sm:$0xf] 0
      %609 = vst [vmem:[#allocation4 + $0x294] sm:$0xf] 0
      %610 = vst [vmem:[#allocation4 + $0x298] sm:$0xf] 0
      %611 = vst [vmem:[#allocation4 + $0x29c] sm:$0xf] 0
      %612 = vst [vmem:[#allocation4 + $0x2a0] sm:$0xf] 0
      %613 = vst [vmem:[#allocation4 + $0x2a4] sm:$0xf] 0
      %614 = vst [vmem:[#allocation4 + $0x2a8] sm:$0xf] 0
      %615 = vst [vmem:[#allocation4 + $0x2ac] sm:$0xf] 0
      %616 = vst [vmem:[#allocation4 + $0x2b0] sm:$0xf] 0
      %617 = vst [vmem:[#allocation4 + $0x2b4] sm:$0xf] 0
      %618 = vst [vmem:[#allocation4 + $0x2b8] sm:$0xf] 0
      %619 = vst [vmem:[#allocation4 + $0x2bc] sm:$0xf] 0
      %620 = vst [vmem:[#allocation4 + $0x2c0] sm:$0xf] 0
      %621 = vst [vmem:[#allocation4 + $0x2c4] sm:$0xf] 0
      %622 = vst [vmem:[#allocation4 + $0x2c8] sm:$0xf] 0
      %623 = vst [vmem:[#allocation4 + $0x2cc] sm:$0xf] 0
      %624 = vst [vmem:[#allocation4 + $0x2d0] sm:$0xf] 0
      %625 = vst [vmem:[#allocation4 + $0x2d4] sm:$0xf] 0
      %626 = vst [vmem:[#allocation4 + $0x2d8] sm:$0xf] 0
      %627 = vst [vmem:[#allocation4 + $0x2dc] sm:$0xf] 0
      %628 = vst [vmem:[#allocation4 + $0x2e0] sm:$0xf] 0
      %629 = vst [vmem:[#allocation4 + $0x2e4] sm:$0xf] 0
      %630 = vst [vmem:[#allocation4 + $0x2e8] sm:$0xf] 0
      %631 = vst [vmem:[#allocation4 + $0x2ec] sm:$0xf] 0
      %632 = vst [vmem:[#allocation4 + $0x2f0] sm:$0xf] 0
      %633 = vst [vmem:[#allocation4 + $0x2f4] sm:$0xf] 0
      %634 = vst [vmem:[#allocation4 + $0x2f8] sm:$0xf] 0
      %635 = vst [vmem:[#allocation4 + $0x2fc] sm:$0xf] 0
      %636 = vst [vmem:[#allocation4 + $0x300] sm:$0xf] 0
      %637 = vst [vmem:[#allocation4 + $0x304] sm:$0xf] 0
      %638 = vst [vmem:[#allocation4 + $0x308] sm:$0xf] 0
      %639 = vst [vmem:[#allocation4 + $0x30c] sm:$0xf] 0
      %640 = vst [vmem:[#allocation4 + $0x310] sm:$0xf] 0
      %641 = vst [vmem:[#allocation4 + $0x314] sm:$0xf] 0
      %642 = vst [vmem:[#allocation4 + $0x318] sm:$0xf] 0
      %643 = vst [vmem:[#allocation4 + $0x31c] sm:$0xf] 0
      %644 = vst [vmem:[#allocation4 + $0x320] sm:$0xf] 0
      %645 = vst [vmem:[#allocation4 + $0x324] sm:$0xf] 0
      %646 = vst [vmem:[#allocation4 + $0x328] sm:$0xf] 0
      %647 = vst [vmem:[#allocation4 + $0x32c] sm:$0xf] 0
      %648 = vst [vmem:[#allocation4 + $0x330] sm:$0xf] 0
      %649 = vst [vmem:[#allocation4 + $0x334] sm:$0xf] 0
      %650 = vst [vmem:[#allocation4 + $0x338] sm:$0xf] 0
      %651 = vst [vmem:[#allocation4 + $0x33c] sm:$0xf] 0
      %652 = vst [vmem:[#allocation4 + $0x340] sm:$0xf] 0
      %653 = vst [vmem:[#allocation4 + $0x344] sm:$0xf] 0
      %654 = vst [vmem:[#allocation4 + $0x348] sm:$0xf] 0
      %655 = vst [vmem:[#allocation4 + $0x34c] sm:$0xf] 0
      %656 = vst [vmem:[#allocation4 + $0x350] sm:$0xf] 0
      %657 = vst [vmem:[#allocation4 + $0x354] sm:$0xf] 0
      %658 = vst [vmem:[#allocation4 + $0x358] sm:$0xf] 0
      %659 = vst [vmem:[#allocation4 + $0x35c] sm:$0xf] 0
      %660 = vst [vmem:[#allocation4 + $0x360] sm:$0xf] 0
      %661 = vst [vmem:[#allocation4 + $0x364] sm:$0xf] 0
      %662 = vst [vmem:[#allocation4 + $0x368] sm:$0xf] 0
      %663 = vst [vmem:[#allocation4 + $0x36c] sm:$0xf] 0
      %664 = vst [vmem:[#allocation4 + $0x370] sm:$0xf] 0
      %665 = vst [vmem:[#allocation4 + $0x374] sm:$0xf] 0
      %666 = vst [vmem:[#allocation4 + $0x378] sm:$0xf] 0
      %667 = vst [vmem:[#allocation4 + $0x37c] sm:$0xf] 0
      %668 = vst [vmem:[#allocation4 + $0x380] sm:$0xf] 0
      %669 = vst [vmem:[#allocation4 + $0x384] sm:$0xf] 0
      %670 = vst [vmem:[#allocation4 + $0x388] sm:$0xf] 0
      %671 = vst [vmem:[#allocation4 + $0x38c] sm:$0xf] 0
      %672 = vst [vmem:[#allocation4 + $0x390] sm:$0xf] 0
      %673 = vst [vmem:[#allocation4 + $0x394] sm:$0xf] 0
      %674 = vst [vmem:[#allocation4 + $0x398] sm:$0xf] 0
      %675 = vst [vmem:[#allocation4 + $0x39c] sm:$0xf] 0
      %676 = vst [vmem:[#allocation4 + $0x3a0] sm:$0xf] 0
      %677 = vst [vmem:[#allocation4 + $0x3a4] sm:$0xf] 0
      %678 = vst [vmem:[#allocation4 + $0x3a8] sm:$0xf] 0
      %679 = vst [vmem:[#allocation4 + $0x3ac] sm:$0xf] 0
      %680 = vst [vmem:[#allocation4 + $0x3b0] sm:$0xf] 0
      %681 = vst [vmem:[#allocation4 + $0x3b4] sm:$0xf] 0
      %682 = vst [vmem:[#allocation4 + $0x3b8] sm:$0xf] 0
      %683 = vst [vmem:[#allocation4 + $0x3bc] sm:$0xf] 0
      %684 = vst [vmem:[#allocation4 + $0x3c0] sm:$0xf] 0
      %685 = vst [vmem:[#allocation4 + $0x3c4] sm:$0xf] 0
      %686 = vst [vmem:[#allocation4 + $0x3c8] sm:$0xf] 0
      %687 = vst [vmem:[#allocation4 + $0x3cc] sm:$0xf] 0
      %688 = vst [vmem:[#allocation4 + $0x3d0] sm:$0xf] 0
      %689 = vst [vmem:[#allocation4 + $0x3d4] sm:$0xf] 0
      %690 = vst [vmem:[#allocation4 + $0x3d8] sm:$0xf] 0
      %691 = vst [vmem:[#allocation4 + $0x3dc] sm:$0xf] 0
      %692 = vst [vmem:[#allocation4 + $0x3e0] sm:$0xf] 0
      %693 = vst [vmem:[#allocation4 + $0x3e4] sm:$0xf] 0
      %694 = vst [vmem:[#allocation4 + $0x3e8] sm:$0xf] 0
      %695 = vst [vmem:[#allocation4 + $0x3ec] sm:$0xf] 0
      %696 = vst [vmem:[#allocation4 + $0x3f0] sm:$0xf] 0
      %697 = vst [vmem:[#allocation4 + $0x3f4] sm:$0xf] 0
      %698 = vst [vmem:[#allocation4 + $0x3f8] sm:$0xf] 0
      %699 = vst [vmem:[#allocation4 + $0x3fc] sm:$0xf] 0
      %v700 = vld [vmem:[%s3] sm:$0xf]
      %v701 = vld [vmem:[%s3 + $0x14] sm:$0xf]
      %v702 = vld [vmem:[%s3 + $0x28] sm:$0xf]
      %v703 = vld [vmem:[%s3 + $0x3c] sm:$0xf]
      %v704 = vld [vmem:[%s3 + $0x50] sm:$0xf]
      %705 = vst [vmem:[#allocation3] sm:$0xf] %v700
      %706 = vst [vmem:[#allocation3 + $0x140] sm:$0xf] %v701
      %707 = vst [vmem:[#allocation3 + $0x280] sm:$0xf] %v702
      %708 = vst [vmem:[#allocation3 + $0x3c0] sm:$0xf] %v703
      %709 = vst [vmem:[#allocation3 + $0x500] sm:$0xf] %v704
      %v710 = vld [vmem:[%s3 + $0x4] sm:$0xf]
      %v711 = vld [vmem:[%s3 + $0x18] sm:$0xf]
      %v712 = vld [vmem:[%s3 + $0x2c] sm:$0xf]
      %v713 = vld [vmem:[%s3 + $0x40] sm:$0xf]
      %v714 = vld [vmem:[%s3 + $0x54] sm:$0xf]
      %715 = vst [vmem:[#allocation3 + $0x40] sm:$0xf] %v710
      %716 = vst [vmem:[#allocation3 + $0x180] sm:$0xf] %v711
      %717 = vst [vmem:[#allocation3 + $0x2c0] sm:$0xf] %v712
      %718 = vst [vmem:[#allocation3 + $0x400] sm:$0xf] %v713
      %719 = vst [vmem:[#allocation3 + $0x540] sm:$0xf] %v714
      %v720 = vld [vmem:[%s3 + $0x8] sm:$0xf]
      %v721 = vld [vmem:[%s3 + $0x1c] sm:$0xf]
      %v722 = vld [vmem:[%s3 + $0x30] sm:$0xf]
      %v723 = vld [vmem:[%s3 + $0x44] sm:$0xf]
      %v724 = vld [vmem:[%s3 + $0x58] sm:$0xf]
      %725 = vst [vmem:[#allocation3 + $0x80] sm:$0xf] %v720
      %726 = vst [vmem:[#allocation3 + $0x1c0] sm:$0xf] %v721
      %727 = vst [vmem:[#allocation3 + $0x300] sm:$0xf] %v722
      %728 = vst [vmem:[#allocation3 + $0x440] sm:$0xf] %v723
      %729 = vst [vmem:[#allocation3 + $0x580] sm:$0xf] %v724
      %v730 = vld [vmem:[%s3 + $0xc] sm:$0xf]
      %v731 = vld [vmem:[%s3 + $0x20] sm:$0xf]
      %v732 = vld [vmem:[%s3 + $0x34] sm:$0xf]
      %v733 = vld [vmem:[%s3 + $0x48] sm:$0xf]
      %v734 = vld [vmem:[%s3 + $0x5c] sm:$0xf]
      %735 = vst [vmem:[#allocation3 + $0xc0] sm:$0xf] %v730
      %736 = vst [vmem:[#allocation3 + $0x200] sm:$0xf] %v731
      %737 = vst [vmem:[#allocation3 + $0x340] sm:$0xf] %v732
      %738 = vst [vmem:[#allocation3 + $0x480] sm:$0xf] %v733
      %739 = vst [vmem:[#allocation3 + $0x5c0] sm:$0xf] %v734
      %v740 = vld [vmem:[%s3 + $0x10] sm:$0xf]
      %v741 = vld [vmem:[%s3 + $0x24] sm:$0xf]
      %v742 = vld [vmem:[%s3 + $0x38] sm:$0xf]
      %v743 = vld [vmem:[%s3 + $0x4c] sm:$0xf]
      %v744 = vld [vmem:[%s3 + $0x60] sm:$0xf]
      %745 = vst [vmem:[#allocation3 + $0x100] sm:$0xf] %v740
      %746 = vst [vmem:[#allocation3 + $0x240] sm:$0xf] %v741
      %747 = vst [vmem:[#allocation3 + $0x380] sm:$0xf] %v742
      %748 = vst [vmem:[#allocation3 + $0x4c0] sm:$0xf] %v743
      %749 = vst [vmem:[#allocation3 + $0x600] sm:$0xf] %v744
      %v750 = vld [vmem:[%s5] sm:$0xf]
      %v751 = vld [vmem:[%s5 + $0x4] sm:$0xf]
      %752 = vst [vmem:[#allocation4] sm:$0xf] %v750
      %753 = vst [vmem:[#allocation4 + $0x4] sm:$0xf] %v751
      %v754 = vld [vmem:[%s5 + $0x8] sm:$0xf]
      %v755 = vld [vmem:[%s5 + $0xc] sm:$0xf]
      %756 = vst [vmem:[#allocation4 + $0x40] sm:$0xf] %v754
      %757 = vst [vmem:[#allocation4 + $0x44] sm:$0xf] %v755
      %v758 = vld [vmem:[%s5 + $0x10] sm:$0xf]
      %v759 = vld [vmem:[%s5 + $0x14] sm:$0xf]
      %760 = vst [vmem:[#allocation4 + $0x80] sm:$0xf] %v758
      %761 = vst [vmem:[#allocation4 + $0x84] sm:$0xf] %v759
      %v762 = vld [vmem:[%s5 + $0x18] sm:$0xf]
      %v763 = vld [vmem:[%s5 + $0x1c] sm:$0xf]
      %764 = vst [vmem:[#allocation4 + $0xc0] sm:$0xf] %v762
      %765 = vst [vmem:[#allocation4 + $0xc4] sm:$0xf] %v763
      %v766 = vld [vmem:[%s5 + $0x20] sm:$0xf]
      %v767 = vld [vmem:[%s5 + $0x24] sm:$0xf]
      %768 = vst [vmem:[#allocation4 + $0x100] sm:$0xf] %v766
      %769 = vst [vmem:[#allocation4 + $0x104] sm:$0xf] %v767
      %v770 = vld [vmem:[%s5 + $0x28] sm:$0xf]
      %v771 = vld [vmem:[%s5 + $0x2c] sm:$0xf]
      %772 = vst [vmem:[#allocation4 + $0x140] sm:$0xf] %v770
      %773 = vst [vmem:[#allocation4 + $0x144] sm:$0xf] %v771
      %v774 = vld [vmem:[%s5 + $0x30] sm:$0xf]
      %v775 = vld [vmem:[%s5 + $0x34] sm:$0xf]
      %776 = vst [vmem:[#allocation4 + $0x180] sm:$0xf] %v774
      %777 = vst [vmem:[#allocation4 + $0x184] sm:$0xf] %v775
      %v778 = vld [vmem:[%s5 + $0x38] sm:$0xf]
      %v779 = vld [vmem:[%s5 + $0x3c] sm:$0xf]
      %780 = vst [vmem:[#allocation4 + $0x1c0] sm:$0xf] %v778
      %781 = vst [vmem:[#allocation4 + $0x1c4] sm:$0xf] %v779
      %v782 = vld [vmem:[%s5 + $0x40] sm:$0xf]
      %v783 = vld [vmem:[%s5 + $0x44] sm:$0xf]
      %784 = vst [vmem:[#allocation4 + $0x200] sm:$0xf] %v782
      %785 = vst [vmem:[#allocation4 + $0x204] sm:$0xf] %v783
      %v786 = vld [vmem:[%s5 + $0x48] sm:$0xf]
      %v787 = vld [vmem:[%s5 + $0x4c] sm:$0xf]
      %788 = vst [vmem:[#allocation4 + $0x240] sm:$0xf] %v786
      %789 = vst [vmem:[#allocation4 + $0x244] sm:$0xf] %v787
      %v790 = vld [vmem:[%s5 + $0x50] sm:$0xf]
      %v791 = vld [vmem:[%s5 + $0x54] sm:$0xf]
      %792 = vst [vmem:[#allocation4 + $0x280] sm:$0xf] %v790
      %793 = vst [vmem:[#allocation4 + $0x284] sm:$0xf] %v791
      %v794 = vld [vmem:[%s5 + $0x58] sm:$0xf]
      %v795 = vld [vmem:[%s5 + $0x5c] sm:$0xf]
      %796 = vst [vmem:[#allocation4 + $0x2c0] sm:$0xf] %v794
      %797 = vst [vmem:[#allocation4 + $0x2c4] sm:$0xf] %v795
      %v798 = vld [vmem:[%s5 + $0x60] sm:$0xf]
      %v799 = vld [vmem:[%s5 + $0x64] sm:$0xf]
      %800 = vst [vmem:[#allocation4 + $0x300] sm:$0xf] %v798
      %801 = vst [vmem:[#allocation4 + $0x304] sm:$0xf] %v799
      %v802 = vld [vmem:[%s5 + $0x68] sm:$0xf]
      %v803 = vld [vmem:[%s5 + $0x6c] sm:$0xf]
      %804 = vst [vmem:[#allocation4 + $0x340] sm:$0xf] %v802
      %805 = vst [vmem:[#allocation4 + $0x344] sm:$0xf] %v803
      %v806 = vld [vmem:[%s5 + $0x70] sm:$0xf]
      %v807 = vld [vmem:[%s5 + $0x74] sm:$0xf]
      %808 = vst [vmem:[#allocation4 + $0x380] sm:$0xf] %v806
      %809 = vst [vmem:[#allocation4 + $0x384] sm:$0xf] %v807
      %v810 = vld [vmem:[%s5 + $0x78] sm:$0xf]
      %v811 = vld [vmem:[%s5 + $0x7c] sm:$0xf]
      %812 = vst [vmem:[#allocation4 + $0x3c0] sm:$0xf] %v810
      %813 = vst [vmem:[#allocation4 + $0x3c4] sm:$0xf] %v811
    $region49: #{lenet_forward.1} parent=1 // pred_fallthru
      _
    %v814 = vld [vmem:[%s0] sm:$0xf]
    %v815 = vld [vmem:[%s0 + $0x4] sm:$0xf]
    %v816 = vld [vmem:[%s0 + $0x8] sm:$0xf]
    %v817 = vld [vmem:[%s0 + $0xc] sm:$0xf]
    %v818 = vld [vmem:[%s0 + $0x10] sm:$0xf]
    %v819 = vld [vmem:[%s0 + $0x14] sm:$0xf]
    %v820 = vld [vmem:[%s0 + $0x18] sm:$0xf]
    %v821 = vld [vmem:[%s0 + $0x1c] sm:$0xf]
    %v822 = vld [vmem:[%s0 + $0x20] sm:$0xf]
    %v823 = vld [vmem:[%s0 + $0x24] sm:$0xf]
    %v824 = vld [vmem:[%s0 + $0x28] sm:$0xf]
    %v825 = vld [vmem:[%s0 + $0x2c] sm:$0xf]
    %v826 = vld [vmem:[%s0 + $0x30] sm:$0xf]
    %v827 = vld [vmem:[%s0 + $0x34] sm:$0xf]
    %v828 = vld [vmem:[%s0 + $0x38] sm:$0xf]
    %v829 = vld [vmem:[%s0 + $0x3c] sm:$0xf]
    %v830 = vld [vmem:[%s0 + $0x40] sm:$0xf]
    %v831 = vld [vmem:[%s0 + $0x44] sm:$0xf]
    %v832 = vld [vmem:[%s0 + $0x48] sm:$0xf]
    %v833 = vld [vmem:[%s0 + $0x4c] sm:$0xf]
    %v834 = vld [vmem:[%s0 + $0x50] sm:$0xf]
    %v835 = vld [vmem:[%s0 + $0x54] sm:$0xf]
    %v836 = vld [vmem:[%s0 + $0x58] sm:$0xf]
    %v837 = vld [vmem:[%s0 + $0x5c] sm:$0xf]
    %v838 = vld [vmem:[%s0 + $0x60] sm:$0xf]
    %v839 = vld [vmem:[%s0 + $0x64] sm:$0xf]
    %v840 = vld [vmem:[%s0 + $0x68] sm:$0xf]
    %v841 = vld [vmem:[%s0 + $0x6c] sm:$0xf]
    %v842 = vld [vmem:[%s0 + $0x70] sm:$0xf]
    %v843 = vld [vmem:[%s0 + $0x74] sm:$0xf]
    %v844 = vld [vmem:[%s0 + $0x78] sm:$0xf]
    %v845 = vld [vmem:[%s0 + $0x7c] sm:$0xf]
    %v846 = vld [vmem:[%s0 + $0x80] sm:$0xf]
    %v847 = vld [vmem:[%s0 + $0x84] sm:$0xf]
    %v848 = vld [vmem:[%s0 + $0x88] sm:$0xf]
    %v849 = vld [vmem:[%s0 + $0x8c] sm:$0xf]
    %v850 = vld [vmem:[%s0 + $0x90] sm:$0xf]
    %v851 = vld [vmem:[%s0 + $0x94] sm:$0xf]
    %v852 = vld [vmem:[%s0 + $0x98] sm:$0xf]
    %v853 = vld [vmem:[%s0 + $0x9c] sm:$0xf]
    %v854 = vld [vmem:[%s0 + $0xa0] sm:$0xf]
    %v855 = vld [vmem:[%s0 + $0xa4] sm:$0xf]
    %v856 = vld [vmem:[%s0 + $0xa8] sm:$0xf]
    %v857 = vld [vmem:[%s0 + $0xac] sm:$0xf]
    %v858 = vld [vmem:[%s0 + $0xb0] sm:$0xf]
    %v859 = vld [vmem:[%s0 + $0xb4] sm:$0xf]
    %v860 = vld [vmem:[%s0 + $0xb8] sm:$0xf]
    %v861 = vld [vmem:[%s0 + $0xbc] sm:$0xf]
    %v862 = vld [vmem:[%s1] sm:$0xf]
    %v863 = vld [vmem:[%s1 + $0x4] sm:$0xf]
    %v864 = vld [vmem:[%s1 + $0x8] sm:$0xf]
    %v865 = vld [vmem:[%s1 + $0xc] sm:$0xf]
    %v866 = vld [vmem:[%s1 + $0x10] sm:$0xf]
    %v867 = vld [vmem:[%s1 + $0x14] sm:$0xf]
    %v868 = vld [vmem:[%s1 + $0x18] sm:$0xf]
    %v869 = vld [vmem:[%s1 + $0x1c] sm:$0xf]
    %v870 = vld [vmem:[%s1 + $0x20] sm:$0xf]
    %v871 = vld [vmem:[%s1 + $0x24] sm:$0xf]
    %v872 = vld [vmem:[%s1 + $0x28] sm:$0xf]
    %v873 = vld [vmem:[%s1 + $0x2c] sm:$0xf]
    %v874 = vld [vmem:[%s1 + $0x30] sm:$0xf]
    %v875 = vld [vmem:[%s1 + $0x34] sm:$0xf]
    %v876 = vld [vmem:[%s1 + $0x38] sm:$0xf]
    %v877 = vld [vmem:[%s1 + $0x3c] sm:$0xf]
    %v926 = vunpack.c.l.b16 %v814
    %v927 = vunpack.c.l.b16 %v815
    %v928 = vunpack.c.l.b16 %v816
    %v929 = vunpack.c.l.b16 %v817
    %v930 = vunpack.c.l.b16 %v818
    %v931 = vunpack.c.l.b16 %v819
    %v932 = vunpack.c.l.b16 %v820
    %v933 = vunpack.c.l.b16 %v821
    %v934 = vunpack.c.l.b16 %v822
    %v935 = vunpack.c.l.b16 %v823
    %v936 = vunpack.c.l.b16 %v824
    %v937 = vunpack.c.l.b16 %v825
    %v938 = vunpack.c.l.b16 %v826
    %v939 = vunpack.c.l.b16 %v827
    %v940 = vunpack.c.l.b16 %v828
    %v941 = vunpack.c.l.b16 %v829
    %v942 = vunpack.c.l.b16 %v830
    %v943 = vunpack.c.l.b16 %v831
    %v944 = vunpack.c.l.b16 %v832
    %v945 = vunpack.c.l.b16 %v833
    %v946 = vunpack.c.l.b16 %v834
    %v947 = vunpack.c.l.b16 %v835
    %v948 = vunpack.c.l.b16 %v836
    %v949 = vunpack.c.l.b16 %v837
    %v950 = vunpack.c.l.b16 %v838
    %v951 = vunpack.c.l.b16 %v839
    %v952 = vunpack.c.l.b16 %v840
    %v953 = vunpack.c.l.b16 %v841
    %v954 = vunpack.c.l.b16 %v842
    %v955 = vunpack.c.l.b16 %v843
    %v956 = vunpack.c.l.b16 %v844
    %v957 = vunpack.c.l.b16 %v845
    %v958 = vunpack.c.l.b16 %v846
    %v959 = vunpack.c.l.b16 %v847
    %v960 = vunpack.c.l.b16 %v848
    %v961 = vunpack.c.l.b16 %v849
    %v962 = vunpack.c.l.b16 %v850
    %v963 = vunpack.c.l.b16 %v851
    %v964 = vunpack.c.l.b16 %v852
    %v965 = vunpack.c.l.b16 %v853
    %v966 = vunpack.c.l.b16 %v854
    %v967 = vunpack.c.l.b16 %v855
    %v968 = vunpack.c.l.b16 %v856
    %v969 = vunpack.c.l.b16 %v857
    %v970 = vunpack.c.l.b16 %v858
    %v971 = vunpack.c.l.b16 %v859
    %v972 = vunpack.c.l.b16 %v860
    %v973 = vunpack.c.l.b16 %v861
    %v974 = vpack.c.b16 %v927, %v926
    %v975 = vpack.c.b16 %v929, %v928
    %v976 = vpack.c.b16 %v931, %v930
    %v977 = vpack.c.b16 %v933, %v932
    %v978 = vpack.c.b16 %v935, %v934
    %v979 = vpack.c.b16 %v937, %v936
    %v980 = vpack.c.b16 %v939, %v938
    %v981 = vpack.c.b16 %v941, %v940
    %v982 = vpack.c.b16 %v943, %v942
    %v983 = vpack.c.b16 %v945, %v944
    %v984 = vpack.c.b16 %v947, %v946
    %v985 = vpack.c.b16 %v949, %v948
    %v986 = vpack.c.b16 %v951, %v950
    %v987 = vpack.c.b16 %v953, %v952
    %v988 = vpack.c.b16 %v955, %v954
    %v989 = vpack.c.b16 %v957, %v956
    %v990 = vpack.c.b16 %v959, %v958
    %v991 = vpack.c.b16 %v961, %v960
    %v992 = vpack.c.b16 %v963, %v962
    %v993 = vpack.c.b16 %v965, %v964
    %v994 = vpack.c.b16 %v967, %v966
    %v995 = vpack.c.b16 %v969, %v968
    %v996 = vpack.c.b16 %v971, %v970
    %v997 = vpack.c.b16 %v973, %v972
    %v1038 = vunpack.c.l.b16 %v862
    %v1039 = vunpack.c.l.b16 %v863
    %v1040 = vunpack.c.l.b16 %v864
    %v1041 = vunpack.c.l.b16 %v865
    %v1042 = vunpack.c.l.b16 %v866
    %v1043 = vunpack.c.l.b16 %v867
    %v1044 = vunpack.c.l.b16 %v868
    %v1045 = vunpack.c.l.b16 %v869
    %v1046 = vunpack.c.l.b16 %v870
    %v1047 = vunpack.c.l.b16 %v871
    %v1048 = vunpack.c.l.b16 %v872
    %v1049 = vunpack.c.l.b16 %v873
    %v1050 = vunpack.c.l.b16 %v874
    %v1051 = vunpack.c.l.b16 %v875
    %v1052 = vunpack.c.l.b16 %v876
    %v1053 = vunpack.c.l.b16 %v877
    %v1054 = vpack.c.b16 %v1039, %v1038
    %v1055 = vpack.c.b16 %v1041, %v1040
    %v1056 = vpack.c.b16 %v1043, %v1042
    %v1057 = vpack.c.b16 %v1045, %v1044
    %v1058 = vpack.c.b16 %v1047, %v1046
    %v1059 = vpack.c.b16 %v1049, %v1048
    %v1060 = vpack.c.b16 %v1051, %v1050
    %v1061 = vpack.c.b16 %v1053, %v1052
    %1070 = vmatpush.bf16.msra.mxu0 %v1061
    %1071 = vmatpush.bf16.msra.mxu0 %v1060
    %1072 = vmatpush.bf16.msra.mxu0 %v1059
    %1073 = vmatpush.bf16.msra.mxu0 %v1058
    %1074 = vmatpush.bf16.msra.mxu0 %v1057
    %1075 = vmatpush.bf16.msra.mxu0 %v1056
    %1076 = vmatpush.bf16.msra.mxu0 %v1055
    %1077 = vmatpush.bf16.msra.mxu0 %v1054
    %1078 = vmatmul.bf16.gmra.mxu0 %v974
    %v1079 = vpop.f32.mrf.mxu0
    %v1080 = vadd.f32 0.0, %v1079
    %v1081 = vpop.f32.mrf.mxu0
    %v1082 = vadd.f32 0.0, %v1081
    %1083 = vmatmul.bf16.gmra.mxu0 %v975
    %v1084 = vpop.f32.mrf.mxu0
    %v1085 = vadd.f32 0.0, %v1084
    %v1086 = vpop.f32.mrf.mxu0
    %v1087 = vadd.f32 0.0, %v1086
    %1088 = vmatmul.bf16.gmra.mxu0 %v976
    %v1089 = vpop.f32.mrf.mxu0
    %v1090 = vadd.f32 0.0, %v1089
    %v1091 = vpop.f32.mrf.mxu0
    %v1092 = vadd.f32 0.0, %v1091
    %1093 = vmatmul.bf16.gmra.mxu0 %v977
    %v1094 = vpop.f32.mrf.mxu0
    %v1095 = vadd.f32 0.0, %v1094
    %v1096 = vpop.f32.mrf.mxu0
    %v1097 = vadd.f32 0.0, %v1096
    %1098 = vmatmul.bf16.gmra.mxu0 %v978
    %v1099 = vpop.f32.mrf.mxu0
    %v1100 = vadd.f32 0.0, %v1099
    %v1101 = vpop.f32.mrf.mxu0
    %v1102 = vadd.f32 0.0, %v1101
    %1103 = vmatmul.bf16.gmra.mxu0 %v979
    %v1104 = vpop.f32.mrf.mxu0
    %v1105 = vadd.f32 0.0, %v1104
    %v1106 = vpop.f32.mrf.mxu0
    %v1107 = vadd.f32 0.0, %v1106
    %1108 = vmatmul.bf16.gmra.mxu0 %v980
    %v1109 = vpop.f32.mrf.mxu0
    %v1110 = vadd.f32 0.0, %v1109
    %v1111 = vpop.f32.mrf.mxu0
    %v1112 = vadd.f32 0.0, %v1111
    %1113 = vmatmul.bf16.gmra.mxu0 %v981
    %v1114 = vpop.f32.mrf.mxu0
    %v1115 = vadd.f32 0.0, %v1114
    %v1116 = vpop.f32.mrf.mxu0
    %v1117 = vadd.f32 0.0, %v1116
    %1118 = vmatmul.bf16.gmra.mxu0 %v982
    %v1119 = vpop.f32.mrf.mxu0
    %v1120 = vadd.f32 0.0, %v1119
    %v1121 = vpop.f32.mrf.mxu0
    %v1122 = vadd.f32 0.0, %v1121
    %1123 = vmatmul.bf16.gmra.mxu0 %v983
    %v1124 = vpop.f32.mrf.mxu0
    %v1125 = vadd.f32 0.0, %v1124
    %v1126 = vpop.f32.mrf.mxu0
    %v1127 = vadd.f32 0.0, %v1126
    %1128 = vmatmul.bf16.gmra.mxu0 %v984
    %v1129 = vpop.f32.mrf.mxu0
    %v1130 = vadd.f32 0.0, %v1129
    %v1131 = vpop.f32.mrf.mxu0
    %v1132 = vadd.f32 0.0, %v1131
    %1133 = vmatmul.bf16.gmra.mxu0 %v985
    %v1134 = vpop.f32.mrf.mxu0
    %v1135 = vadd.f32 0.0, %v1134
    %v1136 = vpop.f32.mrf.mxu0
    %v1137 = vadd.f32 0.0, %v1136
    %1138 = vmatmul.bf16.gmra.mxu0 %v986
    %v1139 = vpop.f32.mrf.mxu0
    %v1140 = vadd.f32 0.0, %v1139
    %v1141 = vpop.f32.mrf.mxu0
    %v1142 = vadd.f32 0.0, %v1141
    %1143 = vmatmul.bf16.gmra.mxu0 %v987
    %v1144 = vpop.f32.mrf.mxu0
    %v1145 = vadd.f32 0.0, %v1144
    %v1146 = vpop.f32.mrf.mxu0
    %v1147 = vadd.f32 0.0, %v1146
    %1148 = vmatmul.bf16.gmra.mxu0 %v988
    %v1149 = vpop.f32.mrf.mxu0
    %v1150 = vadd.f32 0.0, %v1149
    %v1151 = vpop.f32.mrf.mxu0
    %v1152 = vadd.f32 0.0, %v1151
    %1153 = vmatmul.bf16.gmra.mxu0 %v989
    %v1154 = vpop.f32.mrf.mxu0
    %v1155 = vadd.f32 0.0, %v1154
    %v1156 = vpop.f32.mrf.mxu0
    %v1157 = vadd.f32 0.0, %v1156
    %1158 = vmatmul.bf16.gmra.mxu0 %v990
    %v1159 = vpop.f32.mrf.mxu0
    %v1160 = vadd.f32 0.0, %v1159
    %v1161 = vpop.f32.mrf.mxu0
    %v1162 = vadd.f32 0.0, %v1161
    %1163 = vmatmul.bf16.gmra.mxu0 %v991
    %v1164 = vpop.f32.mrf.mxu0
    %v1165 = vadd.f32 0.0, %v1164
    %v1166 = vpop.f32.mrf.mxu0
    %v1167 = vadd.f32 0.0, %v1166
    %1168 = vmatmul.bf16.gmra.mxu0 %v992
    %v1169 = vpop.f32.mrf.mxu0
    %v1170 = vadd.f32 0.0, %v1169
    %v1171 = vpop.f32.mrf.mxu0
    %v1172 = vadd.f32 0.0, %v1171
    %1173 = vmatmul.bf16.gmra.mxu0 %v993
    %v1174 = vpop.f32.mrf.mxu0
    %v1175 = vadd.f32 0.0, %v1174
    %v1176 = vpop.f32.mrf.mxu0
    %v1177 = vadd.f32 0.0, %v1176
    %1178 = vmatmul.bf16.gmra.mxu0 %v994
    %v1179 = vpop.f32.mrf.mxu0
    %v1180 = vadd.f32 0.0, %v1179
    %v1181 = vpop.f32.mrf.mxu0
    %v1182 = vadd.f32 0.0, %v1181
    %1183 = vmatmul.bf16.gmra.mxu0 %v995
    %v1184 = vpop.f32.mrf.mxu0
    %v1185 = vadd.f32 0.0, %v1184
    %v1186 = vpop.f32.mrf.mxu0
    %v1187 = vadd.f32 0.0, %v1186
    %1188 = vmatmul.bf16.gmra.mxu0 %v996
    %v1189 = vpop.f32.mrf.mxu0
    %v1190 = vadd.f32 0.0, %v1189
    %v1191 = vpop.f32.mrf.mxu0
    %v1192 = vadd.f32 0.0, %v1191
    %1193 = vmatmul.bf16.gmra.mxu0 %v997
    %v1194 = vpop.f32.mrf.mxu0
    %v1195 = vadd.f32 0.0, %v1194
    %v1196 = vpop.f32.mrf.mxu0
    %v1197 = vadd.f32 0.0, %v1196
    %1198 = vdwg.mxu0
    %s1199 = scalar_lea.vmem %s0, 192
    %v1200 = vld [vmem:[%s1199] sm:$0xf]
    %v1201 = vld [vmem:[%s1199 + $0x4] sm:$0xf]
    %v1202 = vld [vmem:[%s1199 + $0x8] sm:$0xf]
    %v1203 = vld [vmem:[%s1199 + $0xc] sm:$0xf]
    %v1204 = vld [vmem:[%s1199 + $0x10] sm:$0xf]
    %v1205 = vld [vmem:[%s1199 + $0x14] sm:$0xf]
    %v1206 = vld [vmem:[%s1199 + $0x18] sm:$0xf]
    %v1207 = vld [vmem:[%s1199 + $0x1c] sm:$0xf]
    %v1208 = vld [vmem:[%s1199 + $0x20] sm:$0xf]
    %v1209 = vld [vmem:[%s1199 + $0x24] sm:$0xf]
    %v1210 = vld [vmem:[%s1199 + $0x28] sm:$0xf]
    %v1211 = vld [vmem:[%s1199 + $0x2c] sm:$0xf]
    %v1212 = vld [vmem:[%s1199 + $0x30] sm:$0xf]
    %v1213 = vld [vmem:[%s1199 + $0x34] sm:$0xf]
    %v1214 = vld [vmem:[%s1199 + $0x38] sm:$0xf]
    %v1215 = vld [vmem:[%s1199 + $0x3c] sm:$0xf]
    %v1216 = vld [vmem:[%s1199 + $0x40] sm:$0xf]
    %v1217 = vld [vmem:[%s1199 + $0x44] sm:$0xf]
    %v1218 = vld [vmem:[%s1199 + $0x48] sm:$0xf]
    %v1219 = vld [vmem:[%s1199 + $0x4c] sm:$0xf]
    %v1220 = vld [vmem:[%s1199 + $0x50] sm:$0xf]
    %v1221 = vld [vmem:[%s1199 + $0x54] sm:$0xf]
    %v1222 = vld [vmem:[%s1199 + $0x58] sm:$0xf]
    %v1223 = vld [vmem:[%s1199 + $0x5c] sm:$0xf]
    %v1224 = vld [vmem:[%s1199 + $0x60] sm:$0xf]
    %v1225 = vld [vmem:[%s1199 + $0x64] sm:$0xf]
    %v1226 = vld [vmem:[%s1199 + $0x68] sm:$0xf]
    %v1227 = vld [vmem:[%s1199 + $0x6c] sm:$0xf]
    %v1228 = vld [vmem:[%s1199 + $0x70] sm:$0xf]
    %v1229 = vld [vmem:[%s1199 + $0x74] sm:$0xf]
    %v1230 = vld [vmem:[%s1199 + $0x78] sm:$0xf]
    %v1231 = vld [vmem:[%s1199 + $0x7c] sm:$0xf]
    %v1232 = vld [vmem:[%s1199 + $0x80] sm:$0xf]
    %v1233 = vld [vmem:[%s1199 + $0x84] sm:$0xf]
    %v1234 = vld [vmem:[%s1199 + $0x88] sm:$0xf]
    %v1235 = vld [vmem:[%s1199 + $0x8c] sm:$0xf]
    %v1236 = vld [vmem:[%s1199 + $0x90] sm:$0xf]
    %v1237 = vld [vmem:[%s1199 + $0x94] sm:$0xf]
    %v1238 = vld [vmem:[%s1199 + $0x98] sm:$0xf]
    %v1239 = vld [vmem:[%s1199 + $0x9c] sm:$0xf]
    %v1240 = vld [vmem:[%s1199 + $0xa0] sm:$0xf]
    %v1241 = vld [vmem:[%s1199 + $0xa4] sm:$0xf]
    %v1242 = vld [vmem:[%s1199 + $0xa8] sm:$0xf]
    %v1243 = vld [vmem:[%s1199 + $0xac] sm:$0xf]
    %v1244 = vld [vmem:[%s1199 + $0xb0] sm:$0xf]
    %v1245 = vld [vmem:[%s1199 + $0xb4] sm:$0xf]
    %v1246 = vld [vmem:[%s1199 + $0xb8] sm:$0xf]
    %v1247 = vld [vmem:[%s1199 + $0xbc] sm:$0xf]
    %v1296 = vunpack.c.l.b16 %v1200
    %v1297 = vunpack.c.l.b16 %v1201
    %v1298 = vunpack.c.l.b16 %v1202
    %v1299 = vunpack.c.l.b16 %v1203
    %v1300 = vunpack.c.l.b16 %v1204
    %v1301 = vunpack.c.l.b16 %v1205
    %v1302 = vunpack.c.l.b16 %v1206
    %v1303 = vunpack.c.l.b16 %v1207
    %v1304 = vunpack.c.l.b16 %v1208
    %v1305 = vunpack.c.l.b16 %v1209
    %v1306 = vunpack.c.l.b16 %v1210
    %v1307 = vunpack.c.l.b16 %v1211
    %v1308 = vunpack.c.l.b16 %v1212
    %v1309 = vunpack.c.l.b16 %v1213
    %v1310 = vunpack.c.l.b16 %v1214
    %v1311 = vunpack.c.l.b16 %v1215
    %v1312 = vunpack.c.l.b16 %v1216
    %v1313 = vunpack.c.l.b16 %v1217
    %v1314 = vunpack.c.l.b16 %v1218
    %v1315 = vunpack.c.l.b16 %v1219
    %v1316 = vunpack.c.l.b16 %v1220
    %v1317 = vunpack.c.l.b16 %v1221
    %v1318 = vunpack.c.l.b16 %v1222
    %v1319 = vunpack.c.l.b16 %v1223
    %v1320 = vunpack.c.l.b16 %v1224
    %v1321 = vunpack.c.l.b16 %v1225
    %v1322 = vunpack.c.l.b16 %v1226
    %v1323 = vunpack.c.l.b16 %v1227
    %v1324 = vunpack.c.l.b16 %v1228
    %v1325 = vunpack.c.l.b16 %v1229
    %v1326 = vunpack.c.l.b16 %v1230
    %v1327 = vunpack.c.l.b16 %v1231
    %v1328 = vunpack.c.l.b16 %v1232
    %v1329 = vunpack.c.l.b16 %v1233
    %v1330 = vunpack.c.l.b16 %v1234
    %v1331 = vunpack.c.l.b16 %v1235
    %v1332 = vunpack.c.l.b16 %v1236
    %v1333 = vunpack.c.l.b16 %v1237
    %v1334 = vunpack.c.l.b16 %v1238
    %v1335 = vunpack.c.l.b16 %v1239
    %v1336 = vunpack.c.l.b16 %v1240
    %v1337 = vunpack.c.l.b16 %v1241
    %v1338 = vunpack.c.l.b16 %v1242
    %v1339 = vunpack.c.l.b16 %v1243
    %v1340 = vunpack.c.l.b16 %v1244
    %v1341 = vunpack.c.l.b16 %v1245
    %v1342 = vunpack.c.l.b16 %v1246
    %v1343 = vunpack.c.l.b16 %v1247
    %v1344 = vpack.c.b16 %v1297, %v1296
    %v1345 = vpack.c.b16 %v1299, %v1298
    %v1346 = vpack.c.b16 %v1301, %v1300
    %v1347 = vpack.c.b16 %v1303, %v1302
    %v1348 = vpack.c.b16 %v1305, %v1304
    %v1349 = vpack.c.b16 %v1307, %v1306
    %v1350 = vpack.c.b16 %v1309, %v1308
    %v1351 = vpack.c.b16 %v1311, %v1310
    %v1352 = vpack.c.b16 %v1313, %v1312
    %v1353 = vpack.c.b16 %v1315, %v1314
    %v1354 = vpack.c.b16 %v1317, %v1316
    %v1355 = vpack.c.b16 %v1319, %v1318
    %v1356 = vpack.c.b16 %v1321, %v1320
    %v1357 = vpack.c.b16 %v1323, %v1322
    %v1358 = vpack.c.b16 %v1325, %v1324
    %v1359 = vpack.c.b16 %v1327, %v1326
    %v1360 = vpack.c.b16 %v1329, %v1328
    %v1361 = vpack.c.b16 %v1331, %v1330
    %v1362 = vpack.c.b16 %v1333, %v1332
    %v1363 = vpack.c.b16 %v1335, %v1334
    %v1364 = vpack.c.b16 %v1337, %v1336
    %v1365 = vpack.c.b16 %v1339, %v1338
    %v1366 = vpack.c.b16 %v1341, %v1340
    %v1367 = vpack.c.b16 %v1343, %v1342
    %1392 = vmatpush.bf16.msra.mxu0 %v1061
    %1393 = vmatpush.bf16.msra.mxu0 %v1060
    %1394 = vmatpush.bf16.msra.mxu0 %v1059
    %1395 = vmatpush.bf16.msra.mxu0 %v1058
    %1396 = vmatpush.bf16.msra.mxu0 %v1057
    %1397 = vmatpush.bf16.msra.mxu0 %v1056
    %1398 = vmatpush.bf16.msra.mxu0 %v1055
    %1399 = vmatpush.bf16.msra.mxu0 %v1054
    %1400 = vmatmul.bf16.gmra.mxu0 %v1344
    %v1401 = vpop.f32.mrf.mxu0
    %v1402 = vadd.f32 0.0, %v1401
    %v1403 = vpop.f32.mrf.mxu0
    %v1404 = vadd.f32 0.0, %v1403
    %1405 = vmatmul.bf16.gmra.mxu0 %v1345
    %v1406 = vpop.f32.mrf.mxu0
    %v1407 = vadd.f32 0.0, %v1406
    %v1408 = vpop.f32.mrf.mxu0
    %v1409 = vadd.f32 0.0, %v1408
    %1410 = vmatmul.bf16.gmra.mxu0 %v1346
    %v1411 = vpop.f32.mrf.mxu0
    %v1412 = vadd.f32 0.0, %v1411
    %v1413 = vpop.f32.mrf.mxu0
    %v1414 = vadd.f32 0.0, %v1413
    %1415 = vmatmul.bf16.gmra.mxu0 %v1347
    %v1416 = vpop.f32.mrf.mxu0
    %v1417 = vadd.f32 0.0, %v1416
    %v1418 = vpop.f32.mrf.mxu0
    %v1419 = vadd.f32 0.0, %v1418
    %1420 = vmatmul.bf16.gmra.mxu0 %v1348
    %v1421 = vpop.f32.mrf.mxu0
    %v1422 = vadd.f32 0.0, %v1421
    %v1423 = vpop.f32.mrf.mxu0
    %v1424 = vadd.f32 0.0, %v1423
    %1425 = vmatmul.bf16.gmra.mxu0 %v1349
    %v1426 = vpop.f32.mrf.mxu0
    %v1427 = vadd.f32 0.0, %v1426
    %v1428 = vpop.f32.mrf.mxu0
    %v1429 = vadd.f32 0.0, %v1428
    %1430 = vmatmul.bf16.gmra.mxu0 %v1350
    %v1431 = vpop.f32.mrf.mxu0
    %v1432 = vadd.f32 0.0, %v1431
    %v1433 = vpop.f32.mrf.mxu0
    %v1434 = vadd.f32 0.0, %v1433
    %1435 = vmatmul.bf16.gmra.mxu0 %v1351
    %v1436 = vpop.f32.mrf.mxu0
    %v1437 = vadd.f32 0.0, %v1436
    %v1438 = vpop.f32.mrf.mxu0
    %v1439 = vadd.f32 0.0, %v1438
    %1440 = vmatmul.bf16.gmra.mxu0 %v1352
    %v1441 = vpop.f32.mrf.mxu0
    %v1442 = vadd.f32 0.0, %v1441
    %v1443 = vpop.f32.mrf.mxu0
    %v1444 = vadd.f32 0.0, %v1443
    %1445 = vmatmul.bf16.gmra.mxu0 %v1353
    %v1446 = vpop.f32.mrf.mxu0
    %v1447 = vadd.f32 0.0, %v1446
    %v1448 = vpop.f32.mrf.mxu0
    %v1449 = vadd.f32 0.0, %v1448
    %1450 = vmatmul.bf16.gmra.mxu0 %v1354
    %v1451 = vpop.f32.mrf.mxu0
    %v1452 = vadd.f32 0.0, %v1451
    %v1453 = vpop.f32.mrf.mxu0
    %v1454 = vadd.f32 0.0, %v1453
    %1455 = vmatmul.bf16.gmra.mxu0 %v1355
    %v1456 = vpop.f32.mrf.mxu0
    %v1457 = vadd.f32 0.0, %v1456
    %v1458 = vpop.f32.mrf.mxu0
    %v1459 = vadd.f32 0.0, %v1458
    %1460 = vmatmul.bf16.gmra.mxu0 %v1356
    %v1461 = vpop.f32.mrf.mxu0
    %v1462 = vadd.f32 0.0, %v1461
    %v1463 = vpop.f32.mrf.mxu0
    %v1464 = vadd.f32 0.0, %v1463
    %1465 = vmatmul.bf16.gmra.mxu0 %v1357
    %v1466 = vpop.f32.mrf.mxu0
    %v1467 = vadd.f32 0.0, %v1466
    %v1468 = vpop.f32.mrf.mxu0
    %v1469 = vadd.f32 0.0, %v1468
    %1470 = vmatmul.bf16.gmra.mxu0 %v1358
    %v1471 = vpop.f32.mrf.mxu0
    %v1472 = vadd.f32 0.0, %v1471
    %v1473 = vpop.f32.mrf.mxu0
    %v1474 = vadd.f32 0.0, %v1473
    %1475 = vmatmul.bf16.gmra.mxu0 %v1359
    %v1476 = vpop.f32.mrf.mxu0
    %v1477 = vadd.f32 0.0, %v1476
    %v1478 = vpop.f32.mrf.mxu0
    %v1479 = vadd.f32 0.0, %v1478
    %1480 = vmatmul.bf16.gmra.mxu0 %v1360
    %v1481 = vpop.f32.mrf.mxu0
    %v1482 = vadd.f32 0.0, %v1481
    %v1483 = vpop.f32.mrf.mxu0
    %v1484 = vadd.f32 0.0, %v1483
    %1485 = vmatmul.bf16.gmra.mxu0 %v1361
    %v1486 = vpop.f32.mrf.mxu0
    %v1487 = vadd.f32 0.0, %v1486
    %v1488 = vpop.f32.mrf.mxu0
    %v1489 = vadd.f32 0.0, %v1488
    %1490 = vmatmul.bf16.gmra.mxu0 %v1362
    %v1491 = vpop.f32.mrf.mxu0
    %v1492 = vadd.f32 0.0, %v1491
    %v1493 = vpop.f32.mrf.mxu0
    %v1494 = vadd.f32 0.0, %v1493
    %1495 = vmatmul.bf16.gmra.mxu0 %v1363
    %v1496 = vpop.f32.mrf.mxu0
    %v1497 = vadd.f32 0.0, %v1496
    %v1498 = vpop.f32.mrf.mxu0
    %v1499 = vadd.f32 0.0, %v1498
    %1500 = vmatmul.bf16.gmra.mxu0 %v1364
    %v1501 = vpop.f32.mrf.mxu0
    %v1502 = vadd.f32 0.0, %v1501
    %v1503 = vpop.f32.mrf.mxu0
    %v1504 = vadd.f32 0.0, %v1503
    %1505 = vmatmul.bf16.gmra.mxu0 %v1365
    %v1506 = vpop.f32.mrf.mxu0
    %v1507 = vadd.f32 0.0, %v1506
    %v1508 = vpop.f32.mrf.mxu0
    %v1509 = vadd.f32 0.0, %v1508
    %1510 = vmatmul.bf16.gmra.mxu0 %v1366
    %v1511 = vpop.f32.mrf.mxu0
    %v1512 = vadd.f32 0.0, %v1511
    %v1513 = vpop.f32.mrf.mxu0
    %v1514 = vadd.f32 0.0, %v1513
    %1515 = vmatmul.bf16.gmra.mxu0 %v1367
    %v1516 = vpop.f32.mrf.mxu0
    %v1517 = vadd.f32 0.0, %v1516
    %v1518 = vpop.f32.mrf.mxu0
    %v1519 = vadd.f32 0.0, %v1518
    %1520 = vdwg.mxu0
    %v1521 = vmax.f32 %v1080, %v1402
    %v1522 = vmax.f32 %v1082, %v1404
    %v1523 = vmax.f32 %v1085, %v1407
    %v1524 = vmax.f32 %v1087, %v1409
    %v1525 = vmax.f32 %v1090, %v1412
    %v1526 = vmax.f32 %v1092, %v1414
    %v1527 = vmax.f32 %v1095, %v1417
    %v1528 = vmax.f32 %v1097, %v1419
    %v1529 = vmax.f32 %v1100, %v1422
    %v1530 = vmax.f32 %v1102, %v1424
    %v1531 = vmax.f32 %v1105, %v1427
    %v1532 = vmax.f32 %v1107, %v1429
    %v1533 = vmax.f32 %v1110, %v1432
    %v1534 = vmax.f32 %v1112, %v1434
    %v1535 = vmax.f32 %v1115, %v1437
    %v1536 = vmax.f32 %v1117, %v1439
    %v1537 = vmax.f32 %v1120, %v1442
    %v1538 = vmax.f32 %v1122, %v1444
    %v1539 = vmax.f32 %v1125, %v1447
    %v1540 = vmax.f32 %v1127, %v1449
    %v1541 = vmax.f32 %v1130, %v1452
    %v1542 = vmax.f32 %v1132, %v1454
    %v1543 = vmax.f32 %v1135, %v1457
    %v1544 = vmax.f32 %v1137, %v1459
    %v1545 = vmax.f32 %v1140, %v1462
    %v1546 = vmax.f32 %v1142, %v1464
    %v1547 = vmax.f32 %v1145, %v1467
    %v1548 = vmax.f32 %v1147, %v1469
    %v1549 = vmax.f32 %v1150, %v1472
    %v1550 = vmax.f32 %v1152, %v1474
    %v1551 = vmax.f32 %v1155, %v1477
    %v1552 = vmax.f32 %v1157, %v1479
    %v1553 = vmax.f32 %v1160, %v1482
    %v1554 = vmax.f32 %v1162, %v1484
    %v1555 = vmax.f32 %v1165, %v1487
    %v1556 = vmax.f32 %v1167, %v1489
    %v1557 = vmax.f32 %v1170, %v1492
    %v1558 = vmax.f32 %v1172, %v1494
    %v1559 = vmax.f32 %v1175, %v1497
    %v1560 = vmax.f32 %v1177, %v1499
    %v1561 = vmax.f32 %v1180, %v1502
    %v1562 = vmax.f32 %v1182, %v1504
    %v1563 = vmax.f32 %v1185, %v1507
    %v1564 = vmax.f32 %v1187, %v1509
    %v1565 = vmax.f32 %v1190, %v1512
    %v1566 = vmax.f32 %v1192, %v1514
    %v1567 = vmax.f32 %v1195, %v1517
    %v1568 = vmax.f32 %v1197, %v1519
    %s1569 = scalar_lea.vmem %s0, 384
    %v1570 = vld [vmem:[%s1569] sm:$0xf]
    %v1571 = vld [vmem:[%s1569 + $0x4] sm:$0xf]
    %v1572 = vld [vmem:[%s1569 + $0x8] sm:$0xf]
    %v1573 = vld [vmem:[%s1569 + $0xc] sm:$0xf]
    %v1574 = vld [vmem:[%s1569 + $0x10] sm:$0xf]
    %v1575 = vld [vmem:[%s1569 + $0x14] sm:$0xf]
    %v1576 = vld [vmem:[%s1569 + $0x18] sm:$0xf]
    %v1577 = vld [vmem:[%s1569 + $0x1c] sm:$0xf]
    %v1578 = vld [vmem:[%s1569 + $0x20] sm:$0xf]
    %v1579 = vld [vmem:[%s1569 + $0x24] sm:$0xf]
    %v1580 = vld [vmem:[%s1569 + $0x28] sm:$0xf]
    %v1581 = vld [vmem:[%s1569 + $0x2c] sm:$0xf]
    %v1582 = vld [vmem:[%s1569 + $0x30] sm:$0xf]
    %v1583 = vld [vmem:[%s1569 + $0x34] sm:$0xf]
    %v1584 = vld [vmem:[%s1569 + $0x38] sm:$0xf]
    %v1585 = vld [vmem:[%s1569 + $0x3c] sm:$0xf]
    %v1586 = vld [vmem:[%s1569 + $0x40] sm:$0xf]
    %v1587 = vld [vmem:[%s1569 + $0x44] sm:$0xf]
    %v1588 = vld [vmem:[%s1569 + $0x48] sm:$0xf]
    %v1589 = vld [vmem:[%s1569 + $0x4c] sm:$0xf]
    %v1590 = vld [vmem:[%s1569 + $0x50] sm:$0xf]
    %v1591 = vld [vmem:[%s1569 + $0x54] sm:$0xf]
    %v1592 = vld [vmem:[%s1569 + $0x58] sm:$0xf]
    %v1593 = vld [vmem:[%s1569 + $0x5c] sm:$0xf]
    %v1594 = vld [vmem:[%s1569 + $0x60] sm:$0xf]
    %v1595 = vld [vmem:[%s1569 + $0x64] sm:$0xf]
    %v1596 = vld [vmem:[%s1569 + $0x68] sm:$0xf]
    %v1597 = vld [vmem:[%s1569 + $0x6c] sm:$0xf]
    %v1598 = vld [vmem:[%s1569 + $0x70] sm:$0xf]
    %v1599 = vld [vmem:[%s1569 + $0x74] sm:$0xf]
    %v1600 = vld [vmem:[%s1569 + $0x78] sm:$0xf]
    %v1601 = vld [vmem:[%s1569 + $0x7c] sm:$0xf]
    %v1602 = vld [vmem:[%s1569 + $0x80] sm:$0xf]
    %v1603 = vld [vmem:[%s1569 + $0x84] sm:$0xf]
    %v1604 = vld [vmem:[%s1569 + $0x88] sm:$0xf]
    %v1605 = vld [vmem:[%s1569 + $0x8c] sm:$0xf]
    %v1606 = vld [vmem:[%s1569 + $0x90] sm:$0xf]
    %v1607 = vld [vmem:[%s1569 + $0x94] sm:$0xf]
    %v1608 = vld [vmem:[%s1569 + $0x98] sm:$0xf]
    %v1609 = vld [vmem:[%s1569 + $0x9c] sm:$0xf]
    %v1610 = vld [vmem:[%s1569 + $0xa0] sm:$0xf]
    %v1611 = vld [vmem:[%s1569 + $0xa4] sm:$0xf]
    %v1612 = vld [vmem:[%s1569 + $0xa8] sm:$0xf]
    %v1613 = vld [vmem:[%s1569 + $0xac] sm:$0xf]
    %v1614 = vld [vmem:[%s1569 + $0xb0] sm:$0xf]
    %v1615 = vld [vmem:[%s1569 + $0xb4] sm:$0xf]
    %v1616 = vld [vmem:[%s1569 + $0xb8] sm:$0xf]
    %v1617 = vld [vmem:[%s1569 + $0xbc] sm:$0xf]
    %v1666 = vunpack.c.l.b16 %v1570
    %v1667 = vunpack.c.l.b16 %v1571
    %v1668 = vunpack.c.l.b16 %v1572
    %v1669 = vunpack.c.l.b16 %v1573
    %v1670 = vunpack.c.l.b16 %v1574
    %v1671 = vunpack.c.l.b16 %v1575
    %v1672 = vunpack.c.l.b16 %v1576
    %v1673 = vunpack.c.l.b16 %v1577
    %v1674 = vunpack.c.l.b16 %v1578
    %v1675 = vunpack.c.l.b16 %v1579
    %v1676 = vunpack.c.l.b16 %v1580
    %v1677 = vunpack.c.l.b16 %v1581
    %v1678 = vunpack.c.l.b16 %v1582
    %v1679 = vunpack.c.l.b16 %v1583
    %v1680 = vunpack.c.l.b16 %v1584
    %v1681 = vunpack.c.l.b16 %v1585
    %v1682 = vunpack.c.l.b16 %v1586
    %v1683 = vunpack.c.l.b16 %v1587
    %v1684 = vunpack.c.l.b16 %v1588
    %v1685 = vunpack.c.l.b16 %v1589
    %v1686 = vunpack.c.l.b16 %v1590
    %v1687 = vunpack.c.l.b16 %v1591
    %v1688 = vunpack.c.l.b16 %v1592
    %v1689 = vunpack.c.l.b16 %v1593
    %v1690 = vunpack.c.l.b16 %v1594
    %v1691 = vunpack.c.l.b16 %v1595
    %v1692 = vunpack.c.l.b16 %v1596
    %v1693 = vunpack.c.l.b16 %v1597
    %v1694 = vunpack.c.l.b16 %v1598
    %v1695 = vunpack.c.l.b16 %v1599
    %v1696 = vunpack.c.l.b16 %v1600
    %v1697 = vunpack.c.l.b16 %v1601
    %v1698 = vunpack.c.l.b16 %v1602
    %v1699 = vunpack.c.l.b16 %v1603
    %v1700 = vunpack.c.l.b16 %v1604
    %v1701 = vunpack.c.l.b16 %v1605
    %v1702 = vunpack.c.l.b16 %v1606
    %v1703 = vunpack.c.l.b16 %v1607
    %v1704 = vunpack.c.l.b16 %v1608
    %v1705 = vunpack.c.l.b16 %v1609
    %v1706 = vunpack.c.l.b16 %v1610
    %v1707 = vunpack.c.l.b16 %v1611
    %v1708 = vunpack.c.l.b16 %v1612
    %v1709 = vunpack.c.l.b16 %v1613
    %v1710 = vunpack.c.l.b16 %v1614
    %v1711 = vunpack.c.l.b16 %v1615
    %v1712 = vunpack.c.l.b16 %v1616
    %v1713 = vunpack.c.l.b16 %v1617
    %v1714 = vpack.c.b16 %v1667, %v1666
    %v1715 = vpack.c.b16 %v1669, %v1668
    %v1716 = vpack.c.b16 %v1671, %v1670
    %v1717 = vpack.c.b16 %v1673, %v1672
    %v1718 = vpack.c.b16 %v1675, %v1674
    %v1719 = vpack.c.b16 %v1677, %v1676
    %v1720 = vpack.c.b16 %v1679, %v1678
    %v1721 = vpack.c.b16 %v1681, %v1680
    %v1722 = vpack.c.b16 %v1683, %v1682
    %v1723 = vpack.c.b16 %v1685, %v1684
    %v1724 = vpack.c.b16 %v1687, %v1686
    %v1725 = vpack.c.b16 %v1689, %v1688
    %v1726 = vpack.c.b16 %v1691, %v1690
    %v1727 = vpack.c.b16 %v1693, %v1692
    %v1728 = vpack.c.b16 %v1695, %v1694
    %v1729 = vpack.c.b16 %v1697, %v1696
    %v1730 = vpack.c.b16 %v1699, %v1698
    %v1731 = vpack.c.b16 %v1701, %v1700
    %v1732 = vpack.c.b16 %v1703, %v1702
    %v1733 = vpack.c.b16 %v1705, %v1704
    %v1734 = vpack.c.b16 %v1707, %v1706
    %v1735 = vpack.c.b16 %v1709, %v1708
    %v1736 = vpack.c.b16 %v1711, %v1710
    %v1737 = vpack.c.b16 %v1713, %v1712
    %1762 = vmatpush.bf16.msra.mxu0 %v1061
    %1763 = vmatpush.bf16.msra.mxu0 %v1060
    %1764 = vmatpush.bf16.msra.mxu0 %v1059
    %1765 = vmatpush.bf16.msra.mxu0 %v1058
    %1766 = vmatpush.bf16.msra.mxu0 %v1057
    %1767 = vmatpush.bf16.msra.mxu0 %v1056
    %1768 = vmatpush.bf16.msra.mxu0 %v1055
    %1769 = vmatpush.bf16.msra.mxu0 %v1054
    %1770 = vmatmul.bf16.gmra.mxu0 %v1714
    %v1771 = vpop.f32.mrf.mxu0
    %v1772 = vadd.f32 0.0, %v1771
    %v1773 = vpop.f32.mrf.mxu0
    %v1774 = vadd.f32 0.0, %v1773
    %1775 = vmatmul.bf16.gmra.mxu0 %v1715
    %v1776 = vpop.f32.mrf.mxu0
    %v1777 = vadd.f32 0.0, %v1776
    %v1778 = vpop.f32.mrf.mxu0
    %v1779 = vadd.f32 0.0, %v1778
    %1780 = vmatmul.bf16.gmra.mxu0 %v1716
    %v1781 = vpop.f32.mrf.mxu0
    %v1782 = vadd.f32 0.0, %v1781
    %v1783 = vpop.f32.mrf.mxu0
    %v1784 = vadd.f32 0.0, %v1783
    %1785 = vmatmul.bf16.gmra.mxu0 %v1717
    %v1786 = vpop.f32.mrf.mxu0
    %v1787 = vadd.f32 0.0, %v1786
    %v1788 = vpop.f32.mrf.mxu0
    %v1789 = vadd.f32 0.0, %v1788
    %1790 = vmatmul.bf16.gmra.mxu0 %v1718
    %v1791 = vpop.f32.mrf.mxu0
    %v1792 = vadd.f32 0.0, %v1791
    %v1793 = vpop.f32.mrf.mxu0
    %v1794 = vadd.f32 0.0, %v1793
    %1795 = vmatmul.bf16.gmra.mxu0 %v1719
    %v1796 = vpop.f32.mrf.mxu0
    %v1797 = vadd.f32 0.0, %v1796
    %v1798 = vpop.f32.mrf.mxu0
    %v1799 = vadd.f32 0.0, %v1798
    %1800 = vmatmul.bf16.gmra.mxu0 %v1720
    %v1801 = vpop.f32.mrf.mxu0
    %v1802 = vadd.f32 0.0, %v1801
    %v1803 = vpop.f32.mrf.mxu0
    %v1804 = vadd.f32 0.0, %v1803
    %1805 = vmatmul.bf16.gmra.mxu0 %v1721
    %v1806 = vpop.f32.mrf.mxu0
    %v1807 = vadd.f32 0.0, %v1806
    %v1808 = vpop.f32.mrf.mxu0
    %v1809 = vadd.f32 0.0, %v1808
    %1810 = vmatmul.bf16.gmra.mxu0 %v1722
    %v1811 = vpop.f32.mrf.mxu0
    %v1812 = vadd.f32 0.0, %v1811
    %v1813 = vpop.f32.mrf.mxu0
    %v1814 = vadd.f32 0.0, %v1813
    %1815 = vmatmul.bf16.gmra.mxu0 %v1723
    %v1816 = vpop.f32.mrf.mxu0
    %v1817 = vadd.f32 0.0, %v1816
    %v1818 = vpop.f32.mrf.mxu0
    %v1819 = vadd.f32 0.0, %v1818
    %1820 = vmatmul.bf16.gmra.mxu0 %v1724
    %v1821 = vpop.f32.mrf.mxu0
    %v1822 = vadd.f32 0.0, %v1821
    %v1823 = vpop.f32.mrf.mxu0
    %v1824 = vadd.f32 0.0, %v1823
    %1825 = vmatmul.bf16.gmra.mxu0 %v1725
    %v1826 = vpop.f32.mrf.mxu0
    %v1827 = vadd.f32 0.0, %v1826
    %v1828 = vpop.f32.mrf.mxu0
    %v1829 = vadd.f32 0.0, %v1828
    %1830 = vmatmul.bf16.gmra.mxu0 %v1726
    %v1831 = vpop.f32.mrf.mxu0
    %v1832 = vadd.f32 0.0, %v1831
    %v1833 = vpop.f32.mrf.mxu0
    %v1834 = vadd.f32 0.0, %v1833
    %1835 = vmatmul.bf16.gmra.mxu0 %v1727
    %v1836 = vpop.f32.mrf.mxu0
    %v1837 = vadd.f32 0.0, %v1836
    %v1838 = vpop.f32.mrf.mxu0
    %v1839 = vadd.f32 0.0, %v1838
    %1840 = vmatmul.bf16.gmra.mxu0 %v1728
    %v1841 = vpop.f32.mrf.mxu0
    %v1842 = vadd.f32 0.0, %v1841
    %v1843 = vpop.f32.mrf.mxu0
    %v1844 = vadd.f32 0.0, %v1843
    %1845 = vmatmul.bf16.gmra.mxu0 %v1729
    %v1846 = vpop.f32.mrf.mxu0
    %v1847 = vadd.f32 0.0, %v1846
    %v1848 = vpop.f32.mrf.mxu0
    %v1849 = vadd.f32 0.0, %v1848
    %1850 = vmatmul.bf16.gmra.mxu0 %v1730
    %v1851 = vpop.f32.mrf.mxu0
    %v1852 = vadd.f32 0.0, %v1851
    %v1853 = vpop.f32.mrf.mxu0
    %v1854 = vadd.f32 0.0, %v1853
    %1855 = vmatmul.bf16.gmra.mxu0 %v1731
    %v1856 = vpop.f32.mrf.mxu0
    %v1857 = vadd.f32 0.0, %v1856
    %v1858 = vpop.f32.mrf.mxu0
    %v1859 = vadd.f32 0.0, %v1858
    %1860 = vmatmul.bf16.gmra.mxu0 %v1732
    %v1861 = vpop.f32.mrf.mxu0
    %v1862 = vadd.f32 0.0, %v1861
    %v1863 = vpop.f32.mrf.mxu0
    %v1864 = vadd.f32 0.0, %v1863
    %1865 = vmatmul.bf16.gmra.mxu0 %v1733
    %v1866 = vpop.f32.mrf.mxu0
    %v1867 = vadd.f32 0.0, %v1866
    %v1868 = vpop.f32.mrf.mxu0
    %v1869 = vadd.f32 0.0, %v1868
    %1870 = vmatmul.bf16.gmra.mxu0 %v1734
    %v1871 = vpop.f32.mrf.mxu0
    %v1872 = vadd.f32 0.0, %v1871
    %v1873 = vpop.f32.mrf.mxu0
    %v1874 = vadd.f32 0.0, %v1873
    %1875 = vmatmul.bf16.gmra.mxu0 %v1735
    %v1876 = vpop.f32.mrf.mxu0
    %v1877 = vadd.f32 0.0, %v1876
    %v1878 = vpop.f32.mrf.mxu0
    %v1879 = vadd.f32 0.0, %v1878
    %1880 = vmatmul.bf16.gmra.mxu0 %v1736
    %v1881 = vpop.f32.mrf.mxu0
    %v1882 = vadd.f32 0.0, %v1881
    %v1883 = vpop.f32.mrf.mxu0
    %v1884 = vadd.f32 0.0, %v1883
    %1885 = vmatmul.bf16.gmra.mxu0 %v1737
    %v1886 = vpop.f32.mrf.mxu0
    %v1887 = vadd.f32 0.0, %v1886
    %v1888 = vpop.f32.mrf.mxu0
    %v1889 = vadd.f32 0.0, %v1888
    %1890 = vdwg.mxu0
    %v1891 = vmax.f32 %v1521, %v1772
    %v1892 = vmax.f32 %v1522, %v1774
    %v1893 = vmax.f32 %v1523, %v1777
    %v1894 = vmax.f32 %v1524, %v1779
    %v1895 = vmax.f32 %v1525, %v1782
    %v1896 = vmax.f32 %v1526, %v1784
    %v1897 = vmax.f32 %v1527, %v1787
    %v1898 = vmax.f32 %v1528, %v1789
    %v1899 = vmax.f32 %v1529, %v1792
    %v1900 = vmax.f32 %v1530, %v1794
    %v1901 = vmax.f32 %v1531, %v1797
    %v1902 = vmax.f32 %v1532, %v1799
    %v1903 = vmax.f32 %v1533, %v1802
    %v1904 = vmax.f32 %v1534, %v1804
    %v1905 = vmax.f32 %v1535, %v1807
    %v1906 = vmax.f32 %v1536, %v1809
    %v1907 = vmax.f32 %v1537, %v1812
    %v1908 = vmax.f32 %v1538, %v1814
    %v1909 = vmax.f32 %v1539, %v1817
    %v1910 = vmax.f32 %v1540, %v1819
    %v1911 = vmax.f32 %v1541, %v1822
    %v1912 = vmax.f32 %v1542, %v1824
    %v1913 = vmax.f32 %v1543, %v1827
    %v1914 = vmax.f32 %v1544, %v1829
    %v1915 = vmax.f32 %v1545, %v1832
    %v1916 = vmax.f32 %v1546, %v1834
    %v1917 = vmax.f32 %v1547, %v1837
    %v1918 = vmax.f32 %v1548, %v1839
    %v1919 = vmax.f32 %v1549, %v1842
    %v1920 = vmax.f32 %v1550, %v1844
    %v1921 = vmax.f32 %v1551, %v1847
    %v1922 = vmax.f32 %v1552, %v1849
    %v1923 = vmax.f32 %v1553, %v1852
    %v1924 = vmax.f32 %v1554, %v1854
    %v1925 = vmax.f32 %v1555, %v1857
    %v1926 = vmax.f32 %v1556, %v1859
    %v1927 = vmax.f32 %v1557, %v1862
    %v1928 = vmax.f32 %v1558, %v1864
    %v1929 = vmax.f32 %v1559, %v1867
    %v1930 = vmax.f32 %v1560, %v1869
    %v1931 = vmax.f32 %v1561, %v1872
    %v1932 = vmax.f32 %v1562, %v1874
    %v1933 = vmax.f32 %v1563, %v1877
    %v1934 = vmax.f32 %v1564, %v1879
    %v1935 = vmax.f32 %v1565, %v1882
    %v1936 = vmax.f32 %v1566, %v1884
    %v1937 = vmax.f32 %v1567, %v1887
    %v1938 = vmax.f32 %v1568, %v1889
    %s1939 = scalar_lea.vmem %s0, 576
    %v1940 = vld [vmem:[%s1939] sm:$0xf]
    %v1941 = vld [vmem:[%s1939 + $0x4] sm:$0xf]
    %v1942 = vld [vmem:[%s1939 + $0x8] sm:$0xf]
    %v1943 = vld [vmem:[%s1939 + $0xc] sm:$0xf]
    %v1944 = vld [vmem:[%s1939 + $0x10] sm:$0xf]
    %v1945 = vld [vmem:[%s1939 + $0x14] sm:$0xf]
    %v1946 = vld [vmem:[%s1939 + $0x18] sm:$0xf]
    %v1947 = vld [vmem:[%s1939 + $0x1c] sm:$0xf]
    %v1948 = vld [vmem:[%s1939 + $0x20] sm:$0xf]
    %v1949 = vld [vmem:[%s1939 + $0x24] sm:$0xf]
    %v1950 = vld [vmem:[%s1939 + $0x28] sm:$0xf]
    %v1951 = vld [vmem:[%s1939 + $0x2c] sm:$0xf]
    %v1952 = vld [vmem:[%s1939 + $0x30] sm:$0xf]
    %v1953 = vld [vmem:[%s1939 + $0x34] sm:$0xf]
    %v1954 = vld [vmem:[%s1939 + $0x38] sm:$0xf]
    %v1955 = vld [vmem:[%s1939 + $0x3c] sm:$0xf]
    %v1956 = vld [vmem:[%s1939 + $0x40] sm:$0xf]
    %v1957 = vld [vmem:[%s1939 + $0x44] sm:$0xf]
    %v1958 = vld [vmem:[%s1939 + $0x48] sm:$0xf]
    %v1959 = vld [vmem:[%s1939 + $0x4c] sm:$0xf]
    %v1960 = vld [vmem:[%s1939 + $0x50] sm:$0xf]
    %v1961 = vld [vmem:[%s1939 + $0x54] sm:$0xf]
    %v1962 = vld [vmem:[%s1939 + $0x58] sm:$0xf]
    %v1963 = vld [vmem:[%s1939 + $0x5c] sm:$0xf]
    %v1964 = vld [vmem:[%s1939 + $0x60] sm:$0xf]
    %v1965 = vld [vmem:[%s1939 + $0x64] sm:$0xf]
    %v1966 = vld [vmem:[%s1939 + $0x68] sm:$0xf]
    %v1967 = vld [vmem:[%s1939 + $0x6c] sm:$0xf]
    %v1968 = vld [vmem:[%s1939 + $0x70] sm:$0xf]
    %v1969 = vld [vmem:[%s1939 + $0x74] sm:$0xf]
    %v1970 = vld [vmem:[%s1939 + $0x78] sm:$0xf]
    %v1971 = vld [vmem:[%s1939 + $0x7c] sm:$0xf]
    %v1972 = vld [vmem:[%s1939 + $0x80] sm:$0xf]
    %v1973 = vld [vmem:[%s1939 + $0x84] sm:$0xf]
    %v1974 = vld [vmem:[%s1939 + $0x88] sm:$0xf]
    %v1975 = vld [vmem:[%s1939 + $0x8c] sm:$0xf]
    %v1976 = vld [vmem:[%s1939 + $0x90] sm:$0xf]
    %v1977 = vld [vmem:[%s1939 + $0x94] sm:$0xf]
    %v1978 = vld [vmem:[%s1939 + $0x98] sm:$0xf]
    %v1979 = vld [vmem:[%s1939 + $0x9c] sm:$0xf]
    %v1980 = vld [vmem:[%s1939 + $0xa0] sm:$0xf]
    %v1981 = vld [vmem:[%s1939 + $0xa4] sm:$0xf]
    %v1982 = vld [vmem:[%s1939 + $0xa8] sm:$0xf]
    %v1983 = vld [vmem:[%s1939 + $0xac] sm:$0xf]
    %v1984 = vld [vmem:[%s1939 + $0xb0] sm:$0xf]
    %v1985 = vld [vmem:[%s1939 + $0xb4] sm:$0xf]
    %v1986 = vld [vmem:[%s1939 + $0xb8] sm:$0xf]
    %v1987 = vld [vmem:[%s1939 + $0xbc] sm:$0xf]
    %v2036 = vunpack.c.l.b16 %v1940
    %v2037 = vunpack.c.l.b16 %v1941
    %v2038 = vunpack.c.l.b16 %v1942
    %v2039 = vunpack.c.l.b16 %v1943
    %v2040 = vunpack.c.l.b16 %v1944
    %v2041 = vunpack.c.l.b16 %v1945
    %v2042 = vunpack.c.l.b16 %v1946
    %v2043 = vunpack.c.l.b16 %v1947
    %v2044 = vunpack.c.l.b16 %v1948
    %v2045 = vunpack.c.l.b16 %v1949
    %v2046 = vunpack.c.l.b16 %v1950
    %v2047 = vunpack.c.l.b16 %v1951
    %v2048 = vunpack.c.l.b16 %v1952
    %v2049 = vunpack.c.l.b16 %v1953
    %v2050 = vunpack.c.l.b16 %v1954
    %v2051 = vunpack.c.l.b16 %v1955
    %v2052 = vunpack.c.l.b16 %v1956
    %v2053 = vunpack.c.l.b16 %v1957
    %v2054 = vunpack.c.l.b16 %v1958
    %v2055 = vunpack.c.l.b16 %v1959
    %v2056 = vunpack.c.l.b16 %v1960
    %v2057 = vunpack.c.l.b16 %v1961
    %v2058 = vunpack.c.l.b16 %v1962
    %v2059 = vunpack.c.l.b16 %v1963
    %v2060 = vunpack.c.l.b16 %v1964
    %v2061 = vunpack.c.l.b16 %v1965
    %v2062 = vunpack.c.l.b16 %v1966
    %v2063 = vunpack.c.l.b16 %v1967
    %v2064 = vunpack.c.l.b16 %v1968
    %v2065 = vunpack.c.l.b16 %v1969
    %v2066 = vunpack.c.l.b16 %v1970
    %v2067 = vunpack.c.l.b16 %v1971
    %v2068 = vunpack.c.l.b16 %v1972
    %v2069 = vunpack.c.l.b16 %v1973
    %v2070 = vunpack.c.l.b16 %v1974
    %v2071 = vunpack.c.l.b16 %v1975
    %v2072 = vunpack.c.l.b16 %v1976
    %v2073 = vunpack.c.l.b16 %v1977
    %v2074 = vunpack.c.l.b16 %v1978
    %v2075 = vunpack.c.l.b16 %v1979
    %v2076 = vunpack.c.l.b16 %v1980
    %v2077 = vunpack.c.l.b16 %v1981
    %v2078 = vunpack.c.l.b16 %v1982
    %v2079 = vunpack.c.l.b16 %v1983
    %v2080 = vunpack.c.l.b16 %v1984
    %v2081 = vunpack.c.l.b16 %v1985
    %v2082 = vunpack.c.l.b16 %v1986
    %v2083 = vunpack.c.l.b16 %v1987
    %v2084 = vpack.c.b16 %v2037, %v2036
    %v2085 = vpack.c.b16 %v2039, %v2038
    %v2086 = vpack.c.b16 %v2041, %v2040
    %v2087 = vpack.c.b16 %v2043, %v2042
    %v2088 = vpack.c.b16 %v2045, %v2044
    %v2089 = vpack.c.b16 %v2047, %v2046
    %v2090 = vpack.c.b16 %v2049, %v2048
    %v2091 = vpack.c.b16 %v2051, %v2050
    %v2092 = vpack.c.b16 %v2053, %v2052
    %v2093 = vpack.c.b16 %v2055, %v2054
    %v2094 = vpack.c.b16 %v2057, %v2056
    %v2095 = vpack.c.b16 %v2059, %v2058
    %v2096 = vpack.c.b16 %v2061, %v2060
    %v2097 = vpack.c.b16 %v2063, %v2062
    %v2098 = vpack.c.b16 %v2065, %v2064
    %v2099 = vpack.c.b16 %v2067, %v2066
    %v2100 = vpack.c.b16 %v2069, %v2068
    %v2101 = vpack.c.b16 %v2071, %v2070
    %v2102 = vpack.c.b16 %v2073, %v2072
    %v2103 = vpack.c.b16 %v2075, %v2074
    %v2104 = vpack.c.b16 %v2077, %v2076
    %v2105 = vpack.c.b16 %v2079, %v2078
    %v2106 = vpack.c.b16 %v2081, %v2080
    %v2107 = vpack.c.b16 %v2083, %v2082
    %2132 = vmatpush.bf16.msra.mxu0 %v1061
    %2133 = vmatpush.bf16.msra.mxu0 %v1060
    %2134 = vmatpush.bf16.msra.mxu0 %v1059
    %2135 = vmatpush.bf16.msra.mxu0 %v1058
    %2136 = vmatpush.bf16.msra.mxu0 %v1057
    %2137 = vmatpush.bf16.msra.mxu0 %v1056
    %2138 = vmatpush.bf16.msra.mxu0 %v1055
    %2139 = vmatpush.bf16.msra.mxu0 %v1054
    %2140 = vmatmul.bf16.gmra.mxu0 %v2084
    %v2141 = vpop.f32.mrf.mxu0
    %v2142 = vadd.f32 0.0, %v2141
    %v2143 = vpop.f32.mrf.mxu0
    %v2144 = vadd.f32 0.0, %v2143
    %2145 = vmatmul.bf16.gmra.mxu0 %v2085
    %v2146 = vpop.f32.mrf.mxu0
    %v2147 = vadd.f32 0.0, %v2146
    %v2148 = vpop.f32.mrf.mxu0
    %v2149 = vadd.f32 0.0, %v2148
    %2150 = vmatmul.bf16.gmra.mxu0 %v2086
    %v2151 = vpop.f32.mrf.mxu0
    %v2152 = vadd.f32 0.0, %v2151
    %v2153 = vpop.f32.mrf.mxu0
    %v2154 = vadd.f32 0.0, %v2153
    %2155 = vmatmul.bf16.gmra.mxu0 %v2087
    %v2156 = vpop.f32.mrf.mxu0
    %v2157 = vadd.f32 0.0, %v2156
    %v2158 = vpop.f32.mrf.mxu0
    %v2159 = vadd.f32 0.0, %v2158
    %2160 = vmatmul.bf16.gmra.mxu0 %v2088
    %v2161 = vpop.f32.mrf.mxu0
    %v2162 = vadd.f32 0.0, %v2161
    %v2163 = vpop.f32.mrf.mxu0
    %v2164 = vadd.f32 0.0, %v2163
    %2165 = vmatmul.bf16.gmra.mxu0 %v2089
    %v2166 = vpop.f32.mrf.mxu0
    %v2167 = vadd.f32 0.0, %v2166
    %v2168 = vpop.f32.mrf.mxu0
    %v2169 = vadd.f32 0.0, %v2168
    %2170 = vmatmul.bf16.gmra.mxu0 %v2090
    %v2171 = vpop.f32.mrf.mxu0
    %v2172 = vadd.f32 0.0, %v2171
    %v2173 = vpop.f32.mrf.mxu0
    %v2174 = vadd.f32 0.0, %v2173
    %2175 = vmatmul.bf16.gmra.mxu0 %v2091
    %v2176 = vpop.f32.mrf.mxu0
    %v2177 = vadd.f32 0.0, %v2176
    %v2178 = vpop.f32.mrf.mxu0
    %v2179 = vadd.f32 0.0, %v2178
    %2180 = vmatmul.bf16.gmra.mxu0 %v2092
    %v2181 = vpop.f32.mrf.mxu0
    %v2182 = vadd.f32 0.0, %v2181
    %v2183 = vpop.f32.mrf.mxu0
    %v2184 = vadd.f32 0.0, %v2183
    %2185 = vmatmul.bf16.gmra.mxu0 %v2093
    %v2186 = vpop.f32.mrf.mxu0
    %v2187 = vadd.f32 0.0, %v2186
    %v2188 = vpop.f32.mrf.mxu0
    %v2189 = vadd.f32 0.0, %v2188
    %2190 = vmatmul.bf16.gmra.mxu0 %v2094
    %v2191 = vpop.f32.mrf.mxu0
    %v2192 = vadd.f32 0.0, %v2191
    %v2193 = vpop.f32.mrf.mxu0
    %v2194 = vadd.f32 0.0, %v2193
    %2195 = vmatmul.bf16.gmra.mxu0 %v2095
    %v2196 = vpop.f32.mrf.mxu0
    %v2197 = vadd.f32 0.0, %v2196
    %v2198 = vpop.f32.mrf.mxu0
    %v2199 = vadd.f32 0.0, %v2198
    %2200 = vmatmul.bf16.gmra.mxu0 %v2096
    %v2201 = vpop.f32.mrf.mxu0
    %v2202 = vadd.f32 0.0, %v2201
    %v2203 = vpop.f32.mrf.mxu0
    %v2204 = vadd.f32 0.0, %v2203
    %2205 = vmatmul.bf16.gmra.mxu0 %v2097
    %v2206 = vpop.f32.mrf.mxu0
    %v2207 = vadd.f32 0.0, %v2206
    %v2208 = vpop.f32.mrf.mxu0
    %v2209 = vadd.f32 0.0, %v2208
    %2210 = vmatmul.bf16.gmra.mxu0 %v2098
    %v2211 = vpop.f32.mrf.mxu0
    %v2212 = vadd.f32 0.0, %v2211
    %v2213 = vpop.f32.mrf.mxu0
    %v2214 = vadd.f32 0.0, %v2213
    %2215 = vmatmul.bf16.gmra.mxu0 %v2099
    %v2216 = vpop.f32.mrf.mxu0
    %v2217 = vadd.f32 0.0, %v2216
    %v2218 = vpop.f32.mrf.mxu0
    %v2219 = vadd.f32 0.0, %v2218
    %2220 = vmatmul.bf16.gmra.mxu0 %v2100
    %v2221 = vpop.f32.mrf.mxu0
    %v2222 = vadd.f32 0.0, %v2221
    %v2223 = vpop.f32.mrf.mxu0
    %v2224 = vadd.f32 0.0, %v2223
    %2225 = vmatmul.bf16.gmra.mxu0 %v2101
    %v2226 = vpop.f32.mrf.mxu0
    %v2227 = vadd.f32 0.0, %v2226
    %v2228 = vpop.f32.mrf.mxu0
    %v2229 = vadd.f32 0.0, %v2228
    %2230 = vmatmul.bf16.gmra.mxu0 %v2102
    %v2231 = vpop.f32.mrf.mxu0
    %v2232 = vadd.f32 0.0, %v2231
    %v2233 = vpop.f32.mrf.mxu0
    %v2234 = vadd.f32 0.0, %v2233
    %2235 = vmatmul.bf16.gmra.mxu0 %v2103
    %v2236 = vpop.f32.mrf.mxu0
    %v2237 = vadd.f32 0.0, %v2236
    %v2238 = vpop.f32.mrf.mxu0
    %v2239 = vadd.f32 0.0, %v2238
    %2240 = vmatmul.bf16.gmra.mxu0 %v2104
    %v2241 = vpop.f32.mrf.mxu0
    %v2242 = vadd.f32 0.0, %v2241
    %v2243 = vpop.f32.mrf.mxu0
    %v2244 = vadd.f32 0.0, %v2243
    %2245 = vmatmul.bf16.gmra.mxu0 %v2105
    %v2246 = vpop.f32.mrf.mxu0
    %v2247 = vadd.f32 0.0, %v2246
    %v2248 = vpop.f32.mrf.mxu0
    %v2249 = vadd.f32 0.0, %v2248
    %2250 = vmatmul.bf16.gmra.mxu0 %v2106
    %v2251 = vpop.f32.mrf.mxu0
    %v2252 = vadd.f32 0.0, %v2251
    %v2253 = vpop.f32.mrf.mxu0
    %v2254 = vadd.f32 0.0, %v2253
    %2255 = vmatmul.bf16.gmra.mxu0 %v2107
    %v2256 = vpop.f32.mrf.mxu0
    %v2257 = vadd.f32 0.0, %v2256
    %v2258 = vpop.f32.mrf.mxu0
    %v2259 = vadd.f32 0.0, %v2258
    %2260 = vdwg.mxu0
    %v2261 = vmax.f32 %v1891, %v2142
    %v2262 = vmax.f32 %v1892, %v2144
    %v2263 = vmax.f32 %v1893, %v2147
    %v2264 = vmax.f32 %v1894, %v2149
    %v2265 = vmax.f32 %v1895, %v2152
    %v2266 = vmax.f32 %v1896, %v2154
    %v2267 = vmax.f32 %v1897, %v2157
    %v2268 = vmax.f32 %v1898, %v2159
    %v2269 = vmax.f32 %v1899, %v2162
    %v2270 = vmax.f32 %v1900, %v2164
    %v2271 = vmax.f32 %v1901, %v2167
    %v2272 = vmax.f32 %v1902, %v2169
    %v2273 = vmax.f32 %v1903, %v2172
    %v2274 = vmax.f32 %v1904, %v2174
    %v2275 = vmax.f32 %v1905, %v2177
    %v2276 = vmax.f32 %v1906, %v2179
    %v2277 = vmax.f32 %v1907, %v2182
    %v2278 = vmax.f32 %v1908, %v2184
    %v2279 = vmax.f32 %v1909, %v2187
    %v2280 = vmax.f32 %v1910, %v2189
    %v2281 = vmax.f32 %v1911, %v2192
    %v2282 = vmax.f32 %v1912, %v2194
    %v2283 = vmax.f32 %v1913, %v2197
    %v2284 = vmax.f32 %v1914, %v2199
    %v2285 = vmax.f32 %v1915, %v2202
    %v2286 = vmax.f32 %v1916, %v2204
    %v2287 = vmax.f32 %v1917, %v2207
    %v2288 = vmax.f32 %v1918, %v2209
    %v2289 = vmax.f32 %v1919, %v2212
    %v2290 = vmax.f32 %v1920, %v2214
    %v2291 = vmax.f32 %v1921, %v2217
    %v2292 = vmax.f32 %v1922, %v2219
    %v2293 = vmax.f32 %v1923, %v2222
    %v2294 = vmax.f32 %v1924, %v2224
    %v2295 = vmax.f32 %v1925, %v2227
    %v2296 = vmax.f32 %v1926, %v2229
    %v2297 = vmax.f32 %v1927, %v2232
    %v2298 = vmax.f32 %v1928, %v2234
    %v2299 = vmax.f32 %v1929, %v2237
    %v2300 = vmax.f32 %v1930, %v2239
    %v2301 = vmax.f32 %v1931, %v2242
    %v2302 = vmax.f32 %v1932, %v2244
    %v2303 = vmax.f32 %v1933, %v2247
    %v2304 = vmax.f32 %v1934, %v2249
    %v2305 = vmax.f32 %v1935, %v2252
    %v2306 = vmax.f32 %v1936, %v2254
    %v2307 = vmax.f32 %v1937, %v2257
    %v2308 = vmax.f32 %v1938, %v2259
    %v2309 = vld [vmem:[%s2] sm:$0x1]
    %v2311 = vperm.slane %v2309, 0
    %v2313 = vadd.f32 %v2261, %v2311
    %v2314 = vadd.f32 %v2262, %v2311
    %v2315 = vadd.f32 %v2263, %v2311
    %v2316 = vadd.f32 %v2264, %v2311
    %v2317 = vadd.f32 %v2265, %v2311
    %v2318 = vadd.f32 %v2266, %v2311
    %v2319 = vadd.f32 %v2267, %v2311
    %v2320 = vadd.f32 %v2268, %v2311
    %v2321 = vadd.f32 %v2269, %v2311
    %v2322 = vadd.f32 %v2270, %v2311
    %v2323 = vadd.f32 %v2271, %v2311
    %v2324 = vadd.f32 %v2272, %v2311
    %v2325 = vadd.f32 %v2273, %v2311
    %v2326 = vadd.f32 %v2274, %v2311
    %v2327 = vadd.f32 %v2275, %v2311
    %v2328 = vadd.f32 %v2276, %v2311
    %v2329 = vadd.f32 %v2277, %v2311
    %v2330 = vadd.f32 %v2278, %v2311
    %v2331 = vadd.f32 %v2279, %v2311
    %v2332 = vadd.f32 %v2280, %v2311
    %v2333 = vadd.f32 %v2281, %v2311
    %v2334 = vadd.f32 %v2282, %v2311
    %v2335 = vadd.f32 %v2283, %v2311
    %v2336 = vadd.f32 %v2284, %v2311
    %v2337 = vadd.f32 %v2285, %v2311
    %v2338 = vadd.f32 %v2286, %v2311
    %v2339 = vadd.f32 %v2287, %v2311
    %v2340 = vadd.f32 %v2288, %v2311
    %v2341 = vadd.f32 %v2289, %v2311
    %v2342 = vadd.f32 %v2290, %v2311
    %v2343 = vadd.f32 %v2291, %v2311
    %v2344 = vadd.f32 %v2292, %v2311
    %v2345 = vadd.f32 %v2293, %v2311
    %v2346 = vadd.f32 %v2294, %v2311
    %v2347 = vadd.f32 %v2295, %v2311
    %v2348 = vadd.f32 %v2296, %v2311
    %v2349 = vadd.f32 %v2297, %v2311
    %v2350 = vadd.f32 %v2298, %v2311
    %v2351 = vadd.f32 %v2299, %v2311
    %v2352 = vadd.f32 %v2300, %v2311
    %v2353 = vadd.f32 %v2301, %v2311
    %v2354 = vadd.f32 %v2302, %v2311
    %v2355 = vadd.f32 %v2303, %v2311
    %v2356 = vadd.f32 %v2304, %v2311
    %v2357 = vadd.f32 %v2305, %v2311
    %v2358 = vadd.f32 %v2306, %v2311
    %v2359 = vadd.f32 %v2307, %v2311
    %v2360 = vadd.f32 %v2308, %v2311
    %v2361 = vsub.f32 0.0, %v2313
    %v2362 = vsub.f32 0.0, %v2314
    %v2363 = vsub.f32 0.0, %v2315
    %v2364 = vsub.f32 0.0, %v2316
    %v2365 = vsub.f32 0.0, %v2317
    %v2366 = vsub.f32 0.0, %v2318
    %v2367 = vsub.f32 0.0, %v2319
    %v2368 = vsub.f32 0.0, %v2320
    %v2369 = vsub.f32 0.0, %v2321
    %v2370 = vsub.f32 0.0, %v2322
    %v2371 = vsub.f32 0.0, %v2323
    %v2372 = vsub.f32 0.0, %v2324
    %v2373 = vsub.f32 0.0, %v2325
    %v2374 = vsub.f32 0.0, %v2326
    %v2375 = vsub.f32 0.0, %v2327
    %v2376 = vsub.f32 0.0, %v2328
    %v2377 = vsub.f32 0.0, %v2329
    %v2378 = vsub.f32 0.0, %v2330
    %v2379 = vsub.f32 0.0, %v2331
    %v2380 = vsub.f32 0.0, %v2332
    %v2381 = vsub.f32 0.0, %v2333
    %v2382 = vsub.f32 0.0, %v2334
    %v2383 = vsub.f32 0.0, %v2335
    %v2384 = vsub.f32 0.0, %v2336
    %v2385 = vsub.f32 0.0, %v2337
    %v2386 = vsub.f32 0.0, %v2338
    %v2387 = vsub.f32 0.0, %v2339
    %v2388 = vsub.f32 0.0, %v2340
    %v2389 = vsub.f32 0.0, %v2341
    %v2390 = vsub.f32 0.0, %v2342
    %v2391 = vsub.f32 0.0, %v2343
    %v2392 = vsub.f32 0.0, %v2344
    %v2393 = vsub.f32 0.0, %v2345
    %v2394 = vsub.f32 0.0, %v2346
    %v2395 = vsub.f32 0.0, %v2347
    %v2396 = vsub.f32 0.0, %v2348
    %v2397 = vsub.f32 0.0, %v2349
    %v2398 = vsub.f32 0.0, %v2350
    %v2399 = vsub.f32 0.0, %v2351
    %v2400 = vsub.f32 0.0, %v2352
    %v2401 = vsub.f32 0.0, %v2353
    %v2402 = vsub.f32 0.0, %v2354
    %v2403 = vsub.f32 0.0, %v2355
    %v2404 = vsub.f32 0.0, %v2356
    %v2405 = vsub.f32 0.0, %v2357
    %v2406 = vsub.f32 0.0, %v2358
    %v2407 = vsub.f32 0.0, %v2359
    %v2408 = vsub.f32 0.0, %v2360
    %v2409 = vmul.f32 %v2361, 1.442695
    %v2410 = vpow.pop %v2409
    %v2411 = vmul.f32 %v2362, 1.442695
    %v2412 = vpow.pop %v2411
    %v2413 = vmul.f32 %v2363, 1.442695
    %v2414 = vpow.pop %v2413
    %v2415 = vmul.f32 %v2364, 1.442695
    %v2416 = vpow.pop %v2415
    %v2417 = vmul.f32 %v2365, 1.442695
    %v2418 = vpow.pop %v2417
    %v2419 = vmul.f32 %v2366, 1.442695
    %v2420 = vpow.pop %v2419
    %v2421 = vmul.f32 %v2367, 1.442695
    %v2422 = vpow.pop %v2421
    %v2423 = vmul.f32 %v2368, 1.442695
    %v2424 = vpow.pop %v2423
    %v2425 = vmul.f32 %v2369, 1.442695
    %v2426 = vpow.pop %v2425
    %v2427 = vmul.f32 %v2370, 1.442695
    %v2428 = vpow.pop %v2427
    %v2429 = vmul.f32 %v2371, 1.442695
    %v2430 = vpow.pop %v2429
    %v2431 = vmul.f32 %v2372, 1.442695
    %v2432 = vpow.pop %v2431
    %v2433 = vmul.f32 %v2373, 1.442695
    %v2434 = vpow.pop %v2433
    %v2435 = vmul.f32 %v2374, 1.442695
    %v2436 = vpow.pop %v2435
    %v2437 = vmul.f32 %v2375, 1.442695
    %v2438 = vpow.pop %v2437
    %v2439 = vmul.f32 %v2376, 1.442695
    %v2440 = vpow.pop %v2439
    %v2441 = vmul.f32 %v2377, 1.442695
    %v2442 = vpow.pop %v2441
    %v2443 = vmul.f32 %v2378, 1.442695
    %v2444 = vpow.pop %v2443
    %v2445 = vmul.f32 %v2379, 1.442695
    %v2446 = vpow.pop %v2445
    %v2447 = vmul.f32 %v2380, 1.442695
    %v2448 = vpow.pop %v2447
    %v2449 = vmul.f32 %v2381, 1.442695
    %v2450 = vpow.pop %v2449
    %v2451 = vmul.f32 %v2382, 1.442695
    %v2452 = vpow.pop %v2451
    %v2453 = vmul.f32 %v2383, 1.442695
    %v2454 = vpow.pop %v2453
    %v2455 = vmul.f32 %v2384, 1.442695
    %v2456 = vpow.pop %v2455
    %v2457 = vmul.f32 %v2385, 1.442695
    %v2458 = vpow.pop %v2457
    %v2459 = vmul.f32 %v2386, 1.442695
    %v2460 = vpow.pop %v2459
    %v2461 = vmul.f32 %v2387, 1.442695
    %v2462 = vpow.pop %v2461
    %v2463 = vmul.f32 %v2388, 1.442695
    %v2464 = vpow.pop %v2463
    %v2465 = vmul.f32 %v2389, 1.442695
    %v2466 = vpow.pop %v2465
    %v2467 = vmul.f32 %v2390, 1.442695
    %v2468 = vpow.pop %v2467
    %v2469 = vmul.f32 %v2391, 1.442695
    %v2470 = vpow.pop %v2469
    %v2471 = vmul.f32 %v2392, 1.442695
    %v2472 = vpow.pop %v2471
    %v2473 = vmul.f32 %v2393, 1.442695
    %v2474 = vpow.pop %v2473
    %v2475 = vmul.f32 %v2394, 1.442695
    %v2476 = vpow.pop %v2475
    %v2477 = vmul.f32 %v2395, 1.442695
    %v2478 = vpow.pop %v2477
    %v2479 = vmul.f32 %v2396, 1.442695
    %v2480 = vpow.pop %v2479
    %v2481 = vmul.f32 %v2397, 1.442695
    %v2482 = vpow.pop %v2481
    %v2483 = vmul.f32 %v2398, 1.442695
    %v2484 = vpow.pop %v2483
    %v2485 = vmul.f32 %v2399, 1.442695
    %v2486 = vpow.pop %v2485
    %v2487 = vmul.f32 %v2400, 1.442695
    %v2488 = vpow.pop %v2487
    %v2489 = vmul.f32 %v2401, 1.442695
    %v2490 = vpow.pop %v2489
    %v2491 = vmul.f32 %v2402, 1.442695
    %v2492 = vpow.pop %v2491
    %v2493 = vmul.f32 %v2403, 1.442695
    %v2494 = vpow.pop %v2493
    %v2495 = vmul.f32 %v2404, 1.442695
    %v2496 = vpow.pop %v2495
    %v2497 = vmul.f32 %v2405, 1.442695
    %v2498 = vpow.pop %v2497
    %v2499 = vmul.f32 %v2406, 1.442695
    %v2500 = vpow.pop %v2499
    %v2501 = vmul.f32 %v2407, 1.442695
    %v2502 = vpow.pop %v2501
    %v2503 = vmul.f32 %v2408, 1.442695
    %v2504 = vpow.pop %v2503
    %v2505 = vadd.f32 %v2410, 1.0
    %v2506 = vadd.f32 %v2412, 1.0
    %v2507 = vadd.f32 %v2414, 1.0
    %v2508 = vadd.f32 %v2416, 1.0
    %v2509 = vadd.f32 %v2418, 1.0
    %v2510 = vadd.f32 %v2420, 1.0
    %v2511 = vadd.f32 %v2422, 1.0
    %v2512 = vadd.f32 %v2424, 1.0
    %v2513 = vadd.f32 %v2426, 1.0
    %v2514 = vadd.f32 %v2428, 1.0
    %v2515 = vadd.f32 %v2430, 1.0
    %v2516 = vadd.f32 %v2432, 1.0
    %v2517 = vadd.f32 %v2434, 1.0
    %v2518 = vadd.f32 %v2436, 1.0
    %v2519 = vadd.f32 %v2438, 1.0
    %v2520 = vadd.f32 %v2440, 1.0
    %v2521 = vadd.f32 %v2442, 1.0
    %v2522 = vadd.f32 %v2444, 1.0
    %v2523 = vadd.f32 %v2446, 1.0
    %v2524 = vadd.f32 %v2448, 1.0
    %v2525 = vadd.f32 %v2450, 1.0
    %v2526 = vadd.f32 %v2452, 1.0
    %v2527 = vadd.f32 %v2454, 1.0
    %v2528 = vadd.f32 %v2456, 1.0
    %v2529 = vadd.f32 %v2458, 1.0
    %v2530 = vadd.f32 %v2460, 1.0
    %v2531 = vadd.f32 %v2462, 1.0
    %v2532 = vadd.f32 %v2464, 1.0
    %v2533 = vadd.f32 %v2466, 1.0
    %v2534 = vadd.f32 %v2468, 1.0
    %v2535 = vadd.f32 %v2470, 1.0
    %v2536 = vadd.f32 %v2472, 1.0
    %v2537 = vadd.f32 %v2474, 1.0
    %v2538 = vadd.f32 %v2476, 1.0
    %v2539 = vadd.f32 %v2478, 1.0
    %v2540 = vadd.f32 %v2480, 1.0
    %v2541 = vadd.f32 %v2482, 1.0
    %v2542 = vadd.f32 %v2484, 1.0
    %v2543 = vadd.f32 %v2486, 1.0
    %v2544 = vadd.f32 %v2488, 1.0
    %v2545 = vadd.f32 %v2490, 1.0
    %v2546 = vadd.f32 %v2492, 1.0
    %v2547 = vadd.f32 %v2494, 1.0
    %v2548 = vadd.f32 %v2496, 1.0
    %v2549 = vadd.f32 %v2498, 1.0
    %v2550 = vadd.f32 %v2500, 1.0
    %v2551 = vadd.f32 %v2502, 1.0
    %v2552 = vadd.f32 %v2504, 1.0
    %v2553 = vrcp.pop %v2505
    %v2554 = vrcp.pop %v2506
    %v2555 = vrcp.pop %v2507
    %v2556 = vrcp.pop %v2508
    %v2557 = vrcp.pop %v2509
    %v2558 = vrcp.pop %v2510
    %v2559 = vrcp.pop %v2511
    %v2560 = vrcp.pop %v2512
    %v2561 = vrcp.pop %v2513
    %v2562 = vrcp.pop %v2514
    %v2563 = vrcp.pop %v2515
    %v2564 = vrcp.pop %v2516
    %v2565 = vrcp.pop %v2517
    %v2566 = vrcp.pop %v2518
    %v2567 = vrcp.pop %v2519
    %v2568 = vrcp.pop %v2520
    %v2569 = vrcp.pop %v2521
    %v2570 = vrcp.pop %v2522
    %v2571 = vrcp.pop %v2523
    %v2572 = vrcp.pop %v2524
    %v2573 = vrcp.pop %v2525
    %v2574 = vrcp.pop %v2526
    %v2575 = vrcp.pop %v2527
    %v2576 = vrcp.pop %v2528
    %v2577 = vrcp.pop %v2529
    %v2578 = vrcp.pop %v2530
    %v2579 = vrcp.pop %v2531
    %v2580 = vrcp.pop %v2532
    %v2581 = vrcp.pop %v2533
    %v2582 = vrcp.pop %v2534
    %v2583 = vrcp.pop %v2535
    %v2584 = vrcp.pop %v2536
    %v2585 = vrcp.pop %v2537
    %v2586 = vrcp.pop %v2538
    %v2587 = vrcp.pop %v2539
    %v2588 = vrcp.pop %v2540
    %v2589 = vrcp.pop %v2541
    %v2590 = vrcp.pop %v2542
    %v2591 = vrcp.pop %v2543
    %v2592 = vrcp.pop %v2544
    %v2593 = vrcp.pop %v2545
    %v2594 = vrcp.pop %v2546
    %v2595 = vrcp.pop %v2547
    %v2596 = vrcp.pop %v2548
    %v2597 = vrcp.pop %v2549
    %v2598 = vrcp.pop %v2550
    %v2599 = vrcp.pop %v2551
    %v2600 = vrcp.pop %v2552
    %2601 = vst [vmem:[#allocation2] sm:$0xff] %v2553
    %2602 = vst [vmem:[#allocation2 + $0x8] sm:$0xff] %v2554
    %2603 = vst [vmem:[#allocation2 + $0x10] sm:$0xff] %v2555
    %2604 = vst [vmem:[#allocation2 + $0x18] sm:$0xff] %v2556
    %2605 = vst [vmem:[#allocation2 + $0x20] sm:$0xff] %v2557
    %2606 = vst [vmem:[#allocation2 + $0x28] sm:$0xff] %v2558
    %2607 = vst [vmem:[#allocation2 + $0x30] sm:$0xff] %v2559
    %2608 = vst [vmem:[#allocation2 + $0x38] sm:$0xff] %v2560
    %2609 = vst [vmem:[#allocation2 + $0x40] sm:$0xff] %v2561
    %2610 = vst [vmem:[#allocation2 + $0x48] sm:$0xff] %v2562
    %2611 = vst [vmem:[#allocation2 + $0x50] sm:$0xff] %v2563
    %2612 = vst [vmem:[#allocation2 + $0x58] sm:$0xff] %v2564
    %2613 = vst [vmem:[#allocation2 + $0x60] sm:$0xff] %v2565
    %2614 = vst [vmem:[#allocation2 + $0x68] sm:$0xff] %v2566
    %2615 = vst [vmem:[#allocation2 + $0x70] sm:$0xff] %v2567
    %2616 = vst [vmem:[#allocation2 + $0x78] sm:$0xff] %v2568
    %2617 = vst [vmem:[#allocation2 + $0x80] sm:$0xff] %v2569
    %2618 = vst [vmem:[#allocation2 + $0x88] sm:$0xff] %v2570
    %2619 = vst [vmem:[#allocation2 + $0x90] sm:$0xff] %v2571
    %2620 = vst [vmem:[#allocation2 + $0x98] sm:$0xff] %v2572
    %2621 = vst [vmem:[#allocation2 + $0xa0] sm:$0xff] %v2573
    %2622 = vst [vmem:[#allocation2 + $0xa8] sm:$0xff] %v2574
    %2623 = vst [vmem:[#allocation2 + $0xb0] sm:$0xff] %v2575
    %2624 = vst [vmem:[#allocation2 + $0xb8] sm:$0xff] %v2576
    %2625 = vst [vmem:[#allocation2 + $0xc0] sm:$0xff] %v2577
    %2626 = vst [vmem:[#allocation2 + $0xc8] sm:$0xff] %v2578
    %2627 = vst [vmem:[#allocation2 + $0xd0] sm:$0xff] %v2579
    %2628 = vst [vmem:[#allocation2 + $0xd8] sm:$0xff] %v2580
    %2629 = vst [vmem:[#allocation2 + $0xe0] sm:$0xff] %v2581
    %2630 = vst [vmem:[#allocation2 + $0xe8] sm:$0xff] %v2582
    %2631 = vst [vmem:[#allocation2 + $0xf0] sm:$0xff] %v2583
    %2632 = vst [vmem:[#allocation2 + $0xf8] sm:$0xff] %v2584
    %2633 = vst [vmem:[#allocation2 + $0x100] sm:$0xff] %v2585
    %2634 = vst [vmem:[#allocation2 + $0x108] sm:$0xff] %v2586
    %2635 = vst [vmem:[#allocation2 + $0x110] sm:$0xff] %v2587
    %2636 = vst [vmem:[#allocation2 + $0x118] sm:$0xff] %v2588
    %2637 = vst [vmem:[#allocation2 + $0x120] sm:$0xff] %v2589
    %2638 = vst [vmem:[#allocation2 + $0x128] sm:$0xff] %v2590
    %2639 = vst [vmem:[#allocation2 + $0x130] sm:$0xff] %v2591
    %2640 = vst [vmem:[#allocation2 + $0x138] sm:$0xff] %v2592
    %2641 = vst [vmem:[#allocation2 + $0x140] sm:$0xff] %v2593
    %2642 = vst [vmem:[#allocation2 + $0x148] sm:$0xff] %v2594
    %2643 = vst [vmem:[#allocation2 + $0x150] sm:$0xff] %v2595
    %2644 = vst [vmem:[#allocation2 + $0x158] sm:$0xff] %v2596
    %2645 = vst [vmem:[#allocation2 + $0x160] sm:$0xff] %v2597
    %2646 = vst [vmem:[#allocation2 + $0x168] sm:$0xff] %v2598
    %2647 = vst [vmem:[#allocation2 + $0x170] sm:$0xff] %v2599
    %2648 = vst [vmem:[#allocation2 + $0x178] sm:$0xff] %v2600
    %v2649 = vld [vmem:[#allocation2] sm:$0xff]
    %v2650 = vld [vmem:[#allocation2 + $0x10] sm:$0xff]
    %v2651 = vld [vmem:[#allocation2 + $0x20] sm:$0xff]
    %v2652 = vld [vmem:[#allocation2 + $0x30] sm:$0xff]
    %v2653 = vld [vmem:[#allocation2 + $0x40] sm:$0xff]
    %v2654 = vld [vmem:[#allocation2 + $0x50] sm:$0xff]
    %v2655 = vld [vmem:[#allocation2 + $0x60] sm:$0xff]
    %v2656 = vld [vmem:[#allocation2 + $0x70] sm:$0xff]
    %v2657 = vld [vmem:[#allocation2 + $0x80] sm:$0xff]
    %v2658 = vld [vmem:[#allocation2 + $0x90] sm:$0xff]
    %v2659 = vld [vmem:[#allocation2 + $0xa0] sm:$0xff]
    %v2660 = vld [vmem:[#allocation2 + $0xb0] sm:$0xff]
    %v2661 = vld [vmem:[#allocation2 + $0xc0] sm:$0xff]
    %v2662 = vld [vmem:[#allocation2 + $0xd0] sm:$0xff]
    %v2663 = vld [vmem:[#allocation2 + $0xe0] sm:$0xff]
    %v2664 = vld [vmem:[#allocation2 + $0xf0] sm:$0xff]
    %v2665 = vld [vmem:[#allocation2 + $0x100] sm:$0xff]
    %v2666 = vld [vmem:[#allocation2 + $0x110] sm:$0xff]
    %v2667 = vld [vmem:[#allocation2 + $0x120] sm:$0xff]
    %v2668 = vld [vmem:[#allocation2 + $0x130] sm:$0xff]
    %v2669 = vld [vmem:[#allocation2 + $0x140] sm:$0xff]
    %v2670 = vld [vmem:[#allocation2 + $0x150] sm:$0xff]
    %v2671 = vld [vmem:[#allocation2 + $0x160] sm:$0xff]
    %v2672 = vld [vmem:[#allocation2 + $0x170] sm:$0xff]
    %v2673 = vpack.c.bf16 %v2649, %v2649
    %v2674 = vpack.c.bf16 %v2650, %v2650
    %v2675 = vpack.c.bf16 %v2651, %v2651
    %v2676 = vpack.c.bf16 %v2652, %v2652
    %v2677 = vpack.c.bf16 %v2653, %v2653
    %v2678 = vpack.c.bf16 %v2654, %v2654
    %v2679 = vpack.c.bf16 %v2655, %v2655
    %v2680 = vpack.c.bf16 %v2656, %v2656
    %v2681 = vpack.c.bf16 %v2657, %v2657
    %v2682 = vpack.c.bf16 %v2658, %v2658
    %v2683 = vpack.c.bf16 %v2659, %v2659
    %v2684 = vpack.c.bf16 %v2660, %v2660
    %v2685 = vpack.c.bf16 %v2661, %v2661
    %v2686 = vpack.c.bf16 %v2662, %v2662
    %v2687 = vpack.c.bf16 %v2663, %v2663
    %v2688 = vpack.c.bf16 %v2664, %v2664
    %v2689 = vpack.c.bf16 %v2665, %v2665
    %v2690 = vpack.c.bf16 %v2666, %v2666
    %v2691 = vpack.c.bf16 %v2667, %v2667
    %v2692 = vpack.c.bf16 %v2668, %v2668
    %v2693 = vpack.c.bf16 %v2669, %v2669
    %v2694 = vpack.c.bf16 %v2670, %v2670
    %v2695 = vpack.c.bf16 %v2671, %v2671
    %v2696 = vpack.c.bf16 %v2672, %v2672
    %v2721 = vunpack.c.l.b16 %v2673
    %v2722 = vunpack.c.l.b16 %v2674
    %v2723 = vunpack.c.l.b16 %v2675
    %v2724 = vunpack.c.l.b16 %v2676
    %v2725 = vunpack.c.l.b16 %v2677
    %v2726 = vunpack.c.l.b16 %v2678
    %v2727 = vunpack.c.l.b16 %v2679
    %v2728 = vunpack.c.l.b16 %v2680
    %v2729 = vunpack.c.l.b16 %v2681
    %v2730 = vunpack.c.l.b16 %v2682
    %v2731 = vunpack.c.l.b16 %v2683
    %v2732 = vunpack.c.l.b16 %v2684
    %v2733 = vunpack.c.l.b16 %v2685
    %v2734 = vunpack.c.l.b16 %v2686
    %v2735 = vunpack.c.l.b16 %v2687
    %v2736 = vunpack.c.l.b16 %v2688
    %v2737 = vunpack.c.l.b16 %v2689
    %v2738 = vunpack.c.l.b16 %v2690
    %v2739 = vunpack.c.l.b16 %v2691
    %v2740 = vunpack.c.l.b16 %v2692
    %v2741 = vunpack.c.l.b16 %v2693
    %v2742 = vunpack.c.l.b16 %v2694
    %v2743 = vunpack.c.l.b16 %v2695
    %v2744 = vunpack.c.l.b16 %v2696
    %v2745 = vld [vmem:[#allocation3] sm:$0xf]
    %v2746 = vld [vmem:[#allocation3 + $0x4] sm:$0xf]
    %v2747 = vld [vmem:[#allocation3 + $0x8] sm:$0xf]
    %v2748 = vld [vmem:[#allocation3 + $0xc] sm:$0xf]
    %v2749 = vld [vmem:[#allocation3 + $0x10] sm:$0xf]
    %v2750 = vld [vmem:[#allocation3 + $0x14] sm:$0xf]
    %v2751 = vld [vmem:[#allocation3 + $0x18] sm:$0xf]
    %v2752 = vld [vmem:[#allocation3 + $0x1c] sm:$0xf]
    %v2753 = vld [vmem:[#allocation3 + $0x20] sm:$0xf]
    %v2754 = vld [vmem:[#allocation3 + $0x24] sm:$0xf]
    %v2755 = vld [vmem:[#allocation3 + $0x28] sm:$0xf]
    %v2756 = vld [vmem:[#allocation3 + $0x2c] sm:$0xf]
    %v2757 = vld [vmem:[#allocation3 + $0x30] sm:$0xf]
    %v2758 = vld [vmem:[#allocation3 + $0x34] sm:$0xf]
    %v2759 = vld [vmem:[#allocation3 + $0x38] sm:$0xf]
    %v2760 = vld [vmem:[#allocation3 + $0x3c] sm:$0xf]
    %v2761 = vld [vmem:[#allocation3 + $0x40] sm:$0xf]
    %v2762 = vld [vmem:[#allocation3 + $0x44] sm:$0xf]
    %v2763 = vld [vmem:[#allocation3 + $0x48] sm:$0xf]
    %v2764 = vld [vmem:[#allocation3 + $0x4c] sm:$0xf]
    %v2765 = vld [vmem:[#allocation3 + $0x50] sm:$0xf]
    %v2766 = vld [vmem:[#allocation3 + $0x54] sm:$0xf]
    %v2767 = vld [vmem:[#allocation3 + $0x58] sm:$0xf]
    %v2768 = vld [vmem:[#allocation3 + $0x5c] sm:$0xf]
    %v2769 = vld [vmem:[#allocation3 + $0x60] sm:$0xf]
    %v2770 = vld [vmem:[#allocation3 + $0x64] sm:$0xf]
    %v2771 = vld [vmem:[#allocation3 + $0x68] sm:$0xf]
    %v2772 = vld [vmem:[#allocation3 + $0x6c] sm:$0xf]
    %v2773 = vld [vmem:[#allocation3 + $0x70] sm:$0xf]
    %v2774 = vld [vmem:[#allocation3 + $0x74] sm:$0xf]
    %v2775 = vld [vmem:[#allocation3 + $0x78] sm:$0xf]
    %v2776 = vld [vmem:[#allocation3 + $0x7c] sm:$0xf]
    %v2777 = vld [vmem:[#allocation3 + $0x80] sm:$0xf]
    %v2778 = vld [vmem:[#allocation3 + $0x84] sm:$0xf]
    %v2779 = vld [vmem:[#allocation3 + $0x88] sm:$0xf]
    %v2780 = vld [vmem:[#allocation3 + $0x8c] sm:$0xf]
    %v2781 = vld [vmem:[#allocation3 + $0x90] sm:$0xf]
    %v2782 = vld [vmem:[#allocation3 + $0x94] sm:$0xf]
    %v2783 = vld [vmem:[#allocation3 + $0x98] sm:$0xf]
    %v2784 = vld [vmem:[#allocation3 + $0x9c] sm:$0xf]
    %v2785 = vld [vmem:[#allocation3 + $0xa0] sm:$0xf]
    %v2786 = vld [vmem:[#allocation3 + $0xa4] sm:$0xf]
    %v2787 = vld [vmem:[#allocation3 + $0xa8] sm:$0xf]
    %v2788 = vld [vmem:[#allocation3 + $0xac] sm:$0xf]
    %v2789 = vld [vmem:[#allocation3 + $0xb0] sm:$0xf]
    %v2790 = vld [vmem:[#allocation3 + $0xb4] sm:$0xf]
    %v2791 = vld [vmem:[#allocation3 + $0xb8] sm:$0xf]
    %v2792 = vld [vmem:[#allocation3 + $0xbc] sm:$0xf]
    %v2793 = vld [vmem:[#allocation3 + $0xc0] sm:$0xf]
    %v2794 = vld [vmem:[#allocation3 + $0xc4] sm:$0xf]
    %v2795 = vld [vmem:[#allocation3 + $0xc8] sm:$0xf]
    %v2796 = vld [vmem:[#allocation3 + $0xcc] sm:$0xf]
    %v2797 = vld [vmem:[#allocation3 + $0xd0] sm:$0xf]
    %v2798 = vld [vmem:[#allocation3 + $0xd4] sm:$0xf]
    %v2799 = vld [vmem:[#allocation3 + $0xd8] sm:$0xf]
    %v2800 = vld [vmem:[#allocation3 + $0xdc] sm:$0xf]
    %v2801 = vld [vmem:[#allocation3 + $0xe0] sm:$0xf]
    %v2802 = vld [vmem:[#allocation3 + $0xe4] sm:$0xf]
    %v2803 = vld [vmem:[#allocation3 + $0xe8] sm:$0xf]
    %v2804 = vld [vmem:[#allocation3 + $0xec] sm:$0xf]
    %v2805 = vld [vmem:[#allocation3 + $0xf0] sm:$0xf]
    %v2806 = vld [vmem:[#allocation3 + $0xf4] sm:$0xf]
    %v2807 = vld [vmem:[#allocation3 + $0xf8] sm:$0xf]
    %v2808 = vld [vmem:[#allocation3 + $0xfc] sm:$0xf]
    %v2809 = vld [vmem:[#allocation3 + $0x100] sm:$0xf]
    %v2810 = vld [vmem:[#allocation3 + $0x104] sm:$0xf]
    %v2811 = vld [vmem:[#allocation3 + $0x108] sm:$0xf]
    %v2812 = vld [vmem:[#allocation3 + $0x10c] sm:$0xf]
    %v2813 = vld [vmem:[#allocation3 + $0x110] sm:$0xf]
    %v2814 = vld [vmem:[#allocation3 + $0x114] sm:$0xf]
    %v2815 = vld [vmem:[#allocation3 + $0x118] sm:$0xf]
    %v2816 = vld [vmem:[#allocation3 + $0x11c] sm:$0xf]
    %v2817 = vld [vmem:[#allocation3 + $0x120] sm:$0xf]
    %v2818 = vld [vmem:[#allocation3 + $0x124] sm:$0xf]
    %v2819 = vld [vmem:[#allocation3 + $0x128] sm:$0xf]
    %v2820 = vld [vmem:[#allocation3 + $0x12c] sm:$0xf]
    %v2821 = vld [vmem:[#allocation3 + $0x130] sm:$0xf]
    %v2822 = vld [vmem:[#allocation3 + $0x134] sm:$0xf]
    %v2823 = vld [vmem:[#allocation3 + $0x138] sm:$0xf]
    %v2824 = vld [vmem:[#allocation3 + $0x13c] sm:$0xf]
    %v2825 = vld [vmem:[#allocation2 + $0x1] sm:$0xff]
    %v2826 = vld [vmem:[#allocation2 + $0x11] sm:$0xff]
    %v2827 = vld [vmem:[#allocation2 + $0x21] sm:$0xff]
    %v2828 = vld [vmem:[#allocation2 + $0x31] sm:$0xff]
    %v2829 = vld [vmem:[#allocation2 + $0x41] sm:$0xff]
    %v2830 = vld [vmem:[#allocation2 + $0x51] sm:$0xff]
    %v2831 = vld [vmem:[#allocation2 + $0x61] sm:$0xff]
    %v2832 = vld [vmem:[#allocation2 + $0x71] sm:$0xff]
    %v2833 = vld [vmem:[#allocation2 + $0x81] sm:$0xff]
    %v2834 = vld [vmem:[#allocation2 + $0x91] sm:$0xff]
    %v2835 = vld [vmem:[#allocation2 + $0xa1] sm:$0xff]
    %v2836 = vld [vmem:[#allocation2 + $0xb1] sm:$0xff]
    %v2837 = vld [vmem:[#allocation2 + $0xc1] sm:$0xff]
    %v2838 = vld [vmem:[#allocation2 + $0xd1] sm:$0xff]
    %v2839 = vld [vmem:[#allocation2 + $0xe1] sm:$0xff]
    %v2840 = vld [vmem:[#allocation2 + $0xf1] sm:$0xff]
    %v2841 = vld [vmem:[#allocation2 + $0x101] sm:$0xff]
    %v2842 = vld [vmem:[#allocation2 + $0x111] sm:$0xff]
    %v2843 = vld [vmem:[#allocation2 + $0x121] sm:$0xff]
    %v2844 = vld [vmem:[#allocation2 + $0x131] sm:$0xff]
    %v2845 = vld [vmem:[#allocation2 + $0x141] sm:$0xff]
    %v2846 = vld [vmem:[#allocation2 + $0x151] sm:$0xff]
    %v2847 = vld [vmem:[#allocation2 + $0x161] sm:$0xff]
    %v2848 = vld [vmem:[#allocation2 + $0x171] sm:$0xff]
    %v2849 = vpack.c.bf16 %v2825, %v2825
    %v2850 = vpack.c.bf16 %v2826, %v2826
    %v2851 = vpack.c.bf16 %v2827, %v2827
    %v2852 = vpack.c.bf16 %v2828, %v2828
    %v2853 = vpack.c.bf16 %v2829, %v2829
    %v2854 = vpack.c.bf16 %v2830, %v2830
    %v2855 = vpack.c.bf16 %v2831, %v2831
    %v2856 = vpack.c.bf16 %v2832, %v2832
    %v2857 = vpack.c.bf16 %v2833, %v2833
    %v2858 = vpack.c.bf16 %v2834, %v2834
    %v2859 = vpack.c.bf16 %v2835, %v2835
    %v2860 = vpack.c.bf16 %v2836, %v2836
    %v2861 = vpack.c.bf16 %v2837, %v2837
    %v2862 = vpack.c.bf16 %v2838, %v2838
    %v2863 = vpack.c.bf16 %v2839, %v2839
    %v2864 = vpack.c.bf16 %v2840, %v2840
    %v2865 = vpack.c.bf16 %v2841, %v2841
    %v2866 = vpack.c.bf16 %v2842, %v2842
    %v2867 = vpack.c.bf16 %v2843, %v2843
    %v2868 = vpack.c.bf16 %v2844, %v2844
    %v2869 = vpack.c.bf16 %v2845, %v2845
    %v2870 = vpack.c.bf16 %v2846, %v2846
    %v2871 = vpack.c.bf16 %v2847, %v2847
    %v2872 = vpack.c.bf16 %v2848, %v2848
    %v2897 = vunpack.c.l.b16 %v2849
    %v2898 = vunpack.c.l.b16 %v2850
    %v2899 = vunpack.c.l.b16 %v2851
    %v2900 = vunpack.c.l.b16 %v2852
    %v2901 = vunpack.c.l.b16 %v2853
    %v2902 = vunpack.c.l.b16 %v2854
    %v2903 = vunpack.c.l.b16 %v2855
    %v2904 = vunpack.c.l.b16 %v2856
    %v2905 = vunpack.c.l.b16 %v2857
    %v2906 = vunpack.c.l.b16 %v2858
    %v2907 = vunpack.c.l.b16 %v2859
    %v2908 = vunpack.c.l.b16 %v2860
    %v2909 = vunpack.c.l.b16 %v2861
    %v2910 = vunpack.c.l.b16 %v2862
    %v2911 = vunpack.c.l.b16 %v2863
    %v2912 = vunpack.c.l.b16 %v2864
    %v2913 = vunpack.c.l.b16 %v2865
    %v2914 = vunpack.c.l.b16 %v2866
    %v2915 = vunpack.c.l.b16 %v2867
    %v2916 = vunpack.c.l.b16 %v2868
    %v2917 = vunpack.c.l.b16 %v2869
    %v2918 = vunpack.c.l.b16 %v2870
    %v2919 = vunpack.c.l.b16 %v2871
    %v2920 = vunpack.c.l.b16 %v2872
    %s2921 = scalar_lea.vmem [#allocation3], 320
    %v2922 = vld [vmem:[%s2921] sm:$0xf]
    %v2923 = vld [vmem:[%s2921 + $0x4] sm:$0xf]
    %v2924 = vld [vmem:[%s2921 + $0x8] sm:$0xf]
    %v2925 = vld [vmem:[%s2921 + $0xc] sm:$0xf]
    %v2926 = vld [vmem:[%s2921 + $0x10] sm:$0xf]
    %v2927 = vld [vmem:[%s2921 + $0x14] sm:$0xf]
    %v2928 = vld [vmem:[%s2921 + $0x18] sm:$0xf]
    %v2929 = vld [vmem:[%s2921 + $0x1c] sm:$0xf]
    %v2930 = vld [vmem:[%s2921 + $0x20] sm:$0xf]
    %v2931 = vld [vmem:[%s2921 + $0x24] sm:$0xf]
    %v2932 = vld [vmem:[%s2921 + $0x28] sm:$0xf]
    %v2933 = vld [vmem:[%s2921 + $0x2c] sm:$0xf]
    %v2934 = vld [vmem:[%s2921 + $0x30] sm:$0xf]
    %v2935 = vld [vmem:[%s2921 + $0x34] sm:$0xf]
    %v2936 = vld [vmem:[%s2921 + $0x38] sm:$0xf]
    %v2937 = vld [vmem:[%s2921 + $0x3c] sm:$0xf]
    %v2938 = vld [vmem:[%s2921 + $0x40] sm:$0xf]
    %v2939 = vld [vmem:[%s2921 + $0x44] sm:$0xf]
    %v2940 = vld [vmem:[%s2921 + $0x48] sm:$0xf]
    %v2941 = vld [vmem:[%s2921 + $0x4c] sm:$0xf]
    %v2942 = vld [vmem:[%s2921 + $0x50] sm:$0xf]
    %v2943 = vld [vmem:[%s2921 + $0x54] sm:$0xf]
    %v2944 = vld [vmem:[%s2921 + $0x58] sm:$0xf]
    %v2945 = vld [vmem:[%s2921 + $0x5c] sm:$0xf]
    %v2946 = vld [vmem:[%s2921 + $0x60] sm:$0xf]
    %v2947 = vld [vmem:[%s2921 + $0x64] sm:$0xf]
    %v2948 = vld [vmem:[%s2921 + $0x68] sm:$0xf]
    %v2949 = vld [vmem:[%s2921 + $0x6c] sm:$0xf]
    %v2950 = vld [vmem:[%s2921 + $0x70] sm:$0xf]
    %v2951 = vld [vmem:[%s2921 + $0x74] sm:$0xf]
    %v2952 = vld [vmem:[%s2921 + $0x78] sm:$0xf]
    %v2953 = vld [vmem:[%s2921 + $0x7c] sm:$0xf]
    %v2954 = vld [vmem:[%s2921 + $0x80] sm:$0xf]
    %v2955 = vld [vmem:[%s2921 + $0x84] sm:$0xf]
    %v2956 = vld [vmem:[%s2921 + $0x88] sm:$0xf]
    %v2957 = vld [vmem:[%s2921 + $0x8c] sm:$0xf]
    %v2958 = vld [vmem:[%s2921 + $0x90] sm:$0xf]
    %v2959 = vld [vmem:[%s2921 + $0x94] sm:$0xf]
    %v2960 = vld [vmem:[%s2921 + $0x98] sm:$0xf]
    %v2961 = vld [vmem:[%s2921 + $0x9c] sm:$0xf]
    %v2962 = vld [vmem:[%s2921 + $0xa0] sm:$0xf]
    %v2963 = vld [vmem:[%s2921 + $0xa4] sm:$0xf]
    %v2964 = vld [vmem:[%s2921 + $0xa8] sm:$0xf]
    %v2965 = vld [vmem:[%s2921 + $0xac] sm:$0xf]
    %v2966 = vld [vmem:[%s2921 + $0xb0] sm:$0xf]
    %v2967 = vld [vmem:[%s2921 + $0xb4] sm:$0xf]
    %v2968 = vld [vmem:[%s2921 + $0xb8] sm:$0xf]
    %v2969 = vld [vmem:[%s2921 + $0xbc] sm:$0xf]
    %v2970 = vld [vmem:[%s2921 + $0xc0] sm:$0xf]
    %v2971 = vld [vmem:[%s2921 + $0xc4] sm:$0xf]
    %v2972 = vld [vmem:[%s2921 + $0xc8] sm:$0xf]
    %v2973 = vld [vmem:[%s2921 + $0xcc] sm:$0xf]
    %v2974 = vld [vmem:[%s2921 + $0xd0] sm:$0xf]
    %v2975 = vld [vmem:[%s2921 + $0xd4] sm:$0xf]
    %v2976 = vld [vmem:[%s2921 + $0xd8] sm:$0xf]
    %v2977 = vld [vmem:[%s2921 + $0xdc] sm:$0xf]
    %v2978 = vld [vmem:[%s2921 + $0xe0] sm:$0xf]
    %v2979 = vld [vmem:[%s2921 + $0xe4] sm:$0xf]
    %v2980 = vld [vmem:[%s2921 + $0xe8] sm:$0xf]
    %v2981 = vld [vmem:[%s2921 + $0xec] sm:$0xf]
    %v2982 = vld [vmem:[%s2921 + $0xf0] sm:$0xf]
    %v2983 = vld [vmem:[%s2921 + $0xf4] sm:$0xf]
    %v2984 = vld [vmem:[%s2921 + $0xf8] sm:$0xf]
    %v2985 = vld [vmem:[%s2921 + $0xfc] sm:$0xf]
    %v2986 = vld [vmem:[%s2921 + $0x100] sm:$0xf]
    %v2987 = vld [vmem:[%s2921 + $0x104] sm:$0xf]
    %v2988 = vld [vmem:[%s2921 + $0x108] sm:$0xf]
    %v2989 = vld [vmem:[%s2921 + $0x10c] sm:$0xf]
    %v2990 = vld [vmem:[%s2921 + $0x110] sm:$0xf]
    %v2991 = vld [vmem:[%s2921 + $0x114] sm:$0xf]
    %v2992 = vld [vmem:[%s2921 + $0x118] sm:$0xf]
    %v2993 = vld [vmem:[%s2921 + $0x11c] sm:$0xf]
    %v2994 = vld [vmem:[%s2921 + $0x120] sm:$0xf]
    %v2995 = vld [vmem:[%s2921 + $0x124] sm:$0xf]
    %v2996 = vld [vmem:[%s2921 + $0x128] sm:$0xf]
    %v2997 = vld [vmem:[%s2921 + $0x12c] sm:$0xf]
    %v2998 = vld [vmem:[%s2921 + $0x130] sm:$0xf]
    %v2999 = vld [vmem:[%s2921 + $0x134] sm:$0xf]
    %v3000 = vld [vmem:[%s2921 + $0x138] sm:$0xf]
    %v3001 = vld [vmem:[%s2921 + $0x13c] sm:$0xf]
    %v3002 = vpack.c.b16 %v2898, %v2897
    %v3003 = vpack.c.b16 %v2899, %v2898
    %v3004 = vpack.c.b16 %v2900, %v2899
    %v3005 = vpack.c.b16 %v2901, %v2900
    %v3006 = vpack.c.b16 %v2902, %v2901
    %v3007 = vpack.c.b16 %v2903, %v2902
    %v3008 = vpack.c.b16 %v2904, %v2903
    %v3009 = vpack.c.b16 %v2905, %v2904
    %v3010 = vpack.c.b16 %v2906, %v2905
    %v3011 = vpack.c.b16 %v2907, %v2906
    %v3012 = vpack.c.b16 %v2908, %v2907
    %v3013 = vpack.c.b16 %v2910, %v2909
    %v3014 = vpack.c.b16 %v2911, %v2910
    %v3015 = vpack.c.b16 %v2912, %v2911
    %v3016 = vpack.c.b16 %v2913, %v2912
    %v3017 = vpack.c.b16 %v2914, %v2913
    %v3018 = vpack.c.b16 %v2915, %v2914
    %v3019 = vpack.c.b16 %v2916, %v2915
    %v3020 = vpack.c.b16 %v2917, %v2916
    %v3021 = vpack.c.b16 %v2918, %v2917
    %v3022 = vpack.c.b16 %v2919, %v2918
    %v3023 = vpack.c.b16 %v2920, %v2919
    %v3126 = vunpack.c.l.b16 %v2922
    %v3127 = vunpack.c.l.b16 %v2923
    %v3128 = vunpack.c.l.b16 %v2924
    %v3129 = vunpack.c.l.b16 %v2925
    %v3130 = vunpack.c.l.b16 %v2926
    %v3131 = vunpack.c.l.b16 %v2927
    %v3132 = vunpack.c.l.b16 %v2928
    %v3133 = vunpack.c.l.b16 %v2929
    %v3134 = vunpack.c.l.b16 %v2930
    %v3135 = vunpack.c.l.b16 %v2931
    %v3136 = vunpack.c.l.b16 %v2932
    %v3137 = vunpack.c.l.b16 %v2933
    %v3138 = vunpack.c.l.b16 %v2934
    %v3139 = vunpack.c.l.b16 %v2935
    %v3140 = vunpack.c.l.b16 %v2936
    %v3141 = vunpack.c.l.b16 %v2937
    %v3142 = vunpack.c.l.b16 %v2938
    %v3143 = vunpack.c.l.b16 %v2939
    %v3144 = vunpack.c.l.b16 %v2940
    %v3145 = vunpack.c.l.b16 %v2941
    %v3146 = vunpack.c.l.b16 %v2942
    %v3147 = vunpack.c.l.b16 %v2943
    %v3148 = vunpack.c.l.b16 %v2944
    %v3149 = vunpack.c.l.b16 %v2945
    %v3150 = vunpack.c.l.b16 %v2946
    %v3151 = vunpack.c.l.b16 %v2947
    %v3152 = vunpack.c.l.b16 %v2948
    %v3153 = vunpack.c.l.b16 %v2949
    %v3154 = vunpack.c.l.b16 %v2950
    %v3155 = vunpack.c.l.b16 %v2951
    %v3156 = vunpack.c.l.b16 %v2952
    %v3157 = vunpack.c.l.b16 %v2953
    %v3158 = vunpack.c.l.b16 %v2954
    %v3159 = vunpack.c.l.b16 %v2955
    %v3160 = vunpack.c.l.b16 %v2956
    %v3161 = vunpack.c.l.b16 %v2957
    %v3162 = vunpack.c.l.b16 %v2958
    %v3163 = vunpack.c.l.b16 %v2959
    %v3164 = vunpack.c.l.b16 %v2960
    %v3165 = vunpack.c.l.b16 %v2961
    %v3166 = vunpack.c.l.b16 %v2962
    %v3167 = vunpack.c.l.b16 %v2963
    %v3168 = vunpack.c.l.b16 %v2964
    %v3169 = vunpack.c.l.b16 %v2965
    %v3170 = vunpack.c.l.b16 %v2966
    %v3171 = vunpack.c.l.b16 %v2967
    %v3172 = vunpack.c.l.b16 %v2968
    %v3173 = vunpack.c.l.b16 %v2969
    %v3174 = vunpack.c.l.b16 %v2970
    %v3175 = vunpack.c.l.b16 %v2971
    %v3176 = vunpack.c.l.b16 %v2972
    %v3177 = vunpack.c.l.b16 %v2973
    %v3178 = vunpack.c.l.b16 %v2974
    %v3179 = vunpack.c.l.b16 %v2975
    %v3180 = vunpack.c.l.b16 %v2976
    %v3181 = vunpack.c.l.b16 %v2977
    %v3182 = vunpack.c.l.b16 %v2978
    %v3183 = vunpack.c.l.b16 %v2979
    %v3184 = vunpack.c.l.b16 %v2980
    %v3185 = vunpack.c.l.b16 %v2981
    %v3186 = vunpack.c.l.b16 %v2982
    %v3187 = vunpack.c.l.b16 %v2983
    %v3188 = vunpack.c.l.b16 %v2984
    %v3189 = vunpack.c.l.b16 %v2985
    %v3190 = vunpack.c.l.b16 %v2986
    %v3191 = vunpack.c.l.b16 %v2987
    %v3192 = vunpack.c.l.b16 %v2988
    %v3193 = vunpack.c.l.b16 %v2989
    %v3194 = vunpack.c.l.b16 %v2990
    %v3195 = vunpack.c.l.b16 %v2991
    %v3196 = vunpack.c.l.b16 %v2992
    %v3197 = vunpack.c.l.b16 %v2993
    %v3198 = vunpack.c.l.b16 %v2994
    %v3199 = vunpack.c.l.b16 %v2995
    %v3200 = vunpack.c.l.b16 %v2996
    %v3201 = vunpack.c.l.b16 %v2997
    %v3202 = vunpack.c.l.b16 %v2998
    %v3203 = vunpack.c.l.b16 %v2999
    %v3204 = vunpack.c.l.b16 %v3000
    %v3205 = vunpack.c.l.b16 %v3001
    %v3206 = vpack.c.b16 %v3127, %v3126
    %v3207 = vpack.c.b16 %v3129, %v3128
    %v3208 = vpack.c.b16 %v3131, %v3130
    %v3209 = vpack.c.b16 %v3133, %v3132
    %v3210 = vpack.c.b16 %v3135, %v3134
    %v3211 = vpack.c.b16 %v3137, %v3136
    %v3212 = vpack.c.b16 %v3139, %v3138
    %v3213 = vpack.c.b16 %v3141, %v3140
    %v3214 = vpack.c.b16 %v3143, %v3142
    %v3215 = vpack.c.b16 %v3145, %v3144
    %v3216 = vpack.c.b16 %v3147, %v3146
    %v3217 = vpack.c.b16 %v3149, %v3148
    %v3218 = vpack.c.b16 %v3151, %v3150
    %v3219 = vpack.c.b16 %v3153, %v3152
    %v3220 = vpack.c.b16 %v3155, %v3154
    %v3221 = vpack.c.b16 %v3157, %v3156
    %v3222 = vpack.c.b16 %v3159, %v3158
    %v3223 = vpack.c.b16 %v3161, %v3160
    %v3224 = vpack.c.b16 %v3163, %v3162
    %v3225 = vpack.c.b16 %v3165, %v3164
    %v3226 = vpack.c.b16 %v3167, %v3166
    %v3227 = vpack.c.b16 %v3169, %v3168
    %v3228 = vpack.c.b16 %v3171, %v3170
    %v3229 = vpack.c.b16 %v3173, %v3172
    %v3230 = vpack.c.b16 %v3175, %v3174
    %v3231 = vpack.c.b16 %v3177, %v3176
    %v3232 = vpack.c.b16 %v3179, %v3178
    %v3233 = vpack.c.b16 %v3181, %v3180
    %v3234 = vpack.c.b16 %v3183, %v3182
    %v3235 = vpack.c.b16 %v3185, %v3184
    %v3236 = vpack.c.b16 %v3187, %v3186
    %v3237 = vpack.c.b16 %v3189, %v3188
    %v3238 = vpack.c.b16 %v3191, %v3190
    %v3239 = vpack.c.b16 %v3193, %v3192
    %v3240 = vpack.c.b16 %v3195, %v3194
    %v3241 = vpack.c.b16 %v3197, %v3196
    %v3242 = vpack.c.b16 %v3199, %v3198
    %v3243 = vpack.c.b16 %v3201, %v3200
    %v3244 = vpack.c.b16 %v3203, %v3202
    %v3245 = vpack.c.b16 %v3205, %v3204
    %3286 = vmatpush.bf16.msra.mxu0 %v3213
    %3287 = vmatpush.bf16.msra.mxu0 %v3212
    %3288 = vmatpush.bf16.msra.mxu0 %v3211
    %3289 = vmatpush.bf16.msra.mxu0 %v3210
    %3290 = vmatpush.bf16.msra.mxu0 %v3209
    %3291 = vmatpush.bf16.msra.mxu0 %v3208
    %3292 = vmatpush.bf16.msra.mxu0 %v3207
    %3293 = vmatpush.bf16.msra.mxu0 %v3206
    %3294 = vmatmul.bf16.gmra.mxu0 %v3002
    %v3295 = vpop.f32.mrf.mxu0
    %v3296 = vadd.f32 0.0, %v3295
    %v3297 = vpop.f32.mrf.mxu0
    %v3298 = vadd.f32 0.0, %v3297
    %3299 = vmatmul.bf16.gmra.mxu0 %v3004
    %v3300 = vpop.f32.mrf.mxu0
    %v3301 = vadd.f32 0.0, %v3300
    %v3302 = vpop.f32.mrf.mxu0
    %v3303 = vadd.f32 0.0, %v3302
    %3304 = vmatmul.bf16.gmra.mxu0 %v3006
    %v3305 = vpop.f32.mrf.mxu0
    %v3306 = vadd.f32 0.0, %v3305
    %v3307 = vpop.f32.mrf.mxu0
    %v3308 = vadd.f32 0.0, %v3307
    %3309 = vmatmul.bf16.gmra.mxu0 %v3008
    %v3310 = vpop.f32.mrf.mxu0
    %v3311 = vadd.f32 0.0, %v3310
    %v3312 = vpop.f32.mrf.mxu0
    %v3313 = vadd.f32 0.0, %v3312
    %3314 = vmatmul.bf16.gmra.mxu0 %v3013
    %v3315 = vpop.f32.mrf.mxu0
    %v3316 = vadd.f32 0.0, %v3315
    %v3317 = vpop.f32.mrf.mxu0
    %v3318 = vadd.f32 0.0, %v3317
    %3319 = vmatmul.bf16.gmra.mxu0 %v3015
    %v3320 = vpop.f32.mrf.mxu0
    %v3321 = vadd.f32 0.0, %v3320
    %v3322 = vpop.f32.mrf.mxu0
    %v3323 = vadd.f32 0.0, %v3322
    %3324 = vmatmul.bf16.gmra.mxu0 %v3017
    %v3325 = vpop.f32.mrf.mxu0
    %v3326 = vadd.f32 0.0, %v3325
    %v3327 = vpop.f32.mrf.mxu0
    %v3328 = vadd.f32 0.0, %v3327
    %3329 = vmatmul.bf16.gmra.mxu0 %v3019
    %v3330 = vpop.f32.mrf.mxu0
    %v3331 = vadd.f32 0.0, %v3330
    %v3332 = vpop.f32.mrf.mxu0
    %v3333 = vadd.f32 0.0, %v3332
    %3334 = vdwg.mxu0
    %3335 = vmatpush.bf16.msra.mxu0 %v3221
    %3336 = vmatpush.bf16.msra.mxu0 %v3220
    %3337 = vmatpush.bf16.msra.mxu0 %v3219
    %3338 = vmatpush.bf16.msra.mxu0 %v3218
    %3339 = vmatpush.bf16.msra.mxu0 %v3217
    %3340 = vmatpush.bf16.msra.mxu0 %v3216
    %3341 = vmatpush.bf16.msra.mxu0 %v3215
    %3342 = vmatpush.bf16.msra.mxu0 %v3214
    %3343 = vmatmul.bf16.gmra.mxu0 %v3003
    %v3344 = vpop.f32.mrf.mxu0
    %v3345 = vadd.f32 %v3296, %v3344
    %v3346 = vpop.f32.mrf.mxu0
    %v3347 = vadd.f32 %v3298, %v3346
    %3348 = vmatmul.bf16.gmra.mxu0 %v3005
    %v3349 = vpop.f32.mrf.mxu0
    %v3350 = vadd.f32 %v3301, %v3349
    %v3351 = vpop.f32.mrf.mxu0
    %v3352 = vadd.f32 %v3303, %v3351
    %3353 = vmatmul.bf16.gmra.mxu0 %v3007
    %v3354 = vpop.f32.mrf.mxu0
    %v3355 = vadd.f32 %v3306, %v3354
    %v3356 = vpop.f32.mrf.mxu0
    %v3357 = vadd.f32 %v3308, %v3356
    %3358 = vmatmul.bf16.gmra.mxu0 %v3009
    %v3359 = vpop.f32.mrf.mxu0
    %v3360 = vadd.f32 %v3311, %v3359
    %v3361 = vpop.f32.mrf.mxu0
    %v3362 = vadd.f32 %v3313, %v3361
    %3363 = vmatmul.bf16.gmra.mxu0 %v3014
    %v3364 = vpop.f32.mrf.mxu0
    %v3365 = vadd.f32 %v3316, %v3364
    %v3366 = vpop.f32.mrf.mxu0
    %v3367 = vadd.f32 %v3318, %v3366
    %3368 = vmatmul.bf16.gmra.mxu0 %v3016
    %v3369 = vpop.f32.mrf.mxu0
    %v3370 = vadd.f32 %v3321, %v3369
    %v3371 = vpop.f32.mrf.mxu0
    %v3372 = vadd.f32 %v3323, %v3371
    %3373 = vmatmul.bf16.gmra.mxu0 %v3018
    %v3374 = vpop.f32.mrf.mxu0
    %v3375 = vadd.f32 %v3326, %v3374
    %v3376 = vpop.f32.mrf.mxu0
    %v3377 = vadd.f32 %v3328, %v3376
    %3378 = vmatmul.bf16.gmra.mxu0 %v3020
    %v3379 = vpop.f32.mrf.mxu0
    %v3380 = vadd.f32 %v3331, %v3379
    %v3381 = vpop.f32.mrf.mxu0
    %v3382 = vadd.f32 %v3333, %v3381
    %3383 = vdwg.mxu0
    %3384 = vmatpush.bf16.msra.mxu0 %v3229
    %3385 = vmatpush.bf16.msra.mxu0 %v3228
    %3386 = vmatpush.bf16.msra.mxu0 %v3227
    %3387 = vmatpush.bf16.msra.mxu0 %v3226
    %3388 = vmatpush.bf16.msra.mxu0 %v3225
    %3389 = vmatpush.bf16.msra.mxu0 %v3224
    %3390 = vmatpush.bf16.msra.mxu0 %v3223
    %3391 = vmatpush.bf16.msra.mxu0 %v3222
    %3392 = vmatmul.bf16.gmra.mxu0 %v3004
    %v3393 = vpop.f32.mrf.mxu0
    %v3394 = vadd.f32 %v3345, %v3393
    %v3395 = vpop.f32.mrf.mxu0
    %v3396 = vadd.f32 %v3347, %v3395
    %3397 = vmatmul.bf16.gmra.mxu0 %v3006
    %v3398 = vpop.f32.mrf.mxu0
    %v3399 = vadd.f32 %v3350, %v3398
    %v3400 = vpop.f32.mrf.mxu0
    %v3401 = vadd.f32 %v3352, %v3400
    %3402 = vmatmul.bf16.gmra.mxu0 %v3008
    %v3403 = vpop.f32.mrf.mxu0
    %v3404 = vadd.f32 %v3355, %v3403
    %v3405 = vpop.f32.mrf.mxu0
    %v3406 = vadd.f32 %v3357, %v3405
    %3407 = vmatmul.bf16.gmra.mxu0 %v3010
    %v3408 = vpop.f32.mrf.mxu0
    %v3409 = vadd.f32 %v3360, %v3408
    %v3410 = vpop.f32.mrf.mxu0
    %v3411 = vadd.f32 %v3362, %v3410
    %3412 = vmatmul.bf16.gmra.mxu0 %v3015
    %v3413 = vpop.f32.mrf.mxu0
    %v3414 = vadd.f32 %v3365, %v3413
    %v3415 = vpop.f32.mrf.mxu0
    %v3416 = vadd.f32 %v3367, %v3415
    %3417 = vmatmul.bf16.gmra.mxu0 %v3017
    %v3418 = vpop.f32.mrf.mxu0
    %v3419 = vadd.f32 %v3370, %v3418
    %v3420 = vpop.f32.mrf.mxu0
    %v3421 = vadd.f32 %v3372, %v3420
    %3422 = vmatmul.bf16.gmra.mxu0 %v3019
    %v3423 = vpop.f32.mrf.mxu0
    %v3424 = vadd.f32 %v3375, %v3423
    %v3425 = vpop.f32.mrf.mxu0
    %v3426 = vadd.f32 %v3377, %v3425
    %3427 = vmatmul.bf16.gmra.mxu0 %v3021
    %v3428 = vpop.f32.mrf.mxu0
    %v3429 = vadd.f32 %v3380, %v3428
    %v3430 = vpop.f32.mrf.mxu0
    %v3431 = vadd.f32 %v3382, %v3430
    %3432 = vdwg.mxu0
    %3433 = vmatpush.bf16.msra.mxu0 %v3237
    %3434 = vmatpush.bf16.msra.mxu0 %v3236
    %3435 = vmatpush.bf16.msra.mxu0 %v3235
    %3436 = vmatpush.bf16.msra.mxu0 %v3234
    %3437 = vmatpush.bf16.msra.mxu0 %v3233
    %3438 = vmatpush.bf16.msra.mxu0 %v3232
    %3439 = vmatpush.bf16.msra.mxu0 %v3231
    %3440 = vmatpush.bf16.msra.mxu0 %v3230
    %3441 = vmatmul.bf16.gmra.mxu0 %v3005
    %v3442 = vpop.f32.mrf.mxu0
    %v3443 = vadd.f32 %v3394, %v3442
    %v3444 = vpop.f32.mrf.mxu0
    %v3445 = vadd.f32 %v3396, %v3444
    %3446 = vmatmul.bf16.gmra.mxu0 %v3007
    %v3447 = vpop.f32.mrf.mxu0
    %v3448 = vadd.f32 %v3399, %v3447
    %v3449 = vpop.f32.mrf.mxu0
    %v3450 = vadd.f32 %v3401, %v3449
    %3451 = vmatmul.bf16.gmra.mxu0 %v3009
    %v3452 = vpop.f32.mrf.mxu0
    %v3453 = vadd.f32 %v3404, %v3452
    %v3454 = vpop.f32.mrf.mxu0
    %v3455 = vadd.f32 %v3406, %v3454
    %3456 = vmatmul.bf16.gmra.mxu0 %v3011
    %v3457 = vpop.f32.mrf.mxu0
    %v3458 = vadd.f32 %v3409, %v3457
    %v3459 = vpop.f32.mrf.mxu0
    %v3460 = vadd.f32 %v3411, %v3459
    %3461 = vmatmul.bf16.gmra.mxu0 %v3016
    %v3462 = vpop.f32.mrf.mxu0
    %v3463 = vadd.f32 %v3414, %v3462
    %v3464 = vpop.f32.mrf.mxu0
    %v3465 = vadd.f32 %v3416, %v3464
    %3466 = vmatmul.bf16.gmra.mxu0 %v3018
    %v3467 = vpop.f32.mrf.mxu0
    %v3468 = vadd.f32 %v3419, %v3467
    %v3469 = vpop.f32.mrf.mxu0
    %v3470 = vadd.f32 %v3421, %v3469
    %3471 = vmatmul.bf16.gmra.mxu0 %v3020
    %v3472 = vpop.f32.mrf.mxu0
    %v3473 = vadd.f32 %v3424, %v3472
    %v3474 = vpop.f32.mrf.mxu0
    %v3475 = vadd.f32 %v3426, %v3474
    %3476 = vmatmul.bf16.gmra.mxu0 %v3022
    %v3477 = vpop.f32.mrf.mxu0
    %v3478 = vadd.f32 %v3429, %v3477
    %v3479 = vpop.f32.mrf.mxu0
    %v3480 = vadd.f32 %v3431, %v3479
    %3481 = vdwg.mxu0
    %3482 = vmatpush.bf16.msra.mxu0 %v3245
    %3483 = vmatpush.bf16.msra.mxu0 %v3244
    %3484 = vmatpush.bf16.msra.mxu0 %v3243
    %3485 = vmatpush.bf16.msra.mxu0 %v3242
    %3486 = vmatpush.bf16.msra.mxu0 %v3241
    %3487 = vmatpush.bf16.msra.mxu0 %v3240
    %3488 = vmatpush.bf16.msra.mxu0 %v3239
    %3489 = vmatpush.bf16.msra.mxu0 %v3238
    %3490 = vmatmul.bf16.gmra.mxu0 %v3006
    %v3491 = vpop.f32.mrf.mxu0
    %v3492 = vadd.f32 %v3443, %v3491
    %v3493 = vpop.f32.mrf.mxu0
    %v3494 = vadd.f32 %v3445, %v3493
    %3495 = vmatmul.bf16.gmra.mxu0 %v3008
    %v3496 = vpop.f32.mrf.mxu0
    %v3497 = vadd.f32 %v3448, %v3496
    %v3498 = vpop.f32.mrf.mxu0
    %v3499 = vadd.f32 %v3450, %v3498
    %3500 = vmatmul.bf16.gmra.mxu0 %v3010
    %v3501 = vpop.f32.mrf.mxu0
    %v3502 = vadd.f32 %v3453, %v3501
    %v3503 = vpop.f32.mrf.mxu0
    %v3504 = vadd.f32 %v3455, %v3503
    %3505 = vmatmul.bf16.gmra.mxu0 %v3012
    %v3506 = vpop.f32.mrf.mxu0
    %v3507 = vadd.f32 %v3458, %v3506
    %v3508 = vpop.f32.mrf.mxu0
    %v3509 = vadd.f32 %v3460, %v3508
    %3510 = vmatmul.bf16.gmra.mxu0 %v3017
    %v3511 = vpop.f32.mrf.mxu0
    %v3512 = vadd.f32 %v3463, %v3511
    %v3513 = vpop.f32.mrf.mxu0
    %v3514 = vadd.f32 %v3465, %v3513
    %3515 = vmatmul.bf16.gmra.mxu0 %v3019
    %v3516 = vpop.f32.mrf.mxu0
    %v3517 = vadd.f32 %v3468, %v3516
    %v3518 = vpop.f32.mrf.mxu0
    %v3519 = vadd.f32 %v3470, %v3518
    %3520 = vmatmul.bf16.gmra.mxu0 %v3021
    %v3521 = vpop.f32.mrf.mxu0
    %v3522 = vadd.f32 %v3473, %v3521
    %v3523 = vpop.f32.mrf.mxu0
    %v3524 = vadd.f32 %v3475, %v3523
    %3525 = vmatmul.bf16.gmra.mxu0 %v3023
    %v3526 = vpop.f32.mrf.mxu0
    %v3527 = vadd.f32 %v3478, %v3526
    %v3528 = vpop.f32.mrf.mxu0
    %v3529 = vadd.f32 %v3480, %v3528
    %3530 = vdwg.mxu0
    %v3531 = vpack.c.b16 %v2722, %v2721
    %v3532 = vpack.c.b16 %v2723, %v2722
    %v3533 = vpack.c.b16 %v2724, %v2723
    %v3534 = vpack.c.b16 %v2725, %v2724
    %v3535 = vpack.c.b16 %v2726, %v2725
    %v3536 = vpack.c.b16 %v2727, %v2726
    %v3537 = vpack.c.b16 %v2728, %v2727
    %v3538 = vpack.c.b16 %v2729, %v2728
    %v3539 = vpack.c.b16 %v2730, %v2729
    %v3540 = vpack.c.b16 %v2731, %v2730
    %v3541 = vpack.c.b16 %v2732, %v2731
    %v3542 = vpack.c.b16 %v2734, %v2733
    %v3543 = vpack.c.b16 %v2735, %v2734
    %v3544 = vpack.c.b16 %v2736, %v2735
    %v3545 = vpack.c.b16 %v2737, %v2736
    %v3546 = vpack.c.b16 %v2738, %v2737
    %v3547 = vpack.c.b16 %v2739, %v2738
    %v3548 = vpack.c.b16 %v2740, %v2739
    %v3549 = vpack.c.b16 %v2741, %v2740
    %v3550 = vpack.c.b16 %v2742, %v2741
    %v3551 = vpack.c.b16 %v2743, %v2742
    %v3552 = vpack.c.b16 %v2744, %v2743
    %v3655 = vunpack.c.l.b16 %v2745
    %v3656 = vunpack.c.l.b16 %v2746
    %v3657 = vunpack.c.l.b16 %v2747
    %v3658 = vunpack.c.l.b16 %v2748
    %v3659 = vunpack.c.l.b16 %v2749
    %v3660 = vunpack.c.l.b16 %v2750
    %v3661 = vunpack.c.l.b16 %v2751
    %v3662 = vunpack.c.l.b16 %v2752
    %v3663 = vunpack.c.l.b16 %v2753
    %v3664 = vunpack.c.l.b16 %v2754
    %v3665 = vunpack.c.l.b16 %v2755
    %v3666 = vunpack.c.l.b16 %v2756
    %v3667 = vunpack.c.l.b16 %v2757
    %v3668 = vunpack.c.l.b16 %v2758
    %v3669 = vunpack.c.l.b16 %v2759
    %v3670 = vunpack.c.l.b16 %v2760
    %v3671 = vunpack.c.l.b16 %v2761
    %v3672 = vunpack.c.l.b16 %v2762
    %v3673 = vunpack.c.l.b16 %v2763
    %v3674 = vunpack.c.l.b16 %v2764
    %v3675 = vunpack.c.l.b16 %v2765
    %v3676 = vunpack.c.l.b16 %v2766
    %v3677 = vunpack.c.l.b16 %v2767
    %v3678 = vunpack.c.l.b16 %v2768
    %v3679 = vunpack.c.l.b16 %v2769
    %v3680 = vunpack.c.l.b16 %v2770
    %v3681 = vunpack.c.l.b16 %v2771
    %v3682 = vunpack.c.l.b16 %v2772
    %v3683 = vunpack.c.l.b16 %v2773
    %v3684 = vunpack.c.l.b16 %v2774
    %v3685 = vunpack.c.l.b16 %v2775
    %v3686 = vunpack.c.l.b16 %v2776
    %v3687 = vunpack.c.l.b16 %v2777
    %v3688 = vunpack.c.l.b16 %v2778
    %v3689 = vunpack.c.l.b16 %v2779
    %v3690 = vunpack.c.l.b16 %v2780
    %v3691 = vunpack.c.l.b16 %v2781
    %v3692 = vunpack.c.l.b16 %v2782
    %v3693 = vunpack.c.l.b16 %v2783
    %v3694 = vunpack.c.l.b16 %v2784
    %v3695 = vunpack.c.l.b16 %v2785
    %v3696 = vunpack.c.l.b16 %v2786
    %v3697 = vunpack.c.l.b16 %v2787
    %v3698 = vunpack.c.l.b16 %v2788
    %v3699 = vunpack.c.l.b16 %v2789
    %v3700 = vunpack.c.l.b16 %v2790
    %v3701 = vunpack.c.l.b16 %v2791
    %v3702 = vunpack.c.l.b16 %v2792
    %v3703 = vunpack.c.l.b16 %v2793
    %v3704 = vunpack.c.l.b16 %v2794
    %v3705 = vunpack.c.l.b16 %v2795
    %v3706 = vunpack.c.l.b16 %v2796
    %v3707 = vunpack.c.l.b16 %v2797
    %v3708 = vunpack.c.l.b16 %v2798
    %v3709 = vunpack.c.l.b16 %v2799
    %v3710 = vunpack.c.l.b16 %v2800
    %v3711 = vunpack.c.l.b16 %v2801
    %v3712 = vunpack.c.l.b16 %v2802
    %v3713 = vunpack.c.l.b16 %v2803
    %v3714 = vunpack.c.l.b16 %v2804
    %v3715 = vunpack.c.l.b16 %v2805
    %v3716 = vunpack.c.l.b16 %v2806
    %v3717 = vunpack.c.l.b16 %v2807
    %v3718 = vunpack.c.l.b16 %v2808
    %v3719 = vunpack.c.l.b16 %v2809
    %v3720 = vunpack.c.l.b16 %v2810
    %v3721 = vunpack.c.l.b16 %v2811
    %v3722 = vunpack.c.l.b16 %v2812
    %v3723 = vunpack.c.l.b16 %v2813
    %v3724 = vunpack.c.l.b16 %v2814
    %v3725 = vunpack.c.l.b16 %v2815
    %v3726 = vunpack.c.l.b16 %v2816
    %v3727 = vunpack.c.l.b16 %v2817
    %v3728 = vunpack.c.l.b16 %v2818
    %v3729 = vunpack.c.l.b16 %v2819
    %v3730 = vunpack.c.l.b16 %v2820
    %v3731 = vunpack.c.l.b16 %v2821
    %v3732 = vunpack.c.l.b16 %v2822
    %v3733 = vunpack.c.l.b16 %v2823
    %v3734 = vunpack.c.l.b16 %v2824
    %v3735 = vpack.c.b16 %v3656, %v3655
    %v3736 = vpack.c.b16 %v3658, %v3657
    %v3737 = vpack.c.b16 %v3660, %v3659
    %v3738 = vpack.c.b16 %v3662, %v3661
    %v3739 = vpack.c.b16 %v3664, %v3663
    %v3740 = vpack.c.b16 %v3666, %v3665
    %v3741 = vpack.c.b16 %v3668, %v3667
    %v3742 = vpack.c.b16 %v3670, %v3669
    %v3743 = vpack.c.b16 %v3672, %v3671
    %v3744 = vpack.c.b16 %v3674, %v3673
    %v3745 = vpack.c.b16 %v3676, %v3675
    %v3746 = vpack.c.b16 %v3678, %v3677
    %v3747 = vpack.c.b16 %v3680, %v3679
    %v3748 = vpack.c.b16 %v3682, %v3681
    %v3749 = vpack.c.b16 %v3684, %v3683
    %v3750 = vpack.c.b16 %v3686, %v3685
    %v3751 = vpack.c.b16 %v3688, %v3687
    %v3752 = vpack.c.b16 %v3690, %v3689
    %v3753 = vpack.c.b16 %v3692, %v3691
    %v3754 = vpack.c.b16 %v3694, %v3693
    %v3755 = vpack.c.b16 %v3696, %v3695
    %v3756 = vpack.c.b16 %v3698, %v3697
    %v3757 = vpack.c.b16 %v3700, %v3699
    %v3758 = vpack.c.b16 %v3702, %v3701
    %v3759 = vpack.c.b16 %v3704, %v3703
    %v3760 = vpack.c.b16 %v3706, %v3705
    %v3761 = vpack.c.b16 %v3708, %v3707
    %v3762 = vpack.c.b16 %v3710, %v3709
    %v3763 = vpack.c.b16 %v3712, %v3711
    %v3764 = vpack.c.b16 %v3714, %v3713
    %v3765 = vpack.c.b16 %v3716, %v3715
    %v3766 = vpack.c.b16 %v3718, %v3717
    %v3767 = vpack.c.b16 %v3720, %v3719
    %v3768 = vpack.c.b16 %v3722, %v3721
    %v3769 = vpack.c.b16 %v3724, %v3723
    %v3770 = vpack.c.b16 %v3726, %v3725
    %v3771 = vpack.c.b16 %v3728, %v3727
    %v3772 = vpack.c.b16 %v3730, %v3729
    %v3773 = vpack.c.b16 %v3732, %v3731
    %v3774 = vpack.c.b16 %v3734, %v3733
    %3815 = vmatpush.bf16.msra.mxu0 %v3742
    %3816 = vmatpush.bf16.msra.mxu0 %v3741
    %3817 = vmatpush.bf16.msra.mxu0 %v3740
    %3818 = vmatpush.bf16.msra.mxu0 %v3739
    %3819 = vmatpush.bf16.msra.mxu0 %v3738
    %3820 = vmatpush.bf16.msra.mxu0 %v3737
    %3821 = vmatpush.bf16.msra.mxu0 %v3736
    %3822 = vmatpush.bf16.msra.mxu0 %v3735
    %3823 = vmatmul.bf16.gmra.mxu0 %v3531
    %v3824 = vpop.f32.mrf.mxu0
    %v3825 = vadd.f32 %v3492, %v3824
    %v3826 = vpop.f32.mrf.mxu0
    %v3827 = vadd.f32 %v3494, %v3826
    %3828 = vmatmul.bf16.gmra.mxu0 %v3533
    %v3829 = vpop.f32.mrf.mxu0
    %v3830 = vadd.f32 %v3497, %v3829
    %v3831 = vpop.f32.mrf.mxu0
    %v3832 = vadd.f32 %v3499, %v3831
    %3833 = vmatmul.bf16.gmra.mxu0 %v3535
    %v3834 = vpop.f32.mrf.mxu0
    %v3835 = vadd.f32 %v3502, %v3834
    %v3836 = vpop.f32.mrf.mxu0
    %v3837 = vadd.f32 %v3504, %v3836
    %3838 = vmatmul.bf16.gmra.mxu0 %v3537
    %v3839 = vpop.f32.mrf.mxu0
    %v3840 = vadd.f32 %v3507, %v3839
    %v3841 = vpop.f32.mrf.mxu0
    %v3842 = vadd.f32 %v3509, %v3841
    %3843 = vmatmul.bf16.gmra.mxu0 %v3542
    %v3844 = vpop.f32.mrf.mxu0
    %v3845 = vadd.f32 %v3512, %v3844
    %v3846 = vpop.f32.mrf.mxu0
    %v3847 = vadd.f32 %v3514, %v3846
    %3848 = vmatmul.bf16.gmra.mxu0 %v3544
    %v3849 = vpop.f32.mrf.mxu0
    %v3850 = vadd.f32 %v3517, %v3849
    %v3851 = vpop.f32.mrf.mxu0
    %v3852 = vadd.f32 %v3519, %v3851
    %3853 = vmatmul.bf16.gmra.mxu0 %v3546
    %v3854 = vpop.f32.mrf.mxu0
    %v3855 = vadd.f32 %v3522, %v3854
    %v3856 = vpop.f32.mrf.mxu0
    %v3857 = vadd.f32 %v3524, %v3856
    %3858 = vmatmul.bf16.gmra.mxu0 %v3548
    %v3859 = vpop.f32.mrf.mxu0
    %v3860 = vadd.f32 %v3527, %v3859
    %v3861 = vpop.f32.mrf.mxu0
    %v3862 = vadd.f32 %v3529, %v3861
    %3863 = vdwg.mxu0
    %3864 = vmatpush.bf16.msra.mxu0 %v3750
    %3865 = vmatpush.bf16.msra.mxu0 %v3749
    %3866 = vmatpush.bf16.msra.mxu0 %v3748
    %3867 = vmatpush.bf16.msra.mxu0 %v3747
    %3868 = vmatpush.bf16.msra.mxu0 %v3746
    %3869 = vmatpush.bf16.msra.mxu0 %v3745
    %3870 = vmatpush.bf16.msra.mxu0 %v3744
    %3871 = vmatpush.bf16.msra.mxu0 %v3743
    %3872 = vmatmul.bf16.gmra.mxu0 %v3532
    %v3873 = vpop.f32.mrf.mxu0
    %v3874 = vadd.f32 %v3825, %v3873
    %v3875 = vpop.f32.mrf.mxu0
    %v3876 = vadd.f32 %v3827, %v3875
    %3877 = vmatmul.bf16.gmra.mxu0 %v3534
    %v3878 = vpop.f32.mrf.mxu0
    %v3879 = vadd.f32 %v3830, %v3878
    %v3880 = vpop.f32.mrf.mxu0
    %v3881 = vadd.f32 %v3832, %v3880
    %3882 = vmatmul.bf16.gmra.mxu0 %v3536
    %v3883 = vpop.f32.mrf.mxu0
    %v3884 = vadd.f32 %v3835, %v3883
    %v3885 = vpop.f32.mrf.mxu0
    %v3886 = vadd.f32 %v3837, %v3885
    %3887 = vmatmul.bf16.gmra.mxu0 %v3538
    %v3888 = vpop.f32.mrf.mxu0
    %v3889 = vadd.f32 %v3840, %v3888
    %v3890 = vpop.f32.mrf.mxu0
    %v3891 = vadd.f32 %v3842, %v3890
    %3892 = vmatmul.bf16.gmra.mxu0 %v3543
    %v3893 = vpop.f32.mrf.mxu0
    %v3894 = vadd.f32 %v3845, %v3893
    %v3895 = vpop.f32.mrf.mxu0
    %v3896 = vadd.f32 %v3847, %v3895
    %3897 = vmatmul.bf16.gmra.mxu0 %v3545
    %v3898 = vpop.f32.mrf.mxu0
    %v3899 = vadd.f32 %v3850, %v3898
    %v3900 = vpop.f32.mrf.mxu0
    %v3901 = vadd.f32 %v3852, %v3900
    %3902 = vmatmul.bf16.gmra.mxu0 %v3547
    %v3903 = vpop.f32.mrf.mxu0
    %v3904 = vadd.f32 %v3855, %v3903
    %v3905 = vpop.f32.mrf.mxu0
    %v3906 = vadd.f32 %v3857, %v3905
    %3907 = vmatmul.bf16.gmra.mxu0 %v3549
    %v3908 = vpop.f32.mrf.mxu0
    %v3909 = vadd.f32 %v3860, %v3908
    %v3910 = vpop.f32.mrf.mxu0
    %v3911 = vadd.f32 %v3862, %v3910
    %3912 = vdwg.mxu0
    %3913 = vmatpush.bf16.msra.mxu0 %v3758
    %3914 = vmatpush.bf16.msra.mxu0 %v3757
    %3915 = vmatpush.bf16.msra.mxu0 %v3756
    %3916 = vmatpush.bf16.msra.mxu0 %v3755
    %3917 = vmatpush.bf16.msra.mxu0 %v3754
    %3918 = vmatpush.bf16.msra.mxu0 %v3753
    %3919 = vmatpush.bf16.msra.mxu0 %v3752
    %3920 = vmatpush.bf16.msra.mxu0 %v3751
    %3921 = vmatmul.bf16.gmra.mxu0 %v3533
    %v3922 = vpop.f32.mrf.mxu0
    %v3923 = vadd.f32 %v3874, %v3922
    %v3924 = vpop.f32.mrf.mxu0
    %v3925 = vadd.f32 %v3876, %v3924
    %3926 = vmatmul.bf16.gmra.mxu0 %v3535
    %v3927 = vpop.f32.mrf.mxu0
    %v3928 = vadd.f32 %v3879, %v3927
    %v3929 = vpop.f32.mrf.mxu0
    %v3930 = vadd.f32 %v3881, %v3929
    %3931 = vmatmul.bf16.gmra.mxu0 %v3537
    %v3932 = vpop.f32.mrf.mxu0
    %v3933 = vadd.f32 %v3884, %v3932
    %v3934 = vpop.f32.mrf.mxu0
    %v3935 = vadd.f32 %v3886, %v3934
    %3936 = vmatmul.bf16.gmra.mxu0 %v3539
    %v3937 = vpop.f32.mrf.mxu0
    %v3938 = vadd.f32 %v3889, %v3937
    %v3939 = vpop.f32.mrf.mxu0
    %v3940 = vadd.f32 %v3891, %v3939
    %3941 = vmatmul.bf16.gmra.mxu0 %v3544
    %v3942 = vpop.f32.mrf.mxu0
    %v3943 = vadd.f32 %v3894, %v3942
    %v3944 = vpop.f32.mrf.mxu0
    %v3945 = vadd.f32 %v3896, %v3944
    %3946 = vmatmul.bf16.gmra.mxu0 %v3546
    %v3947 = vpop.f32.mrf.mxu0
    %v3948 = vadd.f32 %v3899, %v3947
    %v3949 = vpop.f32.mrf.mxu0
    %v3950 = vadd.f32 %v3901, %v3949
    %3951 = vmatmul.bf16.gmra.mxu0 %v3548
    %v3952 = vpop.f32.mrf.mxu0
    %v3953 = vadd.f32 %v3904, %v3952
    %v3954 = vpop.f32.mrf.mxu0
    %v3955 = vadd.f32 %v3906, %v3954
    %3956 = vmatmul.bf16.gmra.mxu0 %v3550
    %v3957 = vpop.f32.mrf.mxu0
    %v3958 = vadd.f32 %v3909, %v3957
    %v3959 = vpop.f32.mrf.mxu0
    %v3960 = vadd.f32 %v3911, %v3959
    %3961 = vdwg.mxu0
    %3962 = vmatpush.bf16.msra.mxu0 %v3766
    %3963 = vmatpush.bf16.msra.mxu0 %v3765
    %3964 = vmatpush.bf16.msra.mxu0 %v3764
    %3965 = vmatpush.bf16.msra.mxu0 %v3763
    %3966 = vmatpush.bf16.msra.mxu0 %v3762
    %3967 = vmatpush.bf16.msra.mxu0 %v3761
    %3968 = vmatpush.bf16.msra.mxu0 %v3760
    %3969 = vmatpush.bf16.msra.mxu0 %v3759
    %3970 = vmatmul.bf16.gmra.mxu0 %v3534
    %v3971 = vpop.f32.mrf.mxu0
    %v3972 = vadd.f32 %v3923, %v3971
    %v3973 = vpop.f32.mrf.mxu0
    %v3974 = vadd.f32 %v3925, %v3973
    %3975 = vmatmul.bf16.gmra.mxu0 %v3536
    %v3976 = vpop.f32.mrf.mxu0
    %v3977 = vadd.f32 %v3928, %v3976
    %v3978 = vpop.f32.mrf.mxu0
    %v3979 = vadd.f32 %v3930, %v3978
    %3980 = vmatmul.bf16.gmra.mxu0 %v3538
    %v3981 = vpop.f32.mrf.mxu0
    %v3982 = vadd.f32 %v3933, %v3981
    %v3983 = vpop.f32.mrf.mxu0
    %v3984 = vadd.f32 %v3935, %v3983
    %3985 = vmatmul.bf16.gmra.mxu0 %v3540
    %v3986 = vpop.f32.mrf.mxu0
    %v3987 = vadd.f32 %v3938, %v3986
    %v3988 = vpop.f32.mrf.mxu0
    %v3989 = vadd.f32 %v3940, %v3988
    %3990 = vmatmul.bf16.gmra.mxu0 %v3545
    %v3991 = vpop.f32.mrf.mxu0
    %v3992 = vadd.f32 %v3943, %v3991
    %v3993 = vpop.f32.mrf.mxu0
    %v3994 = vadd.f32 %v3945, %v3993
    %3995 = vmatmul.bf16.gmra.mxu0 %v3547
    %v3996 = vpop.f32.mrf.mxu0
    %v3997 = vadd.f32 %v3948, %v3996
    %v3998 = vpop.f32.mrf.mxu0
    %v3999 = vadd.f32 %v3950, %v3998
    %4000 = vmatmul.bf16.gmra.mxu0 %v3549
    %v4001 = vpop.f32.mrf.mxu0
    %v4002 = vadd.f32 %v3953, %v4001
    %v4003 = vpop.f32.mrf.mxu0
    %v4004 = vadd.f32 %v3955, %v4003
    %4005 = vmatmul.bf16.gmra.mxu0 %v3551
    %v4006 = vpop.f32.mrf.mxu0
    %v4007 = vadd.f32 %v3958, %v4006
    %v4008 = vpop.f32.mrf.mxu0
    %v4009 = vadd.f32 %v3960, %v4008
    %4010 = vdwg.mxu0
    %4011 = vmatpush.bf16.msra.mxu0 %v3774
    %4012 = vmatpush.bf16.msra.mxu0 %v3773
    %4013 = vmatpush.bf16.msra.mxu0 %v3772
    %4014 = vmatpush.bf16.msra.mxu0 %v3771
    %4015 = vmatpush.bf16.msra.mxu0 %v3770
    %4016 = vmatpush.bf16.msra.mxu0 %v3769
    %4017 = vmatpush.bf16.msra.mxu0 %v3768
    %4018 = vmatpush.bf16.msra.mxu0 %v3767
    %4019 = vmatmul.bf16.gmra.mxu0 %v3535
    %v4020 = vpop.f32.mrf.mxu0
    %v4021 = vadd.f32 %v3972, %v4020
    %v4022 = vpop.f32.mrf.mxu0
    %v4023 = vadd.f32 %v3974, %v4022
    %4024 = vmatmul.bf16.gmra.mxu0 %v3537
    %v4025 = vpop.f32.mrf.mxu0
    %v4026 = vadd.f32 %v3977, %v4025
    %v4027 = vpop.f32.mrf.mxu0
    %v4028 = vadd.f32 %v3979, %v4027
    %4029 = vmatmul.bf16.gmra.mxu0 %v3539
    %v4030 = vpop.f32.mrf.mxu0
    %v4031 = vadd.f32 %v3982, %v4030
    %v4032 = vpop.f32.mrf.mxu0
    %v4033 = vadd.f32 %v3984, %v4032
    %4034 = vmatmul.bf16.gmra.mxu0 %v3541
    %v4035 = vpop.f32.mrf.mxu0
    %v4036 = vadd.f32 %v3987, %v4035
    %v4037 = vpop.f32.mrf.mxu0
    %v4038 = vadd.f32 %v3989, %v4037
    %4039 = vmatmul.bf16.gmra.mxu0 %v3546
    %v4040 = vpop.f32.mrf.mxu0
    %v4041 = vadd.f32 %v3992, %v4040
    %v4042 = vpop.f32.mrf.mxu0
    %v4043 = vadd.f32 %v3994, %v4042
    %4044 = vmatmul.bf16.gmra.mxu0 %v3548
    %v4045 = vpop.f32.mrf.mxu0
    %v4046 = vadd.f32 %v3997, %v4045
    %v4047 = vpop.f32.mrf.mxu0
    %v4048 = vadd.f32 %v3999, %v4047
    %4049 = vmatmul.bf16.gmra.mxu0 %v3550
    %v4050 = vpop.f32.mrf.mxu0
    %v4051 = vadd.f32 %v4002, %v4050
    %v4052 = vpop.f32.mrf.mxu0
    %v4053 = vadd.f32 %v4004, %v4052
    %4054 = vmatmul.bf16.gmra.mxu0 %v3552
    %v4055 = vpop.f32.mrf.mxu0
    %v4056 = vadd.f32 %v4007, %v4055
    %v4057 = vpop.f32.mrf.mxu0
    %v4058 = vadd.f32 %v4009, %v4057
    %4059 = vdwg.mxu0
    %v4060 = vld [vmem:[#allocation2 + $0x2] sm:$0xff]
    %v4061 = vld [vmem:[#allocation2 + $0x12] sm:$0xff]
    %v4062 = vld [vmem:[#allocation2 + $0x22] sm:$0xff]
    %v4063 = vld [vmem:[#allocation2 + $0x32] sm:$0xff]
    %v4064 = vld [vmem:[#allocation2 + $0x42] sm:$0xff]
    %v4065 = vld [vmem:[#allocation2 + $0x52] sm:$0xff]
    %v4066 = vld [vmem:[#allocation2 + $0x62] sm:$0xff]
    %v4067 = vld [vmem:[#allocation2 + $0x72] sm:$0xff]
    %v4068 = vld [vmem:[#allocation2 + $0x82] sm:$0xff]
    %v4069 = vld [vmem:[#allocation2 + $0x92] sm:$0xff]
    %v4070 = vld [vmem:[#allocation2 + $0xa2] sm:$0xff]
    %v4071 = vld [vmem:[#allocation2 + $0xb2] sm:$0xff]
    %v4072 = vld [vmem:[#allocation2 + $0xc2] sm:$0xff]
    %v4073 = vld [vmem:[#allocation2 + $0xd2] sm:$0xff]
    %v4074 = vld [vmem:[#allocation2 + $0xe2] sm:$0xff]
    %v4075 = vld [vmem:[#allocation2 + $0xf2] sm:$0xff]
    %v4076 = vld [vmem:[#allocation2 + $0x102] sm:$0xff]
    %v4077 = vld [vmem:[#allocation2 + $0x112] sm:$0xff]
    %v4078 = vld [vmem:[#allocation2 + $0x122] sm:$0xff]
    %v4079 = vld [vmem:[#allocation2 + $0x132] sm:$0xff]
    %v4080 = vld [vmem:[#allocation2 + $0x142] sm:$0xff]
    %v4081 = vld [vmem:[#allocation2 + $0x152] sm:$0xff]
    %v4082 = vld [vmem:[#allocation2 + $0x162] sm:$0xff]
    %v4083 = vld [vmem:[#allocation2 + $0x172] sm:$0xff]
    %v4084 = vpack.c.bf16 %v4060, %v4060
    %v4085 = vpack.c.bf16 %v4061, %v4061
    %v4086 = vpack.c.bf16 %v4062, %v4062
    %v4087 = vpack.c.bf16 %v4063, %v4063
    %v4088 = vpack.c.bf16 %v4064, %v4064
    %v4089 = vpack.c.bf16 %v4065, %v4065
    %v4090 = vpack.c.bf16 %v4066, %v4066
    %v4091 = vpack.c.bf16 %v4067, %v4067
    %v4092 = vpack.c.bf16 %v4068, %v4068
    %v4093 = vpack.c.bf16 %v4069, %v4069
    %v4094 = vpack.c.bf16 %v4070, %v4070
    %v4095 = vpack.c.bf16 %v4071, %v4071
    %v4096 = vpack.c.bf16 %v4072, %v4072
    %v4097 = vpack.c.bf16 %v4073, %v4073
    %v4098 = vpack.c.bf16 %v4074, %v4074
    %v4099 = vpack.c.bf16 %v4075, %v4075
    %v4100 = vpack.c.bf16 %v4076, %v4076
    %v4101 = vpack.c.bf16 %v4077, %v4077
    %v4102 = vpack.c.bf16 %v4078, %v4078
    %v4103 = vpack.c.bf16 %v4079, %v4079
    %v4104 = vpack.c.bf16 %v4080, %v4080
    %v4105 = vpack.c.bf16 %v4081, %v4081
    %v4106 = vpack.c.bf16 %v4082, %v4082
    %v4107 = vpack.c.bf16 %v4083, %v4083
    %v4132 = vunpack.c.l.b16 %v4084
    %v4133 = vunpack.c.l.b16 %v4085
    %v4134 = vunpack.c.l.b16 %v4086
    %v4135 = vunpack.c.l.b16 %v4087
    %v4136 = vunpack.c.l.b16 %v4088
    %v4137 = vunpack.c.l.b16 %v4089
    %v4138 = vunpack.c.l.b16 %v4090
    %v4139 = vunpack.c.l.b16 %v4091
    %v4140 = vunpack.c.l.b16 %v4092
    %v4141 = vunpack.c.l.b16 %v4093
    %v4142 = vunpack.c.l.b16 %v4094
    %v4143 = vunpack.c.l.b16 %v4095
    %v4144 = vunpack.c.l.b16 %v4096
    %v4145 = vunpack.c.l.b16 %v4097
    %v4146 = vunpack.c.l.b16 %v4098
    %v4147 = vunpack.c.l.b16 %v4099
    %v4148 = vunpack.c.l.b16 %v4100
    %v4149 = vunpack.c.l.b16 %v4101
    %v4150 = vunpack.c.l.b16 %v4102
    %v4151 = vunpack.c.l.b16 %v4103
    %v4152 = vunpack.c.l.b16 %v4104
    %v4153 = vunpack.c.l.b16 %v4105
    %v4154 = vunpack.c.l.b16 %v4106
    %v4155 = vunpack.c.l.b16 %v4107
    %s4156 = scalar_lea.vmem [#allocation3], 640
    %v4157 = vld [vmem:[%s4156] sm:$0xf]
    %v4158 = vld [vmem:[%s4156 + $0x4] sm:$0xf]
    %v4159 = vld [vmem:[%s4156 + $0x8] sm:$0xf]
    %v4160 = vld [vmem:[%s4156 + $0xc] sm:$0xf]
    %v4161 = vld [vmem:[%s4156 + $0x10] sm:$0xf]
    %v4162 = vld [vmem:[%s4156 + $0x14] sm:$0xf]
    %v4163 = vld [vmem:[%s4156 + $0x18] sm:$0xf]
    %v4164 = vld [vmem:[%s4156 + $0x1c] sm:$0xf]
    %v4165 = vld [vmem:[%s4156 + $0x20] sm:$0xf]
    %v4166 = vld [vmem:[%s4156 + $0x24] sm:$0xf]
    %v4167 = vld [vmem:[%s4156 + $0x28] sm:$0xf]
    %v4168 = vld [vmem:[%s4156 + $0x2c] sm:$0xf]
    %v4169 = vld [vmem:[%s4156 + $0x30] sm:$0xf]
    %v4170 = vld [vmem:[%s4156 + $0x34] sm:$0xf]
    %v4171 = vld [vmem:[%s4156 + $0x38] sm:$0xf]
    %v4172 = vld [vmem:[%s4156 + $0x3c] sm:$0xf]
    %v4173 = vld [vmem:[%s4156 + $0x40] sm:$0xf]
    %v4174 = vld [vmem:[%s4156 + $0x44] sm:$0xf]
    %v4175 = vld [vmem:[%s4156 + $0x48] sm:$0xf]
    %v4176 = vld [vmem:[%s4156 + $0x4c] sm:$0xf]
    %v4177 = vld [vmem:[%s4156 + $0x50] sm:$0xf]
    %v4178 = vld [vmem:[%s4156 + $0x54] sm:$0xf]
    %v4179 = vld [vmem:[%s4156 + $0x58] sm:$0xf]
    %v4180 = vld [vmem:[%s4156 + $0x5c] sm:$0xf]
    %v4181 = vld [vmem:[%s4156 + $0x60] sm:$0xf]
    %v4182 = vld [vmem:[%s4156 + $0x64] sm:$0xf]
    %v4183 = vld [vmem:[%s4156 + $0x68] sm:$0xf]
    %v4184 = vld [vmem:[%s4156 + $0x6c] sm:$0xf]
    %v4185 = vld [vmem:[%s4156 + $0x70] sm:$0xf]
    %v4186 = vld [vmem:[%s4156 + $0x74] sm:$0xf]
    %v4187 = vld [vmem:[%s4156 + $0x78] sm:$0xf]
    %v4188 = vld [vmem:[%s4156 + $0x7c] sm:$0xf]
    %v4189 = vld [vmem:[%s4156 + $0x80] sm:$0xf]
    %v4190 = vld [vmem:[%s4156 + $0x84] sm:$0xf]
    %v4191 = vld [vmem:[%s4156 + $0x88] sm:$0xf]
    %v4192 = vld [vmem:[%s4156 + $0x8c] sm:$0xf]
    %v4193 = vld [vmem:[%s4156 + $0x90] sm:$0xf]
    %v4194 = vld [vmem:[%s4156 + $0x94] sm:$0xf]
    %v4195 = vld [vmem:[%s4156 + $0x98] sm:$0xf]
    %v4196 = vld [vmem:[%s4156 + $0x9c] sm:$0xf]
    %v4197 = vld [vmem:[%s4156 + $0xa0] sm:$0xf]
    %v4198 = vld [vmem:[%s4156 + $0xa4] sm:$0xf]
    %v4199 = vld [vmem:[%s4156 + $0xa8] sm:$0xf]
    %v4200 = vld [vmem:[%s4156 + $0xac] sm:$0xf]
    %v4201 = vld [vmem:[%s4156 + $0xb0] sm:$0xf]
    %v4202 = vld [vmem:[%s4156 + $0xb4] sm:$0xf]
    %v4203 = vld [vmem:[%s4156 + $0xb8] sm:$0xf]
    %v4204 = vld [vmem:[%s4156 + $0xbc] sm:$0xf]
    %v4205 = vld [vmem:[%s4156 + $0xc0] sm:$0xf]
    %v4206 = vld [vmem:[%s4156 + $0xc4] sm:$0xf]
    %v4207 = vld [vmem:[%s4156 + $0xc8] sm:$0xf]
    %v4208 = vld [vmem:[%s4156 + $0xcc] sm:$0xf]
    %v4209 = vld [vmem:[%s4156 + $0xd0] sm:$0xf]
    %v4210 = vld [vmem:[%s4156 + $0xd4] sm:$0xf]
    %v4211 = vld [vmem:[%s4156 + $0xd8] sm:$0xf]
    %v4212 = vld [vmem:[%s4156 + $0xdc] sm:$0xf]
    %v4213 = vld [vmem:[%s4156 + $0xe0] sm:$0xf]
    %v4214 = vld [vmem:[%s4156 + $0xe4] sm:$0xf]
    %v4215 = vld [vmem:[%s4156 + $0xe8] sm:$0xf]
    %v4216 = vld [vmem:[%s4156 + $0xec] sm:$0xf]
    %v4217 = vld [vmem:[%s4156 + $0xf0] sm:$0xf]
    %v4218 = vld [vmem:[%s4156 + $0xf4] sm:$0xf]
    %v4219 = vld [vmem:[%s4156 + $0xf8] sm:$0xf]
    %v4220 = vld [vmem:[%s4156 + $0xfc] sm:$0xf]
    %v4221 = vld [vmem:[%s4156 + $0x100] sm:$0xf]
    %v4222 = vld [vmem:[%s4156 + $0x104] sm:$0xf]
    %v4223 = vld [vmem:[%s4156 + $0x108] sm:$0xf]
    %v4224 = vld [vmem:[%s4156 + $0x10c] sm:$0xf]
    %v4225 = vld [vmem:[%s4156 + $0x110] sm:$0xf]
    %v4226 = vld [vmem:[%s4156 + $0x114] sm:$0xf]
    %v4227 = vld [vmem:[%s4156 + $0x118] sm:$0xf]
    %v4228 = vld [vmem:[%s4156 + $0x11c] sm:$0xf]
    %v4229 = vld [vmem:[%s4156 + $0x120] sm:$0xf]
    %v4230 = vld [vmem:[%s4156 + $0x124] sm:$0xf]
    %v4231 = vld [vmem:[%s4156 + $0x128] sm:$0xf]
    %v4232 = vld [vmem:[%s4156 + $0x12c] sm:$0xf]
    %v4233 = vld [vmem:[%s4156 + $0x130] sm:$0xf]
    %v4234 = vld [vmem:[%s4156 + $0x134] sm:$0xf]
    %v4235 = vld [vmem:[%s4156 + $0x138] sm:$0xf]
    %v4236 = vld [vmem:[%s4156 + $0x13c] sm:$0xf]
    %v4237 = vpack.c.b16 %v4133, %v4132
    %v4238 = vpack.c.b16 %v4134, %v4133
    %v4239 = vpack.c.b16 %v4135, %v4134
    %v4240 = vpack.c.b16 %v4136, %v4135
    %v4241 = vpack.c.b16 %v4137, %v4136
    %v4242 = vpack.c.b16 %v4138, %v4137
    %v4243 = vpack.c.b16 %v4139, %v4138
    %v4244 = vpack.c.b16 %v4140, %v4139
    %v4245 = vpack.c.b16 %v4141, %v4140
    %v4246 = vpack.c.b16 %v4142, %v4141
    %v4247 = vpack.c.b16 %v4143, %v4142
    %v4248 = vpack.c.b16 %v4145, %v4144
    %v4249 = vpack.c.b16 %v4146, %v4145
    %v4250 = vpack.c.b16 %v4147, %v4146
    %v4251 = vpack.c.b16 %v4148, %v4147
    %v4252 = vpack.c.b16 %v4149, %v4148
    %v4253 = vpack.c.b16 %v4150, %v4149
    %v4254 = vpack.c.b16 %v4151, %v4150
    %v4255 = vpack.c.b16 %v4152, %v4151
    %v4256 = vpack.c.b16 %v4153, %v4152
    %v4257 = vpack.c.b16 %v4154, %v4153
    %v4258 = vpack.c.b16 %v4155, %v4154
    %v4361 = vunpack.c.l.b16 %v4157
    %v4362 = vunpack.c.l.b16 %v4158
    %v4363 = vunpack.c.l.b16 %v4159
    %v4364 = vunpack.c.l.b16 %v4160
    %v4365 = vunpack.c.l.b16 %v4161
    %v4366 = vunpack.c.l.b16 %v4162
    %v4367 = vunpack.c.l.b16 %v4163
    %v4368 = vunpack.c.l.b16 %v4164
    %v4369 = vunpack.c.l.b16 %v4165
    %v4370 = vunpack.c.l.b16 %v4166
    %v4371 = vunpack.c.l.b16 %v4167
    %v4372 = vunpack.c.l.b16 %v4168
    %v4373 = vunpack.c.l.b16 %v4169
    %v4374 = vunpack.c.l.b16 %v4170
    %v4375 = vunpack.c.l.b16 %v4171
    %v4376 = vunpack.c.l.b16 %v4172
    %v4377 = vunpack.c.l.b16 %v4173
    %v4378 = vunpack.c.l.b16 %v4174
    %v4379 = vunpack.c.l.b16 %v4175
    %v4380 = vunpack.c.l.b16 %v4176
    %v4381 = vunpack.c.l.b16 %v4177
    %v4382 = vunpack.c.l.b16 %v4178
    %v4383 = vunpack.c.l.b16 %v4179
    %v4384 = vunpack.c.l.b16 %v4180
    %v4385 = vunpack.c.l.b16 %v4181
    %v4386 = vunpack.c.l.b16 %v4182
    %v4387 = vunpack.c.l.b16 %v4183
    %v4388 = vunpack.c.l.b16 %v4184
    %v4389 = vunpack.c.l.b16 %v4185
    %v4390 = vunpack.c.l.b16 %v4186
    %v4391 = vunpack.c.l.b16 %v4187
    %v4392 = vunpack.c.l.b16 %v4188
    %v4393 = vunpack.c.l.b16 %v4189
    %v4394 = vunpack.c.l.b16 %v4190
    %v4395 = vunpack.c.l.b16 %v4191
    %v4396 = vunpack.c.l.b16 %v4192
    %v4397 = vunpack.c.l.b16 %v4193
    %v4398 = vunpack.c.l.b16 %v4194
    %v4399 = vunpack.c.l.b16 %v4195
    %v4400 = vunpack.c.l.b16 %v4196
    %v4401 = vunpack.c.l.b16 %v4197
    %v4402 = vunpack.c.l.b16 %v4198
    %v4403 = vunpack.c.l.b16 %v4199
    %v4404 = vunpack.c.l.b16 %v4200
    %v4405 = vunpack.c.l.b16 %v4201
    %v4406 = vunpack.c.l.b16 %v4202
    %v4407 = vunpack.c.l.b16 %v4203
    %v4408 = vunpack.c.l.b16 %v4204
    %v4409 = vunpack.c.l.b16 %v4205
    %v4410 = vunpack.c.l.b16 %v4206
    %v4411 = vunpack.c.l.b16 %v4207
    %v4412 = vunpack.c.l.b16 %v4208
    %v4413 = vunpack.c.l.b16 %v4209
    %v4414 = vunpack.c.l.b16 %v4210
    %v4415 = vunpack.c.l.b16 %v4211
    %v4416 = vunpack.c.l.b16 %v4212
    %v4417 = vunpack.c.l.b16 %v4213
    %v4418 = vunpack.c.l.b16 %v4214
    %v4419 = vunpack.c.l.b16 %v4215
    %v4420 = vunpack.c.l.b16 %v4216
    %v4421 = vunpack.c.l.b16 %v4217
    %v4422 = vunpack.c.l.b16 %v4218
    %v4423 = vunpack.c.l.b16 %v4219
    %v4424 = vunpack.c.l.b16 %v4220
    %v4425 = vunpack.c.l.b16 %v4221
    %v4426 = vunpack.c.l.b16 %v4222
    %v4427 = vunpack.c.l.b16 %v4223
    %v4428 = vunpack.c.l.b16 %v4224
    %v4429 = vunpack.c.l.b16 %v4225
    %v4430 = vunpack.c.l.b16 %v4226
    %v4431 = vunpack.c.l.b16 %v4227
    %v4432 = vunpack.c.l.b16 %v4228
    %v4433 = vunpack.c.l.b16 %v4229
    %v4434 = vunpack.c.l.b16 %v4230
    %v4435 = vunpack.c.l.b16 %v4231
    %v4436 = vunpack.c.l.b16 %v4232
    %v4437 = vunpack.c.l.b16 %v4233
    %v4438 = vunpack.c.l.b16 %v4234
    %v4439 = vunpack.c.l.b16 %v4235
    %v4440 = vunpack.c.l.b16 %v4236
    %v4441 = vpack.c.b16 %v4362, %v4361
    %v4442 = vpack.c.b16 %v4364, %v4363
    %v4443 = vpack.c.b16 %v4366, %v4365
    %v4444 = vpack.c.b16 %v4368, %v4367
    %v4445 = vpack.c.b16 %v4370, %v4369
    %v4446 = vpack.c.b16 %v4372, %v4371
    %v4447 = vpack.c.b16 %v4374, %v4373
    %v4448 = vpack.c.b16 %v4376, %v4375
    %v4449 = vpack.c.b16 %v4378, %v4377
    %v4450 = vpack.c.b16 %v4380, %v4379
    %v4451 = vpack.c.b16 %v4382, %v4381
    %v4452 = vpack.c.b16 %v4384, %v4383
    %v4453 = vpack.c.b16 %v4386, %v4385
    %v4454 = vpack.c.b16 %v4388, %v4387
    %v4455 = vpack.c.b16 %v4390, %v4389
    %v4456 = vpack.c.b16 %v4392, %v4391
    %v4457 = vpack.c.b16 %v4394, %v4393
    %v4458 = vpack.c.b16 %v4396, %v4395
    %v4459 = vpack.c.b16 %v4398, %v4397
    %v4460 = vpack.c.b16 %v4400, %v4399
    %v4461 = vpack.c.b16 %v4402, %v4401
    %v4462 = vpack.c.b16 %v4404, %v4403
    %v4463 = vpack.c.b16 %v4406, %v4405
    %v4464 = vpack.c.b16 %v4408, %v4407
    %v4465 = vpack.c.b16 %v4410, %v4409
    %v4466 = vpack.c.b16 %v4412, %v4411
    %v4467 = vpack.c.b16 %v4414, %v4413
    %v4468 = vpack.c.b16 %v4416, %v4415
    %v4469 = vpack.c.b16 %v4418, %v4417
    %v4470 = vpack.c.b16 %v4420, %v4419
    %v4471 = vpack.c.b16 %v4422, %v4421
    %v4472 = vpack.c.b16 %v4424, %v4423
    %v4473 = vpack.c.b16 %v4426, %v4425
    %v4474 = vpack.c.b16 %v4428, %v4427
    %v4475 = vpack.c.b16 %v4430, %v4429
    %v4476 = vpack.c.b16 %v4432, %v4431
    %v4477 = vpack.c.b16 %v4434, %v4433
    %v4478 = vpack.c.b16 %v4436, %v4435
    %v4479 = vpack.c.b16 %v4438, %v4437
    %v4480 = vpack.c.b16 %v4440, %v4439
    %4521 = vmatpush.bf16.msra.mxu0 %v4448
    %4522 = vmatpush.bf16.msra.mxu0 %v4447
    %4523 = vmatpush.bf16.msra.mxu0 %v4446
    %4524 = vmatpush.bf16.msra.mxu0 %v4445
    %4525 = vmatpush.bf16.msra.mxu0 %v4444
    %4526 = vmatpush.bf16.msra.mxu0 %v4443
    %4527 = vmatpush.bf16.msra.mxu0 %v4442
    %4528 = vmatpush.bf16.msra.mxu0 %v4441
    %4529 = vmatmul.bf16.gmra.mxu0 %v4237
    %v4530 = vpop.f32.mrf.mxu0
    %v4531 = vadd.f32 0.0, %v4530
    %v4532 = vpop.f32.mrf.mxu0
    %v4533 = vadd.f32 0.0, %v4532
    %4534 = vmatmul.bf16.gmra.mxu0 %v4239
    %v4535 = vpop.f32.mrf.mxu0
    %v4536 = vadd.f32 0.0, %v4535
    %v4537 = vpop.f32.mrf.mxu0
    %v4538 = vadd.f32 0.0, %v4537
    %4539 = vmatmul.bf16.gmra.mxu0 %v4241
    %v4540 = vpop.f32.mrf.mxu0
    %v4541 = vadd.f32 0.0, %v4540
    %v4542 = vpop.f32.mrf.mxu0
    %v4543 = vadd.f32 0.0, %v4542
    %4544 = vmatmul.bf16.gmra.mxu0 %v4243
    %v4545 = vpop.f32.mrf.mxu0
    %v4546 = vadd.f32 0.0, %v4545
    %v4547 = vpop.f32.mrf.mxu0
    %v4548 = vadd.f32 0.0, %v4547
    %4549 = vmatmul.bf16.gmra.mxu0 %v4248
    %v4550 = vpop.f32.mrf.mxu0
    %v4551 = vadd.f32 0.0, %v4550
    %v4552 = vpop.f32.mrf.mxu0
    %v4553 = vadd.f32 0.0, %v4552
    %4554 = vmatmul.bf16.gmra.mxu0 %v4250
    %v4555 = vpop.f32.mrf.mxu0
    %v4556 = vadd.f32 0.0, %v4555
    %v4557 = vpop.f32.mrf.mxu0
    %v4558 = vadd.f32 0.0, %v4557
    %4559 = vmatmul.bf16.gmra.mxu0 %v4252
    %v4560 = vpop.f32.mrf.mxu0
    %v4561 = vadd.f32 0.0, %v4560
    %v4562 = vpop.f32.mrf.mxu0
    %v4563 = vadd.f32 0.0, %v4562
    %4564 = vmatmul.bf16.gmra.mxu0 %v4254
    %v4565 = vpop.f32.mrf.mxu0
    %v4566 = vadd.f32 0.0, %v4565
    %v4567 = vpop.f32.mrf.mxu0
    %v4568 = vadd.f32 0.0, %v4567
    %4569 = vdwg.mxu0
    %4570 = vmatpush.bf16.msra.mxu0 %v4456
    %4571 = vmatpush.bf16.msra.mxu0 %v4455
    %4572 = vmatpush.bf16.msra.mxu0 %v4454
    %4573 = vmatpush.bf16.msra.mxu0 %v4453
    %4574 = vmatpush.bf16.msra.mxu0 %v4452
    %4575 = vmatpush.bf16.msra.mxu0 %v4451
    %4576 = vmatpush.bf16.msra.mxu0 %v4450
    %4577 = vmatpush.bf16.msra.mxu0 %v4449
    %4578 = vmatmul.bf16.gmra.mxu0 %v4238
    %v4579 = vpop.f32.mrf.mxu0
    %v4580 = vadd.f32 %v4531, %v4579
    %v4581 = vpop.f32.mrf.mxu0
    %v4582 = vadd.f32 %v4533, %v4581
    %4583 = vmatmul.bf16.gmra.mxu0 %v4240
    %v4584 = vpop.f32.mrf.mxu0
    %v4585 = vadd.f32 %v4536, %v4584
    %v4586 = vpop.f32.mrf.mxu0
    %v4587 = vadd.f32 %v4538, %v4586
    %4588 = vmatmul.bf16.gmra.mxu0 %v4242
    %v4589 = vpop.f32.mrf.mxu0
    %v4590 = vadd.f32 %v4541, %v4589
    %v4591 = vpop.f32.mrf.mxu0
    %v4592 = vadd.f32 %v4543, %v4591
    %4593 = vmatmul.bf16.gmra.mxu0 %v4244
    %v4594 = vpop.f32.mrf.mxu0
    %v4595 = vadd.f32 %v4546, %v4594
    %v4596 = vpop.f32.mrf.mxu0
    %v4597 = vadd.f32 %v4548, %v4596
    %4598 = vmatmul.bf16.gmra.mxu0 %v4249
    %v4599 = vpop.f32.mrf.mxu0
    %v4600 = vadd.f32 %v4551, %v4599
    %v4601 = vpop.f32.mrf.mxu0
    %v4602 = vadd.f32 %v4553, %v4601
    %4603 = vmatmul.bf16.gmra.mxu0 %v4251
    %v4604 = vpop.f32.mrf.mxu0
    %v4605 = vadd.f32 %v4556, %v4604
    %v4606 = vpop.f32.mrf.mxu0
    %v4607 = vadd.f32 %v4558, %v4606
    %4608 = vmatmul.bf16.gmra.mxu0 %v4253
    %v4609 = vpop.f32.mrf.mxu0
    %v4610 = vadd.f32 %v4561, %v4609
    %v4611 = vpop.f32.mrf.mxu0
    %v4612 = vadd.f32 %v4563, %v4611
    %4613 = vmatmul.bf16.gmra.mxu0 %v4255
    %v4614 = vpop.f32.mrf.mxu0
    %v4615 = vadd.f32 %v4566, %v4614
    %v4616 = vpop.f32.mrf.mxu0
    %v4617 = vadd.f32 %v4568, %v4616
    %4618 = vdwg.mxu0
    %4619 = vmatpush.bf16.msra.mxu0 %v4464
    %4620 = vmatpush.bf16.msra.mxu0 %v4463
    %4621 = vmatpush.bf16.msra.mxu0 %v4462
    %4622 = vmatpush.bf16.msra.mxu0 %v4461
    %4623 = vmatpush.bf16.msra.mxu0 %v4460
    %4624 = vmatpush.bf16.msra.mxu0 %v4459
    %4625 = vmatpush.bf16.msra.mxu0 %v4458
    %4626 = vmatpush.bf16.msra.mxu0 %v4457
    %4627 = vmatmul.bf16.gmra.mxu0 %v4239
    %v4628 = vpop.f32.mrf.mxu0
    %v4629 = vadd.f32 %v4580, %v4628
    %v4630 = vpop.f32.mrf.mxu0
    %v4631 = vadd.f32 %v4582, %v4630
    %4632 = vmatmul.bf16.gmra.mxu0 %v4241
    %v4633 = vpop.f32.mrf.mxu0
    %v4634 = vadd.f32 %v4585, %v4633
    %v4635 = vpop.f32.mrf.mxu0
    %v4636 = vadd.f32 %v4587, %v4635
    %4637 = vmatmul.bf16.gmra.mxu0 %v4243
    %v4638 = vpop.f32.mrf.mxu0
    %v4639 = vadd.f32 %v4590, %v4638
    %v4640 = vpop.f32.mrf.mxu0
    %v4641 = vadd.f32 %v4592, %v4640
    %4642 = vmatmul.bf16.gmra.mxu0 %v4245
    %v4643 = vpop.f32.mrf.mxu0
    %v4644 = vadd.f32 %v4595, %v4643
    %v4645 = vpop.f32.mrf.mxu0
    %v4646 = vadd.f32 %v4597, %v4645
    %4647 = vmatmul.bf16.gmra.mxu0 %v4250
    %v4648 = vpop.f32.mrf.mxu0
    %v4649 = vadd.f32 %v4600, %v4648
    %v4650 = vpop.f32.mrf.mxu0
    %v4651 = vadd.f32 %v4602, %v4650
    %4652 = vmatmul.bf16.gmra.mxu0 %v4252
    %v4653 = vpop.f32.mrf.mxu0
    %v4654 = vadd.f32 %v4605, %v4653
    %v4655 = vpop.f32.mrf.mxu0
    %v4656 = vadd.f32 %v4607, %v4655
    %4657 = vmatmul.bf16.gmra.mxu0 %v4254
    %v4658 = vpop.f32.mrf.mxu0
    %v4659 = vadd.f32 %v4610, %v4658
    %v4660 = vpop.f32.mrf.mxu0
    %v4661 = vadd.f32 %v4612, %v4660
    %4662 = vmatmul.bf16.gmra.mxu0 %v4256
    %v4663 = vpop.f32.mrf.mxu0
    %v4664 = vadd.f32 %v4615, %v4663
    %v4665 = vpop.f32.mrf.mxu0
    %v4666 = vadd.f32 %v4617, %v4665
    %4667 = vdwg.mxu0
    %4668 = vmatpush.bf16.msra.mxu0 %v4472
    %4669 = vmatpush.bf16.msra.mxu0 %v4471
    %4670 = vmatpush.bf16.msra.mxu0 %v4470
    %4671 = vmatpush.bf16.msra.mxu0 %v4469
    %4672 = vmatpush.bf16.msra.mxu0 %v4468
    %4673 = vmatpush.bf16.msra.mxu0 %v4467
    %4674 = vmatpush.bf16.msra.mxu0 %v4466
    %4675 = vmatpush.bf16.msra.mxu0 %v4465
    %4676 = vmatmul.bf16.gmra.mxu0 %v4240
    %v4677 = vpop.f32.mrf.mxu0
    %v4678 = vadd.f32 %v4629, %v4677
    %v4679 = vpop.f32.mrf.mxu0
    %v4680 = vadd.f32 %v4631, %v4679
    %4681 = vmatmul.bf16.gmra.mxu0 %v4242
    %v4682 = vpop.f32.mrf.mxu0
    %v4683 = vadd.f32 %v4634, %v4682
    %v4684 = vpop.f32.mrf.mxu0
    %v4685 = vadd.f32 %v4636, %v4684
    %4686 = vmatmul.bf16.gmra.mxu0 %v4244
    %v4687 = vpop.f32.mrf.mxu0
    %v4688 = vadd.f32 %v4639, %v4687
    %v4689 = vpop.f32.mrf.mxu0
    %v4690 = vadd.f32 %v4641, %v4689
    %4691 = vmatmul.bf16.gmra.mxu0 %v4246
    %v4692 = vpop.f32.mrf.mxu0
    %v4693 = vadd.f32 %v4644, %v4692
    %v4694 = vpop.f32.mrf.mxu0
    %v4695 = vadd.f32 %v4646, %v4694
    %4696 = vmatmul.bf16.gmra.mxu0 %v4251
    %v4697 = vpop.f32.mrf.mxu0
    %v4698 = vadd.f32 %v4649, %v4697
    %v4699 = vpop.f32.mrf.mxu0
    %v4700 = vadd.f32 %v4651, %v4699
    %4701 = vmatmul.bf16.gmra.mxu0 %v4253
    %v4702 = vpop.f32.mrf.mxu0
    %v4703 = vadd.f32 %v4654, %v4702
    %v4704 = vpop.f32.mrf.mxu0
    %v4705 = vadd.f32 %v4656, %v4704
    %4706 = vmatmul.bf16.gmra.mxu0 %v4255
    %v4707 = vpop.f32.mrf.mxu0
    %v4708 = vadd.f32 %v4659, %v4707
    %v4709 = vpop.f32.mrf.mxu0
    %v4710 = vadd.f32 %v4661, %v4709
    %4711 = vmatmul.bf16.gmra.mxu0 %v4257
    %v4712 = vpop.f32.mrf.mxu0
    %v4713 = vadd.f32 %v4664, %v4712
    %v4714 = vpop.f32.mrf.mxu0
    %v4715 = vadd.f32 %v4666, %v4714
    %4716 = vdwg.mxu0
    %4717 = vmatpush.bf16.msra.mxu0 %v4480
    %4718 = vmatpush.bf16.msra.mxu0 %v4479
    %4719 = vmatpush.bf16.msra.mxu0 %v4478
    %4720 = vmatpush.bf16.msra.mxu0 %v4477
    %4721 = vmatpush.bf16.msra.mxu0 %v4476
    %4722 = vmatpush.bf16.msra.mxu0 %v4475
    %4723 = vmatpush.bf16.msra.mxu0 %v4474
    %4724 = vmatpush.bf16.msra.mxu0 %v4473
    %4725 = vmatmul.bf16.gmra.mxu0 %v4241
    %v4726 = vpop.f32.mrf.mxu0
    %v4727 = vadd.f32 %v4678, %v4726
    %v4728 = vpop.f32.mrf.mxu0
    %v4729 = vadd.f32 %v4680, %v4728
    %4730 = vmatmul.bf16.gmra.mxu0 %v4243
    %v4731 = vpop.f32.mrf.mxu0
    %v4732 = vadd.f32 %v4683, %v4731
    %v4733 = vpop.f32.mrf.mxu0
    %v4734 = vadd.f32 %v4685, %v4733
    %4735 = vmatmul.bf16.gmra.mxu0 %v4245
    %v4736 = vpop.f32.mrf.mxu0
    %v4737 = vadd.f32 %v4688, %v4736
    %v4738 = vpop.f32.mrf.mxu0
    %v4739 = vadd.f32 %v4690, %v4738
    %4740 = vmatmul.bf16.gmra.mxu0 %v4247
    %v4741 = vpop.f32.mrf.mxu0
    %v4742 = vadd.f32 %v4693, %v4741
    %v4743 = vpop.f32.mrf.mxu0
    %v4744 = vadd.f32 %v4695, %v4743
    %4745 = vmatmul.bf16.gmra.mxu0 %v4252
    %v4746 = vpop.f32.mrf.mxu0
    %v4747 = vadd.f32 %v4698, %v4746
    %v4748 = vpop.f32.mrf.mxu0
    %v4749 = vadd.f32 %v4700, %v4748
    %4750 = vmatmul.bf16.gmra.mxu0 %v4254
    %v4751 = vpop.f32.mrf.mxu0
    %v4752 = vadd.f32 %v4703, %v4751
    %v4753 = vpop.f32.mrf.mxu0
    %v4754 = vadd.f32 %v4705, %v4753
    %4755 = vmatmul.bf16.gmra.mxu0 %v4256
    %v4756 = vpop.f32.mrf.mxu0
    %v4757 = vadd.f32 %v4708, %v4756
    %v4758 = vpop.f32.mrf.mxu0
    %v4759 = vadd.f32 %v4710, %v4758
    %4760 = vmatmul.bf16.gmra.mxu0 %v4258
    %v4761 = vpop.f32.mrf.mxu0
    %v4762 = vadd.f32 %v4713, %v4761
    %v4763 = vpop.f32.mrf.mxu0
    %v4764 = vadd.f32 %v4715, %v4763
    %4765 = vdwg.mxu0
    %v4766 = vadd.f32 %v4021, %v4727
    %v4767 = vadd.f32 %v4023, %v4729
    %v4768 = vadd.f32 %v4026, %v4732
    %v4769 = vadd.f32 %v4028, %v4734
    %v4770 = vadd.f32 %v4031, %v4737
    %v4771 = vadd.f32 %v4033, %v4739
    %v4772 = vadd.f32 %v4036, %v4742
    %v4773 = vadd.f32 %v4038, %v4744
    %v4774 = vadd.f32 %v4041, %v4747
    %v4775 = vadd.f32 %v4043, %v4749
    %v4776 = vadd.f32 %v4046, %v4752
    %v4777 = vadd.f32 %v4048, %v4754
    %v4778 = vadd.f32 %v4051, %v4757
    %v4779 = vadd.f32 %v4053, %v4759
    %v4780 = vadd.f32 %v4056, %v4762
    %v4781 = vadd.f32 %v4058, %v4764
    %v4782 = vld [vmem:[#allocation2 + $0x3] sm:$0xff]
    %v4783 = vld [vmem:[#allocation2 + $0x13] sm:$0xff]
    %v4784 = vld [vmem:[#allocation2 + $0x23] sm:$0xff]
    %v4785 = vld [vmem:[#allocation2 + $0x33] sm:$0xff]
    %v4786 = vld [vmem:[#allocation2 + $0x43] sm:$0xff]
    %v4787 = vld [vmem:[#allocation2 + $0x53] sm:$0xff]
    %v4788 = vld [vmem:[#allocation2 + $0x63] sm:$0xff]
    %v4789 = vld [vmem:[#allocation2 + $0x73] sm:$0xff]
    %v4790 = vld [vmem:[#allocation2 + $0x83] sm:$0xff]
    %v4791 = vld [vmem:[#allocation2 + $0x93] sm:$0xff]
    %v4792 = vld [vmem:[#allocation2 + $0xa3] sm:$0xff]
    %v4793 = vld [vmem:[#allocation2 + $0xb3] sm:$0xff]
    %v4794 = vld [vmem:[#allocation2 + $0xc3] sm:$0xff]
    %v4795 = vld [vmem:[#allocation2 + $0xd3] sm:$0xff]
    %v4796 = vld [vmem:[#allocation2 + $0xe3] sm:$0xff]
    %v4797 = vld [vmem:[#allocation2 + $0xf3] sm:$0xff]
    %v4798 = vld [vmem:[#allocation2 + $0x103] sm:$0xff]
    %v4799 = vld [vmem:[#allocation2 + $0x113] sm:$0xff]
    %v4800 = vld [vmem:[#allocation2 + $0x123] sm:$0xff]
    %v4801 = vld [vmem:[#allocation2 + $0x133] sm:$0xff]
    %v4802 = vld [vmem:[#allocation2 + $0x143] sm:$0xff]
    %v4803 = vld [vmem:[#allocation2 + $0x153] sm:$0xff]
    %v4804 = vld [vmem:[#allocation2 + $0x163] sm:$0xff]
    %v4805 = vld [vmem:[#allocation2 + $0x173] sm:$0xff]
    %v4806 = vpack.c.bf16 %v4782, %v4782
    %v4807 = vpack.c.bf16 %v4783, %v4783
    %v4808 = vpack.c.bf16 %v4784, %v4784
    %v4809 = vpack.c.bf16 %v4785, %v4785
    %v4810 = vpack.c.bf16 %v4786, %v4786
    %v4811 = vpack.c.bf16 %v4787, %v4787
    %v4812 = vpack.c.bf16 %v4788, %v4788
    %v4813 = vpack.c.bf16 %v4789, %v4789
    %v4814 = vpack.c.bf16 %v4790, %v4790
    %v4815 = vpack.c.bf16 %v4791, %v4791
    %v4816 = vpack.c.bf16 %v4792, %v4792
    %v4817 = vpack.c.bf16 %v4793, %v4793
    %v4818 = vpack.c.bf16 %v4794, %v4794
    %v4819 = vpack.c.bf16 %v4795, %v4795
    %v4820 = vpack.c.bf16 %v4796, %v4796
    %v4821 = vpack.c.bf16 %v4797, %v4797
    %v4822 = vpack.c.bf16 %v4798, %v4798
    %v4823 = vpack.c.bf16 %v4799, %v4799
    %v4824 = vpack.c.bf16 %v4800, %v4800
    %v4825 = vpack.c.bf16 %v4801, %v4801
    %v4826 = vpack.c.bf16 %v4802, %v4802
    %v4827 = vpack.c.bf16 %v4803, %v4803
    %v4828 = vpack.c.bf16 %v4804, %v4804
    %v4829 = vpack.c.bf16 %v4805, %v4805
    %v4854 = vunpack.c.l.b16 %v4806
    %v4855 = vunpack.c.l.b16 %v4807
    %v4856 = vunpack.c.l.b16 %v4808
    %v4857 = vunpack.c.l.b16 %v4809
    %v4858 = vunpack.c.l.b16 %v4810
    %v4859 = vunpack.c.l.b16 %v4811
    %v4860 = vunpack.c.l.b16 %v4812
    %v4861 = vunpack.c.l.b16 %v4813
    %v4862 = vunpack.c.l.b16 %v4814
    %v4863 = vunpack.c.l.b16 %v4815
    %v4864 = vunpack.c.l.b16 %v4816
    %v4865 = vunpack.c.l.b16 %v4817
    %v4866 = vunpack.c.l.b16 %v4818
    %v4867 = vunpack.c.l.b16 %v4819
    %v4868 = vunpack.c.l.b16 %v4820
    %v4869 = vunpack.c.l.b16 %v4821
    %v4870 = vunpack.c.l.b16 %v4822
    %v4871 = vunpack.c.l.b16 %v4823
    %v4872 = vunpack.c.l.b16 %v4824
    %v4873 = vunpack.c.l.b16 %v4825
    %v4874 = vunpack.c.l.b16 %v4826
    %v4875 = vunpack.c.l.b16 %v4827
    %v4876 = vunpack.c.l.b16 %v4828
    %v4877 = vunpack.c.l.b16 %v4829
    %s4878 = scalar_lea.vmem [#allocation3], 960
    %v4879 = vld [vmem:[%s4878] sm:$0xf]
    %v4880 = vld [vmem:[%s4878 + $0x4] sm:$0xf]
    %v4881 = vld [vmem:[%s4878 + $0x8] sm:$0xf]
    %v4882 = vld [vmem:[%s4878 + $0xc] sm:$0xf]
    %v4883 = vld [vmem:[%s4878 + $0x10] sm:$0xf]
    %v4884 = vld [vmem:[%s4878 + $0x14] sm:$0xf]
    %v4885 = vld [vmem:[%s4878 + $0x18] sm:$0xf]
    %v4886 = vld [vmem:[%s4878 + $0x1c] sm:$0xf]
    %v4887 = vld [vmem:[%s4878 + $0x20] sm:$0xf]
    %v4888 = vld [vmem:[%s4878 + $0x24] sm:$0xf]
    %v4889 = vld [vmem:[%s4878 + $0x28] sm:$0xf]
    %v4890 = vld [vmem:[%s4878 + $0x2c] sm:$0xf]
    %v4891 = vld [vmem:[%s4878 + $0x30] sm:$0xf]
    %v4892 = vld [vmem:[%s4878 + $0x34] sm:$0xf]
    %v4893 = vld [vmem:[%s4878 + $0x38] sm:$0xf]
    %v4894 = vld [vmem:[%s4878 + $0x3c] sm:$0xf]
    %v4895 = vld [vmem:[%s4878 + $0x40] sm:$0xf]
    %v4896 = vld [vmem:[%s4878 + $0x44] sm:$0xf]
    %v4897 = vld [vmem:[%s4878 + $0x48] sm:$0xf]
    %v4898 = vld [vmem:[%s4878 + $0x4c] sm:$0xf]
    %v4899 = vld [vmem:[%s4878 + $0x50] sm:$0xf]
    %v4900 = vld [vmem:[%s4878 + $0x54] sm:$0xf]
    %v4901 = vld [vmem:[%s4878 + $0x58] sm:$0xf]
    %v4902 = vld [vmem:[%s4878 + $0x5c] sm:$0xf]
    %v4903 = vld [vmem:[%s4878 + $0x60] sm:$0xf]
    %v4904 = vld [vmem:[%s4878 + $0x64] sm:$0xf]
    %v4905 = vld [vmem:[%s4878 + $0x68] sm:$0xf]
    %v4906 = vld [vmem:[%s4878 + $0x6c] sm:$0xf]
    %v4907 = vld [vmem:[%s4878 + $0x70] sm:$0xf]
    %v4908 = vld [vmem:[%s4878 + $0x74] sm:$0xf]
    %v4909 = vld [vmem:[%s4878 + $0x78] sm:$0xf]
    %v4910 = vld [vmem:[%s4878 + $0x7c] sm:$0xf]
    %v4911 = vld [vmem:[%s4878 + $0x80] sm:$0xf]
    %v4912 = vld [vmem:[%s4878 + $0x84] sm:$0xf]
    %v4913 = vld [vmem:[%s4878 + $0x88] sm:$0xf]
    %v4914 = vld [vmem:[%s4878 + $0x8c] sm:$0xf]
    %v4915 = vld [vmem:[%s4878 + $0x90] sm:$0xf]
    %v4916 = vld [vmem:[%s4878 + $0x94] sm:$0xf]
    %v4917 = vld [vmem:[%s4878 + $0x98] sm:$0xf]
    %v4918 = vld [vmem:[%s4878 + $0x9c] sm:$0xf]
    %v4919 = vld [vmem:[%s4878 + $0xa0] sm:$0xf]
    %v4920 = vld [vmem:[%s4878 + $0xa4] sm:$0xf]
    %v4921 = vld [vmem:[%s4878 + $0xa8] sm:$0xf]
    %v4922 = vld [vmem:[%s4878 + $0xac] sm:$0xf]
    %v4923 = vld [vmem:[%s4878 + $0xb0] sm:$0xf]
    %v4924 = vld [vmem:[%s4878 + $0xb4] sm:$0xf]
    %v4925 = vld [vmem:[%s4878 + $0xb8] sm:$0xf]
    %v4926 = vld [vmem:[%s4878 + $0xbc] sm:$0xf]
    %v4927 = vld [vmem:[%s4878 + $0xc0] sm:$0xf]
    %v4928 = vld [vmem:[%s4878 + $0xc4] sm:$0xf]
    %v4929 = vld [vmem:[%s4878 + $0xc8] sm:$0xf]
    %v4930 = vld [vmem:[%s4878 + $0xcc] sm:$0xf]
    %v4931 = vld [vmem:[%s4878 + $0xd0] sm:$0xf]
    %v4932 = vld [vmem:[%s4878 + $0xd4] sm:$0xf]
    %v4933 = vld [vmem:[%s4878 + $0xd8] sm:$0xf]
    %v4934 = vld [vmem:[%s4878 + $0xdc] sm:$0xf]
    %v4935 = vld [vmem:[%s4878 + $0xe0] sm:$0xf]
    %v4936 = vld [vmem:[%s4878 + $0xe4] sm:$0xf]
    %v4937 = vld [vmem:[%s4878 + $0xe8] sm:$0xf]
    %v4938 = vld [vmem:[%s4878 + $0xec] sm:$0xf]
    %v4939 = vld [vmem:[%s4878 + $0xf0] sm:$0xf]
    %v4940 = vld [vmem:[%s4878 + $0xf4] sm:$0xf]
    %v4941 = vld [vmem:[%s4878 + $0xf8] sm:$0xf]
    %v4942 = vld [vmem:[%s4878 + $0xfc] sm:$0xf]
    %v4943 = vld [vmem:[%s4878 + $0x100] sm:$0xf]
    %v4944 = vld [vmem:[%s4878 + $0x104] sm:$0xf]
    %v4945 = vld [vmem:[%s4878 + $0x108] sm:$0xf]
    %v4946 = vld [vmem:[%s4878 + $0x10c] sm:$0xf]
    %v4947 = vld [vmem:[%s4878 + $0x110] sm:$0xf]
    %v4948 = vld [vmem:[%s4878 + $0x114] sm:$0xf]
    %v4949 = vld [vmem:[%s4878 + $0x118] sm:$0xf]
    %v4950 = vld [vmem:[%s4878 + $0x11c] sm:$0xf]
    %v4951 = vld [vmem:[%s4878 + $0x120] sm:$0xf]
    %v4952 = vld [vmem:[%s4878 + $0x124] sm:$0xf]
    %v4953 = vld [vmem:[%s4878 + $0x128] sm:$0xf]
    %v4954 = vld [vmem:[%s4878 + $0x12c] sm:$0xf]
    %v4955 = vld [vmem:[%s4878 + $0x130] sm:$0xf]
    %v4956 = vld [vmem:[%s4878 + $0x134] sm:$0xf]
    %v4957 = vld [vmem:[%s4878 + $0x138] sm:$0xf]
    %v4958 = vld [vmem:[%s4878 + $0x13c] sm:$0xf]
    %v4959 = vpack.c.b16 %v4855, %v4854
    %v4960 = vpack.c.b16 %v4856, %v4855
    %v4961 = vpack.c.b16 %v4857, %v4856
    %v4962 = vpack.c.b16 %v4858, %v4857
    %v4963 = vpack.c.b16 %v4859, %v4858
    %v4964 = vpack.c.b16 %v4860, %v4859
    %v4965 = vpack.c.b16 %v4861, %v4860
    %v4966 = vpack.c.b16 %v4862, %v4861
    %v4967 = vpack.c.b16 %v4863, %v4862
    %v4968 = vpack.c.b16 %v4864, %v4863
    %v4969 = vpack.c.b16 %v4865, %v4864
    %v4970 = vpack.c.b16 %v4867, %v4866
    %v4971 = vpack.c.b16 %v4868, %v4867
    %v4972 = vpack.c.b16 %v4869, %v4868
    %v4973 = vpack.c.b16 %v4870, %v4869
    %v4974 = vpack.c.b16 %v4871, %v4870
    %v4975 = vpack.c.b16 %v4872, %v4871
    %v4976 = vpack.c.b16 %v4873, %v4872
    %v4977 = vpack.c.b16 %v4874, %v4873
    %v4978 = vpack.c.b16 %v4875, %v4874
    %v4979 = vpack.c.b16 %v4876, %v4875
    %v4980 = vpack.c.b16 %v4877, %v4876
    %v5083 = vunpack.c.l.b16 %v4879
    %v5084 = vunpack.c.l.b16 %v4880
    %v5085 = vunpack.c.l.b16 %v4881
    %v5086 = vunpack.c.l.b16 %v4882
    %v5087 = vunpack.c.l.b16 %v4883
    %v5088 = vunpack.c.l.b16 %v4884
    %v5089 = vunpack.c.l.b16 %v4885
    %v5090 = vunpack.c.l.b16 %v4886
    %v5091 = vunpack.c.l.b16 %v4887
    %v5092 = vunpack.c.l.b16 %v4888
    %v5093 = vunpack.c.l.b16 %v4889
    %v5094 = vunpack.c.l.b16 %v4890
    %v5095 = vunpack.c.l.b16 %v4891
    %v5096 = vunpack.c.l.b16 %v4892
    %v5097 = vunpack.c.l.b16 %v4893
    %v5098 = vunpack.c.l.b16 %v4894
    %v5099 = vunpack.c.l.b16 %v4895
    %v5100 = vunpack.c.l.b16 %v4896
    %v5101 = vunpack.c.l.b16 %v4897
    %v5102 = vunpack.c.l.b16 %v4898
    %v5103 = vunpack.c.l.b16 %v4899
    %v5104 = vunpack.c.l.b16 %v4900
    %v5105 = vunpack.c.l.b16 %v4901
    %v5106 = vunpack.c.l.b16 %v4902
    %v5107 = vunpack.c.l.b16 %v4903
    %v5108 = vunpack.c.l.b16 %v4904
    %v5109 = vunpack.c.l.b16 %v4905
    %v5110 = vunpack.c.l.b16 %v4906
    %v5111 = vunpack.c.l.b16 %v4907
    %v5112 = vunpack.c.l.b16 %v4908
    %v5113 = vunpack.c.l.b16 %v4909
    %v5114 = vunpack.c.l.b16 %v4910
    %v5115 = vunpack.c.l.b16 %v4911
    %v5116 = vunpack.c.l.b16 %v4912
    %v5117 = vunpack.c.l.b16 %v4913
    %v5118 = vunpack.c.l.b16 %v4914
    %v5119 = vunpack.c.l.b16 %v4915
    %v5120 = vunpack.c.l.b16 %v4916
    %v5121 = vunpack.c.l.b16 %v4917
    %v5122 = vunpack.c.l.b16 %v4918
    %v5123 = vunpack.c.l.b16 %v4919
    %v5124 = vunpack.c.l.b16 %v4920
    %v5125 = vunpack.c.l.b16 %v4921
    %v5126 = vunpack.c.l.b16 %v4922
    %v5127 = vunpack.c.l.b16 %v4923
    %v5128 = vunpack.c.l.b16 %v4924
    %v5129 = vunpack.c.l.b16 %v4925
    %v5130 = vunpack.c.l.b16 %v4926
    %v5131 = vunpack.c.l.b16 %v4927
    %v5132 = vunpack.c.l.b16 %v4928
    %v5133 = vunpack.c.l.b16 %v4929
    %v5134 = vunpack.c.l.b16 %v4930
    %v5135 = vunpack.c.l.b16 %v4931
    %v5136 = vunpack.c.l.b16 %v4932
    %v5137 = vunpack.c.l.b16 %v4933
    %v5138 = vunpack.c.l.b16 %v4934
    %v5139 = vunpack.c.l.b16 %v4935
    %v5140 = vunpack.c.l.b16 %v4936
    %v5141 = vunpack.c.l.b16 %v4937
    %v5142 = vunpack.c.l.b16 %v4938
    %v5143 = vunpack.c.l.b16 %v4939
    %v5144 = vunpack.c.l.b16 %v4940
    %v5145 = vunpack.c.l.b16 %v4941
    %v5146 = vunpack.c.l.b16 %v4942
    %v5147 = vunpack.c.l.b16 %v4943
    %v5148 = vunpack.c.l.b16 %v4944
    %v5149 = vunpack.c.l.b16 %v4945
    %v5150 = vunpack.c.l.b16 %v4946
    %v5151 = vunpack.c.l.b16 %v4947
    %v5152 = vunpack.c.l.b16 %v4948
    %v5153 = vunpack.c.l.b16 %v4949
    %v5154 = vunpack.c.l.b16 %v4950
    %v5155 = vunpack.c.l.b16 %v4951
    %v5156 = vunpack.c.l.b16 %v4952
    %v5157 = vunpack.c.l.b16 %v4953
    %v5158 = vunpack.c.l.b16 %v4954
    %v5159 = vunpack.c.l.b16 %v4955
    %v5160 = vunpack.c.l.b16 %v4956
    %v5161 = vunpack.c.l.b16 %v4957
    %v5162 = vunpack.c.l.b16 %v4958
    %v5163 = vpack.c.b16 %v5084, %v5083
    %v5164 = vpack.c.b16 %v5086, %v5085
    %v5165 = vpack.c.b16 %v5088, %v5087
    %v5166 = vpack.c.b16 %v5090, %v5089
    %v5167 = vpack.c.b16 %v5092, %v5091
    %v5168 = vpack.c.b16 %v5094, %v5093
    %v5169 = vpack.c.b16 %v5096, %v5095
    %v5170 = vpack.c.b16 %v5098, %v5097
    %v5171 = vpack.c.b16 %v5100, %v5099
    %v5172 = vpack.c.b16 %v5102, %v5101
    %v5173 = vpack.c.b16 %v5104, %v5103
    %v5174 = vpack.c.b16 %v5106, %v5105
    %v5175 = vpack.c.b16 %v5108, %v5107
    %v5176 = vpack.c.b16 %v5110, %v5109
    %v5177 = vpack.c.b16 %v5112, %v5111
    %v5178 = vpack.c.b16 %v5114, %v5113
    %v5179 = vpack.c.b16 %v5116, %v5115
    %v5180 = vpack.c.b16 %v5118, %v5117
    %v5181 = vpack.c.b16 %v5120, %v5119
    %v5182 = vpack.c.b16 %v5122, %v5121
    %v5183 = vpack.c.b16 %v5124, %v5123
    %v5184 = vpack.c.b16 %v5126, %v5125
    %v5185 = vpack.c.b16 %v5128, %v5127
    %v5186 = vpack.c.b16 %v5130, %v5129
    %v5187 = vpack.c.b16 %v5132, %v5131
    %v5188 = vpack.c.b16 %v5134, %v5133
    %v5189 = vpack.c.b16 %v5136, %v5135
    %v5190 = vpack.c.b16 %v5138, %v5137
    %v5191 = vpack.c.b16 %v5140, %v5139
    %v5192 = vpack.c.b16 %v5142, %v5141
    %v5193 = vpack.c.b16 %v5144, %v5143
    %v5194 = vpack.c.b16 %v5146, %v5145
    %v5195 = vpack.c.b16 %v5148, %v5147
    %v5196 = vpack.c.b16 %v5150, %v5149
    %v5197 = vpack.c.b16 %v5152, %v5151
    %v5198 = vpack.c.b16 %v5154, %v5153
    %v5199 = vpack.c.b16 %v5156, %v5155
    %v5200 = vpack.c.b16 %v5158, %v5157
    %v5201 = vpack.c.b16 %v5160, %v5159
    %v5202 = vpack.c.b16 %v5162, %v5161
    %5243 = vmatpush.bf16.msra.mxu0 %v5170
    %5244 = vmatpush.bf16.msra.mxu0 %v5169
    %5245 = vmatpush.bf16.msra.mxu0 %v5168
    %5246 = vmatpush.bf16.msra.mxu0 %v5167
    %5247 = vmatpush.bf16.msra.mxu0 %v5166
    %5248 = vmatpush.bf16.msra.mxu0 %v5165
    %5249 = vmatpush.bf16.msra.mxu0 %v5164
    %5250 = vmatpush.bf16.msra.mxu0 %v5163
    %5251 = vmatmul.bf16.gmra.mxu0 %v4959
    %v5252 = vpop.f32.mrf.mxu0
    %v5253 = vadd.f32 0.0, %v5252
    %v5254 = vpop.f32.mrf.mxu0
    %v5255 = vadd.f32 0.0, %v5254
    %5256 = vmatmul.bf16.gmra.mxu0 %v4961
    %v5257 = vpop.f32.mrf.mxu0
    %v5258 = vadd.f32 0.0, %v5257
    %v5259 = vpop.f32.mrf.mxu0
    %v5260 = vadd.f32 0.0, %v5259
    %5261 = vmatmul.bf16.gmra.mxu0 %v4963
    %v5262 = vpop.f32.mrf.mxu0
    %v5263 = vadd.f32 0.0, %v5262
    %v5264 = vpop.f32.mrf.mxu0
    %v5265 = vadd.f32 0.0, %v5264
    %5266 = vmatmul.bf16.gmra.mxu0 %v4965
    %v5267 = vpop.f32.mrf.mxu0
    %v5268 = vadd.f32 0.0, %v5267
    %v5269 = vpop.f32.mrf.mxu0
    %v5270 = vadd.f32 0.0, %v5269
    %5271 = vmatmul.bf16.gmra.mxu0 %v4970
    %v5272 = vpop.f32.mrf.mxu0
    %v5273 = vadd.f32 0.0, %v5272
    %v5274 = vpop.f32.mrf.mxu0
    %v5275 = vadd.f32 0.0, %v5274
    %5276 = vmatmul.bf16.gmra.mxu0 %v4972
    %v5277 = vpop.f32.mrf.mxu0
    %v5278 = vadd.f32 0.0, %v5277
    %v5279 = vpop.f32.mrf.mxu0
    %v5280 = vadd.f32 0.0, %v5279
    %5281 = vmatmul.bf16.gmra.mxu0 %v4974
    %v5282 = vpop.f32.mrf.mxu0
    %v5283 = vadd.f32 0.0, %v5282
    %v5284 = vpop.f32.mrf.mxu0
    %v5285 = vadd.f32 0.0, %v5284
    %5286 = vmatmul.bf16.gmra.mxu0 %v4976
    %v5287 = vpop.f32.mrf.mxu0
    %v5288 = vadd.f32 0.0, %v5287
    %v5289 = vpop.f32.mrf.mxu0
    %v5290 = vadd.f32 0.0, %v5289
    %5291 = vdwg.mxu0
    %5292 = vmatpush.bf16.msra.mxu0 %v5178
    %5293 = vmatpush.bf16.msra.mxu0 %v5177
    %5294 = vmatpush.bf16.msra.mxu0 %v5176
    %5295 = vmatpush.bf16.msra.mxu0 %v5175
    %5296 = vmatpush.bf16.msra.mxu0 %v5174
    %5297 = vmatpush.bf16.msra.mxu0 %v5173
    %5298 = vmatpush.bf16.msra.mxu0 %v5172
    %5299 = vmatpush.bf16.msra.mxu0 %v5171
    %5300 = vmatmul.bf16.gmra.mxu0 %v4960
    %v5301 = vpop.f32.mrf.mxu0
    %v5302 = vadd.f32 %v5253, %v5301
    %v5303 = vpop.f32.mrf.mxu0
    %v5304 = vadd.f32 %v5255, %v5303
    %5305 = vmatmul.bf16.gmra.mxu0 %v4962
    %v5306 = vpop.f32.mrf.mxu0
    %v5307 = vadd.f32 %v5258, %v5306
    %v5308 = vpop.f32.mrf.mxu0
    %v5309 = vadd.f32 %v5260, %v5308
    %5310 = vmatmul.bf16.gmra.mxu0 %v4964
    %v5311 = vpop.f32.mrf.mxu0
    %v5312 = vadd.f32 %v5263, %v5311
    %v5313 = vpop.f32.mrf.mxu0
    %v5314 = vadd.f32 %v5265, %v5313
    %5315 = vmatmul.bf16.gmra.mxu0 %v4966
    %v5316 = vpop.f32.mrf.mxu0
    %v5317 = vadd.f32 %v5268, %v5316
    %v5318 = vpop.f32.mrf.mxu0
    %v5319 = vadd.f32 %v5270, %v5318
    %5320 = vmatmul.bf16.gmra.mxu0 %v4971
    %v5321 = vpop.f32.mrf.mxu0
    %v5322 = vadd.f32 %v5273, %v5321
    %v5323 = vpop.f32.mrf.mxu0
    %v5324 = vadd.f32 %v5275, %v5323
    %5325 = vmatmul.bf16.gmra.mxu0 %v4973
    %v5326 = vpop.f32.mrf.mxu0
    %v5327 = vadd.f32 %v5278, %v5326
    %v5328 = vpop.f32.mrf.mxu0
    %v5329 = vadd.f32 %v5280, %v5328
    %5330 = vmatmul.bf16.gmra.mxu0 %v4975
    %v5331 = vpop.f32.mrf.mxu0
    %v5332 = vadd.f32 %v5283, %v5331
    %v5333 = vpop.f32.mrf.mxu0
    %v5334 = vadd.f32 %v5285, %v5333
    %5335 = vmatmul.bf16.gmra.mxu0 %v4977
    %v5336 = vpop.f32.mrf.mxu0
    %v5337 = vadd.f32 %v5288, %v5336
    %v5338 = vpop.f32.mrf.mxu0
    %v5339 = vadd.f32 %v5290, %v5338
    %5340 = vdwg.mxu0
    %5341 = vmatpush.bf16.msra.mxu0 %v5186
    %5342 = vmatpush.bf16.msra.mxu0 %v5185
    %5343 = vmatpush.bf16.msra.mxu0 %v5184
    %5344 = vmatpush.bf16.msra.mxu0 %v5183
    %5345 = vmatpush.bf16.msra.mxu0 %v5182
    %5346 = vmatpush.bf16.msra.mxu0 %v5181
    %5347 = vmatpush.bf16.msra.mxu0 %v5180
    %5348 = vmatpush.bf16.msra.mxu0 %v5179
    %5349 = vmatmul.bf16.gmra.mxu0 %v4961
    %v5350 = vpop.f32.mrf.mxu0
    %v5351 = vadd.f32 %v5302, %v5350
    %v5352 = vpop.f32.mrf.mxu0
    %v5353 = vadd.f32 %v5304, %v5352
    %5354 = vmatmul.bf16.gmra.mxu0 %v4963
    %v5355 = vpop.f32.mrf.mxu0
    %v5356 = vadd.f32 %v5307, %v5355
    %v5357 = vpop.f32.mrf.mxu0
    %v5358 = vadd.f32 %v5309, %v5357
    %5359 = vmatmul.bf16.gmra.mxu0 %v4965
    %v5360 = vpop.f32.mrf.mxu0
    %v5361 = vadd.f32 %v5312, %v5360
    %v5362 = vpop.f32.mrf.mxu0
    %v5363 = vadd.f32 %v5314, %v5362
    %5364 = vmatmul.bf16.gmra.mxu0 %v4967
    %v5365 = vpop.f32.mrf.mxu0
    %v5366 = vadd.f32 %v5317, %v5365
    %v5367 = vpop.f32.mrf.mxu0
    %v5368 = vadd.f32 %v5319, %v5367
    %5369 = vmatmul.bf16.gmra.mxu0 %v4972
    %v5370 = vpop.f32.mrf.mxu0
    %v5371 = vadd.f32 %v5322, %v5370
    %v5372 = vpop.f32.mrf.mxu0
    %v5373 = vadd.f32 %v5324, %v5372
    %5374 = vmatmul.bf16.gmra.mxu0 %v4974
    %v5375 = vpop.f32.mrf.mxu0
    %v5376 = vadd.f32 %v5327, %v5375
    %v5377 = vpop.f32.mrf.mxu0
    %v5378 = vadd.f32 %v5329, %v5377
    %5379 = vmatmul.bf16.gmra.mxu0 %v4976
    %v5380 = vpop.f32.mrf.mxu0
    %v5381 = vadd.f32 %v5332, %v5380
    %v5382 = vpop.f32.mrf.mxu0
    %v5383 = vadd.f32 %v5334, %v5382
    %5384 = vmatmul.bf16.gmra.mxu0 %v4978
    %v5385 = vpop.f32.mrf.mxu0
    %v5386 = vadd.f32 %v5337, %v5385
    %v5387 = vpop.f32.mrf.mxu0
    %v5388 = vadd.f32 %v5339, %v5387
    %5389 = vdwg.mxu0
    %5390 = vmatpush.bf16.msra.mxu0 %v5194
    %5391 = vmatpush.bf16.msra.mxu0 %v5193
    %5392 = vmatpush.bf16.msra.mxu0 %v5192
    %5393 = vmatpush.bf16.msra.mxu0 %v5191
    %5394 = vmatpush.bf16.msra.mxu0 %v5190
    %5395 = vmatpush.bf16.msra.mxu0 %v5189
    %5396 = vmatpush.bf16.msra.mxu0 %v5188
    %5397 = vmatpush.bf16.msra.mxu0 %v5187
    %5398 = vmatmul.bf16.gmra.mxu0 %v4962
    %v5399 = vpop.f32.mrf.mxu0
    %v5400 = vadd.f32 %v5351, %v5399
    %v5401 = vpop.f32.mrf.mxu0
    %v5402 = vadd.f32 %v5353, %v5401
    %5403 = vmatmul.bf16.gmra.mxu0 %v4964
    %v5404 = vpop.f32.mrf.mxu0
    %v5405 = vadd.f32 %v5356, %v5404
    %v5406 = vpop.f32.mrf.mxu0
    %v5407 = vadd.f32 %v5358, %v5406
    %5408 = vmatmul.bf16.gmra.mxu0 %v4966
    %v5409 = vpop.f32.mrf.mxu0
    %v5410 = vadd.f32 %v5361, %v5409
    %v5411 = vpop.f32.mrf.mxu0
    %v5412 = vadd.f32 %v5363, %v5411
    %5413 = vmatmul.bf16.gmra.mxu0 %v4968
    %v5414 = vpop.f32.mrf.mxu0
    %v5415 = vadd.f32 %v5366, %v5414
    %v5416 = vpop.f32.mrf.mxu0
    %v5417 = vadd.f32 %v5368, %v5416
    %5418 = vmatmul.bf16.gmra.mxu0 %v4973
    %v5419 = vpop.f32.mrf.mxu0
    %v5420 = vadd.f32 %v5371, %v5419
    %v5421 = vpop.f32.mrf.mxu0
    %v5422 = vadd.f32 %v5373, %v5421
    %5423 = vmatmul.bf16.gmra.mxu0 %v4975
    %v5424 = vpop.f32.mrf.mxu0
    %v5425 = vadd.f32 %v5376, %v5424
    %v5426 = vpop.f32.mrf.mxu0
    %v5427 = vadd.f32 %v5378, %v5426
    %5428 = vmatmul.bf16.gmra.mxu0 %v4977
    %v5429 = vpop.f32.mrf.mxu0
    %v5430 = vadd.f32 %v5381, %v5429
    %v5431 = vpop.f32.mrf.mxu0
    %v5432 = vadd.f32 %v5383, %v5431
    %5433 = vmatmul.bf16.gmra.mxu0 %v4979
    %v5434 = vpop.f32.mrf.mxu0
    %v5435 = vadd.f32 %v5386, %v5434
    %v5436 = vpop.f32.mrf.mxu0
    %v5437 = vadd.f32 %v5388, %v5436
    %5438 = vdwg.mxu0
    %5439 = vmatpush.bf16.msra.mxu0 %v5202
    %5440 = vmatpush.bf16.msra.mxu0 %v5201
    %5441 = vmatpush.bf16.msra.mxu0 %v5200
    %5442 = vmatpush.bf16.msra.mxu0 %v5199
    %5443 = vmatpush.bf16.msra.mxu0 %v5198
    %5444 = vmatpush.bf16.msra.mxu0 %v5197
    %5445 = vmatpush.bf16.msra.mxu0 %v5196
    %5446 = vmatpush.bf16.msra.mxu0 %v5195
    %5447 = vmatmul.bf16.gmra.mxu0 %v4963
    %v5448 = vpop.f32.mrf.mxu0
    %v5449 = vadd.f32 %v5400, %v5448
    %v5450 = vpop.f32.mrf.mxu0
    %v5451 = vadd.f32 %v5402, %v5450
    %5452 = vmatmul.bf16.gmra.mxu0 %v4965
    %v5453 = vpop.f32.mrf.mxu0
    %v5454 = vadd.f32 %v5405, %v5453
    %v5455 = vpop.f32.mrf.mxu0
    %v5456 = vadd.f32 %v5407, %v5455
    %5457 = vmatmul.bf16.gmra.mxu0 %v4967
    %v5458 = vpop.f32.mrf.mxu0
    %v5459 = vadd.f32 %v5410, %v5458
    %v5460 = vpop.f32.mrf.mxu0
    %v5461 = vadd.f32 %v5412, %v5460
    %5462 = vmatmul.bf16.gmra.mxu0 %v4969
    %v5463 = vpop.f32.mrf.mxu0
    %v5464 = vadd.f32 %v5415, %v5463
    %v5465 = vpop.f32.mrf.mxu0
    %v5466 = vadd.f32 %v5417, %v5465
    %5467 = vmatmul.bf16.gmra.mxu0 %v4974
    %v5468 = vpop.f32.mrf.mxu0
    %v5469 = vadd.f32 %v5420, %v5468
    %v5470 = vpop.f32.mrf.mxu0
    %v5471 = vadd.f32 %v5422, %v5470
    %5472 = vmatmul.bf16.gmra.mxu0 %v4976
    %v5473 = vpop.f32.mrf.mxu0
    %v5474 = vadd.f32 %v5425, %v5473
    %v5475 = vpop.f32.mrf.mxu0
    %v5476 = vadd.f32 %v5427, %v5475
    %5477 = vmatmul.bf16.gmra.mxu0 %v4978
    %v5478 = vpop.f32.mrf.mxu0
    %v5479 = vadd.f32 %v5430, %v5478
    %v5480 = vpop.f32.mrf.mxu0
    %v5481 = vadd.f32 %v5432, %v5480
    %5482 = vmatmul.bf16.gmra.mxu0 %v4980
    %v5483 = vpop.f32.mrf.mxu0
    %v5484 = vadd.f32 %v5435, %v5483
    %v5485 = vpop.f32.mrf.mxu0
    %v5486 = vadd.f32 %v5437, %v5485
    %5487 = vdwg.mxu0
    %v5488 = vadd.f32 %v4766, %v5449
    %v5489 = vadd.f32 %v4767, %v5451
    %v5490 = vadd.f32 %v4768, %v5454
    %v5491 = vadd.f32 %v4769, %v5456
    %v5492 = vadd.f32 %v4770, %v5459
    %v5493 = vadd.f32 %v4771, %v5461
    %v5494 = vadd.f32 %v4772, %v5464
    %v5495 = vadd.f32 %v4773, %v5466
    %v5496 = vadd.f32 %v4774, %v5469
    %v5497 = vadd.f32 %v4775, %v5471
    %v5498 = vadd.f32 %v4776, %v5474
    %v5499 = vadd.f32 %v4777, %v5476
    %v5500 = vadd.f32 %v4778, %v5479
    %v5501 = vadd.f32 %v4779, %v5481
    %v5502 = vadd.f32 %v4780, %v5484
    %v5503 = vadd.f32 %v4781, %v5486
    %v5504 = vld [vmem:[#allocation2 + $0x4] sm:$0xff]
    %v5505 = vld [vmem:[#allocation2 + $0x14] sm:$0xff]
    %v5506 = vld [vmem:[#allocation2 + $0x24] sm:$0xff]
    %v5507 = vld [vmem:[#allocation2 + $0x34] sm:$0xff]
    %v5508 = vld [vmem:[#allocation2 + $0x44] sm:$0xff]
    %v5509 = vld [vmem:[#allocation2 + $0x54] sm:$0xff]
    %v5510 = vld [vmem:[#allocation2 + $0x64] sm:$0xff]
    %v5511 = vld [vmem:[#allocation2 + $0x74] sm:$0xff]
    %v5512 = vld [vmem:[#allocation2 + $0x84] sm:$0xff]
    %v5513 = vld [vmem:[#allocation2 + $0x94] sm:$0xff]
    %v5514 = vld [vmem:[#allocation2 + $0xa4] sm:$0xff]
    %v5515 = vld [vmem:[#allocation2 + $0xb4] sm:$0xff]
    %v5516 = vld [vmem:[#allocation2 + $0xc4] sm:$0xff]
    %v5517 = vld [vmem:[#allocation2 + $0xd4] sm:$0xff]
    %v5518 = vld [vmem:[#allocation2 + $0xe4] sm:$0xff]
    %v5519 = vld [vmem:[#allocation2 + $0xf4] sm:$0xff]
    %v5520 = vld [vmem:[#allocation2 + $0x104] sm:$0xff]
    %v5521 = vld [vmem:[#allocation2 + $0x114] sm:$0xff]
    %v5522 = vld [vmem:[#allocation2 + $0x124] sm:$0xff]
    %v5523 = vld [vmem:[#allocation2 + $0x134] sm:$0xff]
    %v5524 = vld [vmem:[#allocation2 + $0x144] sm:$0xff]
    %v5525 = vld [vmem:[#allocation2 + $0x154] sm:$0xff]
    %v5526 = vld [vmem:[#allocation2 + $0x164] sm:$0xff]
    %v5527 = vld [vmem:[#allocation2 + $0x174] sm:$0xff]
    %v5528 = vpack.c.bf16 %v5504, %v5504
    %v5529 = vpack.c.bf16 %v5505, %v5505
    %v5530 = vpack.c.bf16 %v5506, %v5506
    %v5531 = vpack.c.bf16 %v5507, %v5507
    %v5532 = vpack.c.bf16 %v5508, %v5508
    %v5533 = vpack.c.bf16 %v5509, %v5509
    %v5534 = vpack.c.bf16 %v5510, %v5510
    %v5535 = vpack.c.bf16 %v5511, %v5511
    %v5536 = vpack.c.bf16 %v5512, %v5512
    %v5537 = vpack.c.bf16 %v5513, %v5513
    %v5538 = vpack.c.bf16 %v5514, %v5514
    %v5539 = vpack.c.bf16 %v5515, %v5515
    %v5540 = vpack.c.bf16 %v5516, %v5516
    %v5541 = vpack.c.bf16 %v5517, %v5517
    %v5542 = vpack.c.bf16 %v5518, %v5518
    %v5543 = vpack.c.bf16 %v5519, %v5519
    %v5544 = vpack.c.bf16 %v5520, %v5520
    %v5545 = vpack.c.bf16 %v5521, %v5521
    %v5546 = vpack.c.bf16 %v5522, %v5522
    %v5547 = vpack.c.bf16 %v5523, %v5523
    %v5548 = vpack.c.bf16 %v5524, %v5524
    %v5549 = vpack.c.bf16 %v5525, %v5525
    %v5550 = vpack.c.bf16 %v5526, %v5526
    %v5551 = vpack.c.bf16 %v5527, %v5527
    %v5576 = vunpack.c.l.b16 %v5528
    %v5577 = vunpack.c.l.b16 %v5529
    %v5578 = vunpack.c.l.b16 %v5530
    %v5579 = vunpack.c.l.b16 %v5531
    %v5580 = vunpack.c.l.b16 %v5532
    %v5581 = vunpack.c.l.b16 %v5533
    %v5582 = vunpack.c.l.b16 %v5534
    %v5583 = vunpack.c.l.b16 %v5535
    %v5584 = vunpack.c.l.b16 %v5536
    %v5585 = vunpack.c.l.b16 %v5537
    %v5586 = vunpack.c.l.b16 %v5538
    %v5587 = vunpack.c.l.b16 %v5539
    %v5588 = vunpack.c.l.b16 %v5540
    %v5589 = vunpack.c.l.b16 %v5541
    %v5590 = vunpack.c.l.b16 %v5542
    %v5591 = vunpack.c.l.b16 %v5543
    %v5592 = vunpack.c.l.b16 %v5544
    %v5593 = vunpack.c.l.b16 %v5545
    %v5594 = vunpack.c.l.b16 %v5546
    %v5595 = vunpack.c.l.b16 %v5547
    %v5596 = vunpack.c.l.b16 %v5548
    %v5597 = vunpack.c.l.b16 %v5549
    %v5598 = vunpack.c.l.b16 %v5550
    %v5599 = vunpack.c.l.b16 %v5551
    %s5600 = scalar_lea.vmem [#allocation3], 1280
    %v5601 = vld [vmem:[%s5600] sm:$0xf]
    %v5602 = vld [vmem:[%s5600 + $0x4] sm:$0xf]
    %v5603 = vld [vmem:[%s5600 + $0x8] sm:$0xf]
    %v5604 = vld [vmem:[%s5600 + $0xc] sm:$0xf]
    %v5605 = vld [vmem:[%s5600 + $0x10] sm:$0xf]
    %v5606 = vld [vmem:[%s5600 + $0x14] sm:$0xf]
    %v5607 = vld [vmem:[%s5600 + $0x18] sm:$0xf]
    %v5608 = vld [vmem:[%s5600 + $0x1c] sm:$0xf]
    %v5609 = vld [vmem:[%s5600 + $0x20] sm:$0xf]
    %v5610 = vld [vmem:[%s5600 + $0x24] sm:$0xf]
    %v5611 = vld [vmem:[%s5600 + $0x28] sm:$0xf]
    %v5612 = vld [vmem:[%s5600 + $0x2c] sm:$0xf]
    %v5613 = vld [vmem:[%s5600 + $0x30] sm:$0xf]
    %v5614 = vld [vmem:[%s5600 + $0x34] sm:$0xf]
    %v5615 = vld [vmem:[%s5600 + $0x38] sm:$0xf]
    %v5616 = vld [vmem:[%s5600 + $0x3c] sm:$0xf]
    %v5617 = vld [vmem:[%s5600 + $0x40] sm:$0xf]
    %v5618 = vld [vmem:[%s5600 + $0x44] sm:$0xf]
    %v5619 = vld [vmem:[%s5600 + $0x48] sm:$0xf]
    %v5620 = vld [vmem:[%s5600 + $0x4c] sm:$0xf]
    %v5621 = vld [vmem:[%s5600 + $0x50] sm:$0xf]
    %v5622 = vld [vmem:[%s5600 + $0x54] sm:$0xf]
    %v5623 = vld [vmem:[%s5600 + $0x58] sm:$0xf]
    %v5624 = vld [vmem:[%s5600 + $0x5c] sm:$0xf]
    %v5625 = vld [vmem:[%s5600 + $0x60] sm:$0xf]
    %v5626 = vld [vmem:[%s5600 + $0x64] sm:$0xf]
    %v5627 = vld [vmem:[%s5600 + $0x68] sm:$0xf]
    %v5628 = vld [vmem:[%s5600 + $0x6c] sm:$0xf]
    %v5629 = vld [vmem:[%s5600 + $0x70] sm:$0xf]
    %v5630 = vld [vmem:[%s5600 + $0x74] sm:$0xf]
    %v5631 = vld [vmem:[%s5600 + $0x78] sm:$0xf]
    %v5632 = vld [vmem:[%s5600 + $0x7c] sm:$0xf]
    %v5633 = vld [vmem:[%s5600 + $0x80] sm:$0xf]
    %v5634 = vld [vmem:[%s5600 + $0x84] sm:$0xf]
    %v5635 = vld [vmem:[%s5600 + $0x88] sm:$0xf]
    %v5636 = vld [vmem:[%s5600 + $0x8c] sm:$0xf]
    %v5637 = vld [vmem:[%s5600 + $0x90] sm:$0xf]
    %v5638 = vld [vmem:[%s5600 + $0x94] sm:$0xf]
    %v5639 = vld [vmem:[%s5600 + $0x98] sm:$0xf]
    %v5640 = vld [vmem:[%s5600 + $0x9c] sm:$0xf]
    %v5641 = vld [vmem:[%s5600 + $0xa0] sm:$0xf]
    %v5642 = vld [vmem:[%s5600 + $0xa4] sm:$0xf]
    %v5643 = vld [vmem:[%s5600 + $0xa8] sm:$0xf]
    %v5644 = vld [vmem:[%s5600 + $0xac] sm:$0xf]
    %v5645 = vld [vmem:[%s5600 + $0xb0] sm:$0xf]
    %v5646 = vld [vmem:[%s5600 + $0xb4] sm:$0xf]
    %v5647 = vld [vmem:[%s5600 + $0xb8] sm:$0xf]
    %v5648 = vld [vmem:[%s5600 + $0xbc] sm:$0xf]
    %v5649 = vld [vmem:[%s5600 + $0xc0] sm:$0xf]
    %v5650 = vld [vmem:[%s5600 + $0xc4] sm:$0xf]
    %v5651 = vld [vmem:[%s5600 + $0xc8] sm:$0xf]
    %v5652 = vld [vmem:[%s5600 + $0xcc] sm:$0xf]
    %v5653 = vld [vmem:[%s5600 + $0xd0] sm:$0xf]
    %v5654 = vld [vmem:[%s5600 + $0xd4] sm:$0xf]
    %v5655 = vld [vmem:[%s5600 + $0xd8] sm:$0xf]
    %v5656 = vld [vmem:[%s5600 + $0xdc] sm:$0xf]
    %v5657 = vld [vmem:[%s5600 + $0xe0] sm:$0xf]
    %v5658 = vld [vmem:[%s5600 + $0xe4] sm:$0xf]
    %v5659 = vld [vmem:[%s5600 + $0xe8] sm:$0xf]
    %v5660 = vld [vmem:[%s5600 + $0xec] sm:$0xf]
    %v5661 = vld [vmem:[%s5600 + $0xf0] sm:$0xf]
    %v5662 = vld [vmem:[%s5600 + $0xf4] sm:$0xf]
    %v5663 = vld [vmem:[%s5600 + $0xf8] sm:$0xf]
    %v5664 = vld [vmem:[%s5600 + $0xfc] sm:$0xf]
    %v5665 = vld [vmem:[%s5600 + $0x100] sm:$0xf]
    %v5666 = vld [vmem:[%s5600 + $0x104] sm:$0xf]
    %v5667 = vld [vmem:[%s5600 + $0x108] sm:$0xf]
    %v5668 = vld [vmem:[%s5600 + $0x10c] sm:$0xf]
    %v5669 = vld [vmem:[%s5600 + $0x110] sm:$0xf]
    %v5670 = vld [vmem:[%s5600 + $0x114] sm:$0xf]
    %v5671 = vld [vmem:[%s5600 + $0x118] sm:$0xf]
    %v5672 = vld [vmem:[%s5600 + $0x11c] sm:$0xf]
    %v5673 = vld [vmem:[%s5600 + $0x120] sm:$0xf]
    %v5674 = vld [vmem:[%s5600 + $0x124] sm:$0xf]
    %v5675 = vld [vmem:[%s5600 + $0x128] sm:$0xf]
    %v5676 = vld [vmem:[%s5600 + $0x12c] sm:$0xf]
    %v5677 = vld [vmem:[%s5600 + $0x130] sm:$0xf]
    %v5678 = vld [vmem:[%s5600 + $0x134] sm:$0xf]
    %v5679 = vld [vmem:[%s5600 + $0x138] sm:$0xf]
    %v5680 = vld [vmem:[%s5600 + $0x13c] sm:$0xf]
    %v5681 = vpack.c.b16 %v5577, %v5576
    %v5682 = vpack.c.b16 %v5578, %v5577
    %v5683 = vpack.c.b16 %v5579, %v5578
    %v5684 = vpack.c.b16 %v5580, %v5579
    %v5685 = vpack.c.b16 %v5581, %v5580
    %v5686 = vpack.c.b16 %v5582, %v5581
    %v5687 = vpack.c.b16 %v5583, %v5582
    %v5688 = vpack.c.b16 %v5584, %v5583
    %v5689 = vpack.c.b16 %v5585, %v5584
    %v5690 = vpack.c.b16 %v5586, %v5585
    %v5691 = vpack.c.b16 %v5587, %v5586
    %v5692 = vpack.c.b16 %v5589, %v5588
    %v5693 = vpack.c.b16 %v5590, %v5589
    %v5694 = vpack.c.b16 %v5591, %v5590
    %v5695 = vpack.c.b16 %v5592, %v5591
    %v5696 = vpack.c.b16 %v5593, %v5592
    %v5697 = vpack.c.b16 %v5594, %v5593
    %v5698 = vpack.c.b16 %v5595, %v5594
    %v5699 = vpack.c.b16 %v5596, %v5595
    %v5700 = vpack.c.b16 %v5597, %v5596
    %v5701 = vpack.c.b16 %v5598, %v5597
    %v5702 = vpack.c.b16 %v5599, %v5598
    %v5805 = vunpack.c.l.b16 %v5601
    %v5806 = vunpack.c.l.b16 %v5602
    %v5807 = vunpack.c.l.b16 %v5603
    %v5808 = vunpack.c.l.b16 %v5604
    %v5809 = vunpack.c.l.b16 %v5605
    %v5810 = vunpack.c.l.b16 %v5606
    %v5811 = vunpack.c.l.b16 %v5607
    %v5812 = vunpack.c.l.b16 %v5608
    %v5813 = vunpack.c.l.b16 %v5609
    %v5814 = vunpack.c.l.b16 %v5610
    %v5815 = vunpack.c.l.b16 %v5611
    %v5816 = vunpack.c.l.b16 %v5612
    %v5817 = vunpack.c.l.b16 %v5613
    %v5818 = vunpack.c.l.b16 %v5614
    %v5819 = vunpack.c.l.b16 %v5615
    %v5820 = vunpack.c.l.b16 %v5616
    %v5821 = vunpack.c.l.b16 %v5617
    %v5822 = vunpack.c.l.b16 %v5618
    %v5823 = vunpack.c.l.b16 %v5619
    %v5824 = vunpack.c.l.b16 %v5620
    %v5825 = vunpack.c.l.b16 %v5621
    %v5826 = vunpack.c.l.b16 %v5622
    %v5827 = vunpack.c.l.b16 %v5623
    %v5828 = vunpack.c.l.b16 %v5624
    %v5829 = vunpack.c.l.b16 %v5625
    %v5830 = vunpack.c.l.b16 %v5626
    %v5831 = vunpack.c.l.b16 %v5627
    %v5832 = vunpack.c.l.b16 %v5628
    %v5833 = vunpack.c.l.b16 %v5629
    %v5834 = vunpack.c.l.b16 %v5630
    %v5835 = vunpack.c.l.b16 %v5631
    %v5836 = vunpack.c.l.b16 %v5632
    %v5837 = vunpack.c.l.b16 %v5633
    %v5838 = vunpack.c.l.b16 %v5634
    %v5839 = vunpack.c.l.b16 %v5635
    %v5840 = vunpack.c.l.b16 %v5636
    %v5841 = vunpack.c.l.b16 %v5637
    %v5842 = vunpack.c.l.b16 %v5638
    %v5843 = vunpack.c.l.b16 %v5639
    %v5844 = vunpack.c.l.b16 %v5640
    %v5845 = vunpack.c.l.b16 %v5641
    %v5846 = vunpack.c.l.b16 %v5642
    %v5847 = vunpack.c.l.b16 %v5643
    %v5848 = vunpack.c.l.b16 %v5644
    %v5849 = vunpack.c.l.b16 %v5645
    %v5850 = vunpack.c.l.b16 %v5646
    %v5851 = vunpack.c.l.b16 %v5647
    %v5852 = vunpack.c.l.b16 %v5648
    %v5853 = vunpack.c.l.b16 %v5649
    %v5854 = vunpack.c.l.b16 %v5650
    %v5855 = vunpack.c.l.b16 %v5651
    %v5856 = vunpack.c.l.b16 %v5652
    %v5857 = vunpack.c.l.b16 %v5653
    %v5858 = vunpack.c.l.b16 %v5654
    %v5859 = vunpack.c.l.b16 %v5655
    %v5860 = vunpack.c.l.b16 %v5656
    %v5861 = vunpack.c.l.b16 %v5657
    %v5862 = vunpack.c.l.b16 %v5658
    %v5863 = vunpack.c.l.b16 %v5659
    %v5864 = vunpack.c.l.b16 %v5660
    %v5865 = vunpack.c.l.b16 %v5661
    %v5866 = vunpack.c.l.b16 %v5662
    %v5867 = vunpack.c.l.b16 %v5663
    %v5868 = vunpack.c.l.b16 %v5664
    %v5869 = vunpack.c.l.b16 %v5665
    %v5870 = vunpack.c.l.b16 %v5666
    %v5871 = vunpack.c.l.b16 %v5667
    %v5872 = vunpack.c.l.b16 %v5668
    %v5873 = vunpack.c.l.b16 %v5669
    %v5874 = vunpack.c.l.b16 %v5670
    %v5875 = vunpack.c.l.b16 %v5671
    %v5876 = vunpack.c.l.b16 %v5672
    %v5877 = vunpack.c.l.b16 %v5673
    %v5878 = vunpack.c.l.b16 %v5674
    %v5879 = vunpack.c.l.b16 %v5675
    %v5880 = vunpack.c.l.b16 %v5676
    %v5881 = vunpack.c.l.b16 %v5677
    %v5882 = vunpack.c.l.b16 %v5678
    %v5883 = vunpack.c.l.b16 %v5679
    %v5884 = vunpack.c.l.b16 %v5680
    %v5885 = vpack.c.b16 %v5806, %v5805
    %v5886 = vpack.c.b16 %v5808, %v5807
    %v5887 = vpack.c.b16 %v5810, %v5809
    %v5888 = vpack.c.b16 %v5812, %v5811
    %v5889 = vpack.c.b16 %v5814, %v5813
    %v5890 = vpack.c.b16 %v5816, %v5815
    %v5891 = vpack.c.b16 %v5818, %v5817
    %v5892 = vpack.c.b16 %v5820, %v5819
    %v5893 = vpack.c.b16 %v5822, %v5821
    %v5894 = vpack.c.b16 %v5824, %v5823
    %v5895 = vpack.c.b16 %v5826, %v5825
    %v5896 = vpack.c.b16 %v5828, %v5827
    %v5897 = vpack.c.b16 %v5830, %v5829
    %v5898 = vpack.c.b16 %v5832, %v5831
    %v5899 = vpack.c.b16 %v5834, %v5833
    %v5900 = vpack.c.b16 %v5836, %v5835
    %v5901 = vpack.c.b16 %v5838, %v5837
    %v5902 = vpack.c.b16 %v5840, %v5839
    %v5903 = vpack.c.b16 %v5842, %v5841
    %v5904 = vpack.c.b16 %v5844, %v5843
    %v5905 = vpack.c.b16 %v5846, %v5845
    %v5906 = vpack.c.b16 %v5848, %v5847
    %v5907 = vpack.c.b16 %v5850, %v5849
    %v5908 = vpack.c.b16 %v5852, %v5851
    %v5909 = vpack.c.b16 %v5854, %v5853
    %v5910 = vpack.c.b16 %v5856, %v5855
    %v5911 = vpack.c.b16 %v5858, %v5857
    %v5912 = vpack.c.b16 %v5860, %v5859
    %v5913 = vpack.c.b16 %v5862, %v5861
    %v5914 = vpack.c.b16 %v5864, %v5863
    %v5915 = vpack.c.b16 %v5866, %v5865
    %v5916 = vpack.c.b16 %v5868, %v5867
    %v5917 = vpack.c.b16 %v5870, %v5869
    %v5918 = vpack.c.b16 %v5872, %v5871
    %v5919 = vpack.c.b16 %v5874, %v5873
    %v5920 = vpack.c.b16 %v5876, %v5875
    %v5921 = vpack.c.b16 %v5878, %v5877
    %v5922 = vpack.c.b16 %v5880, %v5879
    %v5923 = vpack.c.b16 %v5882, %v5881
    %v5924 = vpack.c.b16 %v5884, %v5883
    %5965 = vmatpush.bf16.msra.mxu0 %v5892
    %5966 = vmatpush.bf16.msra.mxu0 %v5891
    %5967 = vmatpush.bf16.msra.mxu0 %v5890
    %5968 = vmatpush.bf16.msra.mxu0 %v5889
    %5969 = vmatpush.bf16.msra.mxu0 %v5888
    %5970 = vmatpush.bf16.msra.mxu0 %v5887
    %5971 = vmatpush.bf16.msra.mxu0 %v5886
    %5972 = vmatpush.bf16.msra.mxu0 %v5885
    %5973 = vmatmul.bf16.gmra.mxu0 %v5681
    %v5974 = vpop.f32.mrf.mxu0
    %v5975 = vadd.f32 0.0, %v5974
    %v5976 = vpop.f32.mrf.mxu0
    %v5977 = vadd.f32 0.0, %v5976
    %5978 = vmatmul.bf16.gmra.mxu0 %v5683
    %v5979 = vpop.f32.mrf.mxu0
    %v5980 = vadd.f32 0.0, %v5979
    %v5981 = vpop.f32.mrf.mxu0
    %v5982 = vadd.f32 0.0, %v5981
    %5983 = vmatmul.bf16.gmra.mxu0 %v5685
    %v5984 = vpop.f32.mrf.mxu0
    %v5985 = vadd.f32 0.0, %v5984
    %v5986 = vpop.f32.mrf.mxu0
    %v5987 = vadd.f32 0.0, %v5986
    %5988 = vmatmul.bf16.gmra.mxu0 %v5687
    %v5989 = vpop.f32.mrf.mxu0
    %v5990 = vadd.f32 0.0, %v5989
    %v5991 = vpop.f32.mrf.mxu0
    %v5992 = vadd.f32 0.0, %v5991
    %5993 = vmatmul.bf16.gmra.mxu0 %v5692
    %v5994 = vpop.f32.mrf.mxu0
    %v5995 = vadd.f32 0.0, %v5994
    %v5996 = vpop.f32.mrf.mxu0
    %v5997 = vadd.f32 0.0, %v5996
    %5998 = vmatmul.bf16.gmra.mxu0 %v5694
    %v5999 = vpop.f32.mrf.mxu0
    %v6000 = vadd.f32 0.0, %v5999
    %v6001 = vpop.f32.mrf.mxu0
    %v6002 = vadd.f32 0.0, %v6001
    %6003 = vmatmul.bf16.gmra.mxu0 %v5696
    %v6004 = vpop.f32.mrf.mxu0
    %v6005 = vadd.f32 0.0, %v6004
    %v6006 = vpop.f32.mrf.mxu0
    %v6007 = vadd.f32 0.0, %v6006
    %6008 = vmatmul.bf16.gmra.mxu0 %v5698
    %v6009 = vpop.f32.mrf.mxu0
    %v6010 = vadd.f32 0.0, %v6009
    %v6011 = vpop.f32.mrf.mxu0
    %v6012 = vadd.f32 0.0, %v6011
    %6013 = vdwg.mxu0
    %6014 = vmatpush.bf16.msra.mxu0 %v5900
    %6015 = vmatpush.bf16.msra.mxu0 %v5899
    %6016 = vmatpush.bf16.msra.mxu0 %v5898
    %6017 = vmatpush.bf16.msra.mxu0 %v5897
    %6018 = vmatpush.bf16.msra.mxu0 %v5896
    %6019 = vmatpush.bf16.msra.mxu0 %v5895
    %6020 = vmatpush.bf16.msra.mxu0 %v5894
    %6021 = vmatpush.bf16.msra.mxu0 %v5893
    %6022 = vmatmul.bf16.gmra.mxu0 %v5682
    %v6023 = vpop.f32.mrf.mxu0
    %v6024 = vadd.f32 %v5975, %v6023
    %v6025 = vpop.f32.mrf.mxu0
    %v6026 = vadd.f32 %v5977, %v6025
    %6027 = vmatmul.bf16.gmra.mxu0 %v5684
    %v6028 = vpop.f32.mrf.mxu0
    %v6029 = vadd.f32 %v5980, %v6028
    %v6030 = vpop.f32.mrf.mxu0
    %v6031 = vadd.f32 %v5982, %v6030
    %6032 = vmatmul.bf16.gmra.mxu0 %v5686
    %v6033 = vpop.f32.mrf.mxu0
    %v6034 = vadd.f32 %v5985, %v6033
    %v6035 = vpop.f32.mrf.mxu0
    %v6036 = vadd.f32 %v5987, %v6035
    %6037 = vmatmul.bf16.gmra.mxu0 %v5688
    %v6038 = vpop.f32.mrf.mxu0
    %v6039 = vadd.f32 %v5990, %v6038
    %v6040 = vpop.f32.mrf.mxu0
    %v6041 = vadd.f32 %v5992, %v6040
    %6042 = vmatmul.bf16.gmra.mxu0 %v5693
    %v6043 = vpop.f32.mrf.mxu0
    %v6044 = vadd.f32 %v5995, %v6043
    %v6045 = vpop.f32.mrf.mxu0
    %v6046 = vadd.f32 %v5997, %v6045
    %6047 = vmatmul.bf16.gmra.mxu0 %v5695
    %v6048 = vpop.f32.mrf.mxu0
    %v6049 = vadd.f32 %v6000, %v6048
    %v6050 = vpop.f32.mrf.mxu0
    %v6051 = vadd.f32 %v6002, %v6050
    %6052 = vmatmul.bf16.gmra.mxu0 %v5697
    %v6053 = vpop.f32.mrf.mxu0
    %v6054 = vadd.f32 %v6005, %v6053
    %v6055 = vpop.f32.mrf.mxu0
    %v6056 = vadd.f32 %v6007, %v6055
    %6057 = vmatmul.bf16.gmra.mxu0 %v5699
    %v6058 = vpop.f32.mrf.mxu0
    %v6059 = vadd.f32 %v6010, %v6058
    %v6060 = vpop.f32.mrf.mxu0
    %v6061 = vadd.f32 %v6012, %v6060
    %6062 = vdwg.mxu0
    %6063 = vmatpush.bf16.msra.mxu0 %v5908
    %6064 = vmatpush.bf16.msra.mxu0 %v5907
    %6065 = vmatpush.bf16.msra.mxu0 %v5906
    %6066 = vmatpush.bf16.msra.mxu0 %v5905
    %6067 = vmatpush.bf16.msra.mxu0 %v5904
    %6068 = vmatpush.bf16.msra.mxu0 %v5903
    %6069 = vmatpush.bf16.msra.mxu0 %v5902
    %6070 = vmatpush.bf16.msra.mxu0 %v5901
    %6071 = vmatmul.bf16.gmra.mxu0 %v5683
    %v6072 = vpop.f32.mrf.mxu0
    %v6073 = vadd.f32 %v6024, %v6072
    %v6074 = vpop.f32.mrf.mxu0
    %v6075 = vadd.f32 %v6026, %v6074
    %6076 = vmatmul.bf16.gmra.mxu0 %v5685
    %v6077 = vpop.f32.mrf.mxu0
    %v6078 = vadd.f32 %v6029, %v6077
    %v6079 = vpop.f32.mrf.mxu0
    %v6080 = vadd.f32 %v6031, %v6079
    %6081 = vmatmul.bf16.gmra.mxu0 %v5687
    %v6082 = vpop.f32.mrf.mxu0
    %v6083 = vadd.f32 %v6034, %v6082
    %v6084 = vpop.f32.mrf.mxu0
    %v6085 = vadd.f32 %v6036, %v6084
    %6086 = vmatmul.bf16.gmra.mxu0 %v5689
    %v6087 = vpop.f32.mrf.mxu0
    %v6088 = vadd.f32 %v6039, %v6087
    %v6089 = vpop.f32.mrf.mxu0
    %v6090 = vadd.f32 %v6041, %v6089
    %6091 = vmatmul.bf16.gmra.mxu0 %v5694
    %v6092 = vpop.f32.mrf.mxu0
    %v6093 = vadd.f32 %v6044, %v6092
    %v6094 = vpop.f32.mrf.mxu0
    %v6095 = vadd.f32 %v6046, %v6094
    %6096 = vmatmul.bf16.gmra.mxu0 %v5696
    %v6097 = vpop.f32.mrf.mxu0
    %v6098 = vadd.f32 %v6049, %v6097
    %v6099 = vpop.f32.mrf.mxu0
    %v6100 = vadd.f32 %v6051, %v6099
    %6101 = vmatmul.bf16.gmra.mxu0 %v5698
    %v6102 = vpop.f32.mrf.mxu0
    %v6103 = vadd.f32 %v6054, %v6102
    %v6104 = vpop.f32.mrf.mxu0
    %v6105 = vadd.f32 %v6056, %v6104
    %6106 = vmatmul.bf16.gmra.mxu0 %v5700
    %v6107 = vpop.f32.mrf.mxu0
    %v6108 = vadd.f32 %v6059, %v6107
    %v6109 = vpop.f32.mrf.mxu0
    %v6110 = vadd.f32 %v6061, %v6109
    %6111 = vdwg.mxu0
    %6112 = vmatpush.bf16.msra.mxu0 %v5916
    %6113 = vmatpush.bf16.msra.mxu0 %v5915
    %6114 = vmatpush.bf16.msra.mxu0 %v5914
    %6115 = vmatpush.bf16.msra.mxu0 %v5913
    %6116 = vmatpush.bf16.msra.mxu0 %v5912
    %6117 = vmatpush.bf16.msra.mxu0 %v5911
    %6118 = vmatpush.bf16.msra.mxu0 %v5910
    %6119 = vmatpush.bf16.msra.mxu0 %v5909
    %6120 = vmatmul.bf16.gmra.mxu0 %v5684
    %v6121 = vpop.f32.mrf.mxu0
    %v6122 = vadd.f32 %v6073, %v6121
    %v6123 = vpop.f32.mrf.mxu0
    %v6124 = vadd.f32 %v6075, %v6123
    %6125 = vmatmul.bf16.gmra.mxu0 %v5686
    %v6126 = vpop.f32.mrf.mxu0
    %v6127 = vadd.f32 %v6078, %v6126
    %v6128 = vpop.f32.mrf.mxu0
    %v6129 = vadd.f32 %v6080, %v6128
    %6130 = vmatmul.bf16.gmra.mxu0 %v5688
    %v6131 = vpop.f32.mrf.mxu0
    %v6132 = vadd.f32 %v6083, %v6131
    %v6133 = vpop.f32.mrf.mxu0
    %v6134 = vadd.f32 %v6085, %v6133
    %6135 = vmatmul.bf16.gmra.mxu0 %v5690
    %v6136 = vpop.f32.mrf.mxu0
    %v6137 = vadd.f32 %v6088, %v6136
    %v6138 = vpop.f32.mrf.mxu0
    %v6139 = vadd.f32 %v6090, %v6138
    %6140 = vmatmul.bf16.gmra.mxu0 %v5695
    %v6141 = vpop.f32.mrf.mxu0
    %v6142 = vadd.f32 %v6093, %v6141
    %v6143 = vpop.f32.mrf.mxu0
    %v6144 = vadd.f32 %v6095, %v6143
    %6145 = vmatmul.bf16.gmra.mxu0 %v5697
    %v6146 = vpop.f32.mrf.mxu0
    %v6147 = vadd.f32 %v6098, %v6146
    %v6148 = vpop.f32.mrf.mxu0
    %v6149 = vadd.f32 %v6100, %v6148
    %6150 = vmatmul.bf16.gmra.mxu0 %v5699
    %v6151 = vpop.f32.mrf.mxu0
    %v6152 = vadd.f32 %v6103, %v6151
    %v6153 = vpop.f32.mrf.mxu0
    %v6154 = vadd.f32 %v6105, %v6153
    %6155 = vmatmul.bf16.gmra.mxu0 %v5701
    %v6156 = vpop.f32.mrf.mxu0
    %v6157 = vadd.f32 %v6108, %v6156
    %v6158 = vpop.f32.mrf.mxu0
    %v6159 = vadd.f32 %v6110, %v6158
    %6160 = vdwg.mxu0
    %6161 = vmatpush.bf16.msra.mxu0 %v5924
    %6162 = vmatpush.bf16.msra.mxu0 %v5923
    %6163 = vmatpush.bf16.msra.mxu0 %v5922
    %6164 = vmatpush.bf16.msra.mxu0 %v5921
    %6165 = vmatpush.bf16.msra.mxu0 %v5920
    %6166 = vmatpush.bf16.msra.mxu0 %v5919
    %6167 = vmatpush.bf16.msra.mxu0 %v5918
    %6168 = vmatpush.bf16.msra.mxu0 %v5917
    %6169 = vmatmul.bf16.gmra.mxu0 %v5685
    %v6170 = vpop.f32.mrf.mxu0
    %v6171 = vadd.f32 %v6122, %v6170
    %v6172 = vpop.f32.mrf.mxu0
    %v6173 = vadd.f32 %v6124, %v6172
    %6174 = vmatmul.bf16.gmra.mxu0 %v5687
    %v6175 = vpop.f32.mrf.mxu0
    %v6176 = vadd.f32 %v6127, %v6175
    %v6177 = vpop.f32.mrf.mxu0
    %v6178 = vadd.f32 %v6129, %v6177
    %6179 = vmatmul.bf16.gmra.mxu0 %v5689
    %v6180 = vpop.f32.mrf.mxu0
    %v6181 = vadd.f32 %v6132, %v6180
    %v6182 = vpop.f32.mrf.mxu0
    %v6183 = vadd.f32 %v6134, %v6182
    %6184 = vmatmul.bf16.gmra.mxu0 %v5691
    %v6185 = vpop.f32.mrf.mxu0
    %v6186 = vadd.f32 %v6137, %v6185
    %v6187 = vpop.f32.mrf.mxu0
    %v6188 = vadd.f32 %v6139, %v6187
    %6189 = vmatmul.bf16.gmra.mxu0 %v5696
    %v6190 = vpop.f32.mrf.mxu0
    %v6191 = vadd.f32 %v6142, %v6190
    %v6192 = vpop.f32.mrf.mxu0
    %v6193 = vadd.f32 %v6144, %v6192
    %6194 = vmatmul.bf16.gmra.mxu0 %v5698
    %v6195 = vpop.f32.mrf.mxu0
    %v6196 = vadd.f32 %v6147, %v6195
    %v6197 = vpop.f32.mrf.mxu0
    %v6198 = vadd.f32 %v6149, %v6197
    %6199 = vmatmul.bf16.gmra.mxu0 %v5700
    %v6200 = vpop.f32.mrf.mxu0
    %v6201 = vadd.f32 %v6152, %v6200
    %v6202 = vpop.f32.mrf.mxu0
    %v6203 = vadd.f32 %v6154, %v6202
    %6204 = vmatmul.bf16.gmra.mxu0 %v5702
    %v6205 = vpop.f32.mrf.mxu0
    %v6206 = vadd.f32 %v6157, %v6205
    %v6207 = vpop.f32.mrf.mxu0
    %v6208 = vadd.f32 %v6159, %v6207
    %6209 = vdwg.mxu0
    %v6210 = vadd.f32 %v5488, %v6171
    %v6211 = vadd.f32 %v5489, %v6173
    %v6212 = vadd.f32 %v5490, %v6176
    %v6213 = vadd.f32 %v5491, %v6178
    %v6214 = vadd.f32 %v5492, %v6181
    %v6215 = vadd.f32 %v5493, %v6183
    %v6216 = vadd.f32 %v5494, %v6186
    %v6217 = vadd.f32 %v5495, %v6188
    %v6218 = vadd.f32 %v5496, %v6191
    %v6219 = vadd.f32 %v5497, %v6193
    %v6220 = vadd.f32 %v5498, %v6196
    %v6221 = vadd.f32 %v5499, %v6198
    %v6222 = vadd.f32 %v5500, %v6201
    %v6223 = vadd.f32 %v5501, %v6203
    %v6224 = vadd.f32 %v5502, %v6206
    %v6225 = vadd.f32 %v5503, %v6208
    %v6226 = vmax.f32 %v6210, %v6211
    %v6227 = vmax.f32 %v6212, %v6213
    %v6228 = vmax.f32 %v6214, %v6215
    %v6229 = vmax.f32 %v6216, %v6217
    %v6230 = vmax.f32 %v6218, %v6219
    %v6231 = vmax.f32 %v6220, %v6221
    %v6232 = vmax.f32 %v6222, %v6223
    %v6233 = vmax.f32 %v6224, %v6225
    %v6236 = vrot.slane %v6226, 1
    %v6237 = vrot.slane %v6230, 1
    %v6240 = vmax.f32 %v6226, %v6236
    %v6241 = vmax.f32 %v6230, %v6237
    %v6242 = vld [vmem:[%s4] sm:$0x1]
    %v6244 = vperm.slane %v6242, 0
    %v6246 = vadd.f32 %v6240, %v6244
    %v6247 = vadd.f32 %v6241, %v6244
    %v6248 = vsub.f32 0.0, %v6246
    %v6249 = vsub.f32 0.0, %v6247
    %v6250 = vmul.f32 %v6248, 1.442695
    %v6251 = vpow.pop %v6250
    %v6252 = vmul.f32 %v6249, 1.442695
    %v6253 = vpow.pop %v6252
    %v6254 = vadd.f32 %v6251, 1.0
    %v6255 = vadd.f32 %v6253, 1.0
    %v6256 = vrcp.pop %v6254
    %v6257 = vrcp.pop %v6255
    %v6260 = vrot.slane %v6227, 1
    %v6261 = vrot.slane %v6231, 1
    %v6264 = vmax.f32 %v6227, %v6260
    %v6265 = vmax.f32 %v6231, %v6261
    %v6266 = vadd.f32 %v6264, %v6244
    %v6267 = vadd.f32 %v6265, %v6244
    %v6268 = vsub.f32 0.0, %v6266
    %v6269 = vsub.f32 0.0, %v6267
    %v6270 = vmul.f32 %v6268, 1.442695
    %v6271 = vpow.pop %v6270
    %v6272 = vmul.f32 %v6269, 1.442695
    %v6273 = vpow.pop %v6272
    %v6274 = vadd.f32 %v6271, 1.0
    %v6275 = vadd.f32 %v6273, 1.0
    %v6276 = vrcp.pop %v6274
    %v6277 = vrcp.pop %v6275
    %v6280 = vrot.slane %v6228, 1
    %v6281 = vrot.slane %v6232, 1
    %v6284 = vmax.f32 %v6228, %v6280
    %v6285 = vmax.f32 %v6232, %v6281
    %v6286 = vadd.f32 %v6284, %v6244
    %v6287 = vadd.f32 %v6285, %v6244
    %v6288 = vsub.f32 0.0, %v6286
    %v6289 = vsub.f32 0.0, %v6287
    %v6290 = vmul.f32 %v6288, 1.442695
    %v6291 = vpow.pop %v6290
    %v6292 = vmul.f32 %v6289, 1.442695
    %v6293 = vpow.pop %v6292
    %v6294 = vadd.f32 %v6291, 1.0
    %v6295 = vadd.f32 %v6293, 1.0
    %v6296 = vrcp.pop %v6294
    %v6297 = vrcp.pop %v6295
    %v6300 = vrot.slane %v6229, 1
    %v6301 = vrot.slane %v6233, 1
    %v6304 = vmax.f32 %v6229, %v6300
    %v6305 = vmax.f32 %v6233, %v6301
    %v6306 = vadd.f32 %v6304, %v6244
    %v6307 = vadd.f32 %v6305, %v6244
    %v6308 = vsub.f32 0.0, %v6306
    %v6309 = vsub.f32 0.0, %v6307
    %v6310 = vmul.f32 %v6308, 1.442695
    %v6311 = vpow.pop %v6310
    %v6312 = vmul.f32 %v6309, 1.442695
    %v6313 = vpow.pop %v6312
    %v6314 = vadd.f32 %v6311, 1.0
    %v6315 = vadd.f32 %v6313, 1.0
    %v6316 = vrcp.pop %v6314
    %v6317 = vrcp.pop %v6315
    %v6320 = vrot.slane %v6257, 7
    %vm6321 = vcmask 1041409
    %v6322 = vsel %vm6321, %v6320, %v6256
    %v6324 = vrot.slane %v6256, 2
    %v6325 = vrot.slane %v6257, 1
    %v6326 = vsel %vm6321, %v6325, %v6324
    %v6328 = vrot.slane %v6256, 4
    %v6329 = vrot.slane %v6257, 3
    %v6330 = vsel %vm6321, %v6329, %v6328
    %v6332 = vrot.slane %v6256, 6
    %v6333 = vrot.slane %v6257, 5
    %v6334 = vsel %vm6321, %v6333, %v6332
    %v6338 = vrot.slane %v6277, 7
    %v6339 = vsel %vm6321, %v6338, %v6276
    %v6341 = vrot.slane %v6276, 2
    %v6342 = vrot.slane %v6277, 1
    %v6343 = vsel %vm6321, %v6342, %v6341
    %v6345 = vrot.slane %v6276, 4
    %v6346 = vrot.slane %v6277, 3
    %v6347 = vsel %vm6321, %v6346, %v6345
    %v6349 = vrot.slane %v6276, 6
    %v6350 = vrot.slane %v6277, 5
    %v6351 = vsel %vm6321, %v6350, %v6349
    %v6355 = vrot.slane %v6297, 7
    %v6356 = vsel %vm6321, %v6355, %v6296
    %v6358 = vrot.slane %v6296, 2
    %v6359 = vrot.slane %v6297, 1
    %v6360 = vsel %vm6321, %v6359, %v6358
    %v6362 = vrot.slane %v6296, 4
    %v6363 = vrot.slane %v6297, 3
    %v6364 = vsel %vm6321, %v6363, %v6362
    %v6366 = vrot.slane %v6296, 6
    %v6367 = vrot.slane %v6297, 5
    %v6368 = vsel %vm6321, %v6367, %v6366
    %v6372 = vrot.slane %v6317, 7
    %v6373 = vsel %vm6321, %v6372, %v6316
    %v6375 = vrot.slane %v6316, 2
    %v6376 = vrot.slane %v6317, 1
    %v6377 = vsel %vm6321, %v6376, %v6375
    %v6379 = vrot.slane %v6316, 4
    %v6380 = vrot.slane %v6317, 3
    %v6381 = vsel %vm6321, %v6380, %v6379
    %v6383 = vrot.slane %v6316, 6
    %v6384 = vrot.slane %v6317, 5
    %v6385 = vsel %vm6321, %v6384, %v6383
    %v6387 = vpack.c.bf16 %v6322, %v6322
    %v6388 = vpack.c.bf16 %v6326, %v6326
    %v6389 = vpack.c.bf16 %v6330, %v6330
    %v6390 = vpack.c.bf16 %v6334, %v6334
    %v6391 = vpack.c.bf16 %v6339, %v6339
    %v6392 = vpack.c.bf16 %v6343, %v6343
    %v6393 = vpack.c.bf16 %v6347, %v6347
    %v6394 = vpack.c.bf16 %v6351, %v6351
    %v6395 = vpack.c.bf16 %v6356, %v6356
    %v6396 = vpack.c.bf16 %v6360, %v6360
    %v6397 = vpack.c.bf16 %v6364, %v6364
    %v6398 = vpack.c.bf16 %v6368, %v6368
    %v6399 = vpack.c.bf16 %v6373, %v6373
    %v6400 = vpack.c.bf16 %v6377, %v6377
    %v6401 = vpack.c.bf16 %v6381, %v6381
    %v6402 = vpack.c.bf16 %v6385, %v6385
    %v6403 = vld [vmem:[#allocation4] sm:$0xf]
    %v6404 = vld [vmem:[#allocation4 + $0x4] sm:$0xf]
    %v6405 = vld [vmem:[#allocation4 + $0x8] sm:$0xf]
    %v6406 = vld [vmem:[#allocation4 + $0xc] sm:$0xf]
    %v6407 = vld [vmem:[#allocation4 + $0x10] sm:$0xf]
    %v6408 = vld [vmem:[#allocation4 + $0x14] sm:$0xf]
    %v6409 = vld [vmem:[#allocation4 + $0x18] sm:$0xf]
    %v6410 = vld [vmem:[#allocation4 + $0x1c] sm:$0xf]
    %v6411 = vld [vmem:[#allocation4 + $0x20] sm:$0xf]
    %v6412 = vld [vmem:[#allocation4 + $0x24] sm:$0xf]
    %v6413 = vld [vmem:[#allocation4 + $0x28] sm:$0xf]
    %v6414 = vld [vmem:[#allocation4 + $0x2c] sm:$0xf]
    %v6415 = vld [vmem:[#allocation4 + $0x30] sm:$0xf]
    %v6416 = vld [vmem:[#allocation4 + $0x34] sm:$0xf]
    %v6417 = vld [vmem:[#allocation4 + $0x38] sm:$0xf]
    %v6418 = vld [vmem:[#allocation4 + $0x3c] sm:$0xf]
    %v6419 = vld [vmem:[#allocation4 + $0x40] sm:$0xf]
    %v6420 = vld [vmem:[#allocation4 + $0x44] sm:$0xf]
    %v6421 = vld [vmem:[#allocation4 + $0x48] sm:$0xf]
    %v6422 = vld [vmem:[#allocation4 + $0x4c] sm:$0xf]
    %v6423 = vld [vmem:[#allocation4 + $0x50] sm:$0xf]
    %v6424 = vld [vmem:[#allocation4 + $0x54] sm:$0xf]
    %v6425 = vld [vmem:[#allocation4 + $0x58] sm:$0xf]
    %v6426 = vld [vmem:[#allocation4 + $0x5c] sm:$0xf]
    %v6427 = vld [vmem:[#allocation4 + $0x60] sm:$0xf]
    %v6428 = vld [vmem:[#allocation4 + $0x64] sm:$0xf]
    %v6429 = vld [vmem:[#allocation4 + $0x68] sm:$0xf]
    %v6430 = vld [vmem:[#allocation4 + $0x6c] sm:$0xf]
    %v6431 = vld [vmem:[#allocation4 + $0x70] sm:$0xf]
    %v6432 = vld [vmem:[#allocation4 + $0x74] sm:$0xf]
    %v6433 = vld [vmem:[#allocation4 + $0x78] sm:$0xf]
    %v6434 = vld [vmem:[#allocation4 + $0x7c] sm:$0xf]
    %v6435 = vld [vmem:[#allocation4 + $0x80] sm:$0xf]
    %v6436 = vld [vmem:[#allocation4 + $0x84] sm:$0xf]
    %v6437 = vld [vmem:[#allocation4 + $0x88] sm:$0xf]
    %v6438 = vld [vmem:[#allocation4 + $0x8c] sm:$0xf]
    %v6439 = vld [vmem:[#allocation4 + $0x90] sm:$0xf]
    %v6440 = vld [vmem:[#allocation4 + $0x94] sm:$0xf]
    %v6441 = vld [vmem:[#allocation4 + $0x98] sm:$0xf]
    %v6442 = vld [vmem:[#allocation4 + $0x9c] sm:$0xf]
    %v6443 = vld [vmem:[#allocation4 + $0xa0] sm:$0xf]
    %v6444 = vld [vmem:[#allocation4 + $0xa4] sm:$0xf]
    %v6445 = vld [vmem:[#allocation4 + $0xa8] sm:$0xf]
    %v6446 = vld [vmem:[#allocation4 + $0xac] sm:$0xf]
    %v6447 = vld [vmem:[#allocation4 + $0xb0] sm:$0xf]
    %v6448 = vld [vmem:[#allocation4 + $0xb4] sm:$0xf]
    %v6449 = vld [vmem:[#allocation4 + $0xb8] sm:$0xf]
    %v6450 = vld [vmem:[#allocation4 + $0xbc] sm:$0xf]
    %v6451 = vld [vmem:[#allocation4 + $0xc0] sm:$0xf]
    %v6452 = vld [vmem:[#allocation4 + $0xc4] sm:$0xf]
    %v6453 = vld [vmem:[#allocation4 + $0xc8] sm:$0xf]
    %v6454 = vld [vmem:[#allocation4 + $0xcc] sm:$0xf]
    %v6455 = vld [vmem:[#allocation4 + $0xd0] sm:$0xf]
    %v6456 = vld [vmem:[#allocation4 + $0xd4] sm:$0xf]
    %v6457 = vld [vmem:[#allocation4 + $0xd8] sm:$0xf]
    %v6458 = vld [vmem:[#allocation4 + $0xdc] sm:$0xf]
    %v6459 = vld [vmem:[#allocation4 + $0xe0] sm:$0xf]
    %v6460 = vld [vmem:[#allocation4 + $0xe4] sm:$0xf]
    %v6461 = vld [vmem:[#allocation4 + $0xe8] sm:$0xf]
    %v6462 = vld [vmem:[#allocation4 + $0xec] sm:$0xf]
    %v6463 = vld [vmem:[#allocation4 + $0xf0] sm:$0xf]
    %v6464 = vld [vmem:[#allocation4 + $0xf4] sm:$0xf]
    %v6465 = vld [vmem:[#allocation4 + $0xf8] sm:$0xf]
    %v6466 = vld [vmem:[#allocation4 + $0xfc] sm:$0xf]
    %v6467 = vld [vmem:[#allocation4 + $0x100] sm:$0xf]
    %v6468 = vld [vmem:[#allocation4 + $0x104] sm:$0xf]
    %v6469 = vld [vmem:[#allocation4 + $0x108] sm:$0xf]
    %v6470 = vld [vmem:[#allocation4 + $0x10c] sm:$0xf]
    %v6471 = vld [vmem:[#allocation4 + $0x110] sm:$0xf]
    %v6472 = vld [vmem:[#allocation4 + $0x114] sm:$0xf]
    %v6473 = vld [vmem:[#allocation4 + $0x118] sm:$0xf]
    %v6474 = vld [vmem:[#allocation4 + $0x11c] sm:$0xf]
    %v6475 = vld [vmem:[#allocation4 + $0x120] sm:$0xf]
    %v6476 = vld [vmem:[#allocation4 + $0x124] sm:$0xf]
    %v6477 = vld [vmem:[#allocation4 + $0x128] sm:$0xf]
    %v6478 = vld [vmem:[#allocation4 + $0x12c] sm:$0xf]
    %v6479 = vld [vmem:[#allocation4 + $0x130] sm:$0xf]
    %v6480 = vld [vmem:[#allocation4 + $0x134] sm:$0xf]
    %v6481 = vld [vmem:[#allocation4 + $0x138] sm:$0xf]
    %v6482 = vld [vmem:[#allocation4 + $0x13c] sm:$0xf]
    %v6483 = vld [vmem:[#allocation4 + $0x140] sm:$0xf]
    %v6484 = vld [vmem:[#allocation4 + $0x144] sm:$0xf]
    %v6485 = vld [vmem:[#allocation4 + $0x148] sm:$0xf]
    %v6486 = vld [vmem:[#allocation4 + $0x14c] sm:$0xf]
    %v6487 = vld [vmem:[#allocation4 + $0x150] sm:$0xf]
    %v6488 = vld [vmem:[#allocation4 + $0x154] sm:$0xf]
    %v6489 = vld [vmem:[#allocation4 + $0x158] sm:$0xf]
    %v6490 = vld [vmem:[#allocation4 + $0x15c] sm:$0xf]
    %v6491 = vld [vmem:[#allocation4 + $0x160] sm:$0xf]
    %v6492 = vld [vmem:[#allocation4 + $0x164] sm:$0xf]
    %v6493 = vld [vmem:[#allocation4 + $0x168] sm:$0xf]
    %v6494 = vld [vmem:[#allocation4 + $0x16c] sm:$0xf]
    %v6495 = vld [vmem:[#allocation4 + $0x170] sm:$0xf]
    %v6496 = vld [vmem:[#allocation4 + $0x174] sm:$0xf]
    %v6497 = vld [vmem:[#allocation4 + $0x178] sm:$0xf]
    %v6498 = vld [vmem:[#allocation4 + $0x17c] sm:$0xf]
    %v6499 = vld [vmem:[#allocation4 + $0x180] sm:$0xf]
    %v6500 = vld [vmem:[#allocation4 + $0x184] sm:$0xf]
    %v6501 = vld [vmem:[#allocation4 + $0x188] sm:$0xf]
    %v6502 = vld [vmem:[#allocation4 + $0x18c] sm:$0xf]
    %v6503 = vld [vmem:[#allocation4 + $0x190] sm:$0xf]
    %v6504 = vld [vmem:[#allocation4 + $0x194] sm:$0xf]
    %v6505 = vld [vmem:[#allocation4 + $0x198] sm:$0xf]
    %v6506 = vld [vmem:[#allocation4 + $0x19c] sm:$0xf]
    %v6507 = vld [vmem:[#allocation4 + $0x1a0] sm:$0xf]
    %v6508 = vld [vmem:[#allocation4 + $0x1a4] sm:$0xf]
    %v6509 = vld [vmem:[#allocation4 + $0x1a8] sm:$0xf]
    %v6510 = vld [vmem:[#allocation4 + $0x1ac] sm:$0xf]
    %v6511 = vld [vmem:[#allocation4 + $0x1b0] sm:$0xf]
    %v6512 = vld [vmem:[#allocation4 + $0x1b4] sm:$0xf]
    %v6513 = vld [vmem:[#allocation4 + $0x1b8] sm:$0xf]
    %v6514 = vld [vmem:[#allocation4 + $0x1bc] sm:$0xf]
    %v6515 = vld [vmem:[#allocation4 + $0x1c0] sm:$0xf]
    %v6516 = vld [vmem:[#allocation4 + $0x1c4] sm:$0xf]
    %v6517 = vld [vmem:[#allocation4 + $0x1c8] sm:$0xf]
    %v6518 = vld [vmem:[#allocation4 + $0x1cc] sm:$0xf]
    %v6519 = vld [vmem:[#allocation4 + $0x1d0] sm:$0xf]
    %v6520 = vld [vmem:[#allocation4 + $0x1d4] sm:$0xf]
    %v6521 = vld [vmem:[#allocation4 + $0x1d8] sm:$0xf]
    %v6522 = vld [vmem:[#allocation4 + $0x1dc] sm:$0xf]
    %v6523 = vld [vmem:[#allocation4 + $0x1e0] sm:$0xf]
    %v6524 = vld [vmem:[#allocation4 + $0x1e4] sm:$0xf]
    %v6525 = vld [vmem:[#allocation4 + $0x1e8] sm:$0xf]
    %v6526 = vld [vmem:[#allocation4 + $0x1ec] sm:$0xf]
    %v6527 = vld [vmem:[#allocation4 + $0x1f0] sm:$0xf]
    %v6528 = vld [vmem:[#allocation4 + $0x1f4] sm:$0xf]
    %v6529 = vld [vmem:[#allocation4 + $0x1f8] sm:$0xf]
    %v6530 = vld [vmem:[#allocation4 + $0x1fc] sm:$0xf]
    %v6531 = vld [vmem:[#allocation4 + $0x200] sm:$0xf]
    %v6532 = vld [vmem:[#allocation4 + $0x204] sm:$0xf]
    %v6533 = vld [vmem:[#allocation4 + $0x208] sm:$0xf]
    %v6534 = vld [vmem:[#allocation4 + $0x20c] sm:$0xf]
    %v6535 = vld [vmem:[#allocation4 + $0x210] sm:$0xf]
    %v6536 = vld [vmem:[#allocation4 + $0x214] sm:$0xf]
    %v6537 = vld [vmem:[#allocation4 + $0x218] sm:$0xf]
    %v6538 = vld [vmem:[#allocation4 + $0x21c] sm:$0xf]
    %v6539 = vld [vmem:[#allocation4 + $0x220] sm:$0xf]
    %v6540 = vld [vmem:[#allocation4 + $0x224] sm:$0xf]
    %v6541 = vld [vmem:[#allocation4 + $0x228] sm:$0xf]
    %v6542 = vld [vmem:[#allocation4 + $0x22c] sm:$0xf]
    %v6543 = vld [vmem:[#allocation4 + $0x230] sm:$0xf]
    %v6544 = vld [vmem:[#allocation4 + $0x234] sm:$0xf]
    %v6545 = vld [vmem:[#allocation4 + $0x238] sm:$0xf]
    %v6546 = vld [vmem:[#allocation4 + $0x23c] sm:$0xf]
    %v6547 = vld [vmem:[#allocation4 + $0x240] sm:$0xf]
    %v6548 = vld [vmem:[#allocation4 + $0x244] sm:$0xf]
    %v6549 = vld [vmem:[#allocation4 + $0x248] sm:$0xf]
    %v6550 = vld [vmem:[#allocation4 + $0x24c] sm:$0xf]
    %v6551 = vld [vmem:[#allocation4 + $0x250] sm:$0xf]
    %v6552 = vld [vmem:[#allocation4 + $0x254] sm:$0xf]
    %v6553 = vld [vmem:[#allocation4 + $0x258] sm:$0xf]
    %v6554 = vld [vmem:[#allocation4 + $0x25c] sm:$0xf]
    %v6555 = vld [vmem:[#allocation4 + $0x260] sm:$0xf]
    %v6556 = vld [vmem:[#allocation4 + $0x264] sm:$0xf]
    %v6557 = vld [vmem:[#allocation4 + $0x268] sm:$0xf]
    %v6558 = vld [vmem:[#allocation4 + $0x26c] sm:$0xf]
    %v6559 = vld [vmem:[#allocation4 + $0x270] sm:$0xf]
    %v6560 = vld [vmem:[#allocation4 + $0x274] sm:$0xf]
    %v6561 = vld [vmem:[#allocation4 + $0x278] sm:$0xf]
    %v6562 = vld [vmem:[#allocation4 + $0x27c] sm:$0xf]
    %v6563 = vld [vmem:[#allocation4 + $0x280] sm:$0xf]
    %v6564 = vld [vmem:[#allocation4 + $0x284] sm:$0xf]
    %v6565 = vld [vmem:[#allocation4 + $0x288] sm:$0xf]
    %v6566 = vld [vmem:[#allocation4 + $0x28c] sm:$0xf]
    %v6567 = vld [vmem:[#allocation4 + $0x290] sm:$0xf]
    %v6568 = vld [vmem:[#allocation4 + $0x294] sm:$0xf]
    %v6569 = vld [vmem:[#allocation4 + $0x298] sm:$0xf]
    %v6570 = vld [vmem:[#allocation4 + $0x29c] sm:$0xf]
    %v6571 = vld [vmem:[#allocation4 + $0x2a0] sm:$0xf]
    %v6572 = vld [vmem:[#allocation4 + $0x2a4] sm:$0xf]
    %v6573 = vld [vmem:[#allocation4 + $0x2a8] sm:$0xf]
    %v6574 = vld [vmem:[#allocation4 + $0x2ac] sm:$0xf]
    %v6575 = vld [vmem:[#allocation4 + $0x2b0] sm:$0xf]
    %v6576 = vld [vmem:[#allocation4 + $0x2b4] sm:$0xf]
    %v6577 = vld [vmem:[#allocation4 + $0x2b8] sm:$0xf]
    %v6578 = vld [vmem:[#allocation4 + $0x2bc] sm:$0xf]
    %v6579 = vld [vmem:[#allocation4 + $0x2c0] sm:$0xf]
    %v6580 = vld [vmem:[#allocation4 + $0x2c4] sm:$0xf]
    %v6581 = vld [vmem:[#allocation4 + $0x2c8] sm:$0xf]
    %v6582 = vld [vmem:[#allocation4 + $0x2cc] sm:$0xf]
    %v6583 = vld [vmem:[#allocation4 + $0x2d0] sm:$0xf]
    %v6584 = vld [vmem:[#allocation4 + $0x2d4] sm:$0xf]
    %v6585 = vld [vmem:[#allocation4 + $0x2d8] sm:$0xf]
    %v6586 = vld [vmem:[#allocation4 + $0x2dc] sm:$0xf]
    %v6587 = vld [vmem:[#allocation4 + $0x2e0] sm:$0xf]
    %v6588 = vld [vmem:[#allocation4 + $0x2e4] sm:$0xf]
    %v6589 = vld [vmem:[#allocation4 + $0x2e8] sm:$0xf]
    %v6590 = vld [vmem:[#allocation4 + $0x2ec] sm:$0xf]
    %v6591 = vld [vmem:[#allocation4 + $0x2f0] sm:$0xf]
    %v6592 = vld [vmem:[#allocation4 + $0x2f4] sm:$0xf]
    %v6593 = vld [vmem:[#allocation4 + $0x2f8] sm:$0xf]
    %v6594 = vld [vmem:[#allocation4 + $0x2fc] sm:$0xf]
    %v6595 = vld [vmem:[#allocation4 + $0x300] sm:$0xf]
    %v6596 = vld [vmem:[#allocation4 + $0x304] sm:$0xf]
    %v6597 = vld [vmem:[#allocation4 + $0x308] sm:$0xf]
    %v6598 = vld [vmem:[#allocation4 + $0x30c] sm:$0xf]
    %v6599 = vld [vmem:[#allocation4 + $0x310] sm:$0xf]
    %v6600 = vld [vmem:[#allocation4 + $0x314] sm:$0xf]
    %v6601 = vld [vmem:[#allocation4 + $0x318] sm:$0xf]
    %v6602 = vld [vmem:[#allocation4 + $0x31c] sm:$0xf]
    %v6603 = vld [vmem:[#allocation4 + $0x320] sm:$0xf]
    %v6604 = vld [vmem:[#allocation4 + $0x324] sm:$0xf]
    %v6605 = vld [vmem:[#allocation4 + $0x328] sm:$0xf]
    %v6606 = vld [vmem:[#allocation4 + $0x32c] sm:$0xf]
    %v6607 = vld [vmem:[#allocation4 + $0x330] sm:$0xf]
    %v6608 = vld [vmem:[#allocation4 + $0x334] sm:$0xf]
    %v6609 = vld [vmem:[#allocation4 + $0x338] sm:$0xf]
    %v6610 = vld [vmem:[#allocation4 + $0x33c] sm:$0xf]
    %v6611 = vld [vmem:[#allocation4 + $0x340] sm:$0xf]
    %v6612 = vld [vmem:[#allocation4 + $0x344] sm:$0xf]
    %v6613 = vld [vmem:[#allocation4 + $0x348] sm:$0xf]
    %v6614 = vld [vmem:[#allocation4 + $0x34c] sm:$0xf]
    %v6615 = vld [vmem:[#allocation4 + $0x350] sm:$0xf]
    %v6616 = vld [vmem:[#allocation4 + $0x354] sm:$0xf]
    %v6617 = vld [vmem:[#allocation4 + $0x358] sm:$0xf]
    %v6618 = vld [vmem:[#allocation4 + $0x35c] sm:$0xf]
    %v6619 = vld [vmem:[#allocation4 + $0x360] sm:$0xf]
    %v6620 = vld [vmem:[#allocation4 + $0x364] sm:$0xf]
    %v6621 = vld [vmem:[#allocation4 + $0x368] sm:$0xf]
    %v6622 = vld [vmem:[#allocation4 + $0x36c] sm:$0xf]
    %v6623 = vld [vmem:[#allocation4 + $0x370] sm:$0xf]
    %v6624 = vld [vmem:[#allocation4 + $0x374] sm:$0xf]
    %v6625 = vld [vmem:[#allocation4 + $0x378] sm:$0xf]
    %v6626 = vld [vmem:[#allocation4 + $0x37c] sm:$0xf]
    %v6627 = vld [vmem:[#allocation4 + $0x380] sm:$0xf]
    %v6628 = vld [vmem:[#allocation4 + $0x384] sm:$0xf]
    %v6629 = vld [vmem:[#allocation4 + $0x388] sm:$0xf]
    %v6630 = vld [vmem:[#allocation4 + $0x38c] sm:$0xf]
    %v6631 = vld [vmem:[#allocation4 + $0x390] sm:$0xf]
    %v6632 = vld [vmem:[#allocation4 + $0x394] sm:$0xf]
    %v6633 = vld [vmem:[#allocation4 + $0x398] sm:$0xf]
    %v6634 = vld [vmem:[#allocation4 + $0x39c] sm:$0xf]
    %v6635 = vld [vmem:[#allocation4 + $0x3a0] sm:$0xf]
    %v6636 = vld [vmem:[#allocation4 + $0x3a4] sm:$0xf]
    %v6637 = vld [vmem:[#allocation4 + $0x3a8] sm:$0xf]
    %v6638 = vld [vmem:[#allocation4 + $0x3ac] sm:$0xf]
    %v6639 = vld [vmem:[#allocation4 + $0x3b0] sm:$0xf]
    %v6640 = vld [vmem:[#allocation4 + $0x3b4] sm:$0xf]
    %v6641 = vld [vmem:[#allocation4 + $0x3b8] sm:$0xf]
    %v6642 = vld [vmem:[#allocation4 + $0x3bc] sm:$0xf]
    %v6643 = vld [vmem:[#allocation4 + $0x3c0] sm:$0xf]
    %v6644 = vld [vmem:[#allocation4 + $0x3c4] sm:$0xf]
    %v6645 = vld [vmem:[#allocation4 + $0x3c8] sm:$0xf]
    %v6646 = vld [vmem:[#allocation4 + $0x3cc] sm:$0xf]
    %v6647 = vld [vmem:[#allocation4 + $0x3d0] sm:$0xf]
    %v6648 = vld [vmem:[#allocation4 + $0x3d4] sm:$0xf]
    %v6649 = vld [vmem:[#allocation4 + $0x3d8] sm:$0xf]
    %v6650 = vld [vmem:[#allocation4 + $0x3dc] sm:$0xf]
    %v6651 = vld [vmem:[#allocation4 + $0x3e0] sm:$0xf]
    %v6652 = vld [vmem:[#allocation4 + $0x3e4] sm:$0xf]
    %v6653 = vld [vmem:[#allocation4 + $0x3e8] sm:$0xf]
    %v6654 = vld [vmem:[#allocation4 + $0x3ec] sm:$0xf]
    %v6655 = vld [vmem:[#allocation4 + $0x3f0] sm:$0xf]
    %v6656 = vld [vmem:[#allocation4 + $0x3f4] sm:$0xf]
    %v6657 = vld [vmem:[#allocation4 + $0x3f8] sm:$0xf]
    %v6658 = vld [vmem:[#allocation4 + $0x3fc] sm:$0xf]
    %v6659 = vld [vmem:[%s6] sm:$0x1]
    %v6661 = vperm.slane %v6659, 0
    %v6919 = vunpack.c.l.b16 %v6403
    %v6920 = vunpack.c.l.b16 %v6404
    %v6921 = vunpack.c.l.b16 %v6405
    %v6922 = vunpack.c.l.b16 %v6406
    %v6923 = vunpack.c.l.b16 %v6407
    %v6924 = vunpack.c.l.b16 %v6408
    %v6925 = vunpack.c.l.b16 %v6409
    %v6926 = vunpack.c.l.b16 %v6410
    %v6927 = vunpack.c.l.b16 %v6411
    %v6928 = vunpack.c.l.b16 %v6412
    %v6929 = vunpack.c.l.b16 %v6413
    %v6930 = vunpack.c.l.b16 %v6414
    %v6931 = vunpack.c.l.b16 %v6415
    %v6932 = vunpack.c.l.b16 %v6416
    %v6933 = vunpack.c.l.b16 %v6417
    %v6934 = vunpack.c.l.b16 %v6418
    %v6935 = vunpack.c.l.b16 %v6419
    %v6936 = vunpack.c.l.b16 %v6420
    %v6937 = vunpack.c.l.b16 %v6421
    %v6938 = vunpack.c.l.b16 %v6422
    %v6939 = vunpack.c.l.b16 %v6423
    %v6940 = vunpack.c.l.b16 %v6424
    %v6941 = vunpack.c.l.b16 %v6425
    %v6942 = vunpack.c.l.b16 %v6426
    %v6943 = vunpack.c.l.b16 %v6427
    %v6944 = vunpack.c.l.b16 %v6428
    %v6945 = vunpack.c.l.b16 %v6429
    %v6946 = vunpack.c.l.b16 %v6430
    %v6947 = vunpack.c.l.b16 %v6431
    %v6948 = vunpack.c.l.b16 %v6432
    %v6949 = vunpack.c.l.b16 %v6433
    %v6950 = vunpack.c.l.b16 %v6434
    %v6951 = vunpack.c.l.b16 %v6435
    %v6952 = vunpack.c.l.b16 %v6436
    %v6953 = vunpack.c.l.b16 %v6437
    %v6954 = vunpack.c.l.b16 %v6438
    %v6955 = vunpack.c.l.b16 %v6439
    %v6956 = vunpack.c.l.b16 %v6440
    %v6957 = vunpack.c.l.b16 %v6441
    %v6958 = vunpack.c.l.b16 %v6442
    %v6959 = vunpack.c.l.b16 %v6443
    %v6960 = vunpack.c.l.b16 %v6444
    %v6961 = vunpack.c.l.b16 %v6445
    %v6962 = vunpack.c.l.b16 %v6446
    %v6963 = vunpack.c.l.b16 %v6447
    %v6964 = vunpack.c.l.b16 %v6448
    %v6965 = vunpack.c.l.b16 %v6449
    %v6966 = vunpack.c.l.b16 %v6450
    %v6967 = vunpack.c.l.b16 %v6451
    %v6968 = vunpack.c.l.b16 %v6452
    %v6969 = vunpack.c.l.b16 %v6453
    %v6970 = vunpack.c.l.b16 %v6454
    %v6971 = vunpack.c.l.b16 %v6455
    %v6972 = vunpack.c.l.b16 %v6456
    %v6973 = vunpack.c.l.b16 %v6457
    %v6974 = vunpack.c.l.b16 %v6458
    %v6975 = vunpack.c.l.b16 %v6459
    %v6976 = vunpack.c.l.b16 %v6460
    %v6977 = vunpack.c.l.b16 %v6461
    %v6978 = vunpack.c.l.b16 %v6462
    %v6979 = vunpack.c.l.b16 %v6463
    %v6980 = vunpack.c.l.b16 %v6464
    %v6981 = vunpack.c.l.b16 %v6465
    %v6982 = vunpack.c.l.b16 %v6466
    %v6983 = vunpack.c.l.b16 %v6467
    %v6984 = vunpack.c.l.b16 %v6468
    %v6985 = vunpack.c.l.b16 %v6469
    %v6986 = vunpack.c.l.b16 %v6470
    %v6987 = vunpack.c.l.b16 %v6471
    %v6988 = vunpack.c.l.b16 %v6472
    %v6989 = vunpack.c.l.b16 %v6473
    %v6990 = vunpack.c.l.b16 %v6474
    %v6991 = vunpack.c.l.b16 %v6475
    %v6992 = vunpack.c.l.b16 %v6476
    %v6993 = vunpack.c.l.b16 %v6477
    %v6994 = vunpack.c.l.b16 %v6478
    %v6995 = vunpack.c.l.b16 %v6479
    %v6996 = vunpack.c.l.b16 %v6480
    %v6997 = vunpack.c.l.b16 %v6481
    %v6998 = vunpack.c.l.b16 %v6482
    %v6999 = vunpack.c.l.b16 %v6483
    %v7000 = vunpack.c.l.b16 %v6484
    %v7001 = vunpack.c.l.b16 %v6485
    %v7002 = vunpack.c.l.b16 %v6486
    %v7003 = vunpack.c.l.b16 %v6487
    %v7004 = vunpack.c.l.b16 %v6488
    %v7005 = vunpack.c.l.b16 %v6489
    %v7006 = vunpack.c.l.b16 %v6490
    %v7007 = vunpack.c.l.b16 %v6491
    %v7008 = vunpack.c.l.b16 %v6492
    %v7009 = vunpack.c.l.b16 %v6493
    %v7010 = vunpack.c.l.b16 %v6494
    %v7011 = vunpack.c.l.b16 %v6495
    %v7012 = vunpack.c.l.b16 %v6496
    %v7013 = vunpack.c.l.b16 %v6497
    %v7014 = vunpack.c.l.b16 %v6498
    %v7015 = vunpack.c.l.b16 %v6499
    %v7016 = vunpack.c.l.b16 %v6500
    %v7017 = vunpack.c.l.b16 %v6501
    %v7018 = vunpack.c.l.b16 %v6502
    %v7019 = vunpack.c.l.b16 %v6503
    %v7020 = vunpack.c.l.b16 %v6504
    %v7021 = vunpack.c.l.b16 %v6505
    %v7022 = vunpack.c.l.b16 %v6506
    %v7023 = vunpack.c.l.b16 %v6507
    %v7024 = vunpack.c.l.b16 %v6508
    %v7025 = vunpack.c.l.b16 %v6509
    %v7026 = vunpack.c.l.b16 %v6510
    %v7027 = vunpack.c.l.b16 %v6511
    %v7028 = vunpack.c.l.b16 %v6512
    %v7029 = vunpack.c.l.b16 %v6513
    %v7030 = vunpack.c.l.b16 %v6514
    %v7031 = vunpack.c.l.b16 %v6515
    %v7032 = vunpack.c.l.b16 %v6516
    %v7033 = vunpack.c.l.b16 %v6517
    %v7034 = vunpack.c.l.b16 %v6518
    %v7035 = vunpack.c.l.b16 %v6519
    %v7036 = vunpack.c.l.b16 %v6520
    %v7037 = vunpack.c.l.b16 %v6521
    %v7038 = vunpack.c.l.b16 %v6522
    %v7039 = vunpack.c.l.b16 %v6523
    %v7040 = vunpack.c.l.b16 %v6524
    %v7041 = vunpack.c.l.b16 %v6525
    %v7042 = vunpack.c.l.b16 %v6526
    %v7043 = vunpack.c.l.b16 %v6527
    %v7044 = vunpack.c.l.b16 %v6528
    %v7045 = vunpack.c.l.b16 %v6529
    %v7046 = vunpack.c.l.b16 %v6530
    %v7047 = vunpack.c.l.b16 %v6531
    %v7048 = vunpack.c.l.b16 %v6532
    %v7049 = vunpack.c.l.b16 %v6533
    %v7050 = vunpack.c.l.b16 %v6534
    %v7051 = vunpack.c.l.b16 %v6535
    %v7052 = vunpack.c.l.b16 %v6536
    %v7053 = vunpack.c.l.b16 %v6537
    %v7054 = vunpack.c.l.b16 %v6538
    %v7055 = vunpack.c.l.b16 %v6539
    %v7056 = vunpack.c.l.b16 %v6540
    %v7057 = vunpack.c.l.b16 %v6541
    %v7058 = vunpack.c.l.b16 %v6542
    %v7059 = vunpack.c.l.b16 %v6543
    %v7060 = vunpack.c.l.b16 %v6544
    %v7061 = vunpack.c.l.b16 %v6545
    %v7062 = vunpack.c.l.b16 %v6546
    %v7063 = vunpack.c.l.b16 %v6547
    %v7064 = vunpack.c.l.b16 %v6548
    %v7065 = vunpack.c.l.b16 %v6549
    %v7066 = vunpack.c.l.b16 %v6550
    %v7067 = vunpack.c.l.b16 %v6551
    %v7068 = vunpack.c.l.b16 %v6552
    %v7069 = vunpack.c.l.b16 %v6553
    %v7070 = vunpack.c.l.b16 %v6554
    %v7071 = vunpack.c.l.b16 %v6555
    %v7072 = vunpack.c.l.b16 %v6556
    %v7073 = vunpack.c.l.b16 %v6557
    %v7074 = vunpack.c.l.b16 %v6558
    %v7075 = vunpack.c.l.b16 %v6559
    %v7076 = vunpack.c.l.b16 %v6560
    %v7077 = vunpack.c.l.b16 %v6561
    %v7078 = vunpack.c.l.b16 %v6562
    %v7079 = vunpack.c.l.b16 %v6563
    %v7080 = vunpack.c.l.b16 %v6564
    %v7081 = vunpack.c.l.b16 %v6565
    %v7082 = vunpack.c.l.b16 %v6566
    %v7083 = vunpack.c.l.b16 %v6567
    %v7084 = vunpack.c.l.b16 %v6568
    %v7085 = vunpack.c.l.b16 %v6569
    %v7086 = vunpack.c.l.b16 %v6570
    %v7087 = vunpack.c.l.b16 %v6571
    %v7088 = vunpack.c.l.b16 %v6572
    %v7089 = vunpack.c.l.b16 %v6573
    %v7090 = vunpack.c.l.b16 %v6574
    %v7091 = vunpack.c.l.b16 %v6575
    %v7092 = vunpack.c.l.b16 %v6576
    %v7093 = vunpack.c.l.b16 %v6577
    %v7094 = vunpack.c.l.b16 %v6578
    %v7095 = vunpack.c.l.b16 %v6579
    %v7096 = vunpack.c.l.b16 %v6580
    %v7097 = vunpack.c.l.b16 %v6581
    %v7098 = vunpack.c.l.b16 %v6582
    %v7099 = vunpack.c.l.b16 %v6583
    %v7100 = vunpack.c.l.b16 %v6584
    %v7101 = vunpack.c.l.b16 %v6585
    %v7102 = vunpack.c.l.b16 %v6586
    %v7103 = vunpack.c.l.b16 %v6587
    %v7104 = vunpack.c.l.b16 %v6588
    %v7105 = vunpack.c.l.b16 %v6589
    %v7106 = vunpack.c.l.b16 %v6590
    %v7107 = vunpack.c.l.b16 %v6591
    %v7108 = vunpack.c.l.b16 %v6592
    %v7109 = vunpack.c.l.b16 %v6593
    %v7110 = vunpack.c.l.b16 %v6594
    %v7111 = vunpack.c.l.b16 %v6595
    %v7112 = vunpack.c.l.b16 %v6596
    %v7113 = vunpack.c.l.b16 %v6597
    %v7114 = vunpack.c.l.b16 %v6598
    %v7115 = vunpack.c.l.b16 %v6599
    %v7116 = vunpack.c.l.b16 %v6600
    %v7117 = vunpack.c.l.b16 %v6601
    %v7118 = vunpack.c.l.b16 %v6602
    %v7119 = vunpack.c.l.b16 %v6603
    %v7120 = vunpack.c.l.b16 %v6604
    %v7121 = vunpack.c.l.b16 %v6605
    %v7122 = vunpack.c.l.b16 %v6606
    %v7123 = vunpack.c.l.b16 %v6607
    %v7124 = vunpack.c.l.b16 %v6608
    %v7125 = vunpack.c.l.b16 %v6609
    %v7126 = vunpack.c.l.b16 %v6610
    %v7127 = vunpack.c.l.b16 %v6611
    %v7128 = vunpack.c.l.b16 %v6612
    %v7129 = vunpack.c.l.b16 %v6613
    %v7130 = vunpack.c.l.b16 %v6614
    %v7131 = vunpack.c.l.b16 %v6615
    %v7132 = vunpack.c.l.b16 %v6616
    %v7133 = vunpack.c.l.b16 %v6617
    %v7134 = vunpack.c.l.b16 %v6618
    %v7135 = vunpack.c.l.b16 %v6619
    %v7136 = vunpack.c.l.b16 %v6620
    %v7137 = vunpack.c.l.b16 %v6621
    %v7138 = vunpack.c.l.b16 %v6622
    %v7139 = vunpack.c.l.b16 %v6623
    %v7140 = vunpack.c.l.b16 %v6624
    %v7141 = vunpack.c.l.b16 %v6625
    %v7142 = vunpack.c.l.b16 %v6626
    %v7143 = vunpack.c.l.b16 %v6627
    %v7144 = vunpack.c.l.b16 %v6628
    %v7145 = vunpack.c.l.b16 %v6629
    %v7146 = vunpack.c.l.b16 %v6630
    %v7147 = vunpack.c.l.b16 %v6631
    %v7148 = vunpack.c.l.b16 %v6632
    %v7149 = vunpack.c.l.b16 %v6633
    %v7150 = vunpack.c.l.b16 %v6634
    %v7151 = vunpack.c.l.b16 %v6635
    %v7152 = vunpack.c.l.b16 %v6636
    %v7153 = vunpack.c.l.b16 %v6637
    %v7154 = vunpack.c.l.b16 %v6638
    %v7155 = vunpack.c.l.b16 %v6639
    %v7156 = vunpack.c.l.b16 %v6640
    %v7157 = vunpack.c.l.b16 %v6641
    %v7158 = vunpack.c.l.b16 %v6642
    %v7159 = vunpack.c.l.b16 %v6643
    %v7160 = vunpack.c.l.b16 %v6644
    %v7161 = vunpack.c.l.b16 %v6645
    %v7162 = vunpack.c.l.b16 %v6646
    %v7163 = vunpack.c.l.b16 %v6647
    %v7164 = vunpack.c.l.b16 %v6648
    %v7165 = vunpack.c.l.b16 %v6649
    %v7166 = vunpack.c.l.b16 %v6650
    %v7167 = vunpack.c.l.b16 %v6651
    %v7168 = vunpack.c.l.b16 %v6652
    %v7169 = vunpack.c.l.b16 %v6653
    %v7170 = vunpack.c.l.b16 %v6654
    %v7171 = vunpack.c.l.b16 %v6655
    %v7172 = vunpack.c.l.b16 %v6656
    %v7173 = vunpack.c.l.b16 %v6657
    %v7174 = vunpack.c.l.b16 %v6658
    %v7175 = vpack.c.b16 %v6920, %v6919
    %v7176 = vpack.c.b16 %v6922, %v6921
    %v7177 = vpack.c.b16 %v6924, %v6923
    %v7178 = vpack.c.b16 %v6926, %v6925
    %v7179 = vpack.c.b16 %v6928, %v6927
    %v7180 = vpack.c.b16 %v6930, %v6929
    %v7181 = vpack.c.b16 %v6932, %v6931
    %v7182 = vpack.c.b16 %v6934, %v6933
    %v7183 = vpack.c.b16 %v6936, %v6935
    %v7184 = vpack.c.b16 %v6938, %v6937
    %v7185 = vpack.c.b16 %v6940, %v6939
    %v7186 = vpack.c.b16 %v6942, %v6941
    %v7187 = vpack.c.b16 %v6944, %v6943
    %v7188 = vpack.c.b16 %v6946, %v6945
    %v7189 = vpack.c.b16 %v6948, %v6947
    %v7190 = vpack.c.b16 %v6950, %v6949
    %v7191 = vpack.c.b16 %v6952, %v6951
    %v7192 = vpack.c.b16 %v6954, %v6953
    %v7193 = vpack.c.b16 %v6956, %v6955
    %v7194 = vpack.c.b16 %v6958, %v6957
    %v7195 = vpack.c.b16 %v6960, %v6959
    %v7196 = vpack.c.b16 %v6962, %v6961
    %v7197 = vpack.c.b16 %v6964, %v6963
    %v7198 = vpack.c.b16 %v6966, %v6965
    %v7199 = vpack.c.b16 %v6968, %v6967
    %v7200 = vpack.c.b16 %v6970, %v6969
    %v7201 = vpack.c.b16 %v6972, %v6971
    %v7202 = vpack.c.b16 %v6974, %v6973
    %v7203 = vpack.c.b16 %v6976, %v6975
    %v7204 = vpack.c.b16 %v6978, %v6977
    %v7205 = vpack.c.b16 %v6980, %v6979
    %v7206 = vpack.c.b16 %v6982, %v6981
    %v7207 = vpack.c.b16 %v6984, %v6983
    %v7208 = vpack.c.b16 %v6986, %v6985
    %v7209 = vpack.c.b16 %v6988, %v6987
    %v7210 = vpack.c.b16 %v6990, %v6989
    %v7211 = vpack.c.b16 %v6992, %v6991
    %v7212 = vpack.c.b16 %v6994, %v6993
    %v7213 = vpack.c.b16 %v6996, %v6995
    %v7214 = vpack.c.b16 %v6998, %v6997
    %v7215 = vpack.c.b16 %v7000, %v6999
    %v7216 = vpack.c.b16 %v7002, %v7001
    %v7217 = vpack.c.b16 %v7004, %v7003
    %v7218 = vpack.c.b16 %v7006, %v7005
    %v7219 = vpack.c.b16 %v7008, %v7007
    %v7220 = vpack.c.b16 %v7010, %v7009
    %v7221 = vpack.c.b16 %v7012, %v7011
    %v7222 = vpack.c.b16 %v7014, %v7013
    %v7223 = vpack.c.b16 %v7016, %v7015
    %v7224 = vpack.c.b16 %v7018, %v7017
    %v7225 = vpack.c.b16 %v7020, %v7019
    %v7226 = vpack.c.b16 %v7022, %v7021
    %v7227 = vpack.c.b16 %v7024, %v7023
    %v7228 = vpack.c.b16 %v7026, %v7025
    %v7229 = vpack.c.b16 %v7028, %v7027
    %v7230 = vpack.c.b16 %v7030, %v7029
    %v7231 = vpack.c.b16 %v7032, %v7031
    %v7232 = vpack.c.b16 %v7034, %v7033
    %v7233 = vpack.c.b16 %v7036, %v7035
    %v7234 = vpack.c.b16 %v7038, %v7037
    %v7235 = vpack.c.b16 %v7040, %v7039
    %v7236 = vpack.c.b16 %v7042, %v7041
    %v7237 = vpack.c.b16 %v7044, %v7043
    %v7238 = vpack.c.b16 %v7046, %v7045
    %v7239 = vpack.c.b16 %v7048, %v7047
    %v7240 = vpack.c.b16 %v7050, %v7049
    %v7241 = vpack.c.b16 %v7052, %v7051
    %v7242 = vpack.c.b16 %v7054, %v7053
    %v7243 = vpack.c.b16 %v7056, %v7055
    %v7244 = vpack.c.b16 %v7058, %v7057
    %v7245 = vpack.c.b16 %v7060, %v7059
    %v7246 = vpack.c.b16 %v7062, %v7061
    %v7247 = vpack.c.b16 %v7064, %v7063
    %v7248 = vpack.c.b16 %v7066, %v7065
    %v7249 = vpack.c.b16 %v7068, %v7067
    %v7250 = vpack.c.b16 %v7070, %v7069
    %v7251 = vpack.c.b16 %v7072, %v7071
    %v7252 = vpack.c.b16 %v7074, %v7073
    %v7253 = vpack.c.b16 %v7076, %v7075
    %v7254 = vpack.c.b16 %v7078, %v7077
    %v7255 = vpack.c.b16 %v7080, %v7079
    %v7256 = vpack.c.b16 %v7082, %v7081
    %v7257 = vpack.c.b16 %v7084, %v7083
    %v7258 = vpack.c.b16 %v7086, %v7085
    %v7259 = vpack.c.b16 %v7088, %v7087
    %v7260 = vpack.c.b16 %v7090, %v7089
    %v7261 = vpack.c.b16 %v7092, %v7091
    %v7262 = vpack.c.b16 %v7094, %v7093
    %v7263 = vpack.c.b16 %v7096, %v7095
    %v7264 = vpack.c.b16 %v7098, %v7097
    %v7265 = vpack.c.b16 %v7100, %v7099
    %v7266 = vpack.c.b16 %v7102, %v7101
    %v7267 = vpack.c.b16 %v7104, %v7103
    %v7268 = vpack.c.b16 %v7106, %v7105
    %v7269 = vpack.c.b16 %v7108, %v7107
    %v7270 = vpack.c.b16 %v7110, %v7109
    %v7271 = vpack.c.b16 %v7112, %v7111
    %v7272 = vpack.c.b16 %v7114, %v7113
    %v7273 = vpack.c.b16 %v7116, %v7115
    %v7274 = vpack.c.b16 %v7118, %v7117
    %v7275 = vpack.c.b16 %v7120, %v7119
    %v7276 = vpack.c.b16 %v7122, %v7121
    %v7277 = vpack.c.b16 %v7124, %v7123
    %v7278 = vpack.c.b16 %v7126, %v7125
    %v7279 = vpack.c.b16 %v7128, %v7127
    %v7280 = vpack.c.b16 %v7130, %v7129
    %v7281 = vpack.c.b16 %v7132, %v7131
    %v7282 = vpack.c.b16 %v7134, %v7133
    %v7283 = vpack.c.b16 %v7136, %v7135
    %v7284 = vpack.c.b16 %v7138, %v7137
    %v7285 = vpack.c.b16 %v7140, %v7139
    %v7286 = vpack.c.b16 %v7142, %v7141
    %v7287 = vpack.c.b16 %v7144, %v7143
    %v7288 = vpack.c.b16 %v7146, %v7145
    %v7289 = vpack.c.b16 %v7148, %v7147
    %v7290 = vpack.c.b16 %v7150, %v7149
    %v7291 = vpack.c.b16 %v7152, %v7151
    %v7292 = vpack.c.b16 %v7154, %v7153
    %v7293 = vpack.c.b16 %v7156, %v7155
    %v7294 = vpack.c.b16 %v7158, %v7157
    %v7295 = vpack.c.b16 %v7160, %v7159
    %v7296 = vpack.c.b16 %v7162, %v7161
    %v7297 = vpack.c.b16 %v7164, %v7163
    %v7298 = vpack.c.b16 %v7166, %v7165
    %v7299 = vpack.c.b16 %v7168, %v7167
    %v7300 = vpack.c.b16 %v7170, %v7169
    %v7301 = vpack.c.b16 %v7172, %v7171
    %v7302 = vpack.c.b16 %v7174, %v7173
    %7431 = vmatpush.bf16.msra.mxu0 %v7182
    %7432 = vmatpush.bf16.msra.mxu0 %v7181
    %7433 = vmatpush.bf16.msra.mxu0 %v7180
    %7434 = vmatpush.bf16.msra.mxu0 %v7179
    %7435 = vmatpush.bf16.msra.mxu0 %v7178
    %7436 = vmatpush.bf16.msra.mxu0 %v7177
    %7437 = vmatpush.bf16.msra.mxu0 %v7176
    %7438 = vmatpush.bf16.msra.mxu0 %v7175
    %7439 = vmatmul.bf16.gmra.mxu0 %v6387
    %v7440 = vpop.f32.mrf.mxu0
    %v7441 = vadd.f32 %v6661, %v7440
    %v7442 = vpop.f32.mrf.mxu0
    %7443 = vdwg.mxu0
    %7444 = vmatpush.bf16.msra.mxu0 %v7190
    %7445 = vmatpush.bf16.msra.mxu0 %v7189
    %7446 = vmatpush.bf16.msra.mxu0 %v7188
    %7447 = vmatpush.bf16.msra.mxu0 %v7187
    %7448 = vmatpush.bf16.msra.mxu0 %v7186
    %7449 = vmatpush.bf16.msra.mxu0 %v7185
    %7450 = vmatpush.bf16.msra.mxu0 %v7184
    %7451 = vmatpush.bf16.msra.mxu0 %v7183
    %7452 = vmatmul.bf16.gmra.mxu0 %v6388
    %v7453 = vpop.f32.mrf.mxu0
    %v7454 = vadd.f32 %v7441, %v7453
    %v7455 = vpop.f32.mrf.mxu0
    %7456 = vdwg.mxu0
    %7457 = vmatpush.bf16.msra.mxu0 %v7198
    %7458 = vmatpush.bf16.msra.mxu0 %v7197
    %7459 = vmatpush.bf16.msra.mxu0 %v7196
    %7460 = vmatpush.bf16.msra.mxu0 %v7195
    %7461 = vmatpush.bf16.msra.mxu0 %v7194
    %7462 = vmatpush.bf16.msra.mxu0 %v7193
    %7463 = vmatpush.bf16.msra.mxu0 %v7192
    %7464 = vmatpush.bf16.msra.mxu0 %v7191
    %7465 = vmatmul.bf16.gmra.mxu0 %v6389
    %v7466 = vpop.f32.mrf.mxu0
    %v7467 = vadd.f32 %v7454, %v7466
    %v7468 = vpop.f32.mrf.mxu0
    %7469 = vdwg.mxu0
    %7470 = vmatpush.bf16.msra.mxu0 %v7206
    %7471 = vmatpush.bf16.msra.mxu0 %v7205
    %7472 = vmatpush.bf16.msra.mxu0 %v7204
    %7473 = vmatpush.bf16.msra.mxu0 %v7203
    %7474 = vmatpush.bf16.msra.mxu0 %v7202
    %7475 = vmatpush.bf16.msra.mxu0 %v7201
    %7476 = vmatpush.bf16.msra.mxu0 %v7200
    %7477 = vmatpush.bf16.msra.mxu0 %v7199
    %7478 = vmatmul.bf16.gmra.mxu0 %v6390
    %v7479 = vpop.f32.mrf.mxu0
    %v7480 = vadd.f32 %v7467, %v7479
    %v7481 = vpop.f32.mrf.mxu0
    %7482 = vdwg.mxu0
    %7483 = vmatpush.bf16.msra.mxu0 %v7214
    %7484 = vmatpush.bf16.msra.mxu0 %v7213
    %7485 = vmatpush.bf16.msra.mxu0 %v7212
    %7486 = vmatpush.bf16.msra.mxu0 %v7211
    %7487 = vmatpush.bf16.msra.mxu0 %v7210
    %7488 = vmatpush.bf16.msra.mxu0 %v7209
    %7489 = vmatpush.bf16.msra.mxu0 %v7208
    %7490 = vmatpush.bf16.msra.mxu0 %v7207
    %7491 = vmatmul.bf16.gmra.mxu0 %v6391
    %v7492 = vpop.f32.mrf.mxu0
    %v7493 = vadd.f32 %v7480, %v7492
    %v7494 = vpop.f32.mrf.mxu0
    %7495 = vdwg.mxu0
    %7496 = vmatpush.bf16.msra.mxu0 %v7222
    %7497 = vmatpush.bf16.msra.mxu0 %v7221
    %7498 = vmatpush.bf16.msra.mxu0 %v7220
    %7499 = vmatpush.bf16.msra.mxu0 %v7219
    %7500 = vmatpush.bf16.msra.mxu0 %v7218
    %7501 = vmatpush.bf16.msra.mxu0 %v7217
    %7502 = vmatpush.bf16.msra.mxu0 %v7216
    %7503 = vmatpush.bf16.msra.mxu0 %v7215
    %7504 = vmatmul.bf16.gmra.mxu0 %v6392
    %v7505 = vpop.f32.mrf.mxu0
    %v7506 = vadd.f32 %v7493, %v7505
    %v7507 = vpop.f32.mrf.mxu0
    %7508 = vdwg.mxu0
    %7509 = vmatpush.bf16.msra.mxu0 %v7230
    %7510 = vmatpush.bf16.msra.mxu0 %v7229
    %7511 = vmatpush.bf16.msra.mxu0 %v7228
    %7512 = vmatpush.bf16.msra.mxu0 %v7227
    %7513 = vmatpush.bf16.msra.mxu0 %v7226
    %7514 = vmatpush.bf16.msra.mxu0 %v7225
    %7515 = vmatpush.bf16.msra.mxu0 %v7224
    %7516 = vmatpush.bf16.msra.mxu0 %v7223
    %7517 = vmatmul.bf16.gmra.mxu0 %v6393
    %v7518 = vpop.f32.mrf.mxu0
    %v7519 = vadd.f32 %v7506, %v7518
    %v7520 = vpop.f32.mrf.mxu0
    %7521 = vdwg.mxu0
    %7522 = vmatpush.bf16.msra.mxu0 %v7238
    %7523 = vmatpush.bf16.msra.mxu0 %v7237
    %7524 = vmatpush.bf16.msra.mxu0 %v7236
    %7525 = vmatpush.bf16.msra.mxu0 %v7235
    %7526 = vmatpush.bf16.msra.mxu0 %v7234
    %7527 = vmatpush.bf16.msra.mxu0 %v7233
    %7528 = vmatpush.bf16.msra.mxu0 %v7232
    %7529 = vmatpush.bf16.msra.mxu0 %v7231
    %7530 = vmatmul.bf16.gmra.mxu0 %v6394
    %v7531 = vpop.f32.mrf.mxu0
    %v7532 = vadd.f32 %v7519, %v7531
    %v7533 = vpop.f32.mrf.mxu0
    %7534 = vdwg.mxu0
    %7535 = vmatpush.bf16.msra.mxu0 %v7246
    %7536 = vmatpush.bf16.msra.mxu0 %v7245
    %7537 = vmatpush.bf16.msra.mxu0 %v7244
    %7538 = vmatpush.bf16.msra.mxu0 %v7243
    %7539 = vmatpush.bf16.msra.mxu0 %v7242
    %7540 = vmatpush.bf16.msra.mxu0 %v7241
    %7541 = vmatpush.bf16.msra.mxu0 %v7240
    %7542 = vmatpush.bf16.msra.mxu0 %v7239
    %7543 = vmatmul.bf16.gmra.mxu0 %v6395
    %v7544 = vpop.f32.mrf.mxu0
    %v7545 = vadd.f32 %v7532, %v7544
    %v7546 = vpop.f32.mrf.mxu0
    %7547 = vdwg.mxu0
    %7548 = vmatpush.bf16.msra.mxu0 %v7254
    %7549 = vmatpush.bf16.msra.mxu0 %v7253
    %7550 = vmatpush.bf16.msra.mxu0 %v7252
    %7551 = vmatpush.bf16.msra.mxu0 %v7251
    %7552 = vmatpush.bf16.msra.mxu0 %v7250
    %7553 = vmatpush.bf16.msra.mxu0 %v7249
    %7554 = vmatpush.bf16.msra.mxu0 %v7248
    %7555 = vmatpush.bf16.msra.mxu0 %v7247
    %7556 = vmatmul.bf16.gmra.mxu0 %v6396
    %v7557 = vpop.f32.mrf.mxu0
    %v7558 = vadd.f32 %v7545, %v7557
    %v7559 = vpop.f32.mrf.mxu0
    %7560 = vdwg.mxu0
    %7561 = vmatpush.bf16.msra.mxu0 %v7262
    %7562 = vmatpush.bf16.msra.mxu0 %v7261
    %7563 = vmatpush.bf16.msra.mxu0 %v7260
    %7564 = vmatpush.bf16.msra.mxu0 %v7259
    %7565 = vmatpush.bf16.msra.mxu0 %v7258
    %7566 = vmatpush.bf16.msra.mxu0 %v7257
    %7567 = vmatpush.bf16.msra.mxu0 %v7256
    %7568 = vmatpush.bf16.msra.mxu0 %v7255
    %7569 = vmatmul.bf16.gmra.mxu0 %v6397
    %v7570 = vpop.f32.mrf.mxu0
    %v7571 = vadd.f32 %v7558, %v7570
    %v7572 = vpop.f32.mrf.mxu0
    %7573 = vdwg.mxu0
    %7574 = vmatpush.bf16.msra.mxu0 %v7270
    %7575 = vmatpush.bf16.msra.mxu0 %v7269
    %7576 = vmatpush.bf16.msra.mxu0 %v7268
    %7577 = vmatpush.bf16.msra.mxu0 %v7267
    %7578 = vmatpush.bf16.msra.mxu0 %v7266
    %7579 = vmatpush.bf16.msra.mxu0 %v7265
    %7580 = vmatpush.bf16.msra.mxu0 %v7264
    %7581 = vmatpush.bf16.msra.mxu0 %v7263
    %7582 = vmatmul.bf16.gmra.mxu0 %v6398
    %v7583 = vpop.f32.mrf.mxu0
    %v7584 = vadd.f32 %v7571, %v7583
    %v7585 = vpop.f32.mrf.mxu0
    %7586 = vdwg.mxu0
    %7587 = vmatpush.bf16.msra.mxu0 %v7278
    %7588 = vmatpush.bf16.msra.mxu0 %v7277
    %7589 = vmatpush.bf16.msra.mxu0 %v7276
    %7590 = vmatpush.bf16.msra.mxu0 %v7275
    %7591 = vmatpush.bf16.msra.mxu0 %v7274
    %7592 = vmatpush.bf16.msra.mxu0 %v7273
    %7593 = vmatpush.bf16.msra.mxu0 %v7272
    %7594 = vmatpush.bf16.msra.mxu0 %v7271
    %7595 = vmatmul.bf16.gmra.mxu0 %v6399
    %v7596 = vpop.f32.mrf.mxu0
    %v7597 = vadd.f32 %v7584, %v7596
    %v7598 = vpop.f32.mrf.mxu0
    %7599 = vdwg.mxu0
    %7600 = vmatpush.bf16.msra.mxu0 %v7286
    %7601 = vmatpush.bf16.msra.mxu0 %v7285
    %7602 = vmatpush.bf16.msra.mxu0 %v7284
    %7603 = vmatpush.bf16.msra.mxu0 %v7283
    %7604 = vmatpush.bf16.msra.mxu0 %v7282
    %7605 = vmatpush.bf16.msra.mxu0 %v7281
    %7606 = vmatpush.bf16.msra.mxu0 %v7280
    %7607 = vmatpush.bf16.msra.mxu0 %v7279
    %7608 = vmatmul.bf16.gmra.mxu0 %v6400
    %v7609 = vpop.f32.mrf.mxu0
    %v7610 = vadd.f32 %v7597, %v7609
    %v7611 = vpop.f32.mrf.mxu0
    %7612 = vdwg.mxu0
    %7613 = vmatpush.bf16.msra.mxu0 %v7294
    %7614 = vmatpush.bf16.msra.mxu0 %v7293
    %7615 = vmatpush.bf16.msra.mxu0 %v7292
    %7616 = vmatpush.bf16.msra.mxu0 %v7291
    %7617 = vmatpush.bf16.msra.mxu0 %v7290
    %7618 = vmatpush.bf16.msra.mxu0 %v7289
    %7619 = vmatpush.bf16.msra.mxu0 %v7288
    %7620 = vmatpush.bf16.msra.mxu0 %v7287
    %7621 = vmatmul.bf16.gmra.mxu0 %v6401
    %v7622 = vpop.f32.mrf.mxu0
    %v7623 = vadd.f32 %v7610, %v7622
    %v7624 = vpop.f32.mrf.mxu0
    %7625 = vdwg.mxu0
    %7626 = vmatpush.bf16.msra.mxu0 %v7302
    %7627 = vmatpush.bf16.msra.mxu0 %v7301
    %7628 = vmatpush.bf16.msra.mxu0 %v7300
    %7629 = vmatpush.bf16.msra.mxu0 %v7299
    %7630 = vmatpush.bf16.msra.mxu0 %v7298
    %7631 = vmatpush.bf16.msra.mxu0 %v7297
    %7632 = vmatpush.bf16.msra.mxu0 %v7296
    %7633 = vmatpush.bf16.msra.mxu0 %v7295
    %7634 = vmatmul.bf16.gmra.mxu0 %v6402
    %v7635 = vpop.f32.mrf.mxu0
    %v7636 = vadd.f32 %v7623, %v7635
    %v7637 = vpop.f32.mrf.mxu0
    %7638 = vdwg.mxu0
    %v7639 = vsub.f32 0.0, %v7636
    %v7640 = vmul.f32 %v7639, 1.442695
    %v7641 = vpow.pop %v7640
    %v7642 = vadd.f32 %v7641, 1.0
    %v7643 = vrcp.pop %v7642
    %v7644 = vpack.c.bf16 %v7643, %v7643
    %v7645 = vld [vmem:[%s7] sm:$0xf]
    %v7646 = vld [vmem:[%s7 + $0x4] sm:$0xf]
    %v7647 = vld [vmem:[%s7 + $0x8] sm:$0xf]
    %v7648 = vld [vmem:[%s7 + $0xc] sm:$0xf]
    %v7649 = vld [vmem:[%s7 + $0x10] sm:$0xf]
    %v7650 = vld [vmem:[%s7 + $0x14] sm:$0xf]
    %v7651 = vld [vmem:[%s7 + $0x18] sm:$0xf]
    %v7652 = vld [vmem:[%s7 + $0x1c] sm:$0xf]
    %v7653 = vld [vmem:[%s7 + $0x20] sm:$0xf]
    %v7654 = vld [vmem:[%s7 + $0x24] sm:$0xf]
    %v7655 = vld [vmem:[%s7 + $0x28] sm:$0xf]
    %v7656 = vld [vmem:[%s7 + $0x2c] sm:$0xf]
    %v7657 = vld [vmem:[%s7 + $0x30] sm:$0xf]
    %v7658 = vld [vmem:[%s7 + $0x34] sm:$0xf]
    %v7659 = vld [vmem:[%s7 + $0x38] sm:$0xf]
    %v7660 = vld [vmem:[%s7 + $0x3c] sm:$0xf]
    %v7661 = vld [vmem:[%s8] sm:$0x1]
    %v7663 = vperm.slane %v7661, 0
    %v7681 = vunpack.c.l.b16 %v7645
    %v7682 = vunpack.c.l.b16 %v7646
    %v7683 = vunpack.c.l.b16 %v7647
    %v7684 = vunpack.c.l.b16 %v7648
    %v7685 = vunpack.c.l.b16 %v7649
    %v7686 = vunpack.c.l.b16 %v7650
    %v7687 = vunpack.c.l.b16 %v7651
    %v7688 = vunpack.c.l.b16 %v7652
    %v7689 = vunpack.c.l.b16 %v7653
    %v7690 = vunpack.c.l.b16 %v7654
    %v7691 = vunpack.c.l.b16 %v7655
    %v7692 = vunpack.c.l.b16 %v7656
    %v7693 = vunpack.c.l.b16 %v7657
    %v7694 = vunpack.c.l.b16 %v7658
    %v7695 = vunpack.c.l.b16 %v7659
    %v7696 = vunpack.c.l.b16 %v7660
    %v7697 = vpack.c.b16 %v7682, %v7681
    %v7698 = vpack.c.b16 %v7684, %v7683
    %v7699 = vpack.c.b16 %v7686, %v7685
    %v7700 = vpack.c.b16 %v7688, %v7687
    %v7701 = vpack.c.b16 %v7690, %v7689
    %v7702 = vpack.c.b16 %v7692, %v7691
    %v7703 = vpack.c.b16 %v7694, %v7693
    %v7704 = vpack.c.b16 %v7696, %v7695
    %7713 = vmatpush.bf16.msra.mxu0 %v7704
    %7714 = vmatpush.bf16.msra.mxu0 %v7703
    %7715 = vmatpush.bf16.msra.mxu0 %v7702
    %7716 = vmatpush.bf16.msra.mxu0 %v7701
    %7717 = vmatpush.bf16.msra.mxu0 %v7700
    %7718 = vmatpush.bf16.msra.mxu0 %v7699
    %7719 = vmatpush.bf16.msra.mxu0 %v7698
    %7720 = vmatpush.bf16.msra.mxu0 %v7697
    %7721 = vmatmul.bf16.gmra.mxu0 %v7644
    %v7722 = vpop.f32.mrf.mxu0
    %v7723 = vadd.f32 %v7663, %v7722
    %v7724 = vpop.f32.mrf.mxu0
    %7725 = vdwg.mxu0
    %v7726 = vsub.f32 0.0, %v7723
    %v7727 = vmul.f32 %v7726, 1.442695
    %v7728 = vpow.pop %v7727
    %v7729 = vadd.f32 %v7728, 1.0
    %v7730 = vrcp.pop %v7729
    %v7731 = vpack.c.bf16 %v7730, %v7730
    %v7732 = vld [vmem:[%s9] sm:$0xf]
    %v7733 = vld [vmem:[%s9 + $0x4] sm:$0xf]
    %v7734 = vld [vmem:[%s9 + $0x8] sm:$0xf]
    %v7735 = vld [vmem:[%s9 + $0xc] sm:$0xf]
    %v7736 = vld [vmem:[%s9 + $0x10] sm:$0xf]
    %v7737 = vld [vmem:[%s9 + $0x14] sm:$0xf]
    %v7738 = vld [vmem:[%s9 + $0x18] sm:$0xf]
    %v7739 = vld [vmem:[%s9 + $0x1c] sm:$0xf]
    %v7740 = vld [vmem:[%s9 + $0x20] sm:$0xf]
    %v7741 = vld [vmem:[%s9 + $0x24] sm:$0xf]
    %v7742 = vld [vmem:[%s9 + $0x28] sm:$0xf]
    %v7743 = vld [vmem:[%s9 + $0x2c] sm:$0xf]
    %v7744 = vld [vmem:[%s9 + $0x30] sm:$0xf]
    %v7745 = vld [vmem:[%s9 + $0x34] sm:$0xf]
    %v7746 = vld [vmem:[%s9 + $0x38] sm:$0xf]
    %v7747 = vld [vmem:[%s9 + $0x3c] sm:$0xf]
    %v7748 = vld [vmem:[%s10] sm:$0x1]
    %v7750 = vperm.slane %v7748, 0
    %v7768 = vunpack.c.l.b16 %v7732
    %v7769 = vunpack.c.l.b16 %v7733
    %v7770 = vunpack.c.l.b16 %v7734
    %v7771 = vunpack.c.l.b16 %v7735
    %v7772 = vunpack.c.l.b16 %v7736
    %v7773 = vunpack.c.l.b16 %v7737
    %v7774 = vunpack.c.l.b16 %v7738
    %v7775 = vunpack.c.l.b16 %v7739
    %v7776 = vunpack.c.l.b16 %v7740
    %v7777 = vunpack.c.l.b16 %v7741
    %v7778 = vunpack.c.l.b16 %v7742
    %v7779 = vunpack.c.l.b16 %v7743
    %v7780 = vunpack.c.l.b16 %v7744
    %v7781 = vunpack.c.l.b16 %v7745
    %v7782 = vunpack.c.l.b16 %v7746
    %v7783 = vunpack.c.l.b16 %v7747
    %v7784 = vpack.c.b16 %v7769, %v7768
    %v7785 = vpack.c.b16 %v7771, %v7770
    %v7786 = vpack.c.b16 %v7773, %v7772
    %v7787 = vpack.c.b16 %v7775, %v7774
    %v7788 = vpack.c.b16 %v7777, %v7776
    %v7789 = vpack.c.b16 %v7779, %v7778
    %v7790 = vpack.c.b16 %v7781, %v7780
    %v7791 = vpack.c.b16 %v7783, %v7782
    %7800 = vmatpush.bf16.msra.mxu0 %v7791
    %7801 = vmatpush.bf16.msra.mxu0 %v7790
    %7802 = vmatpush.bf16.msra.mxu0 %v7789
    %7803 = vmatpush.bf16.msra.mxu0 %v7788
    %7804 = vmatpush.bf16.msra.mxu0 %v7787
    %7805 = vmatpush.bf16.msra.mxu0 %v7786
    %7806 = vmatpush.bf16.msra.mxu0 %v7785
    %7807 = vmatpush.bf16.msra.mxu0 %v7784
    %7808 = vmatmul.bf16.gmra.mxu0 %v7731
    %v7809 = vpop.f32.mrf.mxu0
    %v7810 = vadd.f32 %v7750, %v7809
    %v7811 = vpop.f32.mrf.mxu0
    %7812 = vdwg.mxu0
    %7813 = vst [vmem:[#allocation5] sm:$0x3] %v7810
    // Predicated region
    $region50: #{lenet_forward.1} parent=1 // pred_check
      _
    $region51: #{lenet_forward.1} parent=1 // pred_check_branch
      %7815 = sbr.rel (0) target = $region53
    $region52: #{lenet_forward.1} parent=1 // pred_region
      %7817 = vsyncadd [#allocation6], 0
      %s7819 = sshll.u32 [#allocation5], 4
      %s7820 = int_to_ptr.vmem [resolvable:$true] %s7819
      %s7821 = sshll.u32 %s11, 4
      %s7822 = int_to_ptr.hbm [resolvable:$true] %s7821
      %7824 = dma.vmem_to_hbm [thread:$0]  %s7820, 32, %s7822, [#allocation6]
    $region53: #{lenet_forward.1} parent=1 // pred_fallthru
      _
    // Predicated region
    $region54: #{lenet_forward.1} parent=1 // pred_check
      _
    $region55: #{lenet_forward.1} parent=1 // pred_check_branch
      %7826 = sbr.rel (0) target = $region57
    $region56: #{lenet_forward.1} parent=1 // pred_region
      %7828 = dma.done [#allocation6], 32
    $region57: #{lenet_forward.1} parent=1 // pred_fallthru
      _
    %7829 = vsyncpa [#allocation6], 1

</llo_original>
